<compile_context>
chip_gen: v7x
topology: tpu7x:2x2x1
jax: 0.10.0
libtpu: 0.0.40
codegen_flags: <defaults>
</compile_context>

<pallas_src>
import functools
import math

import numpy as np

import jax
import jax.numpy as jnp
from jax.experimental import pallas as pl
from jax.experimental.pallas import tpu as pltpu


def _round_up(x, m):
  return ((x + m - 1) // m) * m


# ----------------------------- fused Pallas kernel -----------------------------

def _fused_forward_kernel(
    x_ref,
    cw_ref, cb_ref,
    ln1_g_ref, ln1_b_ref,
    d1w_ref, d1b_ref,
    wqkv_ref, bqkv_ref,
    wo_ref, bo_ref,
    lna_g_ref, lna_b_ref,
    f1w_ref, f1b_ref, f2w_ref, f2b_ref,
    lnb_g_ref, lnb_b_ref,
    ow_ref, ob_ref,
    kbias_ref,
    o_ref,
    *, nhead, num_layers, hd_pad, inv_n_conv, inv_n_att, eps):
  """Whole model forward: fused conv matmul, LN, dense1, 4 post-norm encoder
  layers (relu FFN, eval-mode dropout), output projection."""

  def layernorm(x, g, b, inv_n):
    # Padding lanes are exactly zero, so plain sums equal sums over the real
    # features; E[x^2] - mu^2 keeps the variance correct without lane masks.
    s1 = jnp.sum(x, axis=-1, keepdims=True)
    s2 = jnp.sum(x * x, axis=-1, keepdims=True)
    mu = s1 * inv_n
    var = jnp.maximum(s2 * inv_n - mu * mu, 0.0)
    return (x - mu) * jax.lax.rsqrt(var + eps) * g + b

  x = x_ref[...]                                                   # (B_pad, L)

  # conv branches (both stages + pos-enc) collapsed host-side -> one matmul.
  conv = jnp.dot(x, cw_ref[...], preferred_element_type=jnp.float32) + cb_ref[...]

  # layer_norm1 + dense1 + relu
  z = layernorm(conv, ln1_g_ref[...], ln1_b_ref[...], inv_n_conv)
  z = jnp.dot(z, d1w_ref[...], preferred_element_type=jnp.float32) + d1b_ref[...]
  z = jnp.maximum(z, 0.0)                                          # (B_pad, a_pad)

  kbias = kbias_ref[...]                                           # (1, B_pad)
  k_off = nhead * hd_pad
  v_off = 2 * nhead * hd_pad

  for l in range(num_layers):
    # one fused QKV matmul per layer; 1/sqrt(hd) already folded into Wq/bq.
    qkv = jnp.dot(z, wqkv_ref[l], preferred_element_type=jnp.float32) + bqkv_ref[l]

    heads = []
    for h in range(nhead):                    # 128-aligned static slices
      qh = qkv[:, h * hd_pad:(h + 1) * hd_pad]
      kh = qkv[:, k_off + h * hd_pad:k_off + (h + 1) * hd_pad]
      vh = qkv[:, v_off + h * hd_pad:v_off + (h + 1) * hd_pad]
      s = jax.lax.dot_general(qh, kh, (((1,), (1,)), ((), ())),
                              preferred_element_type=jnp.float32)  # (B_pad, B_pad)
      s = s + kbias                           # mask padded batch rows (keys)
      s = s - jnp.max(s, axis=-1, keepdims=True)
      p = jnp.exp(s)
      p = p * pl.reciprocal(jnp.sum(p, axis=-1, keepdims=True), approx=True)
      heads.append(jnp.dot(p, vh, preferred_element_type=jnp.float32))
    attn = jnp.concatenate(heads, axis=-1)    # (B_pad, nhead*hd_pad)

    # single out-projection matmul (no per-head accumulates)
    sa = jnp.dot(attn, wo_ref[l], preferred_element_type=jnp.float32) + bo_ref[l]
    z = layernorm(z + sa, lna_g_ref[l], lna_b_ref[l], inv_n_att)

    ff = jnp.dot(z, f1w_ref[l], preferred_element_type=jnp.float32) + f1b_ref[l]
    ff = jnp.maximum(ff, 0.0)
    ff = jnp.dot(ff, f2w_ref[l], preferred_element_type=jnp.float32) + f2b_ref[l]
    z = layernorm(z + ff, lnb_g_ref[l], lnb_b_ref[l], inv_n_att)

  o_ref[...] = jnp.dot(z, ow_ref[...], preferred_element_type=jnp.float32) + ob_ref[...]


# ----------------------------- pallas_call glue -----------------------------

def _fused_forward(params, x_pad, *, nhead, num_layers, hd_pad,
                   inv_n_conv, inv_n_att, eps=1e-5):
  args = [
      x_pad,
      params["conv_w"], params["conv_b"],
      params["ln1_g"], params["ln1_b"],
      params["dense1_w"], params["dense1_b"],
      params["wqkv"], params["bqkv"],
      params["wo"], params["bo"],
      params["lna_g"], params["lna_b"],
      params["ffn_w1"], params["ffn_b1"], params["ffn_w2"], params["ffn_b2"],
      params["lnb_g"], params["lnb_b"],
      params["out_w"], params["out_b"],
      params["attn_kbias"],
  ]
  B_pad = x_pad.shape[0]
  label_pad = params["out_w"].shape[1]
  out_shape = (B_pad, label_pad)

  # No grid: every operand is mapped whole into VMEM.
  in_specs = [pl.BlockSpec(a.shape, lambda *_, n=a.ndim: (0,) * n) for a in args]
  out_spec = pl.BlockSpec(out_shape, lambda *_: (0, 0))

  # VMEM limit tracks the actual operand footprint (x2 for Pallas buffering),
  # capped below v7x's 64 MiB physical VMEM.
  op_bytes = sum(int(np.prod(a.shape)) * a.dtype.itemsize for a in args)
  op_bytes += int(np.prod(out_shape)) * 4
  vmem_limit = int(min(max(2 * op_bytes + (8 << 20), 32 << 20), 56 << 20))

  kernel = functools.partial(
      _fused_forward_kernel, nhead=nhead, num_layers=num_layers, hd_pad=hd_pad,
      inv_n_conv=inv_n_conv, inv_n_att=inv_n_att, eps=eps)
  return pl.pallas_call(
      kernel,
      out_shape=jax.ShapeDtypeStruct(out_shape, jnp.float32),
      in_specs=in_specs,
      out_specs=out_spec,
      compiler_params=pltpu.CompilerParams(vmem_limit_bytes=vmem_limit),
  )(*args)


def make_model_forward(meta):
  nhead = meta["nhead"]
  num_layers = meta["num_layers"]
  hd_pad = meta["hd_pad"]
  B = meta["batch_size"]
  B_pad = meta["batch_pad"]
  label_len = meta["label_len"]
  inv_n_conv = 1.0 / float(meta["input_size"])
  inv_n_att = 1.0 / float(meta["attention_size"])

  @jax.jit
  def model_forward(params, inputs, _x=None, y=None, _y=None):
    x_flat = inputs.reshape(inputs.shape[0], -1).astype(jnp.float32)  # == .view(B,1,-1)
    # Pad batch (= attention sequence) axis to 8 sublanes; padded rows are
    # masked out of attention via attn_kbias and sliced off below.
    x_pad = jnp.zeros((B_pad, x_flat.shape[1]), jnp.float32).at[:B].set(x_flat)
    out = _fused_forward(params, x_pad, nhead=nhead, num_layers=num_layers,
                         hd_pad=hd_pad, inv_n_conv=inv_n_conv, inv_n_att=inv_n_att)
    return out[:B, :label_len].reshape(B, 1, label_len)

  return model_forward


# -------------------------- parameter construction --------------------------

def conv1d_as_matmul(w, b, l_in, dilation, stride):
  """Express a Conv1d(C_in=1) as a dense banded matmul: out_flat = x @ Wm + bv.
  Output flattening matches torch's .view(B, 1, -1): index = f * L_out + t."""
  c_out, _, k = w.shape
  l_out = (l_in - dilation * (k - 1) - 1) // stride + 1
  wm = np.zeros((l_in, c_out, l_out), dtype=np.float32)
  t = np.arange(l_out)
  for f in range(c_out):
    for j in range(k):
      wm[t * stride + j * dilation, f, t] = w[f, 0, j]
  wm = wm.reshape(l_in, c_out * l_out)
  bv = np.repeat(np.asarray(b, np.float32), l_out).reshape(1, c_out * l_out)
  return wm, bv, l_out


def init_params(key, cfg):
  B = cfg["batch_size"]
  L = cfg["enc_in"] * cfg["seq_len"]
  k = cfg["kernel_size"]
  nf = cfg["num_kernels"]
  label_len = cfg["label_len"]
  num_layers = 4
  nhead = 3
  dim_ff = 512

  keys = iter(jax.random.split(key, 96))

  def rnd(shape, scale=0.05):
    return np.asarray(scale * jax.random.normal(next(keys), shape, dtype=jnp.float32))

  # --- conv branches (dilation 1, 2, 3), each followed by stride-2 conv.
  # No nonlinearity between the two conv stages, so each branch's banded
  # matmul pair is collapsed host-side into one (L, l2) matrix; stage biases
  # and positional-encoding row 0 are folded into a single bias vector.
  w_blocks, b_blocks = [], []
  for d in (1, 2, 3):
    w1 = rnd((nf, 1, k)); b1 = rnd((nf,))
    w2 = rnd((1, 1, k)); b2 = rnd((1,))
    w1m, b1v, l1 = conv1d_as_matmul(w1, b1, L, dilation=d, stride=1)
    w2m, b2v, l2 = conv1d_as_matmul(w2, b2, nf * l1, dilation=1, stride=2)
    pe = (np.arange(l2) % 2).astype(np.float32).reshape(1, l2)  # sin(0)=0 / cos(0)=1
    w_blocks.append(w1m @ w2m)                # (L, l2)
    b_blocks.append(b1v @ w2m + b2v + pe)     # (1, l2)

  conv_w = np.concatenate(w_blocks, axis=1)   # (L, input_size)
  conv_b = np.concatenate(b_blocks, axis=1)   # (1, input_size)
  input_size = conv_w.shape[1]
  assert input_size == int((L * 3 - 1 - 2 - 3) * nf / 2), input_size
  attention_size = input_size // 4 + 2
  assert attention_size % nhead == 0, "attention_size must be divisible by nhead"
  hd = attention_size // nhead
  a = attention_size

  # lane-dense padding (multiples of 128) of every feature dimension
  in_pad = _round_up(input_size, 128)
  a_pad = _round_up(a, 128)
  hd_pad = _round_up(hd, 128)
  label_pad = _round_up(label_len, 128)
  B_pad = max(8, _round_up(B, 8))

  def pad2(m, rows, cols):
    out = np.zeros((rows, cols), np.float32)
    out[:m.shape[0], :m.shape[1]] = m
    return out

  conv_w_p = pad2(conv_w, L, in_pad)
  conv_b_p = pad2(conv_b, 1, in_pad)
  ln1_g = pad2(np.ones((1, input_size), np.float32), 1, in_pad)   # gamma=0 on pad lanes
  ln1_b = np.zeros((1, in_pad), np.float32)
  dense1_w = pad2(rnd((input_size, a)), in_pad, a_pad)
  dense1_b = pad2(rnd((1, a)), 1, a_pad)

  # transformer layers: fused head-strided QKV weight (a_pad, 3*nhead*hd_pad)
  # and a single head-strided W_o (nhead*hd_pad, a_pad); softmax scale folded
  # into Wq / bq host-side.
  scale = 1.0 / math.sqrt(hd)
  wqkv = np.zeros((num_layers, a_pad, 3 * nhead * hd_pad), np.float32)
  bqkv = np.zeros((num_layers, 1, 3 * nhead * hd_pad), np.float32)
  wo = np.zeros((num_layers, nhead * hd_pad, a_pad), np.float32)
  bo = np.zeros((num_layers, 1, a_pad), np.float32)
  lna_g = np.zeros((num_layers, 1, a_pad), np.float32)
  lna_b = np.zeros((num_layers, 1, a_pad), np.float32)
  lnb_g = np.zeros((num_layers, 1, a_pad), np.float32)
  lnb_b = np.zeros((num_layers, 1, a_pad), np.float32)
  f1w = np.zeros((num_layers, a_pad, dim_ff), np.float32)
  f1b = np.zeros((num_layers, 1, dim_ff), np.float32)
  f2w = np.zeros((num_layers, dim_ff, a_pad), np.float32)
  f2b = np.zeros((num_layers, 1, a_pad), np.float32)

  for l in range(num_layers):
    wq = rnd((a, a)) * scale; bq = rnd((1, a)) * scale
    wk = rnd((a, a));         bk = rnd((1, a))
    wv = rnd((a, a));         bv = rnd((1, a))
    wo_l = rnd((a, a));       bo_l = rnd((1, a))
    for h in range(nhead):
      src = slice(h * hd, (h + 1) * hd)
      for part, (wsrc, bsrc) in enumerate(((wq, bq), (wk, bk), (wv, bv))):
        off = part * nhead * hd_pad + h * hd_pad
        wqkv[l, :a, off:off + hd] = wsrc[:, src]
        bqkv[l, 0, off:off + hd] = bsrc[0, src]
      wo[l, h * hd_pad:h * hd_pad + hd, :a] = wo_l[src, :]
    bo[l, 0, :a] = bo_l[0, :]
    lna_g[l, 0, :a] = 1.0
    lnb_g[l, 0, :a] = 1.0
    f1w[l, :a, :] = rnd((a, dim_ff))
    f1b[l, 0, :] = rnd((1, dim_ff))[0]
    f2w[l, :, :a] = rnd((dim_ff, a))
    f2b[l, 0, :a] = rnd((1, a))[0]

  out_w = pad2(rnd((a, label_len)), a_pad, label_pad)
  out_b = pad2(rnd((1, label_len)), 1, label_pad)

  # additive key mask: 0 for real batch rows, -1e9 for padded rows
  attn_kbias = np.where(np.arange(B_pad) < B, 0.0, -1e9).astype(np.float32).reshape(1, B_pad)

  params = dict(conv_w=conv_w_p, conv_b=conv_b_p, ln1_g=ln1_g, ln1_b=ln1_b,
                dense1_w=dense1_w, dense1_b=dense1_b,
                wqkv=wqkv, bqkv=bqkv, wo=wo, bo=bo,
                lna_g=lna_g, lna_b=lna_b,
                ffn_w1=f1w, ffn_b1=f1b, ffn_w2=f2w, ffn_b2=f2b,
                lnb_g=lnb_g, lnb_b=lnb_b,
                out_w=out_w, out_b=out_b, attn_kbias=attn_kbias)
  params = jax.tree_util.tree_map(jnp.asarray, params)
  meta = dict(nhead=nhead, num_layers=num_layers, batch_size=B, batch_pad=B_pad,
              label_len=label_len, label_pad=label_pad,
              input_size=input_size, in_pad=in_pad,
              attention_size=a, a_pad=a_pad, hd=hd, hd_pad=hd_pad)
  return params, meta


# --------------------------------- main -------------------------------------

if __name__ == "__main__":
  cfg = dict(batch_size=2, seq_len=7, enc_in=3, kernel_size=2,
             num_kernels=4, label_len=8)

  key = jax.random.PRNGKey(0)
  k_params, k_in = jax.random.split(key)
  params, meta = init_params(k_params, cfg)
  forward = make_model_forward(meta)

  inputs = jax.random.normal(k_in, (cfg["batch_size"], cfg["seq_len"], cfg["enc_in"]),
                             dtype=jnp.float32)
  _x = jnp.zeros((cfg["batch_size"], 1), jnp.float32)
  y = jnp.zeros((cfg["batch_size"], 1), jnp.float32)
  _y = jnp.zeros((cfg["batch_size"], 1), jnp.float32)

  out = forward(params, inputs, _x, y, _y)
  out = jax.block_until_ready(out)

  assert out.shape == (cfg["batch_size"], 1, cfg["label_len"]), out.shape
  assert out.dtype == jnp.float32
  assert bool(jnp.all(jnp.isfinite(out)))
  print("KERNEL_OK")
</pallas_src>

<mosaic_0001>
module attributes {stable_mosaic.version = 11 : i64} {
  func.func @_fused_forward_kernel(%arg0: memref<8x21xf32, #tpu.memory_space<vmem>>, %arg1: memref<21x128xf32, #tpu.memory_space<vmem>>, %arg2: memref<1x128xf32, #tpu.memory_space<vmem>>, %arg3: memref<1x128xf32, #tpu.memory_space<vmem>>, %arg4: memref<1x128xf32, #tpu.memory_space<vmem>>, %arg5: memref<128x128xf32, #tpu.memory_space<vmem>>, %arg6: memref<1x128xf32, #tpu.memory_space<vmem>>, %arg7: memref<4x128x1152xf32, #tpu.memory_space<vmem>>, %arg8: memref<4x1x1152xf32, #tpu.memory_space<vmem>>, %arg9: memref<4x384x128xf32, #tpu.memory_space<vmem>>, %arg10: memref<4x1x128xf32, #tpu.memory_space<vmem>>, %arg11: memref<4x1x128xf32, #tpu.memory_space<vmem>>, %arg12: memref<4x1x128xf32, #tpu.memory_space<vmem>>, %arg13: memref<4x128x512xf32, #tpu.memory_space<vmem>>, %arg14: memref<4x1x512xf32, #tpu.memory_space<vmem>>, %arg15: memref<4x512x128xf32, #tpu.memory_space<vmem>>, %arg16: memref<4x1x128xf32, #tpu.memory_space<vmem>>, %arg17: memref<4x1x128xf32, #tpu.memory_space<vmem>>, %arg18: memref<4x1x128xf32, #tpu.memory_space<vmem>>, %arg19: memref<128x128xf32, #tpu.memory_space<vmem>>, %arg20: memref<1x128xf32, #tpu.memory_space<vmem>>, %arg21: memref<1x8xf32, #tpu.memory_space<vmem>>, %arg22: memref<8x128xf32, #tpu.memory_space<vmem>>) attributes {dimension_semantics = [], scalar_prefetch = 0 : i64, scratch_operands = 0 : i64, tpu.core_type = #tpu.core_type<tc>} {
    %c0 = arith.constant 0 : index
    %c0_0 = arith.constant 0 : index
    %0 = vector.load %arg0[%c0, %c0_0] : memref<8x21xf32, #tpu.memory_space<vmem>>, vector<8x21xf32>
    %c0_1 = arith.constant 0 : index
    %c0_2 = arith.constant 0 : index
    %1 = vector.load %arg1[%c0_1, %c0_2] : memref<21x128xf32, #tpu.memory_space<vmem>>, vector<21x128xf32>
    %cst = arith.constant dense<0.000000e+00> : vector<8x128xf32>
    %2 = tpu.matmul %0, %1, %cst {dimension_numbers = #tpu.dot_dimension_numbers<[1], [0], [0], [1], [0, 0, 1, 1], [], []>} : vector<8x21xf32>, vector<21x128xf32>, vector<8x128xf32> -> vector<8x128xf32>
    %c0_3 = arith.constant 0 : index
    %c0_4 = arith.constant 0 : index
    %3 = vector.load %arg2[%c0_3, %c0_4] : memref<1x128xf32, #tpu.memory_space<vmem>>, vector<1x128xf32>
    %4 = vector.broadcast %3 : vector<1x128xf32> to vector<8x128xf32>
    %5 = arith.addf %2, %4 : vector<8x128xf32>
    %c0_5 = arith.constant 0 : index
    %c0_6 = arith.constant 0 : index
    %6 = vector.load %arg3[%c0_5, %c0_6] : memref<1x128xf32, #tpu.memory_space<vmem>>, vector<1x128xf32>
    %c0_7 = arith.constant 0 : index
    %c0_8 = arith.constant 0 : index
    %7 = vector.load %arg4[%c0_7, %c0_8] : memref<1x128xf32, #tpu.memory_space<vmem>>, vector<1x128xf32>
    %cst_9 = arith.constant dense<0.000000e+00> : vector<8xf32>
    %8 = vector.multi_reduction <add>, %5, %cst_9 [1] : vector<8x128xf32> to vector<8xf32>
    %9 = vector.shape_cast %8 : vector<8xf32> to vector<8x1xf32>
    %10 = arith.mulf %5, %5 : vector<8x128xf32>
    %cst_10 = arith.constant dense<0.000000e+00> : vector<8xf32>
    %11 = vector.multi_reduction <add>, %10, %cst_10 [1] : vector<8x128xf32> to vector<8xf32>
    %12 = vector.shape_cast %11 : vector<8xf32> to vector<8x1xf32>
    %cst_11 = arith.constant 0.00877192988 : f32
    %13 = vector.broadcast %cst_11 : f32 to vector<8x1xf32>
    %14 = arith.mulf %9, %13 : vector<8x1xf32>
    %cst_12 = arith.constant 0.00877192988 : f32
    %15 = vector.broadcast %cst_12 : f32 to vector<8x1xf32>
    %16 = arith.mulf %12, %15 : vector<8x1xf32>
    %17 = arith.mulf %14, %14 : vector<8x1xf32>
    %18 = arith.subf %16, %17 : vector<8x1xf32>
    %cst_13 = arith.constant 0.000000e+00 : f32
    %19 = vector.broadcast %cst_13 : f32 to vector<8x1xf32>
    %20 = arith.maximumf %18, %19 : vector<8x1xf32>
    %21 = vector.broadcast %14 : vector<8x1xf32> to vector<8x128xf32>
    %22 = arith.subf %5, %21 : vector<8x128xf32>
    %cst_14 = arith.constant 9.99999974E-6 : f32
    %23 = vector.broadcast %cst_14 : f32 to vector<8x1xf32>
    %24 = arith.addf %20, %23 : vector<8x1xf32>
    %25 = math.rsqrt %24 : vector<8x1xf32>
    %26 = vector.broadcast %25 : vector<8x1xf32> to vector<8x128xf32>
    %27 = arith.mulf %22, %26 : vector<8x128xf32>
    %28 = vector.broadcast %6 : vector<1x128xf32> to vector<8x128xf32>
    %29 = arith.mulf %27, %28 : vector<8x128xf32>
    %30 = vector.broadcast %7 : vector<1x128xf32> to vector<8x128xf32>
    %31 = arith.addf %29, %30 : vector<8x128xf32>
    %c0_15 = arith.constant 0 : index
    %c0_16 = arith.constant 0 : index
    %32 = vector.load %arg5[%c0_15, %c0_16] : memref<128x128xf32, #tpu.memory_space<vmem>>, vector<128x128xf32>
    %cst_17 = arith.constant dense<0.000000e+00> : vector<8x128xf32>
    %33 = tpu.matmul %31, %32, %cst_17 {dimension_numbers = #tpu.dot_dimension_numbers<[1], [0], [0], [1], [0, 0, 1, 1], [], []>} : vector<8x128xf32>, vector<128x128xf32>, vector<8x128xf32> -> vector<8x128xf32>
    %c0_18 = arith.constant 0 : index
    %c0_19 = arith.constant 0 : index
    %34 = vector.load %arg6[%c0_18, %c0_19] : memref<1x128xf32, #tpu.memory_space<vmem>>, vector<1x128xf32>
    %35 = vector.broadcast %34 : vector<1x128xf32> to vector<8x128xf32>
    %36 = arith.addf %33, %35 : vector<8x128xf32>
    %cst_20 = arith.constant 0.000000e+00 : f32
    %37 = vector.broadcast %cst_20 : f32 to vector<8x128xf32>
    %38 = arith.maximumf %36, %37 : vector<8x128xf32>
    %c0_21 = arith.constant 0 : index
    %c0_22 = arith.constant 0 : index
    %39 = vector.load %arg21[%c0_21, %c0_22] : memref<1x8xf32, #tpu.memory_space<vmem>>, vector<1x8xf32>
    %c0_23 = arith.constant 0 : index
    %c0_24 = arith.constant 0 : index
    %c0_25 = arith.constant 0 : index
    %40 = vector.load %arg7[%c0_23, %c0_24, %c0_25] : memref<4x128x1152xf32, #tpu.memory_space<vmem>>, vector<1x128x1152xf32>
    %41 = vector.shape_cast %40 : vector<1x128x1152xf32> to vector<128x1152xf32>
    %cst_26 = arith.constant dense<0.000000e+00> : vector<8x1152xf32>
    %42 = tpu.matmul %38, %41, %cst_26 {dimension_numbers = #tpu.dot_dimension_numbers<[1], [0], [0], [1], [0, 0, 1, 1], [], []>} : vector<8x128xf32>, vector<128x1152xf32>, vector<8x1152xf32> -> vector<8x1152xf32>
    %c0_27 = arith.constant 0 : index
    %c0_28 = arith.constant 0 : index
    %c0_29 = arith.constant 0 : index
    %43 = vector.load %arg8[%c0_27, %c0_28, %c0_29] : memref<4x1x1152xf32, #tpu.memory_space<vmem>>, vector<1x1x1152xf32>
    %44 = vector.shape_cast %43 : vector<1x1x1152xf32> to vector<1x1152xf32>
    %45 = vector.broadcast %44 : vector<1x1152xf32> to vector<8x1152xf32>
    %46 = arith.addf %42, %45 : vector<8x1152xf32>
    %47 = vector.extract_strided_slice %46 {offsets = [0, 0], sizes = [8, 128], strides = [1, 1]} : vector<8x1152xf32> to vector<8x128xf32>
    %48 = vector.extract_strided_slice %46 {offsets = [0, 384], sizes = [8, 128], strides = [1, 1]} : vector<8x1152xf32> to vector<8x128xf32>
    %49 = vector.extract_strided_slice %46 {offsets = [0, 768], sizes = [8, 128], strides = [1, 1]} : vector<8x1152xf32> to vector<8x128xf32>
    %cst_30 = arith.constant dense<0.000000e+00> : vector<8x8xf32>
    %50 = tpu.matmul %47, %48, %cst_30 {dimension_numbers = #tpu.dot_dimension_numbers<[1], [1], [0], [0], [0, 0, 1, 0], [], []>} : vector<8x128xf32>, vector<8x128xf32>, vector<8x8xf32> -> vector<8x8xf32>
    %51 = vector.broadcast %39 : vector<1x8xf32> to vector<8x8xf32>
    %52 = arith.addf %50, %51 : vector<8x8xf32>
    %cst_31 = arith.constant dense<0xFF800000> : vector<8xf32>
    %53 = vector.multi_reduction <maximumf>, %52, %cst_31 [1] : vector<8x8xf32> to vector<8xf32>
    %54 = vector.shape_cast %53 : vector<8xf32> to vector<8x1xf32>
    %55 = vector.broadcast %54 : vector<8x1xf32> to vector<8x8xf32>
    %56 = arith.subf %52, %55 : vector<8x8xf32>
    %57 = math.exp %56 : vector<8x8xf32>
    %cst_32 = arith.constant dense<0.000000e+00> : vector<8xf32>
    %58 = vector.multi_reduction <add>, %57, %cst_32 [1] : vector<8x8xf32> to vector<8xf32>
    %59 = vector.shape_cast %58 : vector<8xf32> to vector<8x1xf32>
    %60 = tpu.reciprocal %59 {approx = true} : vector<8x1xf32> -> vector<8x1xf32>
    %61 = vector.broadcast %60 : vector<8x1xf32> to vector<8x8xf32>
    %62 = arith.mulf %57, %61 : vector<8x8xf32>
    %cst_33 = arith.constant dense<0.000000e+00> : vector<8x128xf32>
    %63 = tpu.matmul %62, %49, %cst_33 {dimension_numbers = #tpu.dot_dimension_numbers<[1], [0], [0], [1], [0, 0, 1, 1], [], []>} : vector<8x8xf32>, vector<8x128xf32>, vector<8x128xf32> -> vector<8x128xf32>
    %64 = vector.extract_strided_slice %46 {offsets = [0, 128], sizes = [8, 128], strides = [1, 1]} : vector<8x1152xf32> to vector<8x128xf32>
    %65 = vector.extract_strided_slice %46 {offsets = [0, 512], sizes = [8, 128], strides = [1, 1]} : vector<8x1152xf32> to vector<8x128xf32>
    %66 = vector.extract_strided_slice %46 {offsets = [0, 896], sizes = [8, 128], strides = [1, 1]} : vector<8x1152xf32> to vector<8x128xf32>
    %cst_34 = arith.constant dense<0.000000e+00> : vector<8x8xf32>
    %67 = tpu.matmul %64, %65, %cst_34 {dimension_numbers = #tpu.dot_dimension_numbers<[1], [1], [0], [0], [0, 0, 1, 0], [], []>} : vector<8x128xf32>, vector<8x128xf32>, vector<8x8xf32> -> vector<8x8xf32>
    %68 = vector.broadcast %39 : vector<1x8xf32> to vector<8x8xf32>
    %69 = arith.addf %67, %68 : vector<8x8xf32>
    %cst_35 = arith.constant dense<0xFF800000> : vector<8xf32>
    %70 = vector.multi_reduction <maximumf>, %69, %cst_35 [1] : vector<8x8xf32> to vector<8xf32>
    %71 = vector.shape_cast %70 : vector<8xf32> to vector<8x1xf32>
    %72 = vector.broadcast %71 : vector<8x1xf32> to vector<8x8xf32>
    %73 = arith.subf %69, %72 : vector<8x8xf32>
    %74 = math.exp %73 : vector<8x8xf32>
    %cst_36 = arith.constant dense<0.000000e+00> : vector<8xf32>
    %75 = vector.multi_reduction <add>, %74, %cst_36 [1] : vector<8x8xf32> to vector<8xf32>
    %76 = vector.shape_cast %75 : vector<8xf32> to vector<8x1xf32>
    %77 = tpu.reciprocal %76 {approx = true} : vector<8x1xf32> -> vector<8x1xf32>
    %78 = vector.broadcast %77 : vector<8x1xf32> to vector<8x8xf32>
    %79 = arith.mulf %74, %78 : vector<8x8xf32>
    %cst_37 = arith.constant dense<0.000000e+00> : vector<8x128xf32>
    %80 = tpu.matmul %79, %66, %cst_37 {dimension_numbers = #tpu.dot_dimension_numbers<[1], [0], [0], [1], [0, 0, 1, 1], [], []>} : vector<8x8xf32>, vector<8x128xf32>, vector<8x128xf32> -> vector<8x128xf32>
    %81 = vector.extract_strided_slice %46 {offsets = [0, 256], sizes = [8, 128], strides = [1, 1]} : vector<8x1152xf32> to vector<8x128xf32>
    %82 = vector.extract_strided_slice %46 {offsets = [0, 640], sizes = [8, 128], strides = [1, 1]} : vector<8x1152xf32> to vector<8x128xf32>
    %83 = vector.extract_strided_slice %46 {offsets = [0, 1024], sizes = [8, 128], strides = [1, 1]} : vector<8x1152xf32> to vector<8x128xf32>
    %cst_38 = arith.constant dense<0.000000e+00> : vector<8x8xf32>
    %84 = tpu.matmul %81, %82, %cst_38 {dimension_numbers = #tpu.dot_dimension_numbers<[1], [1], [0], [0], [0, 0, 1, 0], [], []>} : vector<8x128xf32>, vector<8x128xf32>, vector<8x8xf32> -> vector<8x8xf32>
    %85 = vector.broadcast %39 : vector<1x8xf32> to vector<8x8xf32>
    %86 = arith.addf %84, %85 : vector<8x8xf32>
    %cst_39 = arith.constant dense<0xFF800000> : vector<8xf32>
    %87 = vector.multi_reduction <maximumf>, %86, %cst_39 [1] : vector<8x8xf32> to vector<8xf32>
    %88 = vector.shape_cast %87 : vector<8xf32> to vector<8x1xf32>
    %89 = vector.broadcast %88 : vector<8x1xf32> to vector<8x8xf32>
    %90 = arith.subf %86, %89 : vector<8x8xf32>
    %91 = math.exp %90 : vector<8x8xf32>
    %cst_40 = arith.constant dense<0.000000e+00> : vector<8xf32>
    %92 = vector.multi_reduction <add>, %91, %cst_40 [1] : vector<8x8xf32> to vector<8xf32>
    %93 = vector.shape_cast %92 : vector<8xf32> to vector<8x1xf32>
    %94 = tpu.reciprocal %93 {approx = true} : vector<8x1xf32> -> vector<8x1xf32>
    %95 = vector.broadcast %94 : vector<8x1xf32> to vector<8x8xf32>
    %96 = arith.mulf %91, %95 : vector<8x8xf32>
    %cst_41 = arith.constant dense<0.000000e+00> : vector<8x128xf32>
    %97 = tpu.matmul %96, %83, %cst_41 {dimension_numbers = #tpu.dot_dimension_numbers<[1], [0], [0], [1], [0, 0, 1, 1], [], []>} : vector<8x8xf32>, vector<8x128xf32>, vector<8x128xf32> -> vector<8x128xf32>
    %98 = tpu.concatenate %63, %80, %97 in 1 : vector<8x128xf32>, vector<8x128xf32>, vector<8x128xf32> -> vector<8x384xf32>
    %c0_42 = arith.constant 0 : index
    %c0_43 = arith.constant 0 : index
    %c0_44 = arith.constant 0 : index
    %99 = vector.load %arg9[%c0_42, %c0_43, %c0_44] : memref<4x384x128xf32, #tpu.memory_space<vmem>>, vector<1x384x128xf32>
    %100 = vector.shape_cast %99 : vector<1x384x128xf32> to vector<384x128xf32>
    %cst_45 = arith.constant dense<0.000000e+00> : vector<8x128xf32>
    %101 = tpu.matmul %98, %100, %cst_45 {dimension_numbers = #tpu.dot_dimension_numbers<[1], [0], [0], [1], [0, 0, 1, 1], [], []>} : vector<8x384xf32>, vector<384x128xf32>, vector<8x128xf32> -> vector<8x128xf32>
    %c0_46 = arith.constant 0 : index
    %c0_47 = arith.constant 0 : index
    %c0_48 = arith.constant 0 : index
    %102 = vector.load %arg10[%c0_46, %c0_47, %c0_48] : memref<4x1x128xf32, #tpu.memory_space<vmem>>, vector<1x1x128xf32>
    %103 = vector.shape_cast %102 : vector<1x1x128xf32> to vector<1x128xf32>
    %104 = vector.broadcast %103 : vector<1x128xf32> to vector<8x128xf32>
    %105 = arith.addf %101, %104 : vector<8x128xf32>
    %106 = arith.addf %38, %105 : vector<8x128xf32>
    %c0_49 = arith.constant 0 : index
    %c0_50 = arith.constant 0 : index
    %c0_51 = arith.constant 0 : index
    %107 = vector.load %arg11[%c0_49, %c0_50, %c0_51] : memref<4x1x128xf32, #tpu.memory_space<vmem>>, vector<1x1x128xf32>
    %108 = vector.shape_cast %107 : vector<1x1x128xf32> to vector<1x128xf32>
    %c0_52 = arith.constant 0 : index
    %c0_53 = arith.constant 0 : index
    %c0_54 = arith.constant 0 : index
    %109 = vector.load %arg12[%c0_52, %c0_53, %c0_54] : memref<4x1x128xf32, #tpu.memory_space<vmem>>, vector<1x1x128xf32>
    %110 = vector.shape_cast %109 : vector<1x1x128xf32> to vector<1x128xf32>
    %cst_55 = arith.constant dense<0.000000e+00> : vector<8xf32>
    %111 = vector.multi_reduction <add>, %106, %cst_55 [1] : vector<8x128xf32> to vector<8xf32>
    %112 = vector.shape_cast %111 : vector<8xf32> to vector<8x1xf32>
    %113 = arith.mulf %106, %106 : vector<8x128xf32>
    %cst_56 = arith.constant dense<0.000000e+00> : vector<8xf32>
    %114 = vector.multi_reduction <add>, %113, %cst_56 [1] : vector<8x128xf32> to vector<8xf32>
    %115 = vector.shape_cast %114 : vector<8xf32> to vector<8x1xf32>
    %cst_57 = arith.constant 0.0333333351 : f32
    %116 = vector.broadcast %cst_57 : f32 to vector<8x1xf32>
    %117 = arith.mulf %112, %116 : vector<8x1xf32>
    %cst_58 = arith.constant 0.0333333351 : f32
    %118 = vector.broadcast %cst_58 : f32 to vector<8x1xf32>
    %119 = arith.mulf %115, %118 : vector<8x1xf32>
    %120 = arith.mulf %117, %117 : vector<8x1xf32>
    %121 = arith.subf %119, %120 : vector<8x1xf32>
    %cst_59 = arith.constant 0.000000e+00 : f32
    %122 = vector.broadcast %cst_59 : f32 to vector<8x1xf32>
    %123 = arith.maximumf %121, %122 : vector<8x1xf32>
    %124 = vector.broadcast %117 : vector<8x1xf32> to vector<8x128xf32>
    %125 = arith.subf %106, %124 : vector<8x128xf32>
    %cst_60 = arith.constant 9.99999974E-6 : f32
    %126 = vector.broadcast %cst_60 : f32 to vector<8x1xf32>
    %127 = arith.addf %123, %126 : vector<8x1xf32>
    %128 = math.rsqrt %127 : vector<8x1xf32>
    %129 = vector.broadcast %128 : vector<8x1xf32> to vector<8x128xf32>
    %130 = arith.mulf %125, %129 : vector<8x128xf32>
    %131 = vector.broadcast %108 : vector<1x128xf32> to vector<8x128xf32>
    %132 = arith.mulf %130, %131 : vector<8x128xf32>
    %133 = vector.broadcast %110 : vector<1x128xf32> to vector<8x128xf32>
    %134 = arith.addf %132, %133 : vector<8x128xf32>
    %c0_61 = arith.constant 0 : index
    %c0_62 = arith.constant 0 : index
    %c0_63 = arith.constant 0 : index
    %135 = vector.load %arg13[%c0_61, %c0_62, %c0_63] : memref<4x128x512xf32, #tpu.memory_space<vmem>>, vector<1x128x512xf32>
    %136 = vector.shape_cast %135 : vector<1x128x512xf32> to vector<128x512xf32>
    %cst_64 = arith.constant dense<0.000000e+00> : vector<8x512xf32>
    %137 = tpu.matmul %134, %136, %cst_64 {dimension_numbers = #tpu.dot_dimension_numbers<[1], [0], [0], [1], [0, 0, 1, 1], [], []>} : vector<8x128xf32>, vector<128x512xf32>, vector<8x512xf32> -> vector<8x512xf32>
    %c0_65 = arith.constant 0 : index
    %c0_66 = arith.constant 0 : index
    %c0_67 = arith.constant 0 : index
    %138 = vector.load %arg14[%c0_65, %c0_66, %c0_67] : memref<4x1x512xf32, #tpu.memory_space<vmem>>, vector<1x1x512xf32>
    %139 = vector.shape_cast %138 : vector<1x1x512xf32> to vector<1x512xf32>
    %140 = vector.broadcast %139 : vector<1x512xf32> to vector<8x512xf32>
    %141 = arith.addf %137, %140 : vector<8x512xf32>
    %cst_68 = arith.constant 0.000000e+00 : f32
    %142 = vector.broadcast %cst_68 : f32 to vector<8x512xf32>
    %143 = arith.maximumf %141, %142 : vector<8x512xf32>
    %c0_69 = arith.constant 0 : index
    %c0_70 = arith.constant 0 : index
    %c0_71 = arith.constant 0 : index
    %144 = vector.load %arg15[%c0_69, %c0_70, %c0_71] : memref<4x512x128xf32, #tpu.memory_space<vmem>>, vector<1x512x128xf32>
    %145 = vector.shape_cast %144 : vector<1x512x128xf32> to vector<512x128xf32>
    %cst_72 = arith.constant dense<0.000000e+00> : vector<8x128xf32>
    %146 = tpu.matmul %143, %145, %cst_72 {dimension_numbers = #tpu.dot_dimension_numbers<[1], [0], [0], [1], [0, 0, 1, 1], [], []>} : vector<8x512xf32>, vector<512x128xf32>, vector<8x128xf32> -> vector<8x128xf32>
    %c0_73 = arith.constant 0 : index
    %c0_74 = arith.constant 0 : index
    %c0_75 = arith.constant 0 : index
    %147 = vector.load %arg16[%c0_73, %c0_74, %c0_75] : memref<4x1x128xf32, #tpu.memory_space<vmem>>, vector<1x1x128xf32>
    %148 = vector.shape_cast %147 : vector<1x1x128xf32> to vector<1x128xf32>
    %149 = vector.broadcast %148 : vector<1x128xf32> to vector<8x128xf32>
    %150 = arith.addf %146, %149 : vector<8x128xf32>
    %151 = arith.addf %134, %150 : vector<8x128xf32>
    %c0_76 = arith.constant 0 : index
    %c0_77 = arith.constant 0 : index
    %c0_78 = arith.constant 0 : index
    %152 = vector.load %arg17[%c0_76, %c0_77, %c0_78] : memref<4x1x128xf32, #tpu.memory_space<vmem>>, vector<1x1x128xf32>
    %153 = vector.shape_cast %152 : vector<1x1x128xf32> to vector<1x128xf32>
    %c0_79 = arith.constant 0 : index
    %c0_80 = arith.constant 0 : index
    %c0_81 = arith.constant 0 : index
    %154 = vector.load %arg18[%c0_79, %c0_80, %c0_81] : memref<4x1x128xf32, #tpu.memory_space<vmem>>, vector<1x1x128xf32>
    %155 = vector.shape_cast %154 : vector<1x1x128xf32> to vector<1x128xf32>
    %cst_82 = arith.constant dense<0.000000e+00> : vector<8xf32>
    %156 = vector.multi_reduction <add>, %151, %cst_82 [1] : vector<8x128xf32> to vector<8xf32>
    %157 = vector.shape_cast %156 : vector<8xf32> to vector<8x1xf32>
    %158 = arith.mulf %151, %151 : vector<8x128xf32>
    %cst_83 = arith.constant dense<0.000000e+00> : vector<8xf32>
    %159 = vector.multi_reduction <add>, %158, %cst_83 [1] : vector<8x128xf32> to vector<8xf32>
    %160 = vector.shape_cast %159 : vector<8xf32> to vector<8x1xf32>
    %cst_84 = arith.constant 0.0333333351 : f32
    %161 = vector.broadcast %cst_84 : f32 to vector<8x1xf32>
    %162 = arith.mulf %157, %161 : vector<8x1xf32>
    %cst_85 = arith.constant 0.0333333351 : f32
    %163 = vector.broadcast %cst_85 : f32 to vector<8x1xf32>
    %164 = arith.mulf %160, %163 : vector<8x1xf32>
    %165 = arith.mulf %162, %162 : vector<8x1xf32>
    %166 = arith.subf %164, %165 : vector<8x1xf32>
    %cst_86 = arith.constant 0.000000e+00 : f32
    %167 = vector.broadcast %cst_86 : f32 to vector<8x1xf32>
    %168 = arith.maximumf %166, %167 : vector<8x1xf32>
    %169 = vector.broadcast %162 : vector<8x1xf32> to vector<8x128xf32>
    %170 = arith.subf %151, %169 : vector<8x128xf32>
    %cst_87 = arith.constant 9.99999974E-6 : f32
    %171 = vector.broadcast %cst_87 : f32 to vector<8x1xf32>
    %172 = arith.addf %168, %171 : vector<8x1xf32>
    %173 = math.rsqrt %172 : vector<8x1xf32>
    %174 = vector.broadcast %173 : vector<8x1xf32> to vector<8x128xf32>
    %175 = arith.mulf %170, %174 : vector<8x128xf32>
    %176 = vector.broadcast %153 : vector<1x128xf32> to vector<8x128xf32>
    %177 = arith.mulf %175, %176 : vector<8x128xf32>
    %178 = vector.broadcast %155 : vector<1x128xf32> to vector<8x128xf32>
    %179 = arith.addf %177, %178 : vector<8x128xf32>
    %c1 = arith.constant 1 : index
    %c0_88 = arith.constant 0 : index
    %c0_89 = arith.constant 0 : index
    %180 = vector.load %arg7[%c1, %c0_88, %c0_89] : memref<4x128x1152xf32, #tpu.memory_space<vmem>>, vector<1x128x1152xf32>
    %181 = vector.shape_cast %180 : vector<1x128x1152xf32> to vector<128x1152xf32>
    %cst_90 = arith.constant dense<0.000000e+00> : vector<8x1152xf32>
    %182 = tpu.matmul %179, %181, %cst_90 {dimension_numbers = #tpu.dot_dimension_numbers<[1], [0], [0], [1], [0, 0, 1, 1], [], []>} : vector<8x128xf32>, vector<128x1152xf32>, vector<8x1152xf32> -> vector<8x1152xf32>
    %c1_91 = arith.constant 1 : index
    %c0_92 = arith.constant 0 : index
    %c0_93 = arith.constant 0 : index
    %183 = vector.load %arg8[%c1_91, %c0_92, %c0_93] : memref<4x1x1152xf32, #tpu.memory_space<vmem>>, vector<1x1x1152xf32>
    %184 = vector.shape_cast %183 : vector<1x1x1152xf32> to vector<1x1152xf32>
    %185 = vector.broadcast %184 : vector<1x1152xf32> to vector<8x1152xf32>
    %186 = arith.addf %182, %185 : vector<8x1152xf32>
    %187 = vector.extract_strided_slice %186 {offsets = [0, 0], sizes = [8, 128], strides = [1, 1]} : vector<8x1152xf32> to vector<8x128xf32>
    %188 = vector.extract_strided_slice %186 {offsets = [0, 384], sizes = [8, 128], strides = [1, 1]} : vector<8x1152xf32> to vector<8x128xf32>
    %189 = vector.extract_strided_slice %186 {offsets = [0, 768], sizes = [8, 128], strides = [1, 1]} : vector<8x1152xf32> to vector<8x128xf32>
    %cst_94 = arith.constant dense<0.000000e+00> : vector<8x8xf32>
    %190 = tpu.matmul %187, %188, %cst_94 {dimension_numbers = #tpu.dot_dimension_numbers<[1], [1], [0], [0], [0, 0, 1, 0], [], []>} : vector<8x128xf32>, vector<8x128xf32>, vector<8x8xf32> -> vector<8x8xf32>
    %191 = vector.broadcast %39 : vector<1x8xf32> to vector<8x8xf32>
    %192 = arith.addf %190, %191 : vector<8x8xf32>
    %cst_95 = arith.constant dense<0xFF800000> : vector<8xf32>
    %193 = vector.multi_reduction <maximumf>, %192, %cst_95 [1] : vector<8x8xf32> to vector<8xf32>
    %194 = vector.shape_cast %193 : vector<8xf32> to vector<8x1xf32>
    %195 = vector.broadcast %194 : vector<8x1xf32> to vector<8x8xf32>
    %196 = arith.subf %192, %195 : vector<8x8xf32>
    %197 = math.exp %196 : vector<8x8xf32>
    %cst_96 = arith.constant dense<0.000000e+00> : vector<8xf32>
    %198 = vector.multi_reduction <add>, %197, %cst_96 [1] : vector<8x8xf32> to vector<8xf32>
    %199 = vector.shape_cast %198 : vector<8xf32> to vector<8x1xf32>
    %200 = tpu.reciprocal %199 {approx = true} : vector<8x1xf32> -> vector<8x1xf32>
    %201 = vector.broadcast %200 : vector<8x1xf32> to vector<8x8xf32>
    %202 = arith.mulf %197, %201 : vector<8x8xf32>
    %cst_97 = arith.constant dense<0.000000e+00> : vector<8x128xf32>
    %203 = tpu.matmul %202, %189, %cst_97 {dimension_numbers = #tpu.dot_dimension_numbers<[1], [0], [0], [1], [0, 0, 1, 1], [], []>} : vector<8x8xf32>, vector<8x128xf32>, vector<8x128xf32> -> vector<8x128xf32>
    %204 = vector.extract_strided_slice %186 {offsets = [0, 128], sizes = [8, 128], strides = [1, 1]} : vector<8x1152xf32> to vector<8x128xf32>
    %205 = vector.extract_strided_slice %186 {offsets = [0, 512], sizes = [8, 128], strides = [1, 1]} : vector<8x1152xf32> to vector<8x128xf32>
    %206 = vector.extract_strided_slice %186 {offsets = [0, 896], sizes = [8, 128], strides = [1, 1]} : vector<8x1152xf32> to vector<8x128xf32>
    %cst_98 = arith.constant dense<0.000000e+00> : vector<8x8xf32>
    %207 = tpu.matmul %204, %205, %cst_98 {dimension_numbers = #tpu.dot_dimension_numbers<[1], [1], [0], [0], [0, 0, 1, 0], [], []>} : vector<8x128xf32>, vector<8x128xf32>, vector<8x8xf32> -> vector<8x8xf32>
    %208 = vector.broadcast %39 : vector<1x8xf32> to vector<8x8xf32>
    %209 = arith.addf %207, %208 : vector<8x8xf32>
    %cst_99 = arith.constant dense<0xFF800000> : vector<8xf32>
    %210 = vector.multi_reduction <maximumf>, %209, %cst_99 [1] : vector<8x8xf32> to vector<8xf32>
    %211 = vector.shape_cast %210 : vector<8xf32> to vector<8x1xf32>
    %212 = vector.broadcast %211 : vector<8x1xf32> to vector<8x8xf32>
    %213 = arith.subf %209, %212 : vector<8x8xf32>
    %214 = math.exp %213 : vector<8x8xf32>
    %cst_100 = arith.constant dense<0.000000e+00> : vector<8xf32>
    %215 = vector.multi_reduction <add>, %214, %cst_100 [1] : vector<8x8xf32> to vector<8xf32>
    %216 = vector.shape_cast %215 : vector<8xf32> to vector<8x1xf32>
    %217 = tpu.reciprocal %216 {approx = true} : vector<8x1xf32> -> vector<8x1xf32>
    %218 = vector.broadcast %217 : vector<8x1xf32> to vector<8x8xf32>
    %219 = arith.mulf %214, %218 : vector<8x8xf32>
    %cst_101 = arith.constant dense<0.000000e+00> : vector<8x128xf32>
    %220 = tpu.matmul %219, %206, %cst_101 {dimension_numbers = #tpu.dot_dimension_numbers<[1], [0], [0], [1], [0, 0, 1, 1], [], []>} : vector<8x8xf32>, vector<8x128xf32>, vector<8x128xf32> -> vector<8x128xf32>
    %221 = vector.extract_strided_slice %186 {offsets = [0, 256], sizes = [8, 128], strides = [1, 1]} : vector<8x1152xf32> to vector<8x128xf32>
    %222 = vector.extract_strided_slice %186 {offsets = [0, 640], sizes = [8, 128], strides = [1, 1]} : vector<8x1152xf32> to vector<8x128xf32>
    %223 = vector.extract_strided_slice %186 {offsets = [0, 1024], sizes = [8, 128], strides = [1, 1]} : vector<8x1152xf32> to vector<8x128xf32>
    %cst_102 = arith.constant dense<0.000000e+00> : vector<8x8xf32>
    %224 = tpu.matmul %221, %222, %cst_102 {dimension_numbers = #tpu.dot_dimension_numbers<[1], [1], [0], [0], [0, 0, 1, 0], [], []>} : vector<8x128xf32>, vector<8x128xf32>, vector<8x8xf32> -> vector<8x8xf32>
    %225 = vector.broadcast %39 : vector<1x8xf32> to vector<8x8xf32>
    %226 = arith.addf %224, %225 : vector<8x8xf32>
    %cst_103 = arith.constant dense<0xFF800000> : vector<8xf32>
    %227 = vector.multi_reduction <maximumf>, %226, %cst_103 [1] : vector<8x8xf32> to vector<8xf32>
    %228 = vector.shape_cast %227 : vector<8xf32> to vector<8x1xf32>
    %229 = vector.broadcast %228 : vector<8x1xf32> to vector<8x8xf32>
    %230 = arith.subf %226, %229 : vector<8x8xf32>
    %231 = math.exp %230 : vector<8x8xf32>
    %cst_104 = arith.constant dense<0.000000e+00> : vector<8xf32>
    %232 = vector.multi_reduction <add>, %231, %cst_104 [1] : vector<8x8xf32> to vector<8xf32>
    %233 = vector.shape_cast %232 : vector<8xf32> to vector<8x1xf32>
    %234 = tpu.reciprocal %233 {approx = true} : vector<8x1xf32> -> vector<8x1xf32>
    %235 = vector.broadcast %234 : vector<8x1xf32> to vector<8x8xf32>
    %236 = arith.mulf %231, %235 : vector<8x8xf32>
    %cst_105 = arith.constant dense<0.000000e+00> : vector<8x128xf32>
    %237 = tpu.matmul %236, %223, %cst_105 {dimension_numbers = #tpu.dot_dimension_numbers<[1], [0], [0], [1], [0, 0, 1, 1], [], []>} : vector<8x8xf32>, vector<8x128xf32>, vector<8x128xf32> -> vector<8x128xf32>
    %238 = tpu.concatenate %203, %220, %237 in 1 : vector<8x128xf32>, vector<8x128xf32>, vector<8x128xf32> -> vector<8x384xf32>
    %c1_106 = arith.constant 1 : index
    %c0_107 = arith.constant 0 : index
    %c0_108 = arith.constant 0 : index
    %239 = vector.load %arg9[%c1_106, %c0_107, %c0_108] : memref<4x384x128xf32, #tpu.memory_space<vmem>>, vector<1x384x128xf32>
    %240 = vector.shape_cast %239 : vector<1x384x128xf32> to vector<384x128xf32>
    %cst_109 = arith.constant dense<0.000000e+00> : vector<8x128xf32>
    %241 = tpu.matmul %238, %240, %cst_109 {dimension_numbers = #tpu.dot_dimension_numbers<[1], [0], [0], [1], [0, 0, 1, 1], [], []>} : vector<8x384xf32>, vector<384x128xf32>, vector<8x128xf32> -> vector<8x128xf32>
    %c1_110 = arith.constant 1 : index
    %c0_111 = arith.constant 0 : index
    %c0_112 = arith.constant 0 : index
    %242 = vector.load %arg10[%c1_110, %c0_111, %c0_112] : memref<4x1x128xf32, #tpu.memory_space<vmem>>, vector<1x1x128xf32>
    %243 = vector.shape_cast %242 : vector<1x1x128xf32> to vector<1x128xf32>
    %244 = vector.broadcast %243 : vector<1x128xf32> to vector<8x128xf32>
    %245 = arith.addf %241, %244 : vector<8x128xf32>
    %246 = arith.addf %179, %245 : vector<8x128xf32>
    %c1_113 = arith.constant 1 : index
    %c0_114 = arith.constant 0 : index
    %c0_115 = arith.constant 0 : index
    %247 = vector.load %arg11[%c1_113, %c0_114, %c0_115] : memref<4x1x128xf32, #tpu.memory_space<vmem>>, vector<1x1x128xf32>
    %248 = vector.shape_cast %247 : vector<1x1x128xf32> to vector<1x128xf32>
    %c1_116 = arith.constant 1 : index
    %c0_117 = arith.constant 0 : index
    %c0_118 = arith.constant 0 : index
    %249 = vector.load %arg12[%c1_116, %c0_117, %c0_118] : memref<4x1x128xf32, #tpu.memory_space<vmem>>, vector<1x1x128xf32>
    %250 = vector.shape_cast %249 : vector<1x1x128xf32> to vector<1x128xf32>
    %cst_119 = arith.constant dense<0.000000e+00> : vector<8xf32>
    %251 = vector.multi_reduction <add>, %246, %cst_119 [1] : vector<8x128xf32> to vector<8xf32>
    %252 = vector.shape_cast %251 : vector<8xf32> to vector<8x1xf32>
    %253 = arith.mulf %246, %246 : vector<8x128xf32>
    %cst_120 = arith.constant dense<0.000000e+00> : vector<8xf32>
    %254 = vector.multi_reduction <add>, %253, %cst_120 [1] : vector<8x128xf32> to vector<8xf32>
    %255 = vector.shape_cast %254 : vector<8xf32> to vector<8x1xf32>
    %cst_121 = arith.constant 0.0333333351 : f32
    %256 = vector.broadcast %cst_121 : f32 to vector<8x1xf32>
    %257 = arith.mulf %252, %256 : vector<8x1xf32>
    %cst_122 = arith.constant 0.0333333351 : f32
    %258 = vector.broadcast %cst_122 : f32 to vector<8x1xf32>
    %259 = arith.mulf %255, %258 : vector<8x1xf32>
    %260 = arith.mulf %257, %257 : vector<8x1xf32>
    %261 = arith.subf %259, %260 : vector<8x1xf32>
    %cst_123 = arith.constant 0.000000e+00 : f32
    %262 = vector.broadcast %cst_123 : f32 to vector<8x1xf32>
    %263 = arith.maximumf %261, %262 : vector<8x1xf32>
    %264 = vector.broadcast %257 : vector<8x1xf32> to vector<8x128xf32>
    %265 = arith.subf %246, %264 : vector<8x128xf32>
    %cst_124 = arith.constant 9.99999974E-6 : f32
    %266 = vector.broadcast %cst_124 : f32 to vector<8x1xf32>
    %267 = arith.addf %263, %266 : vector<8x1xf32>
    %268 = math.rsqrt %267 : vector<8x1xf32>
    %269 = vector.broadcast %268 : vector<8x1xf32> to vector<8x128xf32>
    %270 = arith.mulf %265, %269 : vector<8x128xf32>
    %271 = vector.broadcast %248 : vector<1x128xf32> to vector<8x128xf32>
    %272 = arith.mulf %270, %271 : vector<8x128xf32>
    %273 = vector.broadcast %250 : vector<1x128xf32> to vector<8x128xf32>
    %274 = arith.addf %272, %273 : vector<8x128xf32>
    %c1_125 = arith.constant 1 : index
    %c0_126 = arith.constant 0 : index
    %c0_127 = arith.constant 0 : index
    %275 = vector.load %arg13[%c1_125, %c0_126, %c0_127] : memref<4x128x512xf32, #tpu.memory_space<vmem>>, vector<1x128x512xf32>
    %276 = vector.shape_cast %275 : vector<1x128x512xf32> to vector<128x512xf32>
    %cst_128 = arith.constant dense<0.000000e+00> : vector<8x512xf32>
    %277 = tpu.matmul %274, %276, %cst_128 {dimension_numbers = #tpu.dot_dimension_numbers<[1], [0], [0], [1], [0, 0, 1, 1], [], []>} : vector<8x128xf32>, vector<128x512xf32>, vector<8x512xf32> -> vector<8x512xf32>
    %c1_129 = arith.constant 1 : index
    %c0_130 = arith.constant 0 : index
    %c0_131 = arith.constant 0 : index
    %278 = vector.load %arg14[%c1_129, %c0_130, %c0_131] : memref<4x1x512xf32, #tpu.memory_space<vmem>>, vector<1x1x512xf32>
    %279 = vector.shape_cast %278 : vector<1x1x512xf32> to vector<1x512xf32>
    %280 = vector.broadcast %279 : vector<1x512xf32> to vector<8x512xf32>
    %281 = arith.addf %277, %280 : vector<8x512xf32>
    %cst_132 = arith.constant 0.000000e+00 : f32
    %282 = vector.broadcast %cst_132 : f32 to vector<8x512xf32>
    %283 = arith.maximumf %281, %282 : vector<8x512xf32>
    %c1_133 = arith.constant 1 : index
    %c0_134 = arith.constant 0 : index
    %c0_135 = arith.constant 0 : index
    %284 = vector.load %arg15[%c1_133, %c0_134, %c0_135] : memref<4x512x128xf32, #tpu.memory_space<vmem>>, vector<1x512x128xf32>
    %285 = vector.shape_cast %284 : vector<1x512x128xf32> to vector<512x128xf32>
    %cst_136 = arith.constant dense<0.000000e+00> : vector<8x128xf32>
    %286 = tpu.matmul %283, %285, %cst_136 {dimension_numbers = #tpu.dot_dimension_numbers<[1], [0], [0], [1], [0, 0, 1, 1], [], []>} : vector<8x512xf32>, vector<512x128xf32>, vector<8x128xf32> -> vector<8x128xf32>
    %c1_137 = arith.constant 1 : index
    %c0_138 = arith.constant 0 : index
    %c0_139 = arith.constant 0 : index
    %287 = vector.load %arg16[%c1_137, %c0_138, %c0_139] : memref<4x1x128xf32, #tpu.memory_space<vmem>>, vector<1x1x128xf32>
    %288 = vector.shape_cast %287 : vector<1x1x128xf32> to vector<1x128xf32>
    %289 = vector.broadcast %288 : vector<1x128xf32> to vector<8x128xf32>
    %290 = arith.addf %286, %289 : vector<8x128xf32>
    %291 = arith.addf %274, %290 : vector<8x128xf32>
    %c1_140 = arith.constant 1 : index
    %c0_141 = arith.constant 0 : index
    %c0_142 = arith.constant 0 : index
    %292 = vector.load %arg17[%c1_140, %c0_141, %c0_142] : memref<4x1x128xf32, #tpu.memory_space<vmem>>, vector<1x1x128xf32>
    %293 = vector.shape_cast %292 : vector<1x1x128xf32> to vector<1x128xf32>
    %c1_143 = arith.constant 1 : index
    %c0_144 = arith.constant 0 : index
    %c0_145 = arith.constant 0 : index
    %294 = vector.load %arg18[%c1_143, %c0_144, %c0_145] : memref<4x1x128xf32, #tpu.memory_space<vmem>>, vector<1x1x128xf32>
    %295 = vector.shape_cast %294 : vector<1x1x128xf32> to vector<1x128xf32>
    %cst_146 = arith.constant dense<0.000000e+00> : vector<8xf32>
    %296 = vector.multi_reduction <add>, %291, %cst_146 [1] : vector<8x128xf32> to vector<8xf32>
    %297 = vector.shape_cast %296 : vector<8xf32> to vector<8x1xf32>
    %298 = arith.mulf %291, %291 : vector<8x128xf32>
    %cst_147 = arith.constant dense<0.000000e+00> : vector<8xf32>
    %299 = vector.multi_reduction <add>, %298, %cst_147 [1] : vector<8x128xf32> to vector<8xf32>
    %300 = vector.shape_cast %299 : vector<8xf32> to vector<8x1xf32>
    %cst_148 = arith.constant 0.0333333351 : f32
    %301 = vector.broadcast %cst_148 : f32 to vector<8x1xf32>
    %302 = arith.mulf %297, %301 : vector<8x1xf32>
    %cst_149 = arith.constant 0.0333333351 : f32
    %303 = vector.broadcast %cst_149 : f32 to vector<8x1xf32>
    %304 = arith.mulf %300, %303 : vector<8x1xf32>
    %305 = arith.mulf %302, %302 : vector<8x1xf32>
    %306 = arith.subf %304, %305 : vector<8x1xf32>
    %cst_150 = arith.constant 0.000000e+00 : f32
    %307 = vector.broadcast %cst_150 : f32 to vector<8x1xf32>
    %308 = arith.maximumf %306, %307 : vector<8x1xf32>
    %309 = vector.broadcast %302 : vector<8x1xf32> to vector<8x128xf32>
    %310 = arith.subf %291, %309 : vector<8x128xf32>
    %cst_151 = arith.constant 9.99999974E-6 : f32
    %311 = vector.broadcast %cst_151 : f32 to vector<8x1xf32>
    %312 = arith.addf %308, %311 : vector<8x1xf32>
    %313 = math.rsqrt %312 : vector<8x1xf32>
    %314 = vector.broadcast %313 : vector<8x1xf32> to vector<8x128xf32>
    %315 = arith.mulf %310, %314 : vector<8x128xf32>
    %316 = vector.broadcast %293 : vector<1x128xf32> to vector<8x128xf32>
    %317 = arith.mulf %315, %316 : vector<8x128xf32>
    %318 = vector.broadcast %295 : vector<1x128xf32> to vector<8x128xf32>
    %319 = arith.addf %317, %318 : vector<8x128xf32>
    %c2 = arith.constant 2 : index
    %c0_152 = arith.constant 0 : index
    %c0_153 = arith.constant 0 : index
    %320 = vector.load %arg7[%c2, %c0_152, %c0_153] : memref<4x128x1152xf32, #tpu.memory_space<vmem>>, vector<1x128x1152xf32>
    %321 = vector.shape_cast %320 : vector<1x128x1152xf32> to vector<128x1152xf32>
    %cst_154 = arith.constant dense<0.000000e+00> : vector<8x1152xf32>
    %322 = tpu.matmul %319, %321, %cst_154 {dimension_numbers = #tpu.dot_dimension_numbers<[1], [0], [0], [1], [0, 0, 1, 1], [], []>} : vector<8x128xf32>, vector<128x1152xf32>, vector<8x1152xf32> -> vector<8x1152xf32>
    %c2_155 = arith.constant 2 : index
    %c0_156 = arith.constant 0 : index
    %c0_157 = arith.constant 0 : index
    %323 = vector.load %arg8[%c2_155, %c0_156, %c0_157] : memref<4x1x1152xf32, #tpu.memory_space<vmem>>, vector<1x1x1152xf32>
    %324 = vector.shape_cast %323 : vector<1x1x1152xf32> to vector<1x1152xf32>
    %325 = vector.broadcast %324 : vector<1x1152xf32> to vector<8x1152xf32>
    %326 = arith.addf %322, %325 : vector<8x1152xf32>
    %327 = vector.extract_strided_slice %326 {offsets = [0, 0], sizes = [8, 128], strides = [1, 1]} : vector<8x1152xf32> to vector<8x128xf32>
    %328 = vector.extract_strided_slice %326 {offsets = [0, 384], sizes = [8, 128], strides = [1, 1]} : vector<8x1152xf32> to vector<8x128xf32>
    %329 = vector.extract_strided_slice %326 {offsets = [0, 768], sizes = [8, 128], strides = [1, 1]} : vector<8x1152xf32> to vector<8x128xf32>
    %cst_158 = arith.constant dense<0.000000e+00> : vector<8x8xf32>
    %330 = tpu.matmul %327, %328, %cst_158 {dimension_numbers = #tpu.dot_dimension_numbers<[1], [1], [0], [0], [0, 0, 1, 0], [], []>} : vector<8x128xf32>, vector<8x128xf32>, vector<8x8xf32> -> vector<8x8xf32>
    %331 = vector.broadcast %39 : vector<1x8xf32> to vector<8x8xf32>
    %332 = arith.addf %330, %331 : vector<8x8xf32>
    %cst_159 = arith.constant dense<0xFF800000> : vector<8xf32>
    %333 = vector.multi_reduction <maximumf>, %332, %cst_159 [1] : vector<8x8xf32> to vector<8xf32>
    %334 = vector.shape_cast %333 : vector<8xf32> to vector<8x1xf32>
    %335 = vector.broadcast %334 : vector<8x1xf32> to vector<8x8xf32>
    %336 = arith.subf %332, %335 : vector<8x8xf32>
    %337 = math.exp %336 : vector<8x8xf32>
    %cst_160 = arith.constant dense<0.000000e+00> : vector<8xf32>
    %338 = vector.multi_reduction <add>, %337, %cst_160 [1] : vector<8x8xf32> to vector<8xf32>
    %339 = vector.shape_cast %338 : vector<8xf32> to vector<8x1xf32>
    %340 = tpu.reciprocal %339 {approx = true} : vector<8x1xf32> -> vector<8x1xf32>
    %341 = vector.broadcast %340 : vector<8x1xf32> to vector<8x8xf32>
    %342 = arith.mulf %337, %341 : vector<8x8xf32>
    %cst_161 = arith.constant dense<0.000000e+00> : vector<8x128xf32>
    %343 = tpu.matmul %342, %329, %cst_161 {dimension_numbers = #tpu.dot_dimension_numbers<[1], [0], [0], [1], [0, 0, 1, 1], [], []>} : vector<8x8xf32>, vector<8x128xf32>, vector<8x128xf32> -> vector<8x128xf32>
    %344 = vector.extract_strided_slice %326 {offsets = [0, 128], sizes = [8, 128], strides = [1, 1]} : vector<8x1152xf32> to vector<8x128xf32>
    %345 = vector.extract_strided_slice %326 {offsets = [0, 512], sizes = [8, 128], strides = [1, 1]} : vector<8x1152xf32> to vector<8x128xf32>
    %346 = vector.extract_strided_slice %326 {offsets = [0, 896], sizes = [8, 128], strides = [1, 1]} : vector<8x1152xf32> to vector<8x128xf32>
    %cst_162 = arith.constant dense<0.000000e+00> : vector<8x8xf32>
    %347 = tpu.matmul %344, %345, %cst_162 {dimension_numbers = #tpu.dot_dimension_numbers<[1], [1], [0], [0], [0, 0, 1, 0], [], []>} : vector<8x128xf32>, vector<8x128xf32>, vector<8x8xf32> -> vector<8x8xf32>
    %348 = vector.broadcast %39 : vector<1x8xf32> to vector<8x8xf32>
    %349 = arith.addf %347, %348 : vector<8x8xf32>
    %cst_163 = arith.constant dense<0xFF800000> : vector<8xf32>
    %350 = vector.multi_reduction <maximumf>, %349, %cst_163 [1] : vector<8x8xf32> to vector<8xf32>
    %351 = vector.shape_cast %350 : vector<8xf32> to vector<8x1xf32>
    %352 = vector.broadcast %351 : vector<8x1xf32> to vector<8x8xf32>
    %353 = arith.subf %349, %352 : vector<8x8xf32>
    %354 = math.exp %353 : vector<8x8xf32>
    %cst_164 = arith.constant dense<0.000000e+00> : vector<8xf32>
    %355 = vector.multi_reduction <add>, %354, %cst_164 [1] : vector<8x8xf32> to vector<8xf32>
    %356 = vector.shape_cast %355 : vector<8xf32> to vector<8x1xf32>
    %357 = tpu.reciprocal %356 {approx = true} : vector<8x1xf32> -> vector<8x1xf32>
    %358 = vector.broadcast %357 : vector<8x1xf32> to vector<8x8xf32>
    %359 = arith.mulf %354, %358 : vector<8x8xf32>
    %cst_165 = arith.constant dense<0.000000e+00> : vector<8x128xf32>
    %360 = tpu.matmul %359, %346, %cst_165 {dimension_numbers = #tpu.dot_dimension_numbers<[1], [0], [0], [1], [0, 0, 1, 1], [], []>} : vector<8x8xf32>, vector<8x128xf32>, vector<8x128xf32> -> vector<8x128xf32>
    %361 = vector.extract_strided_slice %326 {offsets = [0, 256], sizes = [8, 128], strides = [1, 1]} : vector<8x1152xf32> to vector<8x128xf32>
    %362 = vector.extract_strided_slice %326 {offsets = [0, 640], sizes = [8, 128], strides = [1, 1]} : vector<8x1152xf32> to vector<8x128xf32>
    %363 = vector.extract_strided_slice %326 {offsets = [0, 1024], sizes = [8, 128], strides = [1, 1]} : vector<8x1152xf32> to vector<8x128xf32>
    %cst_166 = arith.constant dense<0.000000e+00> : vector<8x8xf32>
    %364 = tpu.matmul %361, %362, %cst_166 {dimension_numbers = #tpu.dot_dimension_numbers<[1], [1], [0], [0], [0, 0, 1, 0], [], []>} : vector<8x128xf32>, vector<8x128xf32>, vector<8x8xf32> -> vector<8x8xf32>
    %365 = vector.broadcast %39 : vector<1x8xf32> to vector<8x8xf32>
    %366 = arith.addf %364, %365 : vector<8x8xf32>
    %cst_167 = arith.constant dense<0xFF800000> : vector<8xf32>
    %367 = vector.multi_reduction <maximumf>, %366, %cst_167 [1] : vector<8x8xf32> to vector<8xf32>
    %368 = vector.shape_cast %367 : vector<8xf32> to vector<8x1xf32>
    %369 = vector.broadcast %368 : vector<8x1xf32> to vector<8x8xf32>
    %370 = arith.subf %366, %369 : vector<8x8xf32>
    %371 = math.exp %370 : vector<8x8xf32>
    %cst_168 = arith.constant dense<0.000000e+00> : vector<8xf32>
    %372 = vector.multi_reduction <add>, %371, %cst_168 [1] : vector<8x8xf32> to vector<8xf32>
    %373 = vector.shape_cast %372 : vector<8xf32> to vector<8x1xf32>
    %374 = tpu.reciprocal %373 {approx = true} : vector<8x1xf32> -> vector<8x1xf32>
    %375 = vector.broadcast %374 : vector<8x1xf32> to vector<8x8xf32>
    %376 = arith.mulf %371, %375 : vector<8x8xf32>
    %cst_169 = arith.constant dense<0.000000e+00> : vector<8x128xf32>
    %377 = tpu.matmul %376, %363, %cst_169 {dimension_numbers = #tpu.dot_dimension_numbers<[1], [0], [0], [1], [0, 0, 1, 1], [], []>} : vector<8x8xf32>, vector<8x128xf32>, vector<8x128xf32> -> vector<8x128xf32>
    %378 = tpu.concatenate %343, %360, %377 in 1 : vector<8x128xf32>, vector<8x128xf32>, vector<8x128xf32> -> vector<8x384xf32>
    %c2_170 = arith.constant 2 : index
    %c0_171 = arith.constant 0 : index
    %c0_172 = arith.constant 0 : index
    %379 = vector.load %arg9[%c2_170, %c0_171, %c0_172] : memref<4x384x128xf32, #tpu.memory_space<vmem>>, vector<1x384x128xf32>
    %380 = vector.shape_cast %379 : vector<1x384x128xf32> to vector<384x128xf32>
    %cst_173 = arith.constant dense<0.000000e+00> : vector<8x128xf32>
    %381 = tpu.matmul %378, %380, %cst_173 {dimension_numbers = #tpu.dot_dimension_numbers<[1], [0], [0], [1], [0, 0, 1, 1], [], []>} : vector<8x384xf32>, vector<384x128xf32>, vector<8x128xf32> -> vector<8x128xf32>
    %c2_174 = arith.constant 2 : index
    %c0_175 = arith.constant 0 : index
    %c0_176 = arith.constant 0 : index
    %382 = vector.load %arg10[%c2_174, %c0_175, %c0_176] : memref<4x1x128xf32, #tpu.memory_space<vmem>>, vector<1x1x128xf32>
    %383 = vector.shape_cast %382 : vector<1x1x128xf32> to vector<1x128xf32>
    %384 = vector.broadcast %383 : vector<1x128xf32> to vector<8x128xf32>
    %385 = arith.addf %381, %384 : vector<8x128xf32>
    %386 = arith.addf %319, %385 : vector<8x128xf32>
    %c2_177 = arith.constant 2 : index
    %c0_178 = arith.constant 0 : index
    %c0_179 = arith.constant 0 : index
    %387 = vector.load %arg11[%c2_177, %c0_178, %c0_179] : memref<4x1x128xf32, #tpu.memory_space<vmem>>, vector<1x1x128xf32>
    %388 = vector.shape_cast %387 : vector<1x1x128xf32> to vector<1x128xf32>
    %c2_180 = arith.constant 2 : index
    %c0_181 = arith.constant 0 : index
    %c0_182 = arith.constant 0 : index
    %389 = vector.load %arg12[%c2_180, %c0_181, %c0_182] : memref<4x1x128xf32, #tpu.memory_space<vmem>>, vector<1x1x128xf32>
    %390 = vector.shape_cast %389 : vector<1x1x128xf32> to vector<1x128xf32>
    %cst_183 = arith.constant dense<0.000000e+00> : vector<8xf32>
    %391 = vector.multi_reduction <add>, %386, %cst_183 [1] : vector<8x128xf32> to vector<8xf32>
    %392 = vector.shape_cast %391 : vector<8xf32> to vector<8x1xf32>
    %393 = arith.mulf %386, %386 : vector<8x128xf32>
    %cst_184 = arith.constant dense<0.000000e+00> : vector<8xf32>
    %394 = vector.multi_reduction <add>, %393, %cst_184 [1] : vector<8x128xf32> to vector<8xf32>
    %395 = vector.shape_cast %394 : vector<8xf32> to vector<8x1xf32>
    %cst_185 = arith.constant 0.0333333351 : f32
    %396 = vector.broadcast %cst_185 : f32 to vector<8x1xf32>
    %397 = arith.mulf %392, %396 : vector<8x1xf32>
    %cst_186 = arith.constant 0.0333333351 : f32
    %398 = vector.broadcast %cst_186 : f32 to vector<8x1xf32>
    %399 = arith.mulf %395, %398 : vector<8x1xf32>
    %400 = arith.mulf %397, %397 : vector<8x1xf32>
    %401 = arith.subf %399, %400 : vector<8x1xf32>
    %cst_187 = arith.constant 0.000000e+00 : f32
    %402 = vector.broadcast %cst_187 : f32 to vector<8x1xf32>
    %403 = arith.maximumf %401, %402 : vector<8x1xf32>
    %404 = vector.broadcast %397 : vector<8x1xf32> to vector<8x128xf32>
    %405 = arith.subf %386, %404 : vector<8x128xf32>
    %cst_188 = arith.constant 9.99999974E-6 : f32
    %406 = vector.broadcast %cst_188 : f32 to vector<8x1xf32>
    %407 = arith.addf %403, %406 : vector<8x1xf32>
    %408 = math.rsqrt %407 : vector<8x1xf32>
    %409 = vector.broadcast %408 : vector<8x1xf32> to vector<8x128xf32>
    %410 = arith.mulf %405, %409 : vector<8x128xf32>
    %411 = vector.broadcast %388 : vector<1x128xf32> to vector<8x128xf32>
    %412 = arith.mulf %410, %411 : vector<8x128xf32>
    %413 = vector.broadcast %390 : vector<1x128xf32> to vector<8x128xf32>
    %414 = arith.addf %412, %413 : vector<8x128xf32>
    %c2_189 = arith.constant 2 : index
    %c0_190 = arith.constant 0 : index
    %c0_191 = arith.constant 0 : index
    %415 = vector.load %arg13[%c2_189, %c0_190, %c0_191] : memref<4x128x512xf32, #tpu.memory_space<vmem>>, vector<1x128x512xf32>
    %416 = vector.shape_cast %415 : vector<1x128x512xf32> to vector<128x512xf32>
    %cst_192 = arith.constant dense<0.000000e+00> : vector<8x512xf32>
    %417 = tpu.matmul %414, %416, %cst_192 {dimension_numbers = #tpu.dot_dimension_numbers<[1], [0], [0], [1], [0, 0, 1, 1], [], []>} : vector<8x128xf32>, vector<128x512xf32>, vector<8x512xf32> -> vector<8x512xf32>
    %c2_193 = arith.constant 2 : index
    %c0_194 = arith.constant 0 : index
    %c0_195 = arith.constant 0 : index
    %418 = vector.load %arg14[%c2_193, %c0_194, %c0_195] : memref<4x1x512xf32, #tpu.memory_space<vmem>>, vector<1x1x512xf32>
    %419 = vector.shape_cast %418 : vector<1x1x512xf32> to vector<1x512xf32>
    %420 = vector.broadcast %419 : vector<1x512xf32> to vector<8x512xf32>
    %421 = arith.addf %417, %420 : vector<8x512xf32>
    %cst_196 = arith.constant 0.000000e+00 : f32
    %422 = vector.broadcast %cst_196 : f32 to vector<8x512xf32>
    %423 = arith.maximumf %421, %422 : vector<8x512xf32>
    %c2_197 = arith.constant 2 : index
    %c0_198 = arith.constant 0 : index
    %c0_199 = arith.constant 0 : index
    %424 = vector.load %arg15[%c2_197, %c0_198, %c0_199] : memref<4x512x128xf32, #tpu.memory_space<vmem>>, vector<1x512x128xf32>
    %425 = vector.shape_cast %424 : vector<1x512x128xf32> to vector<512x128xf32>
    %cst_200 = arith.constant dense<0.000000e+00> : vector<8x128xf32>
    %426 = tpu.matmul %423, %425, %cst_200 {dimension_numbers = #tpu.dot_dimension_numbers<[1], [0], [0], [1], [0, 0, 1, 1], [], []>} : vector<8x512xf32>, vector<512x128xf32>, vector<8x128xf32> -> vector<8x128xf32>
    %c2_201 = arith.constant 2 : index
    %c0_202 = arith.constant 0 : index
    %c0_203 = arith.constant 0 : index
    %427 = vector.load %arg16[%c2_201, %c0_202, %c0_203] : memref<4x1x128xf32, #tpu.memory_space<vmem>>, vector<1x1x128xf32>
    %428 = vector.shape_cast %427 : vector<1x1x128xf32> to vector<1x128xf32>
    %429 = vector.broadcast %428 : vector<1x128xf32> to vector<8x128xf32>
    %430 = arith.addf %426, %429 : vector<8x128xf32>
    %431 = arith.addf %414, %430 : vector<8x128xf32>
    %c2_204 = arith.constant 2 : index
    %c0_205 = arith.constant 0 : index
    %c0_206 = arith.constant 0 : index
    %432 = vector.load %arg17[%c2_204, %c0_205, %c0_206] : memref<4x1x128xf32, #tpu.memory_space<vmem>>, vector<1x1x128xf32>
    %433 = vector.shape_cast %432 : vector<1x1x128xf32> to vector<1x128xf32>
    %c2_207 = arith.constant 2 : index
    %c0_208 = arith.constant 0 : index
    %c0_209 = arith.constant 0 : index
    %434 = vector.load %arg18[%c2_207, %c0_208, %c0_209] : memref<4x1x128xf32, #tpu.memory_space<vmem>>, vector<1x1x128xf32>
    %435 = vector.shape_cast %434 : vector<1x1x128xf32> to vector<1x128xf32>
    %cst_210 = arith.constant dense<0.000000e+00> : vector<8xf32>
    %436 = vector.multi_reduction <add>, %431, %cst_210 [1] : vector<8x128xf32> to vector<8xf32>
    %437 = vector.shape_cast %436 : vector<8xf32> to vector<8x1xf32>
    %438 = arith.mulf %431, %431 : vector<8x128xf32>
    %cst_211 = arith.constant dense<0.000000e+00> : vector<8xf32>
    %439 = vector.multi_reduction <add>, %438, %cst_211 [1] : vector<8x128xf32> to vector<8xf32>
    %440 = vector.shape_cast %439 : vector<8xf32> to vector<8x1xf32>
    %cst_212 = arith.constant 0.0333333351 : f32
    %441 = vector.broadcast %cst_212 : f32 to vector<8x1xf32>
    %442 = arith.mulf %437, %441 : vector<8x1xf32>
    %cst_213 = arith.constant 0.0333333351 : f32
    %443 = vector.broadcast %cst_213 : f32 to vector<8x1xf32>
    %444 = arith.mulf %440, %443 : vector<8x1xf32>
    %445 = arith.mulf %442, %442 : vector<8x1xf32>
    %446 = arith.subf %444, %445 : vector<8x1xf32>
    %cst_214 = arith.constant 0.000000e+00 : f32
    %447 = vector.broadcast %cst_214 : f32 to vector<8x1xf32>
    %448 = arith.maximumf %446, %447 : vector<8x1xf32>
    %449 = vector.broadcast %442 : vector<8x1xf32> to vector<8x128xf32>
    %450 = arith.subf %431, %449 : vector<8x128xf32>
    %cst_215 = arith.constant 9.99999974E-6 : f32
    %451 = vector.broadcast %cst_215 : f32 to vector<8x1xf32>
    %452 = arith.addf %448, %451 : vector<8x1xf32>
    %453 = math.rsqrt %452 : vector<8x1xf32>
    %454 = vector.broadcast %453 : vector<8x1xf32> to vector<8x128xf32>
    %455 = arith.mulf %450, %454 : vector<8x128xf32>
    %456 = vector.broadcast %433 : vector<1x128xf32> to vector<8x128xf32>
    %457 = arith.mulf %455, %456 : vector<8x128xf32>
    %458 = vector.broadcast %435 : vector<1x128xf32> to vector<8x128xf32>
    %459 = arith.addf %457, %458 : vector<8x128xf32>
    %c3 = arith.constant 3 : index
    %c0_216 = arith.constant 0 : index
    %c0_217 = arith.constant 0 : index
    %460 = vector.load %arg7[%c3, %c0_216, %c0_217] : memref<4x128x1152xf32, #tpu.memory_space<vmem>>, vector<1x128x1152xf32>
    %461 = vector.shape_cast %460 : vector<1x128x1152xf32> to vector<128x1152xf32>
    %cst_218 = arith.constant dense<0.000000e+00> : vector<8x1152xf32>
    %462 = tpu.matmul %459, %461, %cst_218 {dimension_numbers = #tpu.dot_dimension_numbers<[1], [0], [0], [1], [0, 0, 1, 1], [], []>} : vector<8x128xf32>, vector<128x1152xf32>, vector<8x1152xf32> -> vector<8x1152xf32>
    %c3_219 = arith.constant 3 : index
    %c0_220 = arith.constant 0 : index
    %c0_221 = arith.constant 0 : index
    %463 = vector.load %arg8[%c3_219, %c0_220, %c0_221] : memref<4x1x1152xf32, #tpu.memory_space<vmem>>, vector<1x1x1152xf32>
    %464 = vector.shape_cast %463 : vector<1x1x1152xf32> to vector<1x1152xf32>
    %465 = vector.broadcast %464 : vector<1x1152xf32> to vector<8x1152xf32>
    %466 = arith.addf %462, %465 : vector<8x1152xf32>
    %467 = vector.extract_strided_slice %466 {offsets = [0, 0], sizes = [8, 128], strides = [1, 1]} : vector<8x1152xf32> to vector<8x128xf32>
    %468 = vector.extract_strided_slice %466 {offsets = [0, 384], sizes = [8, 128], strides = [1, 1]} : vector<8x1152xf32> to vector<8x128xf32>
    %469 = vector.extract_strided_slice %466 {offsets = [0, 768], sizes = [8, 128], strides = [1, 1]} : vector<8x1152xf32> to vector<8x128xf32>
    %cst_222 = arith.constant dense<0.000000e+00> : vector<8x8xf32>
    %470 = tpu.matmul %467, %468, %cst_222 {dimension_numbers = #tpu.dot_dimension_numbers<[1], [1], [0], [0], [0, 0, 1, 0], [], []>} : vector<8x128xf32>, vector<8x128xf32>, vector<8x8xf32> -> vector<8x8xf32>
    %471 = vector.broadcast %39 : vector<1x8xf32> to vector<8x8xf32>
    %472 = arith.addf %470, %471 : vector<8x8xf32>
    %cst_223 = arith.constant dense<0xFF800000> : vector<8xf32>
    %473 = vector.multi_reduction <maximumf>, %472, %cst_223 [1] : vector<8x8xf32> to vector<8xf32>
    %474 = vector.shape_cast %473 : vector<8xf32> to vector<8x1xf32>
    %475 = vector.broadcast %474 : vector<8x1xf32> to vector<8x8xf32>
    %476 = arith.subf %472, %475 : vector<8x8xf32>
    %477 = math.exp %476 : vector<8x8xf32>
    %cst_224 = arith.constant dense<0.000000e+00> : vector<8xf32>
    %478 = vector.multi_reduction <add>, %477, %cst_224 [1] : vector<8x8xf32> to vector<8xf32>
    %479 = vector.shape_cast %478 : vector<8xf32> to vector<8x1xf32>
    %480 = tpu.reciprocal %479 {approx = true} : vector<8x1xf32> -> vector<8x1xf32>
    %481 = vector.broadcast %480 : vector<8x1xf32> to vector<8x8xf32>
    %482 = arith.mulf %477, %481 : vector<8x8xf32>
    %cst_225 = arith.constant dense<0.000000e+00> : vector<8x128xf32>
    %483 = tpu.matmul %482, %469, %cst_225 {dimension_numbers = #tpu.dot_dimension_numbers<[1], [0], [0], [1], [0, 0, 1, 1], [], []>} : vector<8x8xf32>, vector<8x128xf32>, vector<8x128xf32> -> vector<8x128xf32>
    %484 = vector.extract_strided_slice %466 {offsets = [0, 128], sizes = [8, 128], strides = [1, 1]} : vector<8x1152xf32> to vector<8x128xf32>
    %485 = vector.extract_strided_slice %466 {offsets = [0, 512], sizes = [8, 128], strides = [1, 1]} : vector<8x1152xf32> to vector<8x128xf32>
    %486 = vector.extract_strided_slice %466 {offsets = [0, 896], sizes = [8, 128], strides = [1, 1]} : vector<8x1152xf32> to vector<8x128xf32>
    %cst_226 = arith.constant dense<0.000000e+00> : vector<8x8xf32>
    %487 = tpu.matmul %484, %485, %cst_226 {dimension_numbers = #tpu.dot_dimension_numbers<[1], [1], [0], [0], [0, 0, 1, 0], [], []>} : vector<8x128xf32>, vector<8x128xf32>, vector<8x8xf32> -> vector<8x8xf32>
    %488 = vector.broadcast %39 : vector<1x8xf32> to vector<8x8xf32>
    %489 = arith.addf %487, %488 : vector<8x8xf32>
    %cst_227 = arith.constant dense<0xFF800000> : vector<8xf32>
    %490 = vector.multi_reduction <maximumf>, %489, %cst_227 [1] : vector<8x8xf32> to vector<8xf32>
    %491 = vector.shape_cast %490 : vector<8xf32> to vector<8x1xf32>
    %492 = vector.broadcast %491 : vector<8x1xf32> to vector<8x8xf32>
    %493 = arith.subf %489, %492 : vector<8x8xf32>
    %494 = math.exp %493 : vector<8x8xf32>
    %cst_228 = arith.constant dense<0.000000e+00> : vector<8xf32>
    %495 = vector.multi_reduction <add>, %494, %cst_228 [1] : vector<8x8xf32> to vector<8xf32>
    %496 = vector.shape_cast %495 : vector<8xf32> to vector<8x1xf32>
    %497 = tpu.reciprocal %496 {approx = true} : vector<8x1xf32> -> vector<8x1xf32>
    %498 = vector.broadcast %497 : vector<8x1xf32> to vector<8x8xf32>
    %499 = arith.mulf %494, %498 : vector<8x8xf32>
    %cst_229 = arith.constant dense<0.000000e+00> : vector<8x128xf32>
    %500 = tpu.matmul %499, %486, %cst_229 {dimension_numbers = #tpu.dot_dimension_numbers<[1], [0], [0], [1], [0, 0, 1, 1], [], []>} : vector<8x8xf32>, vector<8x128xf32>, vector<8x128xf32> -> vector<8x128xf32>
    %501 = vector.extract_strided_slice %466 {offsets = [0, 256], sizes = [8, 128], strides = [1, 1]} : vector<8x1152xf32> to vector<8x128xf32>
    %502 = vector.extract_strided_slice %466 {offsets = [0, 640], sizes = [8, 128], strides = [1, 1]} : vector<8x1152xf32> to vector<8x128xf32>
    %503 = vector.extract_strided_slice %466 {offsets = [0, 1024], sizes = [8, 128], strides = [1, 1]} : vector<8x1152xf32> to vector<8x128xf32>
    %cst_230 = arith.constant dense<0.000000e+00> : vector<8x8xf32>
    %504 = tpu.matmul %501, %502, %cst_230 {dimension_numbers = #tpu.dot_dimension_numbers<[1], [1], [0], [0], [0, 0, 1, 0], [], []>} : vector<8x128xf32>, vector<8x128xf32>, vector<8x8xf32> -> vector<8x8xf32>
    %505 = vector.broadcast %39 : vector<1x8xf32> to vector<8x8xf32>
    %506 = arith.addf %504, %505 : vector<8x8xf32>
    %cst_231 = arith.constant dense<0xFF800000> : vector<8xf32>
    %507 = vector.multi_reduction <maximumf>, %506, %cst_231 [1] : vector<8x8xf32> to vector<8xf32>
    %508 = vector.shape_cast %507 : vector<8xf32> to vector<8x1xf32>
    %509 = vector.broadcast %508 : vector<8x1xf32> to vector<8x8xf32>
    %510 = arith.subf %506, %509 : vector<8x8xf32>
    %511 = math.exp %510 : vector<8x8xf32>
    %cst_232 = arith.constant dense<0.000000e+00> : vector<8xf32>
    %512 = vector.multi_reduction <add>, %511, %cst_232 [1] : vector<8x8xf32> to vector<8xf32>
    %513 = vector.shape_cast %512 : vector<8xf32> to vector<8x1xf32>
    %514 = tpu.reciprocal %513 {approx = true} : vector<8x1xf32> -> vector<8x1xf32>
    %515 = vector.broadcast %514 : vector<8x1xf32> to vector<8x8xf32>
    %516 = arith.mulf %511, %515 : vector<8x8xf32>
    %cst_233 = arith.constant dense<0.000000e+00> : vector<8x128xf32>
    %517 = tpu.matmul %516, %503, %cst_233 {dimension_numbers = #tpu.dot_dimension_numbers<[1], [0], [0], [1], [0, 0, 1, 1], [], []>} : vector<8x8xf32>, vector<8x128xf32>, vector<8x128xf32> -> vector<8x128xf32>
    %518 = tpu.concatenate %483, %500, %517 in 1 : vector<8x128xf32>, vector<8x128xf32>, vector<8x128xf32> -> vector<8x384xf32>
    %c3_234 = arith.constant 3 : index
    %c0_235 = arith.constant 0 : index
    %c0_236 = arith.constant 0 : index
    %519 = vector.load %arg9[%c3_234, %c0_235, %c0_236] : memref<4x384x128xf32, #tpu.memory_space<vmem>>, vector<1x384x128xf32>
    %520 = vector.shape_cast %519 : vector<1x384x128xf32> to vector<384x128xf32>
    %cst_237 = arith.constant dense<0.000000e+00> : vector<8x128xf32>
    %521 = tpu.matmul %518, %520, %cst_237 {dimension_numbers = #tpu.dot_dimension_numbers<[1], [0], [0], [1], [0, 0, 1, 1], [], []>} : vector<8x384xf32>, vector<384x128xf32>, vector<8x128xf32> -> vector<8x128xf32>
    %c3_238 = arith.constant 3 : index
    %c0_239 = arith.constant 0 : index
    %c0_240 = arith.constant 0 : index
    %522 = vector.load %arg10[%c3_238, %c0_239, %c0_240] : memref<4x1x128xf32, #tpu.memory_space<vmem>>, vector<1x1x128xf32>
    %523 = vector.shape_cast %522 : vector<1x1x128xf32> to vector<1x128xf32>
    %524 = vector.broadcast %523 : vector<1x128xf32> to vector<8x128xf32>
    %525 = arith.addf %521, %524 : vector<8x128xf32>
    %526 = arith.addf %459, %525 : vector<8x128xf32>
    %c3_241 = arith.constant 3 : index
    %c0_242 = arith.constant 0 : index
    %c0_243 = arith.constant 0 : index
    %527 = vector.load %arg11[%c3_241, %c0_242, %c0_243] : memref<4x1x128xf32, #tpu.memory_space<vmem>>, vector<1x1x128xf32>
    %528 = vector.shape_cast %527 : vector<1x1x128xf32> to vector<1x128xf32>
    %c3_244 = arith.constant 3 : index
    %c0_245 = arith.constant 0 : index
    %c0_246 = arith.constant 0 : index
    %529 = vector.load %arg12[%c3_244, %c0_245, %c0_246] : memref<4x1x128xf32, #tpu.memory_space<vmem>>, vector<1x1x128xf32>
    %530 = vector.shape_cast %529 : vector<1x1x128xf32> to vector<1x128xf32>
    %cst_247 = arith.constant dense<0.000000e+00> : vector<8xf32>
    %531 = vector.multi_reduction <add>, %526, %cst_247 [1] : vector<8x128xf32> to vector<8xf32>
    %532 = vector.shape_cast %531 : vector<8xf32> to vector<8x1xf32>
    %533 = arith.mulf %526, %526 : vector<8x128xf32>
    %cst_248 = arith.constant dense<0.000000e+00> : vector<8xf32>
    %534 = vector.multi_reduction <add>, %533, %cst_248 [1] : vector<8x128xf32> to vector<8xf32>
    %535 = vector.shape_cast %534 : vector<8xf32> to vector<8x1xf32>
    %cst_249 = arith.constant 0.0333333351 : f32
    %536 = vector.broadcast %cst_249 : f32 to vector<8x1xf32>
    %537 = arith.mulf %532, %536 : vector<8x1xf32>
    %cst_250 = arith.constant 0.0333333351 : f32
    %538 = vector.broadcast %cst_250 : f32 to vector<8x1xf32>
    %539 = arith.mulf %535, %538 : vector<8x1xf32>
    %540 = arith.mulf %537, %537 : vector<8x1xf32>
    %541 = arith.subf %539, %540 : vector<8x1xf32>
    %cst_251 = arith.constant 0.000000e+00 : f32
    %542 = vector.broadcast %cst_251 : f32 to vector<8x1xf32>
    %543 = arith.maximumf %541, %542 : vector<8x1xf32>
    %544 = vector.broadcast %537 : vector<8x1xf32> to vector<8x128xf32>
    %545 = arith.subf %526, %544 : vector<8x128xf32>
    %cst_252 = arith.constant 9.99999974E-6 : f32
    %546 = vector.broadcast %cst_252 : f32 to vector<8x1xf32>
    %547 = arith.addf %543, %546 : vector<8x1xf32>
    %548 = math.rsqrt %547 : vector<8x1xf32>
    %549 = vector.broadcast %548 : vector<8x1xf32> to vector<8x128xf32>
    %550 = arith.mulf %545, %549 : vector<8x128xf32>
    %551 = vector.broadcast %528 : vector<1x128xf32> to vector<8x128xf32>
    %552 = arith.mulf %550, %551 : vector<8x128xf32>
    %553 = vector.broadcast %530 : vector<1x128xf32> to vector<8x128xf32>
    %554 = arith.addf %552, %553 : vector<8x128xf32>
    %c3_253 = arith.constant 3 : index
    %c0_254 = arith.constant 0 : index
    %c0_255 = arith.constant 0 : index
    %555 = vector.load %arg13[%c3_253, %c0_254, %c0_255] : memref<4x128x512xf32, #tpu.memory_space<vmem>>, vector<1x128x512xf32>
    %556 = vector.shape_cast %555 : vector<1x128x512xf32> to vector<128x512xf32>
    %cst_256 = arith.constant dense<0.000000e+00> : vector<8x512xf32>
    %557 = tpu.matmul %554, %556, %cst_256 {dimension_numbers = #tpu.dot_dimension_numbers<[1], [0], [0], [1], [0, 0, 1, 1], [], []>} : vector<8x128xf32>, vector<128x512xf32>, vector<8x512xf32> -> vector<8x512xf32>
    %c3_257 = arith.constant 3 : index
    %c0_258 = arith.constant 0 : index
    %c0_259 = arith.constant 0 : index
    %558 = vector.load %arg14[%c3_257, %c0_258, %c0_259] : memref<4x1x512xf32, #tpu.memory_space<vmem>>, vector<1x1x512xf32>
    %559 = vector.shape_cast %558 : vector<1x1x512xf32> to vector<1x512xf32>
    %560 = vector.broadcast %559 : vector<1x512xf32> to vector<8x512xf32>
    %561 = arith.addf %557, %560 : vector<8x512xf32>
    %cst_260 = arith.constant 0.000000e+00 : f32
    %562 = vector.broadcast %cst_260 : f32 to vector<8x512xf32>
    %563 = arith.maximumf %561, %562 : vector<8x512xf32>
    %c3_261 = arith.constant 3 : index
    %c0_262 = arith.constant 0 : index
    %c0_263 = arith.constant 0 : index
    %564 = vector.load %arg15[%c3_261, %c0_262, %c0_263] : memref<4x512x128xf32, #tpu.memory_space<vmem>>, vector<1x512x128xf32>
    %565 = vector.shape_cast %564 : vector<1x512x128xf32> to vector<512x128xf32>
    %cst_264 = arith.constant dense<0.000000e+00> : vector<8x128xf32>
    %566 = tpu.matmul %563, %565, %cst_264 {dimension_numbers = #tpu.dot_dimension_numbers<[1], [0], [0], [1], [0, 0, 1, 1], [], []>} : vector<8x512xf32>, vector<512x128xf32>, vector<8x128xf32> -> vector<8x128xf32>
    %c3_265 = arith.constant 3 : index
    %c0_266 = arith.constant 0 : index
    %c0_267 = arith.constant 0 : index
    %567 = vector.load %arg16[%c3_265, %c0_266, %c0_267] : memref<4x1x128xf32, #tpu.memory_space<vmem>>, vector<1x1x128xf32>
    %568 = vector.shape_cast %567 : vector<1x1x128xf32> to vector<1x128xf32>
    %569 = vector.broadcast %568 : vector<1x128xf32> to vector<8x128xf32>
    %570 = arith.addf %566, %569 : vector<8x128xf32>
    %571 = arith.addf %554, %570 : vector<8x128xf32>
    %c3_268 = arith.constant 3 : index
    %c0_269 = arith.constant 0 : index
    %c0_270 = arith.constant 0 : index
    %572 = vector.load %arg17[%c3_268, %c0_269, %c0_270] : memref<4x1x128xf32, #tpu.memory_space<vmem>>, vector<1x1x128xf32>
    %573 = vector.shape_cast %572 : vector<1x1x128xf32> to vector<1x128xf32>
    %c3_271 = arith.constant 3 : index
    %c0_272 = arith.constant 0 : index
    %c0_273 = arith.constant 0 : index
    %574 = vector.load %arg18[%c3_271, %c0_272, %c0_273] : memref<4x1x128xf32, #tpu.memory_space<vmem>>, vector<1x1x128xf32>
    %575 = vector.shape_cast %574 : vector<1x1x128xf32> to vector<1x128xf32>
    %cst_274 = arith.constant dense<0.000000e+00> : vector<8xf32>
    %576 = vector.multi_reduction <add>, %571, %cst_274 [1] : vector<8x128xf32> to vector<8xf32>
    %577 = vector.shape_cast %576 : vector<8xf32> to vector<8x1xf32>
    %578 = arith.mulf %571, %571 : vector<8x128xf32>
    %cst_275 = arith.constant dense<0.000000e+00> : vector<8xf32>
    %579 = vector.multi_reduction <add>, %578, %cst_275 [1] : vector<8x128xf32> to vector<8xf32>
    %580 = vector.shape_cast %579 : vector<8xf32> to vector<8x1xf32>
    %cst_276 = arith.constant 0.0333333351 : f32
    %581 = vector.broadcast %cst_276 : f32 to vector<8x1xf32>
    %582 = arith.mulf %577, %581 : vector<8x1xf32>
    %cst_277 = arith.constant 0.0333333351 : f32
    %583 = vector.broadcast %cst_277 : f32 to vector<8x1xf32>
    %584 = arith.mulf %580, %583 : vector<8x1xf32>
    %585 = arith.mulf %582, %582 : vector<8x1xf32>
    %586 = arith.subf %584, %585 : vector<8x1xf32>
    %cst_278 = arith.constant 0.000000e+00 : f32
    %587 = vector.broadcast %cst_278 : f32 to vector<8x1xf32>
    %588 = arith.maximumf %586, %587 : vector<8x1xf32>
    %589 = vector.broadcast %582 : vector<8x1xf32> to vector<8x128xf32>
    %590 = arith.subf %571, %589 : vector<8x128xf32>
    %cst_279 = arith.constant 9.99999974E-6 : f32
    %591 = vector.broadcast %cst_279 : f32 to vector<8x1xf32>
    %592 = arith.addf %588, %591 : vector<8x1xf32>
    %593 = math.rsqrt %592 : vector<8x1xf32>
    %594 = vector.broadcast %593 : vector<8x1xf32> to vector<8x128xf32>
    %595 = arith.mulf %590, %594 : vector<8x128xf32>
    %596 = vector.broadcast %573 : vector<1x128xf32> to vector<8x128xf32>
    %597 = arith.mulf %595, %596 : vector<8x128xf32>
    %598 = vector.broadcast %575 : vector<1x128xf32> to vector<8x128xf32>
    %599 = arith.addf %597, %598 : vector<8x128xf32>
    %c0_280 = arith.constant 0 : index
    %c0_281 = arith.constant 0 : index
    %600 = vector.load %arg19[%c0_280, %c0_281] : memref<128x128xf32, #tpu.memory_space<vmem>>, vector<128x128xf32>
    %cst_282 = arith.constant dense<0.000000e+00> : vector<8x128xf32>
    %601 = tpu.matmul %599, %600, %cst_282 {dimension_numbers = #tpu.dot_dimension_numbers<[1], [0], [0], [1], [0, 0, 1, 1], [], []>} : vector<8x128xf32>, vector<128x128xf32>, vector<8x128xf32> -> vector<8x128xf32>
    %c0_283 = arith.constant 0 : index
    %c0_284 = arith.constant 0 : index
    %602 = vector.load %arg20[%c0_283, %c0_284] : memref<1x128xf32, #tpu.memory_space<vmem>>, vector<1x128xf32>
    %603 = vector.broadcast %602 : vector<1x128xf32> to vector<8x128xf32>
    %604 = arith.addf %601, %603 : vector<8x128xf32>
    %c0_285 = arith.constant 0 : index
    %c0_286 = arith.constant 0 : index
    %605 = vector.load %arg22[%c0_285, %c0_286] : memref<8x128xf32, #tpu.memory_space<vmem>>, vector<8x128xf32>
    tpu.vector_store %arg22[%c0_285, %c0_286], %604 {strides = array<i32>} : memref<8x128xf32, #tpu.memory_space<vmem>>, vector<8x128xf32>,
    return
  }
}

</mosaic_0001>

<llo_original>
// kernel: model_forward.1
$region0: #{model_forward.1}
  #allocation0 [shape = 'u32[]', space=smem, size = 0x4, offset = 0x4, fixed_abs, tag = 'smem constant byte address 0x4 - core index']
  #allocation1 [shape = 'u32[144,128]{1,0:T(1,128)}', space=vmem, size = 0x12000, scoped, tag = 'internal scratch']
  %s0 = inlined_call_operand.vmem [shape: f32[8,21], index: 0, kind: input, shape index: {}]
  %s1 = inlined_call_operand.hbm [shape: f32[21,128], index: 1, kind: input, shape index: {}]
  %s2 = inlined_call_operand.hbm [shape: f32[1,128], index: 2, kind: input, shape index: {}]
  %s3 = inlined_call_operand.hbm [shape: f32[1,128], index: 3, kind: input, shape index: {}]
  %s4 = inlined_call_operand.hbm [shape: f32[1,128], index: 4, kind: input, shape index: {}]
  %s5 = inlined_call_operand.hbm [shape: f32[128,128], index: 5, kind: input, shape index: {}]
  %s6 = inlined_call_operand.hbm [shape: f32[1,128], index: 6, kind: input, shape index: {}]
  %s7 = inlined_call_operand.hbm [shape: f32[4,128,1152], index: 7, kind: input, shape index: {}]
  %s8 = inlined_call_operand.hbm [shape: f32[4,1,1152], index: 8, kind: input, shape index: {}]
  %s9 = inlined_call_operand.hbm [shape: f32[4,384,128], index: 9, kind: input, shape index: {}]
  %s10 = inlined_call_operand.hbm [shape: f32[4,1,128], index: 10, kind: input, shape index: {}]
  %s11 = inlined_call_operand.hbm [shape: f32[4,1,128], index: 11, kind: input, shape index: {}]
  %s12 = inlined_call_operand.hbm [shape: f32[4,1,128], index: 12, kind: input, shape index: {}]
  %s13 = inlined_call_operand.hbm [shape: f32[4,128,512], index: 13, kind: input, shape index: {}]
  %s14 = inlined_call_operand.hbm [shape: f32[4,1,512], index: 14, kind: input, shape index: {}]
  %s15 = inlined_call_operand.hbm [shape: f32[4,512,128], index: 15, kind: input, shape index: {}]
  %s16 = inlined_call_operand.hbm [shape: f32[4,1,128], index: 16, kind: input, shape index: {}]
  %s17 = inlined_call_operand.hbm [shape: f32[4,1,128], index: 17, kind: input, shape index: {}]
  %s18 = inlined_call_operand.hbm [shape: f32[4,1,128], index: 18, kind: input, shape index: {}]
  %s19 = inlined_call_operand.hbm [shape: f32[128,128], index: 19, kind: input, shape index: {}]
  %s20 = inlined_call_operand.hbm [shape: f32[1,128], index: 20, kind: input, shape index: {}]
  %s21 = inlined_call_operand.hbm [shape: f32[1,8], index: 21, kind: input, shape index: {}]
  %s22 = inlined_call_operand.vmem [shape: f32[8,128], index: 22, kind: output, shape index: {}]
  %s23 = sld [smem:[#allocation0]]
  $region182: #{model_forward.1} parent=0
    _
  %s25 = ssub.s32 1, %s23
  %s26 = scalar_select 0, %s25, %s23
  $region1: #{model_forward.1} parent=0
    #allocation2 [shape = 'u8[12288]{0}', space=vmem, size = 0x3000, scoped, tag = 'input window, operand 1, single buffered']
    #allocation3 [shape = 's32[1]{0}', space=sflag, size = 0x4, scoped, tag = 'scoped memory for model_forward.1']
    #allocation4 [shape = 'u8[512]{0}', space=vmem, size = 0x400, scoped, tag = 'input window, operand 2, single buffered']
    #allocation5 [shape = 's32[1]{0}', space=sflag, size = 0x4, scoped, tag = 'scoped memory for model_forward.1']
    #allocation6 [shape = 'u8[512]{0}', space=vmem, size = 0x400, scoped, tag = 'input window, operand 3, single buffered']
    #allocation7 [shape = 'u8[512]{0}', space=vmem, size = 0x400, scoped, tag = 'input window, operand 4, single buffered']
    #allocation8 [shape = 's32[1]{0}', space=sflag, size = 0x4, scoped, tag = 'scoped memory for model_forward.1']
    #allocation9 [shape = 'u8[65536]{0}', space=vmem, size = 0x10000, scoped, tag = 'input window, operand 5, single buffered']
    #allocation10 [shape = 'u8[512]{0}', space=vmem, size = 0x400, scoped, tag = 'input window, operand 6, single buffered']
    #allocation11 [shape = 's32[1]{0}', space=sflag, size = 0x4, scoped, tag = 'scoped memory for model_forward.1']
    #allocation12 [shape = 'u8[2359296]{0}', space=vmem, size = 0x240000, scoped, tag = 'input window, operand 7, single buffered']
    #allocation13 [shape = 'u8[18432]{0}', space=vmem, size = 0x4800, scoped, tag = 'input window, operand 8, single buffered']
    #allocation14 [shape = 's32[1]{0}', space=sflag, size = 0x4, scoped, tag = 'scoped memory for model_forward.1']
    #allocation15 [shape = 'u8[786432]{0}', space=vmem, size = 0xc0000, scoped, tag = 'input window, operand 9, single buffered']
    #allocation16 [shape = 'u8[2048]{0}', space=vmem, size = 0x800, scoped, tag = 'input window, operand 10, single buffered']
    #allocation17 [shape = 's32[1]{0}', space=sflag, size = 0x4, scoped, tag = 'scoped memory for model_forward.1']
    #allocation18 [shape = 'u8[2048]{0}', space=vmem, size = 0x800, scoped, tag = 'input window, operand 11, single buffered']
    #allocation19 [shape = 'u8[2048]{0}', space=vmem, size = 0x800, scoped, tag = 'input window, operand 12, single buffered']
    #allocation20 [shape = 's32[1]{0}', space=sflag, size = 0x4, scoped, tag = 'scoped memory for model_forward.1']
    #allocation21 [shape = 'u8[1048576]{0}', space=vmem, size = 0x100000, scoped, tag = 'input window, operand 13, single buffered']
    #allocation22 [shape = 'u8[8192]{0}', space=vmem, size = 0x2000, scoped, tag = 'input window, operand 14, single buffered']
    #allocation23 [shape = 's32[1]{0}', space=sflag, size = 0x4, scoped, tag = 'scoped memory for model_forward.1']
    #allocation24 [shape = 'u8[1048576]{0}', space=vmem, size = 0x100000, scoped, tag = 'input window, operand 15, single buffered']
    #allocation25 [shape = 'u8[2048]{0}', space=vmem, size = 0x800, scoped, tag = 'input window, operand 16, single buffered']
    #allocation26 [shape = 's32[1]{0}', space=sflag, size = 0x4, scoped, tag = 'scoped memory for model_forward.1']
    #allocation27 [shape = 'u8[2048]{0}', space=vmem, size = 0x800, scoped, tag = 'input window, operand 17, single buffered']
    #allocation28 [shape = 'u8[2048]{0}', space=vmem, size = 0x800, scoped, tag = 'input window, operand 18, single buffered']
    #allocation29 [shape = 's32[1]{0}', space=sflag, size = 0x4, scoped, tag = 'scoped memory for model_forward.1']
    #allocation30 [shape = 'u8[65536]{0}', space=vmem, size = 0x10000, scoped, tag = 'input window, operand 19, single buffered']
    #allocation31 [shape = 'u8[512]{0}', space=vmem, size = 0x400, scoped, tag = 'input window, operand 20, single buffered']
    #allocation32 [shape = 's32[1]{0}', space=sflag, size = 0x4, scoped, tag = 'scoped memory for model_forward.1']
    #allocation33 [shape = 'u8[512]{0}', space=vmem, size = 0x400, scoped, tag = 'input window, operand 21, single buffered']
    %27 = vsyncpa [#allocation3], 0
    %28 = vsyncpa [#allocation5], 0
    %29 = vsyncpa [#allocation8], 0
    %30 = vsyncpa [#allocation11], 0
    %31 = vsyncpa [#allocation14], 0
    %32 = vsyncpa [#allocation17], 0
    %33 = vsyncpa [#allocation20], 0
    %34 = vsyncpa [#allocation23], 0
    %35 = vsyncpa [#allocation26], 0
    %36 = vsyncpa [#allocation29], 0
    %37 = vsyncpa [#allocation32], 0
    // Predicated region
    $region2: #{model_forward.1} parent=1 // pred_check
      _
    $region3: #{model_forward.1} parent=1 // pred_check_branch
      %39 = sbr.rel (0) target = $region5
    $region4: #{model_forward.1} parent=1 // pred_region
      _
    $region5: #{model_forward.1} parent=1 // pred_fallthru
      _
    // Predicated region
    $region6: #{model_forward.1} parent=1 // pred_check
      _
    $region7: #{model_forward.1} parent=1 // pred_check_branch
      %41 = sbr.rel (0) target = $region9
    $region8: #{model_forward.1} parent=1 // pred_region
      %s43 = ssub.s32 384, 384
      %44 = vsyncadd [#allocation3], %s43
      %s45 = sshll.u32 [#allocation2], 4
      %s46 = int_to_ptr.vmem [resolvable:$true] %s45
      %51 = dma.hbm_to_vmem [thread:$0]  %s1, 384, %s46, [#allocation3], 128, 128, 8
    $region9: #{model_forward.1} parent=1 // pred_fallthru
      _
    // Predicated region
    $region10: #{model_forward.1} parent=1 // pred_check
      _
    $region11: #{model_forward.1} parent=1 // pred_check_branch
      %53 = sbr.rel (0) target = $region13
    $region12: #{model_forward.1} parent=1 // pred_region
      %s55 = ssub.s32 16, 16
      %56 = vsyncadd [#allocation5], %s55
      %s58 = sshll.u32 [#allocation4], 4
      %s59 = int_to_ptr.vmem [resolvable:$true] %s58
      %61 = dma.hbm_to_vmem [thread:$0]  %s2, 16, %s59, [#allocation5]
    $region13: #{model_forward.1} parent=1 // pred_fallthru
      _
    // Predicated region
    $region14: #{model_forward.1} parent=1 // pred_check
      _
    $region15: #{model_forward.1} parent=1 // pred_check_branch
      %63 = sbr.rel (0) target = $region17
    $region16: #{model_forward.1} parent=1 // pred_region
      %s65 = ssub.s32 16, 16
      %66 = vsyncadd [#allocation5], %s65
      %s68 = sshll.u32 [#allocation6], 4
      %s69 = int_to_ptr.vmem [resolvable:$true] %s68
      %71 = dma.hbm_to_vmem [thread:$0]  %s3, 16, %s69, [#allocation5]
    $region17: #{model_forward.1} parent=1 // pred_fallthru
      _
    // Predicated region
    $region18: #{model_forward.1} parent=1 // pred_check
      _
    $region19: #{model_forward.1} parent=1 // pred_check_branch
      %73 = sbr.rel (0) target = $region21
    $region20: #{model_forward.1} parent=1 // pred_region
      %s75 = ssub.s32 16, 16
      %76 = vsyncadd [#allocation8], %s75
      %s78 = sshll.u32 [#allocation7], 4
      %s79 = int_to_ptr.vmem [resolvable:$true] %s78
      %81 = dma.hbm_to_vmem [thread:$0]  %s4, 16, %s79, [#allocation8]
    $region21: #{model_forward.1} parent=1 // pred_fallthru
      _
    // Predicated region
    $region22: #{model_forward.1} parent=1 // pred_check
      _
    $region23: #{model_forward.1} parent=1 // pred_check_branch
      %83 = sbr.rel (0) target = $region25
    $region24: #{model_forward.1} parent=1 // pred_region
      %s85 = ssub.s32 2048, 2048
      %86 = vsyncadd [#allocation8], %s85
      %s87 = sshll.u32 [#allocation9], 4
      %s88 = int_to_ptr.vmem [resolvable:$true] %s87
      %93 = dma.hbm_to_vmem [thread:$0]  %s5, 2048, %s88, [#allocation8], 128, 128, 8
    $region25: #{model_forward.1} parent=1 // pred_fallthru
      _
    // Predicated region
    $region26: #{model_forward.1} parent=1 // pred_check
      _
    $region27: #{model_forward.1} parent=1 // pred_check_branch
      %95 = sbr.rel (0) target = $region29
    $region28: #{model_forward.1} parent=1 // pred_region
      %s97 = ssub.s32 16, 16
      %98 = vsyncadd [#allocation11], %s97
      %s100 = sshll.u32 [#allocation10], 4
      %s101 = int_to_ptr.vmem [resolvable:$true] %s100
      %103 = dma.hbm_to_vmem [thread:$0]  %s6, 16, %s101, [#allocation11]
    $region29: #{model_forward.1} parent=1 // pred_fallthru
      _
    // Predicated region
    $region30: #{model_forward.1} parent=1 // pred_check
      _
    $region31: #{model_forward.1} parent=1 // pred_check_branch
      %105 = sbr.rel (0) target = $region33
    $region32: #{model_forward.1} parent=1 // pred_region
      %s107 = ssub.s32 73728, 73728
      %108 = vsyncadd [#allocation11], %s107
      %s109 = sshll.u32 [#allocation12], 4
      %s110 = int_to_ptr.vmem [resolvable:$true] %s109
      %115 = dma.hbm_to_vmem [thread:$0]  %s7, 73728, %s110, [#allocation11], 1152, 1152, 72
    $region33: #{model_forward.1} parent=1 // pred_fallthru
      _
    // Predicated region
    $region34: #{model_forward.1} parent=1 // pred_check
      _
    $region35: #{model_forward.1} parent=1 // pred_check_branch
      %117 = sbr.rel (0) target = $region37
    $region36: #{model_forward.1} parent=1 // pred_region
      %s119 = ssub.s32 576, 576
      %120 = vsyncadd [#allocation14], %s119
      %s121 = sshll.u32 [#allocation13], 4
      %s122 = int_to_ptr.vmem [resolvable:$true] %s121
      %127 = dma.hbm_to_vmem [thread:$0]  %s8, 576, %s122, [#allocation14], 144, 144, 9
    $region37: #{model_forward.1} parent=1 // pred_fallthru
      _
    // Predicated region
    $region38: #{model_forward.1} parent=1 // pred_check
      _
    $region39: #{model_forward.1} parent=1 // pred_check_branch
      %129 = sbr.rel (0) target = $region41
    $region40: #{model_forward.1} parent=1 // pred_region
      %s131 = ssub.s32 24576, 24576
      %132 = vsyncadd [#allocation14], %s131
      %s133 = sshll.u32 [#allocation15], 4
      %s134 = int_to_ptr.vmem [resolvable:$true] %s133
      %139 = dma.hbm_to_vmem [thread:$0]  %s9, 24576, %s134, [#allocation14], 128, 128, 8
    $region41: #{model_forward.1} parent=1 // pred_fallthru
      _
    // Predicated region
    $region42: #{model_forward.1} parent=1 // pred_check
      _
    $region43: #{model_forward.1} parent=1 // pred_check_branch
      %141 = sbr.rel (0) target = $region45
    $region44: #{model_forward.1} parent=1 // pred_region
      %s143 = ssub.s32 64, 64
      %144 = vsyncadd [#allocation17], %s143
      %s145 = sshll.u32 [#allocation16], 4
      %s146 = int_to_ptr.vmem [resolvable:$true] %s145
      %151 = dma.hbm_to_vmem [thread:$0]  %s10, 64, %s146, [#allocation17], 16, 16, 1
    $region45: #{model_forward.1} parent=1 // pred_fallthru
      _
    // Predicated region
    $region46: #{model_forward.1} parent=1 // pred_check
      _
    $region47: #{model_forward.1} parent=1 // pred_check_branch
      %153 = sbr.rel (0) target = $region49
    $region48: #{model_forward.1} parent=1 // pred_region
      %s155 = ssub.s32 64, 64
      %156 = vsyncadd [#allocation17], %s155
      %s157 = sshll.u32 [#allocation18], 4
      %s158 = int_to_ptr.vmem [resolvable:$true] %s157
      %163 = dma.hbm_to_vmem [thread:$0]  %s11, 64, %s158, [#allocation17], 16, 16, 1
    $region49: #{model_forward.1} parent=1 // pred_fallthru
      _
    // Predicated region
    $region50: #{model_forward.1} parent=1 // pred_check
      _
    $region51: #{model_forward.1} parent=1 // pred_check_branch
      %165 = sbr.rel (0) target = $region53
    $region52: #{model_forward.1} parent=1 // pred_region
      %s167 = ssub.s32 64, 64
      %168 = vsyncadd [#allocation20], %s167
      %s169 = sshll.u32 [#allocation19], 4
      %s170 = int_to_ptr.vmem [resolvable:$true] %s169
      %175 = dma.hbm_to_vmem [thread:$0]  %s12, 64, %s170, [#allocation20], 16, 16, 1
    $region53: #{model_forward.1} parent=1 // pred_fallthru
      _
    // Predicated region
    $region54: #{model_forward.1} parent=1 // pred_check
      _
    $region55: #{model_forward.1} parent=1 // pred_check_branch
      %177 = sbr.rel (0) target = $region57
    $region56: #{model_forward.1} parent=1 // pred_region
      %s179 = ssub.s32 32768, 32768
      %180 = vsyncadd [#allocation20], %s179
      %s181 = sshll.u32 [#allocation21], 4
      %s182 = int_to_ptr.vmem [resolvable:$true] %s181
      %187 = dma.hbm_to_vmem [thread:$0]  %s13, 32768, %s182, [#allocation20], 512, 512, 32
    $region57: #{model_forward.1} parent=1 // pred_fallthru
      _
    // Predicated region
    $region58: #{model_forward.1} parent=1 // pred_check
      _
    $region59: #{model_forward.1} parent=1 // pred_check_branch
      %189 = sbr.rel (0) target = $region61
    $region60: #{model_forward.1} parent=1 // pred_region
      %s191 = ssub.s32 256, 256
      %192 = vsyncadd [#allocation23], %s191
      %s193 = sshll.u32 [#allocation22], 4
      %s194 = int_to_ptr.vmem [resolvable:$true] %s193
      %199 = dma.hbm_to_vmem [thread:$0]  %s14, 256, %s194, [#allocation23], 64, 64, 4
    $region61: #{model_forward.1} parent=1 // pred_fallthru
      _
    // Predicated region
    $region62: #{model_forward.1} parent=1 // pred_check
      _
    $region63: #{model_forward.1} parent=1 // pred_check_branch
      %201 = sbr.rel (0) target = $region65
    $region64: #{model_forward.1} parent=1 // pred_region
      %s203 = ssub.s32 32768, 32768
      %204 = vsyncadd [#allocation23], %s203
      %s205 = sshll.u32 [#allocation24], 4
      %s206 = int_to_ptr.vmem [resolvable:$true] %s205
      %211 = dma.hbm_to_vmem [thread:$0]  %s15, 32768, %s206, [#allocation23], 128, 128, 8
    $region65: #{model_forward.1} parent=1 // pred_fallthru
      _
    // Predicated region
    $region66: #{model_forward.1} parent=1 // pred_check
      _
    $region67: #{model_forward.1} parent=1 // pred_check_branch
      %213 = sbr.rel (0) target = $region69
    $region68: #{model_forward.1} parent=1 // pred_region
      %s215 = ssub.s32 64, 64
      %216 = vsyncadd [#allocation26], %s215
      %s217 = sshll.u32 [#allocation25], 4
      %s218 = int_to_ptr.vmem [resolvable:$true] %s217
      %223 = dma.hbm_to_vmem [thread:$0]  %s16, 64, %s218, [#allocation26], 16, 16, 1
    $region69: #{model_forward.1} parent=1 // pred_fallthru
      _
    // Predicated region
    $region70: #{model_forward.1} parent=1 // pred_check
      _
    $region71: #{model_forward.1} parent=1 // pred_check_branch
      %225 = sbr.rel (0) target = $region73
    $region72: #{model_forward.1} parent=1 // pred_region
      %s227 = ssub.s32 64, 64
      %228 = vsyncadd [#allocation26], %s227
      %s229 = sshll.u32 [#allocation27], 4
      %s230 = int_to_ptr.vmem [resolvable:$true] %s229
      %235 = dma.hbm_to_vmem [thread:$0]  %s17, 64, %s230, [#allocation26], 16, 16, 1
    $region73: #{model_forward.1} parent=1 // pred_fallthru
      _
    // Predicated region
    $region74: #{model_forward.1} parent=1 // pred_check
      _
    $region75: #{model_forward.1} parent=1 // pred_check_branch
      %237 = sbr.rel (0) target = $region77
    $region76: #{model_forward.1} parent=1 // pred_region
      %s239 = ssub.s32 64, 64
      %240 = vsyncadd [#allocation29], %s239
      %s241 = sshll.u32 [#allocation28], 4
      %s242 = int_to_ptr.vmem [resolvable:$true] %s241
      %247 = dma.hbm_to_vmem [thread:$0]  %s18, 64, %s242, [#allocation29], 16, 16, 1
    $region77: #{model_forward.1} parent=1 // pred_fallthru
      _
    // Predicated region
    $region78: #{model_forward.1} parent=1 // pred_check
      _
    $region79: #{model_forward.1} parent=1 // pred_check_branch
      %249 = sbr.rel (0) target = $region81
    $region80: #{model_forward.1} parent=1 // pred_region
      %s251 = ssub.s32 2048, 2048
      %252 = vsyncadd [#allocation29], %s251
      %s253 = sshll.u32 [#allocation30], 4
      %s254 = int_to_ptr.vmem [resolvable:$true] %s253
      %259 = dma.hbm_to_vmem [thread:$0]  %s19, 2048, %s254, [#allocation29], 128, 128, 8
    $region81: #{model_forward.1} parent=1 // pred_fallthru
      _
    // Predicated region
    $region82: #{model_forward.1} parent=1 // pred_check
      _
    $region83: #{model_forward.1} parent=1 // pred_check_branch
      %261 = sbr.rel (0) target = $region85
    $region84: #{model_forward.1} parent=1 // pred_region
      %s263 = ssub.s32 16, 16
      %264 = vsyncadd [#allocation32], %s263
      %s266 = sshll.u32 [#allocation31], 4
      %s267 = int_to_ptr.vmem [resolvable:$true] %s266
      %269 = dma.hbm_to_vmem [thread:$0]  %s20, 16, %s267, [#allocation32]
    $region85: #{model_forward.1} parent=1 // pred_fallthru
      _
    // Predicated region
    $region86: #{model_forward.1} parent=1 // pred_check
      _
    $region87: #{model_forward.1} parent=1 // pred_check_branch
      %271 = sbr.rel (0) target = $region89
    $region88: #{model_forward.1} parent=1 // pred_region
      %s273 = ssub.s32 16, 16
      %274 = vsyncadd [#allocation32], %s273
      %s276 = sshll.u32 [#allocation33], 4
      %s277 = int_to_ptr.vmem [resolvable:$true] %s276
      %279 = dma.hbm_to_vmem [thread:$0]  %s21, 16, %s277, [#allocation32]
    $region89: #{model_forward.1} parent=1 // pred_fallthru
      _
    // Predicated region
    $region90: #{model_forward.1} parent=1 // pred_check
      _
    $region91: #{model_forward.1} parent=1 // pred_check_branch
      %281 = sbr.rel (0) target = $region93
    $region92: #{model_forward.1} parent=1 // pred_region
      %282 = dma.done [#allocation3], 384
    $region93: #{model_forward.1} parent=1 // pred_fallthru
      _
    // Predicated region
    $region94: #{model_forward.1} parent=1 // pred_check
      _
    $region95: #{model_forward.1} parent=1 // pred_check_branch
      %284 = sbr.rel (0) target = $region97
    $region96: #{model_forward.1} parent=1 // pred_region
      %285 = dma.done [#allocation5], 16
    $region97: #{model_forward.1} parent=1 // pred_fallthru
      _
    // Predicated region
    $region98: #{model_forward.1} parent=1 // pred_check
      _
    $region99: #{model_forward.1} parent=1 // pred_check_branch
      %287 = sbr.rel (0) target = $region101
    $region100: #{model_forward.1} parent=1 // pred_region
      %288 = dma.done [#allocation5], 16
    $region101: #{model_forward.1} parent=1 // pred_fallthru
      _
    // Predicated region
    $region102: #{model_forward.1} parent=1 // pred_check
      _
    $region103: #{model_forward.1} parent=1 // pred_check_branch
      %290 = sbr.rel (0) target = $region105
    $region104: #{model_forward.1} parent=1 // pred_region
      %291 = dma.done [#allocation8], 16
    $region105: #{model_forward.1} parent=1 // pred_fallthru
      _
    // Predicated region
    $region106: #{model_forward.1} parent=1 // pred_check
      _
    $region107: #{model_forward.1} parent=1 // pred_check_branch
      %293 = sbr.rel (0) target = $region109
    $region108: #{model_forward.1} parent=1 // pred_region
      %294 = dma.done [#allocation8], 2048
    $region109: #{model_forward.1} parent=1 // pred_fallthru
      _
    // Predicated region
    $region110: #{model_forward.1} parent=1 // pred_check
      _
    $region111: #{model_forward.1} parent=1 // pred_check_branch
      %296 = sbr.rel (0) target = $region113
    $region112: #{model_forward.1} parent=1 // pred_region
      %297 = dma.done [#allocation11], 16
    $region113: #{model_forward.1} parent=1 // pred_fallthru
      _
    // Predicated region
    $region114: #{model_forward.1} parent=1 // pred_check
      _
    $region115: #{model_forward.1} parent=1 // pred_check_branch
      %299 = sbr.rel (0) target = $region117
    $region116: #{model_forward.1} parent=1 // pred_region
      %300 = dma.done [#allocation11], 73728
    $region117: #{model_forward.1} parent=1 // pred_fallthru
      _
    // Predicated region
    $region118: #{model_forward.1} parent=1 // pred_check
      _
    $region119: #{model_forward.1} parent=1 // pred_check_branch
      %302 = sbr.rel (0) target = $region121
    $region120: #{model_forward.1} parent=1 // pred_region
      %303 = dma.done [#allocation14], 576
    $region121: #{model_forward.1} parent=1 // pred_fallthru
      _
    // Predicated region
    $region122: #{model_forward.1} parent=1 // pred_check
      _
    $region123: #{model_forward.1} parent=1 // pred_check_branch
      %305 = sbr.rel (0) target = $region125
    $region124: #{model_forward.1} parent=1 // pred_region
      %306 = dma.done [#allocation14], 24576
    $region125: #{model_forward.1} parent=1 // pred_fallthru
      _
    // Predicated region
    $region126: #{model_forward.1} parent=1 // pred_check
      _
    $region127: #{model_forward.1} parent=1 // pred_check_branch
      %308 = sbr.rel (0) target = $region129
    $region128: #{model_forward.1} parent=1 // pred_region
      %309 = dma.done [#allocation17], 64
    $region129: #{model_forward.1} parent=1 // pred_fallthru
      _
    // Predicated region
    $region130: #{model_forward.1} parent=1 // pred_check
      _
    $region131: #{model_forward.1} parent=1 // pred_check_branch
      %311 = sbr.rel (0) target = $region133
    $region132: #{model_forward.1} parent=1 // pred_region
      %312 = dma.done [#allocation17], 64
    $region133: #{model_forward.1} parent=1 // pred_fallthru
      _
    // Predicated region
    $region134: #{model_forward.1} parent=1 // pred_check
      _
    $region135: #{model_forward.1} parent=1 // pred_check_branch
      %314 = sbr.rel (0) target = $region137
    $region136: #{model_forward.1} parent=1 // pred_region
      %315 = dma.done [#allocation20], 64
    $region137: #{model_forward.1} parent=1 // pred_fallthru
      _
    // Predicated region
    $region138: #{model_forward.1} parent=1 // pred_check
      _
    $region139: #{model_forward.1} parent=1 // pred_check_branch
      %317 = sbr.rel (0) target = $region141
    $region140: #{model_forward.1} parent=1 // pred_region
      %318 = dma.done [#allocation20], 32768
    $region141: #{model_forward.1} parent=1 // pred_fallthru
      _
    // Predicated region
    $region142: #{model_forward.1} parent=1 // pred_check
      _
    $region143: #{model_forward.1} parent=1 // pred_check_branch
      %320 = sbr.rel (0) target = $region145
    $region144: #{model_forward.1} parent=1 // pred_region
      %321 = dma.done [#allocation23], 256
    $region145: #{model_forward.1} parent=1 // pred_fallthru
      _
    // Predicated region
    $region146: #{model_forward.1} parent=1 // pred_check
      _
    $region147: #{model_forward.1} parent=1 // pred_check_branch
      %323 = sbr.rel (0) target = $region149
    $region148: #{model_forward.1} parent=1 // pred_region
      %324 = dma.done [#allocation23], 32768
    $region149: #{model_forward.1} parent=1 // pred_fallthru
      _
    // Predicated region
    $region150: #{model_forward.1} parent=1 // pred_check
      _
    $region151: #{model_forward.1} parent=1 // pred_check_branch
      %326 = sbr.rel (0) target = $region153
    $region152: #{model_forward.1} parent=1 // pred_region
      %327 = dma.done [#allocation26], 64
    $region153: #{model_forward.1} parent=1 // pred_fallthru
      _
    // Predicated region
    $region154: #{model_forward.1} parent=1 // pred_check
      _
    $region155: #{model_forward.1} parent=1 // pred_check_branch
      %329 = sbr.rel (0) target = $region157
    $region156: #{model_forward.1} parent=1 // pred_region
      %330 = dma.done [#allocation26], 64
    $region157: #{model_forward.1} parent=1 // pred_fallthru
      _
    // Predicated region
    $region158: #{model_forward.1} parent=1 // pred_check
      _
    $region159: #{model_forward.1} parent=1 // pred_check_branch
      %332 = sbr.rel (0) target = $region161
    $region160: #{model_forward.1} parent=1 // pred_region
      %333 = dma.done [#allocation29], 64
    $region161: #{model_forward.1} parent=1 // pred_fallthru
      _
    // Predicated region
    $region162: #{model_forward.1} parent=1 // pred_check
      _
    $region163: #{model_forward.1} parent=1 // pred_check_branch
      %335 = sbr.rel (0) target = $region165
    $region164: #{model_forward.1} parent=1 // pred_region
      %336 = dma.done [#allocation29], 2048
    $region165: #{model_forward.1} parent=1 // pred_fallthru
      _
    // Predicated region
    $region166: #{model_forward.1} parent=1 // pred_check
      _
    $region167: #{model_forward.1} parent=1 // pred_check_branch
      %338 = sbr.rel (0) target = $region169
    $region168: #{model_forward.1} parent=1 // pred_region
      %339 = dma.done [#allocation32], 16
    $region169: #{model_forward.1} parent=1 // pred_fallthru
      _
    // Predicated region
    $region170: #{model_forward.1} parent=1 // pred_check
      _
    $region171: #{model_forward.1} parent=1 // pred_check_branch
      %341 = sbr.rel (0) target = $region173
    $region172: #{model_forward.1} parent=1 // pred_region
      %342 = dma.done [#allocation32], 16
    $region173: #{model_forward.1} parent=1 // pred_fallthru
      _
    %v343 = vld [vmem:[%s0] sm:$0xff]
    %v344 = vld [vmem:[#allocation2] sm:$0xff]
    %v345 = vld [vmem:[#allocation2 + $0x8] sm:$0xff]
    %v346 = vld [vmem:[#allocation2 + $0x10] sm:$0x1f]
    %v347 = vld [vmem:[#allocation4] sm:$0x1]
    %v349 = vlaneseq
    %v350 = vshrl.u32 %v349, 7
    %v351 = vsub.s32 0, %v350
    %v352 = vrot.slane %v347, %v351
    %vm354 = vcmask 171008
    %v356 = vsel %vm354, %v343, 0
    %vm358 = vcmask 1044480
    %v360 = vsel %vm358, %v346, 0
    %362 = vmatprep.subr.mxu0 0.0
    %363 = vmatpush1.msra.mxu0 %v344
    %364 = vmatprep.subr.mxu0 0.0
    %365 = vmatpush1.msra.mxu0 %v345
    %366 = vmatprep.subr.mxu0 0.0
    %367 = vmatpush1.msra.mxu0 %v360
    %368 = vmatprep.subr.mxu0 0.0
    %369 = vmatpush1.msra.mxu0 0.0
    %370 = vmatprep.subr.mxu0 0.0
    %371 = vmatpush1.msra.mxu0 0.0
    %372 = vmatprep.subr.mxu0 0.0
    %373 = vmatpush1.msra.mxu0 0.0
    %374 = vmatprep.subr.mxu0 0.0
    %375 = vmatpush1.msra.mxu0 0.0
    %376 = vmatprep.subr.mxu0 0.0
    %377 = vmatpush1.msra.mxu0 0.0
    %378 = vmatprep.subr.mxu0 0.0
    %379 = vmatpush1.msra.mxu0 0.0
    %380 = vmatprep.subr.mxu0 0.0
    %381 = vmatpush1.msra.mxu0 0.0
    %382 = vmatprep.subr.mxu0 0.0
    %383 = vmatpush1.msra.mxu0 0.0
    %384 = vmatprep.subr.mxu0 0.0
    %385 = vmatpush1.msra.mxu0 0.0
    %386 = vmatprep.subr.mxu0 0.0
    %387 = vmatpush1.msra.mxu0 0.0
    %388 = vmatprep.subr.mxu0 0.0
    %389 = vmatpush1.msra.mxu0 0.0
    %390 = vmatprep.subr.mxu0 0.0
    %391 = vmatpush1.msra.mxu0 0.0
    %392 = vmatprep.subr.mxu0 0.0
    %393 = vmatpush1.msra.mxu0 0.0
    %394 = vmatprep.subr.mxu0 0.0
    %395 = vmatpush1.msra.mxu0 0.0
    %396 = vmatprep.subr.mxu0 0.0
    %397 = vmatpush1.msra.mxu0 0.0
    %398 = vmatprep.subr.mxu0 0.0
    %399 = vmatpush1.msra.mxu0 0.0
    %400 = vmatprep.subr.mxu0 0.0
    %401 = vmatpush1.msra.mxu0 0.0
    %402 = vmatprep.subr.mxu0 0.0
    %403 = vmatpush1.msra.mxu0 0.0
    %404 = vmatprep.subr.mxu0 0.0
    %405 = vmatpush1.msra.mxu0 0.0
    %406 = vmatprep.subr.mxu0 0.0
    %407 = vmatpush1.msra.mxu0 0.0
    %408 = vmatprep.subr.mxu0 0.0
    %409 = vmatpush1.msra.mxu0 0.0
    %410 = vmatprep.subr.mxu0 0.0
    %411 = vmatpush1.msra.mxu0 0.0
    %412 = vmatprep.subr.mxu0 0.0
    %413 = vmatpush1.msra.mxu0 0.0
    %414 = vmatprep.subr.mxu0 0.0
    %415 = vmatpush1.msra.mxu0 0.0
    %416 = vmatprep.subr.mxu0 0.0
    %417 = vmatpush1.msra.mxu0 0.0
    %418 = vmatprep.subr.mxu0 0.0
    %419 = vmatpush1.msra.mxu0 0.0
    %420 = vmatprep.subr.mxu0 0.0
    %421 = vmatpush1.msra.mxu0 0.0
    %422 = vmatprep.subr.mxu0 0.0
    %423 = vmatpush1.msra.mxu0 0.0
    %424 = vmatprep.subr.mxu0 0.0
    %425 = vmatpush1.msra.mxu0 0.0
    %426 = vmatprep.mubr.f32.mxu0 0.0
    %427 = vmatmul.mubr.f32.gmra.mrb[0].mxu0 %v356
    %v428 = vpop.f32.mrb[0].mxu0
    %v429 = vadd.f32 %v352, %v428
    %v430 = vpop.f32.mrb[0].mxu0
    %431 = vdwg.mxu0
    %v432 = vld [vmem:[#allocation6] sm:$0x1]
    %v433 = vld [vmem:[#allocation7] sm:$0x1]
    %434 = vadd.xlane.f32.xlu0 %v429
    %v435 = vpop.xlane.xlu0 %434
    %v436 = vmul.f32 %v429, %v429
    %437 = vadd.xlane.f32.xlu0 %v436
    %v438 = vpop.xlane.xlu0 %437
    %v439 = vmul.f32 %v435, 0.00877193
    %v440 = vmul.f32 %v438, 0.00877193
    %v441 = vmul.f32 %v439, %v439
    %v442 = vsub.f32 %v440, %v441
    %v443 = vmax.f32 %v442, 0.0
    %v444 = vsub.f32 %v429, %v439
    %v445 = vadd.f32 %v443, 1e-05
    %v446 = vrsqrt.pop %v445
    %v447 = vmul.f32 %v444, %v446
    %v449 = vlaneseq
    %v450 = vshrl.u32 %v449, 7
    %v451 = vsub.s32 0, %v450
    %v452 = vrot.slane %v432, %v451
    %v454 = vmul.f32 %v447, %v452
    %v456 = vlaneseq
    %v457 = vshrl.u32 %v456, 7
    %v458 = vsub.s32 0, %v457
    %v459 = vrot.slane %v433, %v458
    %v461 = vadd.f32 %v454, %v459
    %v462 = vld [vmem:[#allocation9] sm:$0xff]
    %v463 = vld [vmem:[#allocation9 + $0x8] sm:$0xff]
    %v464 = vld [vmem:[#allocation9 + $0x10] sm:$0xff]
    %v465 = vld [vmem:[#allocation9 + $0x18] sm:$0xff]
    %v466 = vld [vmem:[#allocation9 + $0x20] sm:$0xff]
    %v467 = vld [vmem:[#allocation9 + $0x28] sm:$0xff]
    %v468 = vld [vmem:[#allocation9 + $0x30] sm:$0xff]
    %v469 = vld [vmem:[#allocation9 + $0x38] sm:$0xff]
    %v470 = vld [vmem:[#allocation9 + $0x40] sm:$0xff]
    %v471 = vld [vmem:[#allocation9 + $0x48] sm:$0xff]
    %v472 = vld [vmem:[#allocation9 + $0x50] sm:$0xff]
    %v473 = vld [vmem:[#allocation9 + $0x58] sm:$0xff]
    %v474 = vld [vmem:[#allocation9 + $0x60] sm:$0xff]
    %v475 = vld [vmem:[#allocation9 + $0x68] sm:$0xff]
    %v476 = vld [vmem:[#allocation9 + $0x70] sm:$0xff]
    %v477 = vld [vmem:[#allocation9 + $0x78] sm:$0xff]
    %v478 = vld [vmem:[#allocation10] sm:$0x1]
    %v480 = vlaneseq
    %v481 = vshrl.u32 %v480, 7
    %v482 = vsub.s32 0, %v481
    %v483 = vrot.slane %v478, %v482
    %485 = vmatprep.subr.mxu0 0.0
    %486 = vmatpush1.msra.mxu0 %v462
    %487 = vmatprep.subr.mxu0 0.0
    %488 = vmatpush1.msra.mxu0 %v463
    %489 = vmatprep.subr.mxu0 0.0
    %490 = vmatpush1.msra.mxu0 %v464
    %491 = vmatprep.subr.mxu0 0.0
    %492 = vmatpush1.msra.mxu0 %v465
    %493 = vmatprep.subr.mxu0 0.0
    %494 = vmatpush1.msra.mxu0 %v466
    %495 = vmatprep.subr.mxu0 0.0
    %496 = vmatpush1.msra.mxu0 %v467
    %497 = vmatprep.subr.mxu0 0.0
    %498 = vmatpush1.msra.mxu0 %v468
    %499 = vmatprep.subr.mxu0 0.0
    %500 = vmatpush1.msra.mxu0 %v469
    %501 = vmatprep.subr.mxu0 0.0
    %502 = vmatpush1.msra.mxu0 %v470
    %503 = vmatprep.subr.mxu0 0.0
    %504 = vmatpush1.msra.mxu0 %v471
    %505 = vmatprep.subr.mxu0 0.0
    %506 = vmatpush1.msra.mxu0 %v472
    %507 = vmatprep.subr.mxu0 0.0
    %508 = vmatpush1.msra.mxu0 %v473
    %509 = vmatprep.subr.mxu0 0.0
    %510 = vmatpush1.msra.mxu0 %v474
    %511 = vmatprep.subr.mxu0 0.0
    %512 = vmatpush1.msra.mxu0 %v475
    %513 = vmatprep.subr.mxu0 0.0
    %514 = vmatpush1.msra.mxu0 %v476
    %515 = vmatprep.subr.mxu0 0.0
    %516 = vmatpush1.msra.mxu0 %v477
    %517 = vmatprep.subr.mxu0 0.0
    %518 = vmatpush1.msra.mxu0 0.0
    %519 = vmatprep.subr.mxu0 0.0
    %520 = vmatpush1.msra.mxu0 0.0
    %521 = vmatprep.subr.mxu0 0.0
    %522 = vmatpush1.msra.mxu0 0.0
    %523 = vmatprep.subr.mxu0 0.0
    %524 = vmatpush1.msra.mxu0 0.0
    %525 = vmatprep.subr.mxu0 0.0
    %526 = vmatpush1.msra.mxu0 0.0
    %527 = vmatprep.subr.mxu0 0.0
    %528 = vmatpush1.msra.mxu0 0.0
    %529 = vmatprep.subr.mxu0 0.0
    %530 = vmatpush1.msra.mxu0 0.0
    %531 = vmatprep.subr.mxu0 0.0
    %532 = vmatpush1.msra.mxu0 0.0
    %533 = vmatprep.subr.mxu0 0.0
    %534 = vmatpush1.msra.mxu0 0.0
    %535 = vmatprep.subr.mxu0 0.0
    %536 = vmatpush1.msra.mxu0 0.0
    %537 = vmatprep.subr.mxu0 0.0
    %538 = vmatpush1.msra.mxu0 0.0
    %539 = vmatprep.subr.mxu0 0.0
    %540 = vmatpush1.msra.mxu0 0.0
    %541 = vmatprep.subr.mxu0 0.0
    %542 = vmatpush1.msra.mxu0 0.0
    %543 = vmatprep.subr.mxu0 0.0
    %544 = vmatpush1.msra.mxu0 0.0
    %545 = vmatprep.subr.mxu0 0.0
    %546 = vmatpush1.msra.mxu0 0.0
    %547 = vmatprep.subr.mxu0 0.0
    %548 = vmatpush1.msra.mxu0 0.0
    %549 = vmatprep.mubr.f32.mxu0 0.0
    %550 = vmatmul.mubr.f32.gmra.mrb[0].mxu0 %v461
    %v551 = vpop.f32.mrb[0].mxu0
    %v552 = vadd.f32 %v483, %v551
    %v553 = vpop.f32.mrb[0].mxu0
    %554 = vdwg.mxu0
    %v555 = vmax.f32 %v552, 0.0
    %v556 = vld [vmem:[#allocation33] sm:$0x1]
    %v557 = vld [vmem:[#allocation12] sm:$0xff]
    %v558 = vld [vmem:[#allocation12 + $0x8] sm:$0xff]
    %v559 = vld [vmem:[#allocation12 + $0x10] sm:$0xff]
    %v560 = vld [vmem:[#allocation12 + $0x18] sm:$0xff]
    %v561 = vld [vmem:[#allocation12 + $0x20] sm:$0xff]
    %v562 = vld [vmem:[#allocation12 + $0x28] sm:$0xff]
    %v563 = vld [vmem:[#allocation12 + $0x30] sm:$0xff]
    %v564 = vld [vmem:[#allocation12 + $0x38] sm:$0xff]
    %v565 = vld [vmem:[#allocation12 + $0x40] sm:$0xff]
    %v566 = vld [vmem:[#allocation12 + $0x48] sm:$0xff]
    %v567 = vld [vmem:[#allocation12 + $0x50] sm:$0xff]
    %v568 = vld [vmem:[#allocation12 + $0x58] sm:$0xff]
    %v569 = vld [vmem:[#allocation12 + $0x60] sm:$0xff]
    %v570 = vld [vmem:[#allocation12 + $0x68] sm:$0xff]
    %v571 = vld [vmem:[#allocation12 + $0x70] sm:$0xff]
    %v572 = vld [vmem:[#allocation12 + $0x78] sm:$0xff]
    %v573 = vld [vmem:[#allocation12 + $0x80] sm:$0xff]
    %v574 = vld [vmem:[#allocation12 + $0x88] sm:$0xff]
    %v575 = vld [vmem:[#allocation12 + $0x90] sm:$0xff]
    %v576 = vld [vmem:[#allocation12 + $0x98] sm:$0xff]
    %v577 = vld [vmem:[#allocation12 + $0xa0] sm:$0xff]
    %v578 = vld [vmem:[#allocation12 + $0xa8] sm:$0xff]
    %v579 = vld [vmem:[#allocation12 + $0xb0] sm:$0xff]
    %v580 = vld [vmem:[#allocation12 + $0xb8] sm:$0xff]
    %v581 = vld [vmem:[#allocation12 + $0xc0] sm:$0xff]
    %v582 = vld [vmem:[#allocation12 + $0xc8] sm:$0xff]
    %v583 = vld [vmem:[#allocation12 + $0xd0] sm:$0xff]
    %v584 = vld [vmem:[#allocation12 + $0xd8] sm:$0xff]
    %v585 = vld [vmem:[#allocation12 + $0xe0] sm:$0xff]
    %v586 = vld [vmem:[#allocation12 + $0xe8] sm:$0xff]
    %v587 = vld [vmem:[#allocation12 + $0xf0] sm:$0xff]
    %v588 = vld [vmem:[#allocation12 + $0xf8] sm:$0xff]
    %v589 = vld [vmem:[#allocation12 + $0x100] sm:$0xff]
    %v590 = vld [vmem:[#allocation12 + $0x108] sm:$0xff]
    %v591 = vld [vmem:[#allocation12 + $0x110] sm:$0xff]
    %v592 = vld [vmem:[#allocation12 + $0x118] sm:$0xff]
    %v593 = vld [vmem:[#allocation12 + $0x120] sm:$0xff]
    %v594 = vld [vmem:[#allocation12 + $0x128] sm:$0xff]
    %v595 = vld [vmem:[#allocation12 + $0x130] sm:$0xff]
    %v596 = vld [vmem:[#allocation12 + $0x138] sm:$0xff]
    %v597 = vld [vmem:[#allocation12 + $0x140] sm:$0xff]
    %v598 = vld [vmem:[#allocation12 + $0x148] sm:$0xff]
    %v599 = vld [vmem:[#allocation12 + $0x150] sm:$0xff]
    %v600 = vld [vmem:[#allocation12 + $0x158] sm:$0xff]
    %v601 = vld [vmem:[#allocation12 + $0x160] sm:$0xff]
    %v602 = vld [vmem:[#allocation12 + $0x168] sm:$0xff]
    %v603 = vld [vmem:[#allocation12 + $0x170] sm:$0xff]
    %v604 = vld [vmem:[#allocation12 + $0x178] sm:$0xff]
    %v605 = vld [vmem:[#allocation12 + $0x180] sm:$0xff]
    %v606 = vld [vmem:[#allocation12 + $0x188] sm:$0xff]
    %v607 = vld [vmem:[#allocation12 + $0x190] sm:$0xff]
    %v608 = vld [vmem:[#allocation12 + $0x198] sm:$0xff]
    %v609 = vld [vmem:[#allocation12 + $0x1a0] sm:$0xff]
    %v610 = vld [vmem:[#allocation12 + $0x1a8] sm:$0xff]
    %v611 = vld [vmem:[#allocation12 + $0x1b0] sm:$0xff]
    %v612 = vld [vmem:[#allocation12 + $0x1b8] sm:$0xff]
    %v613 = vld [vmem:[#allocation12 + $0x1c0] sm:$0xff]
    %v614 = vld [vmem:[#allocation12 + $0x1c8] sm:$0xff]
    %v615 = vld [vmem:[#allocation12 + $0x1d0] sm:$0xff]
    %v616 = vld [vmem:[#allocation12 + $0x1d8] sm:$0xff]
    %v617 = vld [vmem:[#allocation12 + $0x1e0] sm:$0xff]
    %v618 = vld [vmem:[#allocation12 + $0x1e8] sm:$0xff]
    %v619 = vld [vmem:[#allocation12 + $0x1f0] sm:$0xff]
    %v620 = vld [vmem:[#allocation12 + $0x1f8] sm:$0xff]
    %v621 = vld [vmem:[#allocation12 + $0x200] sm:$0xff]
    %v622 = vld [vmem:[#allocation12 + $0x208] sm:$0xff]
    %v623 = vld [vmem:[#allocation12 + $0x210] sm:$0xff]
    %v624 = vld [vmem:[#allocation12 + $0x218] sm:$0xff]
    %v625 = vld [vmem:[#allocation12 + $0x220] sm:$0xff]
    %v626 = vld [vmem:[#allocation12 + $0x228] sm:$0xff]
    %v627 = vld [vmem:[#allocation12 + $0x230] sm:$0xff]
    %v628 = vld [vmem:[#allocation12 + $0x238] sm:$0xff]
    %v629 = vld [vmem:[#allocation12 + $0x240] sm:$0xff]
    %v630 = vld [vmem:[#allocation12 + $0x248] sm:$0xff]
    %v631 = vld [vmem:[#allocation12 + $0x250] sm:$0xff]
    %v632 = vld [vmem:[#allocation12 + $0x258] sm:$0xff]
    %v633 = vld [vmem:[#allocation12 + $0x260] sm:$0xff]
    %v634 = vld [vmem:[#allocation12 + $0x268] sm:$0xff]
    %v635 = vld [vmem:[#allocation12 + $0x270] sm:$0xff]
    %v636 = vld [vmem:[#allocation12 + $0x278] sm:$0xff]
    %v637 = vld [vmem:[#allocation12 + $0x280] sm:$0xff]
    %v638 = vld [vmem:[#allocation12 + $0x288] sm:$0xff]
    %v639 = vld [vmem:[#allocation12 + $0x290] sm:$0xff]
    %v640 = vld [vmem:[#allocation12 + $0x298] sm:$0xff]
    %v641 = vld [vmem:[#allocation12 + $0x2a0] sm:$0xff]
    %v642 = vld [vmem:[#allocation12 + $0x2a8] sm:$0xff]
    %v643 = vld [vmem:[#allocation12 + $0x2b0] sm:$0xff]
    %v644 = vld [vmem:[#allocation12 + $0x2b8] sm:$0xff]
    %v645 = vld [vmem:[#allocation12 + $0x2c0] sm:$0xff]
    %v646 = vld [vmem:[#allocation12 + $0x2c8] sm:$0xff]
    %v647 = vld [vmem:[#allocation12 + $0x2d0] sm:$0xff]
    %v648 = vld [vmem:[#allocation12 + $0x2d8] sm:$0xff]
    %v649 = vld [vmem:[#allocation12 + $0x2e0] sm:$0xff]
    %v650 = vld [vmem:[#allocation12 + $0x2e8] sm:$0xff]
    %v651 = vld [vmem:[#allocation12 + $0x2f0] sm:$0xff]
    %v652 = vld [vmem:[#allocation12 + $0x2f8] sm:$0xff]
    %v653 = vld [vmem:[#allocation12 + $0x300] sm:$0xff]
    %v654 = vld [vmem:[#allocation12 + $0x308] sm:$0xff]
    %v655 = vld [vmem:[#allocation12 + $0x310] sm:$0xff]
    %v656 = vld [vmem:[#allocation12 + $0x318] sm:$0xff]
    %v657 = vld [vmem:[#allocation12 + $0x320] sm:$0xff]
    %v658 = vld [vmem:[#allocation12 + $0x328] sm:$0xff]
    %v659 = vld [vmem:[#allocation12 + $0x330] sm:$0xff]
    %v660 = vld [vmem:[#allocation12 + $0x338] sm:$0xff]
    %v661 = vld [vmem:[#allocation12 + $0x340] sm:$0xff]
    %v662 = vld [vmem:[#allocation12 + $0x348] sm:$0xff]
    %v663 = vld [vmem:[#allocation12 + $0x350] sm:$0xff]
    %v664 = vld [vmem:[#allocation12 + $0x358] sm:$0xff]
    %v665 = vld [vmem:[#allocation12 + $0x360] sm:$0xff]
    %v666 = vld [vmem:[#allocation12 + $0x368] sm:$0xff]
    %v667 = vld [vmem:[#allocation12 + $0x370] sm:$0xff]
    %v668 = vld [vmem:[#allocation12 + $0x378] sm:$0xff]
    %v669 = vld [vmem:[#allocation12 + $0x380] sm:$0xff]
    %v670 = vld [vmem:[#allocation12 + $0x388] sm:$0xff]
    %v671 = vld [vmem:[#allocation12 + $0x390] sm:$0xff]
    %v672 = vld [vmem:[#allocation12 + $0x398] sm:$0xff]
    %v673 = vld [vmem:[#allocation12 + $0x3a0] sm:$0xff]
    %v674 = vld [vmem:[#allocation12 + $0x3a8] sm:$0xff]
    %v675 = vld [vmem:[#allocation12 + $0x3b0] sm:$0xff]
    %v676 = vld [vmem:[#allocation12 + $0x3b8] sm:$0xff]
    %v677 = vld [vmem:[#allocation12 + $0x3c0] sm:$0xff]
    %v678 = vld [vmem:[#allocation12 + $0x3c8] sm:$0xff]
    %v679 = vld [vmem:[#allocation12 + $0x3d0] sm:$0xff]
    %v680 = vld [vmem:[#allocation12 + $0x3d8] sm:$0xff]
    %v681 = vld [vmem:[#allocation12 + $0x3e0] sm:$0xff]
    %v682 = vld [vmem:[#allocation12 + $0x3e8] sm:$0xff]
    %v683 = vld [vmem:[#allocation12 + $0x3f0] sm:$0xff]
    %v684 = vld [vmem:[#allocation12 + $0x3f8] sm:$0xff]
    %v685 = vld [vmem:[#allocation12 + $0x400] sm:$0xff]
    %v686 = vld [vmem:[#allocation12 + $0x408] sm:$0xff]
    %v687 = vld [vmem:[#allocation12 + $0x410] sm:$0xff]
    %v688 = vld [vmem:[#allocation12 + $0x418] sm:$0xff]
    %v689 = vld [vmem:[#allocation12 + $0x420] sm:$0xff]
    %v690 = vld [vmem:[#allocation12 + $0x428] sm:$0xff]
    %v691 = vld [vmem:[#allocation12 + $0x430] sm:$0xff]
    %v692 = vld [vmem:[#allocation12 + $0x438] sm:$0xff]
    %v693 = vld [vmem:[#allocation12 + $0x440] sm:$0xff]
    %v694 = vld [vmem:[#allocation12 + $0x448] sm:$0xff]
    %v695 = vld [vmem:[#allocation12 + $0x450] sm:$0xff]
    %v696 = vld [vmem:[#allocation12 + $0x458] sm:$0xff]
    %v697 = vld [vmem:[#allocation12 + $0x460] sm:$0xff]
    %v698 = vld [vmem:[#allocation12 + $0x468] sm:$0xff]
    %v699 = vld [vmem:[#allocation12 + $0x470] sm:$0xff]
    %v700 = vld [vmem:[#allocation12 + $0x478] sm:$0xff]
    %v701 = vld [vmem:[#allocation13] sm:$0xff]
    %v702 = vld [vmem:[#allocation13 + $0x8] sm:$0x1]
    %v705 = vlaneseq
    %v706 = vshrl.u32 %v705, 7
    %v707 = vsub.s32 0, %v706
    %v708 = vrot.slane %v701, %v707
    %v709 = vlaneseq
    %v710 = vshrl.u32 %v709, 7
    %v711 = vsub.s32 1, %v710
    %v712 = vrot.slane %v701, %v711
    %v713 = vlaneseq
    %v714 = vshrl.u32 %v713, 7
    %v715 = vsub.s32 2, %v714
    %v716 = vrot.slane %v701, %v715
    %v717 = vlaneseq
    %v718 = vshrl.u32 %v717, 7
    %v719 = vsub.s32 3, %v718
    %v720 = vrot.slane %v701, %v719
    %v721 = vlaneseq
    %v722 = vshrl.u32 %v721, 7
    %v723 = vsub.s32 4, %v722
    %v724 = vrot.slane %v701, %v723
    %v725 = vlaneseq
    %v726 = vshrl.u32 %v725, 7
    %v727 = vsub.s32 5, %v726
    %v728 = vrot.slane %v701, %v727
    %v729 = vlaneseq
    %v730 = vshrl.u32 %v729, 7
    %v731 = vsub.s32 6, %v730
    %v732 = vrot.slane %v701, %v731
    %v733 = vlaneseq
    %v734 = vshrl.u32 %v733, 7
    %v735 = vsub.s32 7, %v734
    %v736 = vrot.slane %v701, %v735
    %v737 = vlaneseq
    %v738 = vshrl.u32 %v737, 7
    %v739 = vsub.s32 0, %v738
    %v740 = vrot.slane %v702, %v739
    %750 = vmatprep.subr.mxu0 %v558
    %751 = vmatpush1.msra.mxu0 %v557
    %752 = vmatprep.subr.mxu0 %v567
    %753 = vmatpush1.msra.mxu0 %v566
    %754 = vmatprep.subr.mxu0 %v576
    %755 = vmatpush1.msra.mxu0 %v575
    %756 = vmatprep.subr.mxu0 %v585
    %757 = vmatpush1.msra.mxu0 %v584
    %758 = vmatprep.subr.mxu0 %v594
    %759 = vmatpush1.msra.mxu0 %v593
    %760 = vmatprep.subr.mxu0 %v603
    %761 = vmatpush1.msra.mxu0 %v602
    %762 = vmatprep.subr.mxu0 %v612
    %763 = vmatpush1.msra.mxu0 %v611
    %764 = vmatprep.subr.mxu0 %v621
    %765 = vmatpush1.msra.mxu0 %v620
    %766 = vmatprep.subr.mxu0 %v630
    %767 = vmatpush1.msra.mxu0 %v629
    %768 = vmatprep.subr.mxu0 %v639
    %769 = vmatpush1.msra.mxu0 %v638
    %770 = vmatprep.subr.mxu0 %v648
    %771 = vmatpush1.msra.mxu0 %v647
    %772 = vmatprep.subr.mxu0 %v657
    %773 = vmatpush1.msra.mxu0 %v656
    %774 = vmatprep.subr.mxu0 %v666
    %775 = vmatpush1.msra.mxu0 %v665
    %776 = vmatprep.subr.mxu0 %v675
    %777 = vmatpush1.msra.mxu0 %v674
    %778 = vmatprep.subr.mxu0 %v684
    %779 = vmatpush1.msra.mxu0 %v683
    %780 = vmatprep.subr.mxu0 %v693
    %781 = vmatpush1.msra.mxu0 %v692
    %782 = vmatprep.subr.mxu0 0.0
    %783 = vmatpush1.msra.mxu0 0.0
    %784 = vmatprep.subr.mxu0 0.0
    %785 = vmatpush1.msra.mxu0 0.0
    %786 = vmatprep.subr.mxu0 0.0
    %787 = vmatpush1.msra.mxu0 0.0
    %788 = vmatprep.subr.mxu0 0.0
    %789 = vmatpush1.msra.mxu0 0.0
    %790 = vmatprep.subr.mxu0 0.0
    %791 = vmatpush1.msra.mxu0 0.0
    %792 = vmatprep.subr.mxu0 0.0
    %793 = vmatpush1.msra.mxu0 0.0
    %794 = vmatprep.subr.mxu0 0.0
    %795 = vmatpush1.msra.mxu0 0.0
    %796 = vmatprep.subr.mxu0 0.0
    %797 = vmatpush1.msra.mxu0 0.0
    %798 = vmatprep.subr.mxu0 0.0
    %799 = vmatpush1.msra.mxu0 0.0
    %800 = vmatprep.subr.mxu0 0.0
    %801 = vmatpush1.msra.mxu0 0.0
    %802 = vmatprep.subr.mxu0 0.0
    %803 = vmatpush1.msra.mxu0 0.0
    %804 = vmatprep.subr.mxu0 0.0
    %805 = vmatpush1.msra.mxu0 0.0
    %806 = vmatprep.subr.mxu0 0.0
    %807 = vmatpush1.msra.mxu0 0.0
    %808 = vmatprep.subr.mxu0 0.0
    %809 = vmatpush1.msra.mxu0 0.0
    %810 = vmatprep.subr.mxu0 0.0
    %811 = vmatpush1.msra.mxu0 0.0
    %812 = vmatprep.subr.mxu0 0.0
    %813 = vmatpush1.msra.mxu0 0.0
    %814 = vmatprep.mubr.f32.mxu0 0.0
    %815 = vmatmul.mubr.f32.gmra.mrb[0].mxu0 %v555
    %v816 = vpop.f32.mrb[0].mxu0
    %v817 = vadd.f32 %v708, %v816
    %v818 = vpop.f32.mrb[0].mxu0
    %v819 = vadd.f32 %v712, %v818
    %820 = vdwg.mxu0
    %821 = vmatprep.subr.mxu0 %v560
    %822 = vmatpush1.msra.mxu0 %v559
    %823 = vmatprep.subr.mxu0 %v569
    %824 = vmatpush1.msra.mxu0 %v568
    %825 = vmatprep.subr.mxu0 %v578
    %826 = vmatpush1.msra.mxu0 %v577
    %827 = vmatprep.subr.mxu0 %v587
    %828 = vmatpush1.msra.mxu0 %v586
    %829 = vmatprep.subr.mxu0 %v596
    %830 = vmatpush1.msra.mxu0 %v595
    %831 = vmatprep.subr.mxu0 %v605
    %832 = vmatpush1.msra.mxu0 %v604
    %833 = vmatprep.subr.mxu0 %v614
    %834 = vmatpush1.msra.mxu0 %v613
    %835 = vmatprep.subr.mxu0 %v623
    %836 = vmatpush1.msra.mxu0 %v622
    %837 = vmatprep.subr.mxu0 %v632
    %838 = vmatpush1.msra.mxu0 %v631
    %839 = vmatprep.subr.mxu0 %v641
    %840 = vmatpush1.msra.mxu0 %v640
    %841 = vmatprep.subr.mxu0 %v650
    %842 = vmatpush1.msra.mxu0 %v649
    %843 = vmatprep.subr.mxu0 %v659
    %844 = vmatpush1.msra.mxu0 %v658
    %845 = vmatprep.subr.mxu0 %v668
    %846 = vmatpush1.msra.mxu0 %v667
    %847 = vmatprep.subr.mxu0 %v677
    %848 = vmatpush1.msra.mxu0 %v676
    %849 = vmatprep.subr.mxu0 %v686
    %850 = vmatpush1.msra.mxu0 %v685
    %851 = vmatprep.subr.mxu0 %v695
    %852 = vmatpush1.msra.mxu0 %v694
    %853 = vmatprep.subr.mxu0 0.0
    %854 = vmatpush1.msra.mxu0 0.0
    %855 = vmatprep.subr.mxu0 0.0
    %856 = vmatpush1.msra.mxu0 0.0
    %857 = vmatprep.subr.mxu0 0.0
    %858 = vmatpush1.msra.mxu0 0.0
    %859 = vmatprep.subr.mxu0 0.0
    %860 = vmatpush1.msra.mxu0 0.0
    %861 = vmatprep.subr.mxu0 0.0
    %862 = vmatpush1.msra.mxu0 0.0
    %863 = vmatprep.subr.mxu0 0.0
    %864 = vmatpush1.msra.mxu0 0.0
    %865 = vmatprep.subr.mxu0 0.0
    %866 = vmatpush1.msra.mxu0 0.0
    %867 = vmatprep.subr.mxu0 0.0
    %868 = vmatpush1.msra.mxu0 0.0
    %869 = vmatprep.subr.mxu0 0.0
    %870 = vmatpush1.msra.mxu0 0.0
    %871 = vmatprep.subr.mxu0 0.0
    %872 = vmatpush1.msra.mxu0 0.0
    %873 = vmatprep.subr.mxu0 0.0
    %874 = vmatpush1.msra.mxu0 0.0
    %875 = vmatprep.subr.mxu0 0.0
    %876 = vmatpush1.msra.mxu0 0.0
    %877 = vmatprep.subr.mxu0 0.0
    %878 = vmatpush1.msra.mxu0 0.0
    %879 = vmatprep.subr.mxu0 0.0
    %880 = vmatpush1.msra.mxu0 0.0
    %881 = vmatprep.subr.mxu0 0.0
    %882 = vmatpush1.msra.mxu0 0.0
    %883 = vmatprep.subr.mxu0 0.0
    %884 = vmatpush1.msra.mxu0 0.0
    %885 = vmatprep.mubr.f32.mxu0 0.0
    %886 = vmatmul.mubr.f32.gmra.mrb[0].mxu0 %v555
    %v887 = vpop.f32.mrb[0].mxu0
    %v888 = vadd.f32 %v716, %v887
    %v889 = vpop.f32.mrb[0].mxu0
    %v890 = vadd.f32 %v720, %v889
    %891 = vdwg.mxu0
    %892 = vmatprep.subr.mxu0 %v562
    %893 = vmatpush1.msra.mxu0 %v561
    %894 = vmatprep.subr.mxu0 %v571
    %895 = vmatpush1.msra.mxu0 %v570
    %896 = vmatprep.subr.mxu0 %v580
    %897 = vmatpush1.msra.mxu0 %v579
    %898 = vmatprep.subr.mxu0 %v589
    %899 = vmatpush1.msra.mxu0 %v588
    %900 = vmatprep.subr.mxu0 %v598
    %901 = vmatpush1.msra.mxu0 %v597
    %902 = vmatprep.subr.mxu0 %v607
    %903 = vmatpush1.msra.mxu0 %v606
    %904 = vmatprep.subr.mxu0 %v616
    %905 = vmatpush1.msra.mxu0 %v615
    %906 = vmatprep.subr.mxu0 %v625
    %907 = vmatpush1.msra.mxu0 %v624
    %908 = vmatprep.subr.mxu0 %v634
    %909 = vmatpush1.msra.mxu0 %v633
    %910 = vmatprep.subr.mxu0 %v643
    %911 = vmatpush1.msra.mxu0 %v642
    %912 = vmatprep.subr.mxu0 %v652
    %913 = vmatpush1.msra.mxu0 %v651
    %914 = vmatprep.subr.mxu0 %v661
    %915 = vmatpush1.msra.mxu0 %v660
    %916 = vmatprep.subr.mxu0 %v670
    %917 = vmatpush1.msra.mxu0 %v669
    %918 = vmatprep.subr.mxu0 %v679
    %919 = vmatpush1.msra.mxu0 %v678
    %920 = vmatprep.subr.mxu0 %v688
    %921 = vmatpush1.msra.mxu0 %v687
    %922 = vmatprep.subr.mxu0 %v697
    %923 = vmatpush1.msra.mxu0 %v696
    %924 = vmatprep.subr.mxu0 0.0
    %925 = vmatpush1.msra.mxu0 0.0
    %926 = vmatprep.subr.mxu0 0.0
    %927 = vmatpush1.msra.mxu0 0.0
    %928 = vmatprep.subr.mxu0 0.0
    %929 = vmatpush1.msra.mxu0 0.0
    %930 = vmatprep.subr.mxu0 0.0
    %931 = vmatpush1.msra.mxu0 0.0
    %932 = vmatprep.subr.mxu0 0.0
    %933 = vmatpush1.msra.mxu0 0.0
    %934 = vmatprep.subr.mxu0 0.0
    %935 = vmatpush1.msra.mxu0 0.0
    %936 = vmatprep.subr.mxu0 0.0
    %937 = vmatpush1.msra.mxu0 0.0
    %938 = vmatprep.subr.mxu0 0.0
    %939 = vmatpush1.msra.mxu0 0.0
    %940 = vmatprep.subr.mxu0 0.0
    %941 = vmatpush1.msra.mxu0 0.0
    %942 = vmatprep.subr.mxu0 0.0
    %943 = vmatpush1.msra.mxu0 0.0
    %944 = vmatprep.subr.mxu0 0.0
    %945 = vmatpush1.msra.mxu0 0.0
    %946 = vmatprep.subr.mxu0 0.0
    %947 = vmatpush1.msra.mxu0 0.0
    %948 = vmatprep.subr.mxu0 0.0
    %949 = vmatpush1.msra.mxu0 0.0
    %950 = vmatprep.subr.mxu0 0.0
    %951 = vmatpush1.msra.mxu0 0.0
    %952 = vmatprep.subr.mxu0 0.0
    %953 = vmatpush1.msra.mxu0 0.0
    %954 = vmatprep.subr.mxu0 0.0
    %955 = vmatpush1.msra.mxu0 0.0
    %956 = vmatprep.mubr.f32.mxu0 0.0
    %957 = vmatmul.mubr.f32.gmra.mrb[0].mxu0 %v555
    %v958 = vpop.f32.mrb[0].mxu0
    %v959 = vadd.f32 %v724, %v958
    %v960 = vpop.f32.mrb[0].mxu0
    %v961 = vadd.f32 %v728, %v960
    %962 = vdwg.mxu0
    %963 = vmatprep.subr.mxu0 %v564
    %964 = vmatpush1.msra.mxu0 %v563
    %965 = vmatprep.subr.mxu0 %v573
    %966 = vmatpush1.msra.mxu0 %v572
    %967 = vmatprep.subr.mxu0 %v582
    %968 = vmatpush1.msra.mxu0 %v581
    %969 = vmatprep.subr.mxu0 %v591
    %970 = vmatpush1.msra.mxu0 %v590
    %971 = vmatprep.subr.mxu0 %v600
    %972 = vmatpush1.msra.mxu0 %v599
    %973 = vmatprep.subr.mxu0 %v609
    %974 = vmatpush1.msra.mxu0 %v608
    %975 = vmatprep.subr.mxu0 %v618
    %976 = vmatpush1.msra.mxu0 %v617
    %977 = vmatprep.subr.mxu0 %v627
    %978 = vmatpush1.msra.mxu0 %v626
    %979 = vmatprep.subr.mxu0 %v636
    %980 = vmatpush1.msra.mxu0 %v635
    %981 = vmatprep.subr.mxu0 %v645
    %982 = vmatpush1.msra.mxu0 %v644
    %983 = vmatprep.subr.mxu0 %v654
    %984 = vmatpush1.msra.mxu0 %v653
    %985 = vmatprep.subr.mxu0 %v663
    %986 = vmatpush1.msra.mxu0 %v662
    %987 = vmatprep.subr.mxu0 %v672
    %988 = vmatpush1.msra.mxu0 %v671
    %989 = vmatprep.subr.mxu0 %v681
    %990 = vmatpush1.msra.mxu0 %v680
    %991 = vmatprep.subr.mxu0 %v690
    %992 = vmatpush1.msra.mxu0 %v689
    %993 = vmatprep.subr.mxu0 %v699
    %994 = vmatpush1.msra.mxu0 %v698
    %995 = vmatprep.subr.mxu0 0.0
    %996 = vmatpush1.msra.mxu0 0.0
    %997 = vmatprep.subr.mxu0 0.0
    %998 = vmatpush1.msra.mxu0 0.0
    %999 = vmatprep.subr.mxu0 0.0
    %1000 = vmatpush1.msra.mxu0 0.0
    %1001 = vmatprep.subr.mxu0 0.0
    %1002 = vmatpush1.msra.mxu0 0.0
    %1003 = vmatprep.subr.mxu0 0.0
    %1004 = vmatpush1.msra.mxu0 0.0
    %1005 = vmatprep.subr.mxu0 0.0
    %1006 = vmatpush1.msra.mxu0 0.0
    %1007 = vmatprep.subr.mxu0 0.0
    %1008 = vmatpush1.msra.mxu0 0.0
    %1009 = vmatprep.subr.mxu0 0.0
    %1010 = vmatpush1.msra.mxu0 0.0
    %1011 = vmatprep.subr.mxu0 0.0
    %1012 = vmatpush1.msra.mxu0 0.0
    %1013 = vmatprep.subr.mxu0 0.0
    %1014 = vmatpush1.msra.mxu0 0.0
    %1015 = vmatprep.subr.mxu0 0.0
    %1016 = vmatpush1.msra.mxu0 0.0
    %1017 = vmatprep.subr.mxu0 0.0
    %1018 = vmatpush1.msra.mxu0 0.0
    %1019 = vmatprep.subr.mxu0 0.0
    %1020 = vmatpush1.msra.mxu0 0.0
    %1021 = vmatprep.subr.mxu0 0.0
    %1022 = vmatpush1.msra.mxu0 0.0
    %1023 = vmatprep.subr.mxu0 0.0
    %1024 = vmatpush1.msra.mxu0 0.0
    %1025 = vmatprep.subr.mxu0 0.0
    %1026 = vmatpush1.msra.mxu0 0.0
    %1027 = vmatprep.mubr.f32.mxu0 0.0
    %1028 = vmatmul.mubr.f32.gmra.mrb[0].mxu0 %v555
    %v1029 = vpop.f32.mrb[0].mxu0
    %v1030 = vadd.f32 %v732, %v1029
    %v1031 = vpop.f32.mrb[0].mxu0
    %v1032 = vadd.f32 %v736, %v1031
    %1033 = vdwg.mxu0
    %1034 = vmatprep.subr.mxu0 0.0
    %1035 = vmatpush1.msra.mxu0 %v565
    %1036 = vmatprep.subr.mxu0 0.0
    %1037 = vmatpush1.msra.mxu0 %v574
    %1038 = vmatprep.subr.mxu0 0.0
    %1039 = vmatpush1.msra.mxu0 %v583
    %1040 = vmatprep.subr.mxu0 0.0
    %1041 = vmatpush1.msra.mxu0 %v592
    %1042 = vmatprep.subr.mxu0 0.0
    %1043 = vmatpush1.msra.mxu0 %v601
    %1044 = vmatprep.subr.mxu0 0.0
    %1045 = vmatpush1.msra.mxu0 %v610
    %1046 = vmatprep.subr.mxu0 0.0
    %1047 = vmatpush1.msra.mxu0 %v619
    %1048 = vmatprep.subr.mxu0 0.0
    %1049 = vmatpush1.msra.mxu0 %v628
    %1050 = vmatprep.subr.mxu0 0.0
    %1051 = vmatpush1.msra.mxu0 %v637
    %1052 = vmatprep.subr.mxu0 0.0
    %1053 = vmatpush1.msra.mxu0 %v646
    %1054 = vmatprep.subr.mxu0 0.0
    %1055 = vmatpush1.msra.mxu0 %v655
    %1056 = vmatprep.subr.mxu0 0.0
    %1057 = vmatpush1.msra.mxu0 %v664
    %1058 = vmatprep.subr.mxu0 0.0
    %1059 = vmatpush1.msra.mxu0 %v673
    %1060 = vmatprep.subr.mxu0 0.0
    %1061 = vmatpush1.msra.mxu0 %v682
    %1062 = vmatprep.subr.mxu0 0.0
    %1063 = vmatpush1.msra.mxu0 %v691
    %1064 = vmatprep.subr.mxu0 0.0
    %1065 = vmatpush1.msra.mxu0 %v700
    %1066 = vmatprep.subr.mxu0 0.0
    %1067 = vmatpush1.msra.mxu0 0.0
    %1068 = vmatprep.subr.mxu0 0.0
    %1069 = vmatpush1.msra.mxu0 0.0
    %1070 = vmatprep.subr.mxu0 0.0
    %1071 = vmatpush1.msra.mxu0 0.0
    %1072 = vmatprep.subr.mxu0 0.0
    %1073 = vmatpush1.msra.mxu0 0.0
    %1074 = vmatprep.subr.mxu0 0.0
    %1075 = vmatpush1.msra.mxu0 0.0
    %1076 = vmatprep.subr.mxu0 0.0
    %1077 = vmatpush1.msra.mxu0 0.0
    %1078 = vmatprep.subr.mxu0 0.0
    %1079 = vmatpush1.msra.mxu0 0.0
    %1080 = vmatprep.subr.mxu0 0.0
    %1081 = vmatpush1.msra.mxu0 0.0
    %1082 = vmatprep.subr.mxu0 0.0
    %1083 = vmatpush1.msra.mxu0 0.0
    %1084 = vmatprep.subr.mxu0 0.0
    %1085 = vmatpush1.msra.mxu0 0.0
    %1086 = vmatprep.subr.mxu0 0.0
    %1087 = vmatpush1.msra.mxu0 0.0
    %1088 = vmatprep.subr.mxu0 0.0
    %1089 = vmatpush1.msra.mxu0 0.0
    %1090 = vmatprep.subr.mxu0 0.0
    %1091 = vmatpush1.msra.mxu0 0.0
    %1092 = vmatprep.subr.mxu0 0.0
    %1093 = vmatpush1.msra.mxu0 0.0
    %1094 = vmatprep.subr.mxu0 0.0
    %1095 = vmatpush1.msra.mxu0 0.0
    %1096 = vmatprep.subr.mxu0 0.0
    %1097 = vmatpush1.msra.mxu0 0.0
    %1098 = vmatprep.mubr.f32.mxu0 0.0
    %1099 = vmatmul.mubr.f32.gmra.mrb[0].mxu0 %v555
    %v1100 = vpop.f32.mrb[0].mxu0
    %v1101 = vadd.f32 %v740, %v1100
    %v1102 = vpop.f32.mrb[0].mxu0
    %1103 = vdwg.mxu0
    %v1105 = vlaneseq
    %v1106 = vshrl.u32 %v1105, 7
    %v1107 = vsub.s32 0, %v1106
    %v1108 = vrot.slane %v556, %v1107
    %1110 = vmatprep.subr.mxu0 0.0
    %1111 = vmatpush1.xpose.msra.mxu0 %v890
    %1112 = vmatprep.subr.mxu0 0.0
    %1113 = vmatpush1.xpose.msra.mxu0 0.0
    %1114 = vmatprep.subr.mxu0 0.0
    %1115 = vmatpush1.xpose.msra.mxu0 0.0
    %1116 = vmatprep.subr.mxu0 0.0
    %1117 = vmatpush1.xpose.msra.mxu0 0.0
    %1118 = vmatprep.subr.mxu0 0.0
    %1119 = vmatpush1.xpose.msra.mxu0 0.0
    %1120 = vmatprep.subr.mxu0 0.0
    %1121 = vmatpush1.xpose.msra.mxu0 0.0
    %1122 = vmatprep.subr.mxu0 0.0
    %1123 = vmatpush1.xpose.msra.mxu0 0.0
    %1124 = vmatprep.subr.mxu0 0.0
    %1125 = vmatpush1.xpose.msra.mxu0 0.0
    %1126 = vmatprep.subr.mxu0 0.0
    %1127 = vmatpush1.xpose.msra.mxu0 0.0
    %1128 = vmatprep.subr.mxu0 0.0
    %1129 = vmatpush1.xpose.msra.mxu0 0.0
    %1130 = vmatprep.subr.mxu0 0.0
    %1131 = vmatpush1.xpose.msra.mxu0 0.0
    %1132 = vmatprep.subr.mxu0 0.0
    %1133 = vmatpush1.xpose.msra.mxu0 0.0
    %1134 = vmatprep.subr.mxu0 0.0
    %1135 = vmatpush1.xpose.msra.mxu0 0.0
    %1136 = vmatprep.subr.mxu0 0.0
    %1137 = vmatpush1.xpose.msra.mxu0 0.0
    %1138 = vmatprep.subr.mxu0 0.0
    %1139 = vmatpush1.xpose.msra.mxu0 0.0
    %1140 = vmatprep.subr.mxu0 0.0
    %1141 = vmatpush1.xpose.msra.mxu0 0.0
    %1142 = vmatprep.subr.mxu0 0.0
    %1143 = vmatpush1.xpose.msra.mxu0 0.0
    %1144 = vmatprep.subr.mxu0 0.0
    %1145 = vmatpush1.xpose.msra.mxu0 0.0
    %1146 = vmatprep.subr.mxu0 0.0
    %1147 = vmatpush1.xpose.msra.mxu0 0.0
    %1148 = vmatprep.subr.mxu0 0.0
    %1149 = vmatpush1.xpose.msra.mxu0 0.0
    %1150 = vmatprep.subr.mxu0 0.0
    %1151 = vmatpush1.xpose.msra.mxu0 0.0
    %1152 = vmatprep.subr.mxu0 0.0
    %1153 = vmatpush1.xpose.msra.mxu0 0.0
    %1154 = vmatprep.subr.mxu0 0.0
    %1155 = vmatpush1.xpose.msra.mxu0 0.0
    %1156 = vmatprep.subr.mxu0 0.0
    %1157 = vmatpush1.xpose.msra.mxu0 0.0
    %1158 = vmatprep.subr.mxu0 0.0
    %1159 = vmatpush1.xpose.msra.mxu0 0.0
    %1160 = vmatprep.subr.mxu0 0.0
    %1161 = vmatpush1.xpose.msra.mxu0 0.0
    %1162 = vmatprep.subr.mxu0 0.0
    %1163 = vmatpush1.xpose.msra.mxu0 0.0
    %1164 = vmatprep.subr.mxu0 0.0
    %1165 = vmatpush1.xpose.msra.mxu0 0.0
    %1166 = vmatprep.subr.mxu0 0.0
    %1167 = vmatpush1.xpose.msra.mxu0 0.0
    %1168 = vmatprep.subr.mxu0 0.0
    %1169 = vmatpush1.xpose.msra.mxu0 0.0
    %1170 = vmatprep.subr.mxu0 0.0
    %1171 = vmatpush1.xpose.msra.mxu0 0.0
    %1172 = vmatprep.subr.mxu0 0.0
    %1173 = vmatpush1.xpose.msra.mxu0 0.0
    %1174 = vmatprep.mubr.f32.mxu0 0.0
    %1175 = vmatmul.mubr.f32.gmra.mrb[0].mxu0 %v817
    %v1176 = vpop.f32.mrb[0].mxu0
    %v1177 = vadd.f32 %v1108, %v1176
    %v1178 = vpop.f32.mrb[0].mxu0
    %1179 = vdwg.mxu0
    %vm1180 = vcmask 64512
    %v1181 = vsel %vm1180, %v1177, -inf
    %1182 = vmax.xlane.f32.xlu0 %v1181
    %v1183 = vpop.xlane.xlu0 %1182
    %v1184 = vsub.f32 %v1177, %v1183
    %v1185 = vmul.f32 %v1184, 1.442695
    %v1186 = vpow.pop %v1185
    %v1187 = vsel %vm1180, %v1186, 0.0
    %1188 = vadd.xlane.f32.xlu0 %v1187
    %v1189 = vpop.xlane.xlu0 %1188
    %v1190 = vrcp.pop %v1189
    %v1191 = vmul.f32 %v1186, %v1190
    %v1193 = vsel %vm1180, %v1191, 0
    %1195 = vmatprep.subr.mxu0 0.0
    %1196 = vmatpush1.msra.mxu0 %v1030
    %1197 = vmatprep.subr.mxu0 0.0
    %1198 = vmatpush1.msra.mxu0 0.0
    %1199 = vmatprep.subr.mxu0 0.0
    %1200 = vmatpush1.msra.mxu0 0.0
    %1201 = vmatprep.subr.mxu0 0.0
    %1202 = vmatpush1.msra.mxu0 0.0
    %1203 = vmatprep.subr.mxu0 0.0
    %1204 = vmatpush1.msra.mxu0 0.0
    %1205 = vmatprep.subr.mxu0 0.0
    %1206 = vmatpush1.msra.mxu0 0.0
    %1207 = vmatprep.subr.mxu0 0.0
    %1208 = vmatpush1.msra.mxu0 0.0
    %1209 = vmatprep.subr.mxu0 0.0
    %1210 = vmatpush1.msra.mxu0 0.0
    %1211 = vmatprep.subr.mxu0 0.0
    %1212 = vmatpush1.msra.mxu0 0.0
    %1213 = vmatprep.subr.mxu0 0.0
    %1214 = vmatpush1.msra.mxu0 0.0
    %1215 = vmatprep.subr.mxu0 0.0
    %1216 = vmatpush1.msra.mxu0 0.0
    %1217 = vmatprep.subr.mxu0 0.0
    %1218 = vmatpush1.msra.mxu0 0.0
    %1219 = vmatprep.subr.mxu0 0.0
    %1220 = vmatpush1.msra.mxu0 0.0
    %1221 = vmatprep.subr.mxu0 0.0
    %1222 = vmatpush1.msra.mxu0 0.0
    %1223 = vmatprep.subr.mxu0 0.0
    %1224 = vmatpush1.msra.mxu0 0.0
    %1225 = vmatprep.subr.mxu0 0.0
    %1226 = vmatpush1.msra.mxu0 0.0
    %1227 = vmatprep.subr.mxu0 0.0
    %1228 = vmatpush1.msra.mxu0 0.0
    %1229 = vmatprep.subr.mxu0 0.0
    %1230 = vmatpush1.msra.mxu0 0.0
    %1231 = vmatprep.subr.mxu0 0.0
    %1232 = vmatpush1.msra.mxu0 0.0
    %1233 = vmatprep.subr.mxu0 0.0
    %1234 = vmatpush1.msra.mxu0 0.0
    %1235 = vmatprep.subr.mxu0 0.0
    %1236 = vmatpush1.msra.mxu0 0.0
    %1237 = vmatprep.subr.mxu0 0.0
    %1238 = vmatpush1.msra.mxu0 0.0
    %1239 = vmatprep.subr.mxu0 0.0
    %1240 = vmatpush1.msra.mxu0 0.0
    %1241 = vmatprep.subr.mxu0 0.0
    %1242 = vmatpush1.msra.mxu0 0.0
    %1243 = vmatprep.subr.mxu0 0.0
    %1244 = vmatpush1.msra.mxu0 0.0
    %1245 = vmatprep.subr.mxu0 0.0
    %1246 = vmatpush1.msra.mxu0 0.0
    %1247 = vmatprep.subr.mxu0 0.0
    %1248 = vmatpush1.msra.mxu0 0.0
    %1249 = vmatprep.subr.mxu0 0.0
    %1250 = vmatpush1.msra.mxu0 0.0
    %1251 = vmatprep.subr.mxu0 0.0
    %1252 = vmatpush1.msra.mxu0 0.0
    %1253 = vmatprep.subr.mxu0 0.0
    %1254 = vmatpush1.msra.mxu0 0.0
    %1255 = vmatprep.subr.mxu0 0.0
    %1256 = vmatpush1.msra.mxu0 0.0
    %1257 = vmatprep.subr.mxu0 0.0
    %1258 = vmatpush1.msra.mxu0 0.0
    %1259 = vmatprep.mubr.f32.mxu0 0.0
    %1260 = vmatmul.mubr.f32.gmra.mrb[0].mxu0 %v1193
    %v1261 = vpop.f32.mrb[0].mxu0
    %v1262 = vadd.f32 0.0, %v1261
    %v1263 = vpop.f32.mrb[0].mxu0
    %1264 = vdwg.mxu0
    %1265 = vmatprep.subr.mxu0 0.0
    %1266 = vmatpush1.xpose.msra.mxu0 %v959
    %1267 = vmatprep.subr.mxu0 0.0
    %1268 = vmatpush1.xpose.msra.mxu0 0.0
    %1269 = vmatprep.subr.mxu0 0.0
    %1270 = vmatpush1.xpose.msra.mxu0 0.0
    %1271 = vmatprep.subr.mxu0 0.0
    %1272 = vmatpush1.xpose.msra.mxu0 0.0
    %1273 = vmatprep.subr.mxu0 0.0
    %1274 = vmatpush1.xpose.msra.mxu0 0.0
    %1275 = vmatprep.subr.mxu0 0.0
    %1276 = vmatpush1.xpose.msra.mxu0 0.0
    %1277 = vmatprep.subr.mxu0 0.0
    %1278 = vmatpush1.xpose.msra.mxu0 0.0
    %1279 = vmatprep.subr.mxu0 0.0
    %1280 = vmatpush1.xpose.msra.mxu0 0.0
    %1281 = vmatprep.subr.mxu0 0.0
    %1282 = vmatpush1.xpose.msra.mxu0 0.0
    %1283 = vmatprep.subr.mxu0 0.0
    %1284 = vmatpush1.xpose.msra.mxu0 0.0
    %1285 = vmatprep.subr.mxu0 0.0
    %1286 = vmatpush1.xpose.msra.mxu0 0.0
    %1287 = vmatprep.subr.mxu0 0.0
    %1288 = vmatpush1.xpose.msra.mxu0 0.0
    %1289 = vmatprep.subr.mxu0 0.0
    %1290 = vmatpush1.xpose.msra.mxu0 0.0
    %1291 = vmatprep.subr.mxu0 0.0
    %1292 = vmatpush1.xpose.msra.mxu0 0.0
    %1293 = vmatprep.subr.mxu0 0.0
    %1294 = vmatpush1.xpose.msra.mxu0 0.0
    %1295 = vmatprep.subr.mxu0 0.0
    %1296 = vmatpush1.xpose.msra.mxu0 0.0
    %1297 = vmatprep.subr.mxu0 0.0
    %1298 = vmatpush1.xpose.msra.mxu0 0.0
    %1299 = vmatprep.subr.mxu0 0.0
    %1300 = vmatpush1.xpose.msra.mxu0 0.0
    %1301 = vmatprep.subr.mxu0 0.0
    %1302 = vmatpush1.xpose.msra.mxu0 0.0
    %1303 = vmatprep.subr.mxu0 0.0
    %1304 = vmatpush1.xpose.msra.mxu0 0.0
    %1305 = vmatprep.subr.mxu0 0.0
    %1306 = vmatpush1.xpose.msra.mxu0 0.0
    %1307 = vmatprep.subr.mxu0 0.0
    %1308 = vmatpush1.xpose.msra.mxu0 0.0
    %1309 = vmatprep.subr.mxu0 0.0
    %1310 = vmatpush1.xpose.msra.mxu0 0.0
    %1311 = vmatprep.subr.mxu0 0.0
    %1312 = vmatpush1.xpose.msra.mxu0 0.0
    %1313 = vmatprep.subr.mxu0 0.0
    %1314 = vmatpush1.xpose.msra.mxu0 0.0
    %1315 = vmatprep.subr.mxu0 0.0
    %1316 = vmatpush1.xpose.msra.mxu0 0.0
    %1317 = vmatprep.subr.mxu0 0.0
    %1318 = vmatpush1.xpose.msra.mxu0 0.0
    %1319 = vmatprep.subr.mxu0 0.0
    %1320 = vmatpush1.xpose.msra.mxu0 0.0
    %1321 = vmatprep.subr.mxu0 0.0
    %1322 = vmatpush1.xpose.msra.mxu0 0.0
    %1323 = vmatprep.subr.mxu0 0.0
    %1324 = vmatpush1.xpose.msra.mxu0 0.0
    %1325 = vmatprep.subr.mxu0 0.0
    %1326 = vmatpush1.xpose.msra.mxu0 0.0
    %1327 = vmatprep.subr.mxu0 0.0
    %1328 = vmatpush1.xpose.msra.mxu0 0.0
    %1329 = vmatprep.mubr.f32.mxu0 0.0
    %1330 = vmatmul.mubr.f32.gmra.mrb[0].mxu0 %v819
    %v1331 = vpop.f32.mrb[0].mxu0
    %v1332 = vadd.f32 %v1108, %v1331
    %v1333 = vpop.f32.mrb[0].mxu0
    %1334 = vdwg.mxu0
    %v1335 = vsel %vm1180, %v1332, -inf
    %1336 = vmax.xlane.f32.xlu0 %v1335
    %v1337 = vpop.xlane.xlu0 %1336
    %v1338 = vsub.f32 %v1332, %v1337
    %v1339 = vmul.f32 %v1338, 1.442695
    %v1340 = vpow.pop %v1339
    %v1341 = vsel %vm1180, %v1340, 0.0
    %1342 = vadd.xlane.f32.xlu0 %v1341
    %v1343 = vpop.xlane.xlu0 %1342
    %v1344 = vrcp.pop %v1343
    %v1345 = vmul.f32 %v1340, %v1344
    %v1347 = vsel %vm1180, %v1345, 0
    %1349 = vmatprep.subr.mxu0 0.0
    %1350 = vmatpush1.msra.mxu0 %v1032
    %1351 = vmatprep.subr.mxu0 0.0
    %1352 = vmatpush1.msra.mxu0 0.0
    %1353 = vmatprep.subr.mxu0 0.0
    %1354 = vmatpush1.msra.mxu0 0.0
    %1355 = vmatprep.subr.mxu0 0.0
    %1356 = vmatpush1.msra.mxu0 0.0
    %1357 = vmatprep.subr.mxu0 0.0
    %1358 = vmatpush1.msra.mxu0 0.0
    %1359 = vmatprep.subr.mxu0 0.0
    %1360 = vmatpush1.msra.mxu0 0.0
    %1361 = vmatprep.subr.mxu0 0.0
    %1362 = vmatpush1.msra.mxu0 0.0
    %1363 = vmatprep.subr.mxu0 0.0
    %1364 = vmatpush1.msra.mxu0 0.0
    %1365 = vmatprep.subr.mxu0 0.0
    %1366 = vmatpush1.msra.mxu0 0.0
    %1367 = vmatprep.subr.mxu0 0.0
    %1368 = vmatpush1.msra.mxu0 0.0
    %1369 = vmatprep.subr.mxu0 0.0
    %1370 = vmatpush1.msra.mxu0 0.0
    %1371 = vmatprep.subr.mxu0 0.0
    %1372 = vmatpush1.msra.mxu0 0.0
    %1373 = vmatprep.subr.mxu0 0.0
    %1374 = vmatpush1.msra.mxu0 0.0
    %1375 = vmatprep.subr.mxu0 0.0
    %1376 = vmatpush1.msra.mxu0 0.0
    %1377 = vmatprep.subr.mxu0 0.0
    %1378 = vmatpush1.msra.mxu0 0.0
    %1379 = vmatprep.subr.mxu0 0.0
    %1380 = vmatpush1.msra.mxu0 0.0
    %1381 = vmatprep.subr.mxu0 0.0
    %1382 = vmatpush1.msra.mxu0 0.0
    %1383 = vmatprep.subr.mxu0 0.0
    %1384 = vmatpush1.msra.mxu0 0.0
    %1385 = vmatprep.subr.mxu0 0.0
    %1386 = vmatpush1.msra.mxu0 0.0
    %1387 = vmatprep.subr.mxu0 0.0
    %1388 = vmatpush1.msra.mxu0 0.0
    %1389 = vmatprep.subr.mxu0 0.0
    %1390 = vmatpush1.msra.mxu0 0.0
    %1391 = vmatprep.subr.mxu0 0.0
    %1392 = vmatpush1.msra.mxu0 0.0
    %1393 = vmatprep.subr.mxu0 0.0
    %1394 = vmatpush1.msra.mxu0 0.0
    %1395 = vmatprep.subr.mxu0 0.0
    %1396 = vmatpush1.msra.mxu0 0.0
    %1397 = vmatprep.subr.mxu0 0.0
    %1398 = vmatpush1.msra.mxu0 0.0
    %1399 = vmatprep.subr.mxu0 0.0
    %1400 = vmatpush1.msra.mxu0 0.0
    %1401 = vmatprep.subr.mxu0 0.0
    %1402 = vmatpush1.msra.mxu0 0.0
    %1403 = vmatprep.subr.mxu0 0.0
    %1404 = vmatpush1.msra.mxu0 0.0
    %1405 = vmatprep.subr.mxu0 0.0
    %1406 = vmatpush1.msra.mxu0 0.0
    %1407 = vmatprep.subr.mxu0 0.0
    %1408 = vmatpush1.msra.mxu0 0.0
    %1409 = vmatprep.subr.mxu0 0.0
    %1410 = vmatpush1.msra.mxu0 0.0
    %1411 = vmatprep.subr.mxu0 0.0
    %1412 = vmatpush1.msra.mxu0 0.0
    %1413 = vmatprep.mubr.f32.mxu0 0.0
    %1414 = vmatmul.mubr.f32.gmra.mrb[0].mxu0 %v1347
    %v1415 = vpop.f32.mrb[0].mxu0
    %v1416 = vadd.f32 0.0, %v1415
    %v1417 = vpop.f32.mrb[0].mxu0
    %1418 = vdwg.mxu0
    %1419 = vmatprep.subr.mxu0 0.0
    %1420 = vmatpush1.xpose.msra.mxu0 %v961
    %1421 = vmatprep.subr.mxu0 0.0
    %1422 = vmatpush1.xpose.msra.mxu0 0.0
    %1423 = vmatprep.subr.mxu0 0.0
    %1424 = vmatpush1.xpose.msra.mxu0 0.0
    %1425 = vmatprep.subr.mxu0 0.0
    %1426 = vmatpush1.xpose.msra.mxu0 0.0
    %1427 = vmatprep.subr.mxu0 0.0
    %1428 = vmatpush1.xpose.msra.mxu0 0.0
    %1429 = vmatprep.subr.mxu0 0.0
    %1430 = vmatpush1.xpose.msra.mxu0 0.0
    %1431 = vmatprep.subr.mxu0 0.0
    %1432 = vmatpush1.xpose.msra.mxu0 0.0
    %1433 = vmatprep.subr.mxu0 0.0
    %1434 = vmatpush1.xpose.msra.mxu0 0.0
    %1435 = vmatprep.subr.mxu0 0.0
    %1436 = vmatpush1.xpose.msra.mxu0 0.0
    %1437 = vmatprep.subr.mxu0 0.0
    %1438 = vmatpush1.xpose.msra.mxu0 0.0
    %1439 = vmatprep.subr.mxu0 0.0
    %1440 = vmatpush1.xpose.msra.mxu0 0.0
    %1441 = vmatprep.subr.mxu0 0.0
    %1442 = vmatpush1.xpose.msra.mxu0 0.0
    %1443 = vmatprep.subr.mxu0 0.0
    %1444 = vmatpush1.xpose.msra.mxu0 0.0
    %1445 = vmatprep.subr.mxu0 0.0
    %1446 = vmatpush1.xpose.msra.mxu0 0.0
    %1447 = vmatprep.subr.mxu0 0.0
    %1448 = vmatpush1.xpose.msra.mxu0 0.0
    %1449 = vmatprep.subr.mxu0 0.0
    %1450 = vmatpush1.xpose.msra.mxu0 0.0
    %1451 = vmatprep.subr.mxu0 0.0
    %1452 = vmatpush1.xpose.msra.mxu0 0.0
    %1453 = vmatprep.subr.mxu0 0.0
    %1454 = vmatpush1.xpose.msra.mxu0 0.0
    %1455 = vmatprep.subr.mxu0 0.0
    %1456 = vmatpush1.xpose.msra.mxu0 0.0
    %1457 = vmatprep.subr.mxu0 0.0
    %1458 = vmatpush1.xpose.msra.mxu0 0.0
    %1459 = vmatprep.subr.mxu0 0.0
    %1460 = vmatpush1.xpose.msra.mxu0 0.0
    %1461 = vmatprep.subr.mxu0 0.0
    %1462 = vmatpush1.xpose.msra.mxu0 0.0
    %1463 = vmatprep.subr.mxu0 0.0
    %1464 = vmatpush1.xpose.msra.mxu0 0.0
    %1465 = vmatprep.subr.mxu0 0.0
    %1466 = vmatpush1.xpose.msra.mxu0 0.0
    %1467 = vmatprep.subr.mxu0 0.0
    %1468 = vmatpush1.xpose.msra.mxu0 0.0
    %1469 = vmatprep.subr.mxu0 0.0
    %1470 = vmatpush1.xpose.msra.mxu0 0.0
    %1471 = vmatprep.subr.mxu0 0.0
    %1472 = vmatpush1.xpose.msra.mxu0 0.0
    %1473 = vmatprep.subr.mxu0 0.0
    %1474 = vmatpush1.xpose.msra.mxu0 0.0
    %1475 = vmatprep.subr.mxu0 0.0
    %1476 = vmatpush1.xpose.msra.mxu0 0.0
    %1477 = vmatprep.subr.mxu0 0.0
    %1478 = vmatpush1.xpose.msra.mxu0 0.0
    %1479 = vmatprep.subr.mxu0 0.0
    %1480 = vmatpush1.xpose.msra.mxu0 0.0
    %1481 = vmatprep.subr.mxu0 0.0
    %1482 = vmatpush1.xpose.msra.mxu0 0.0
    %1483 = vmatprep.mubr.f32.mxu0 0.0
    %1484 = vmatmul.mubr.f32.gmra.mrb[0].mxu0 %v888
    %v1485 = vpop.f32.mrb[0].mxu0
    %v1486 = vadd.f32 %v1108, %v1485
    %v1487 = vpop.f32.mrb[0].mxu0
    %1488 = vdwg.mxu0
    %v1489 = vsel %vm1180, %v1486, -inf
    %1490 = vmax.xlane.f32.xlu0 %v1489
    %v1491 = vpop.xlane.xlu0 %1490
    %v1492 = vsub.f32 %v1486, %v1491
    %v1493 = vmul.f32 %v1492, 1.442695
    %v1494 = vpow.pop %v1493
    %v1495 = vsel %vm1180, %v1494, 0.0
    %1496 = vadd.xlane.f32.xlu0 %v1495
    %v1497 = vpop.xlane.xlu0 %1496
    %v1498 = vrcp.pop %v1497
    %v1499 = vmul.f32 %v1494, %v1498
    %v1501 = vsel %vm1180, %v1499, 0
    %1503 = vmatprep.subr.mxu0 0.0
    %1504 = vmatpush1.msra.mxu0 %v1101
    %1505 = vmatprep.subr.mxu0 0.0
    %1506 = vmatpush1.msra.mxu0 0.0
    %1507 = vmatprep.subr.mxu0 0.0
    %1508 = vmatpush1.msra.mxu0 0.0
    %1509 = vmatprep.subr.mxu0 0.0
    %1510 = vmatpush1.msra.mxu0 0.0
    %1511 = vmatprep.subr.mxu0 0.0
    %1512 = vmatpush1.msra.mxu0 0.0
    %1513 = vmatprep.subr.mxu0 0.0
    %1514 = vmatpush1.msra.mxu0 0.0
    %1515 = vmatprep.subr.mxu0 0.0
    %1516 = vmatpush1.msra.mxu0 0.0
    %1517 = vmatprep.subr.mxu0 0.0
    %1518 = vmatpush1.msra.mxu0 0.0
    %1519 = vmatprep.subr.mxu0 0.0
    %1520 = vmatpush1.msra.mxu0 0.0
    %1521 = vmatprep.subr.mxu0 0.0
    %1522 = vmatpush1.msra.mxu0 0.0
    %1523 = vmatprep.subr.mxu0 0.0
    %1524 = vmatpush1.msra.mxu0 0.0
    %1525 = vmatprep.subr.mxu0 0.0
    %1526 = vmatpush1.msra.mxu0 0.0
    %1527 = vmatprep.subr.mxu0 0.0
    %1528 = vmatpush1.msra.mxu0 0.0
    %1529 = vmatprep.subr.mxu0 0.0
    %1530 = vmatpush1.msra.mxu0 0.0
    %1531 = vmatprep.subr.mxu0 0.0
    %1532 = vmatpush1.msra.mxu0 0.0
    %1533 = vmatprep.subr.mxu0 0.0
    %1534 = vmatpush1.msra.mxu0 0.0
    %1535 = vmatprep.subr.mxu0 0.0
    %1536 = vmatpush1.msra.mxu0 0.0
    %1537 = vmatprep.subr.mxu0 0.0
    %1538 = vmatpush1.msra.mxu0 0.0
    %1539 = vmatprep.subr.mxu0 0.0
    %1540 = vmatpush1.msra.mxu0 0.0
    %1541 = vmatprep.subr.mxu0 0.0
    %1542 = vmatpush1.msra.mxu0 0.0
    %1543 = vmatprep.subr.mxu0 0.0
    %1544 = vmatpush1.msra.mxu0 0.0
    %1545 = vmatprep.subr.mxu0 0.0
    %1546 = vmatpush1.msra.mxu0 0.0
    %1547 = vmatprep.subr.mxu0 0.0
    %1548 = vmatpush1.msra.mxu0 0.0
    %1549 = vmatprep.subr.mxu0 0.0
    %1550 = vmatpush1.msra.mxu0 0.0
    %1551 = vmatprep.subr.mxu0 0.0
    %1552 = vmatpush1.msra.mxu0 0.0
    %1553 = vmatprep.subr.mxu0 0.0
    %1554 = vmatpush1.msra.mxu0 0.0
    %1555 = vmatprep.subr.mxu0 0.0
    %1556 = vmatpush1.msra.mxu0 0.0
    %1557 = vmatprep.subr.mxu0 0.0
    %1558 = vmatpush1.msra.mxu0 0.0
    %1559 = vmatprep.subr.mxu0 0.0
    %1560 = vmatpush1.msra.mxu0 0.0
    %1561 = vmatprep.subr.mxu0 0.0
    %1562 = vmatpush1.msra.mxu0 0.0
    %1563 = vmatprep.subr.mxu0 0.0
    %1564 = vmatpush1.msra.mxu0 0.0
    %1565 = vmatprep.subr.mxu0 0.0
    %1566 = vmatpush1.msra.mxu0 0.0
    %1567 = vmatprep.mubr.f32.mxu0 0.0
    %1568 = vmatmul.mubr.f32.gmra.mrb[0].mxu0 %v1501
    %v1569 = vpop.f32.mrb[0].mxu0
    %v1570 = vadd.f32 0.0, %v1569
    %v1571 = vpop.f32.mrb[0].mxu0
    %1572 = vdwg.mxu0
    %v1573 = vld [vmem:[#allocation15] sm:$0xff]
    %v1574 = vld [vmem:[#allocation15 + $0x8] sm:$0xff]
    %v1575 = vld [vmem:[#allocation15 + $0x10] sm:$0xff]
    %v1576 = vld [vmem:[#allocation15 + $0x18] sm:$0xff]
    %v1577 = vld [vmem:[#allocation15 + $0x20] sm:$0xff]
    %v1578 = vld [vmem:[#allocation15 + $0x28] sm:$0xff]
    %v1579 = vld [vmem:[#allocation15 + $0x30] sm:$0xff]
    %v1580 = vld [vmem:[#allocation15 + $0x38] sm:$0xff]
    %v1581 = vld [vmem:[#allocation15 + $0x40] sm:$0xff]
    %v1582 = vld [vmem:[#allocation15 + $0x48] sm:$0xff]
    %v1583 = vld [vmem:[#allocation15 + $0x50] sm:$0xff]
    %v1584 = vld [vmem:[#allocation15 + $0x58] sm:$0xff]
    %v1585 = vld [vmem:[#allocation15 + $0x60] sm:$0xff]
    %v1586 = vld [vmem:[#allocation15 + $0x68] sm:$0xff]
    %v1587 = vld [vmem:[#allocation15 + $0x70] sm:$0xff]
    %v1588 = vld [vmem:[#allocation15 + $0x78] sm:$0xff]
    %v1589 = vld [vmem:[#allocation15 + $0x80] sm:$0xff]
    %v1590 = vld [vmem:[#allocation15 + $0x88] sm:$0xff]
    %v1591 = vld [vmem:[#allocation15 + $0x90] sm:$0xff]
    %v1592 = vld [vmem:[#allocation15 + $0x98] sm:$0xff]
    %v1593 = vld [vmem:[#allocation15 + $0xa0] sm:$0xff]
    %v1594 = vld [vmem:[#allocation15 + $0xa8] sm:$0xff]
    %v1595 = vld [vmem:[#allocation15 + $0xb0] sm:$0xff]
    %v1596 = vld [vmem:[#allocation15 + $0xb8] sm:$0xff]
    %v1597 = vld [vmem:[#allocation15 + $0xc0] sm:$0xff]
    %v1598 = vld [vmem:[#allocation15 + $0xc8] sm:$0xff]
    %v1599 = vld [vmem:[#allocation15 + $0xd0] sm:$0xff]
    %v1600 = vld [vmem:[#allocation15 + $0xd8] sm:$0xff]
    %v1601 = vld [vmem:[#allocation15 + $0xe0] sm:$0xff]
    %v1602 = vld [vmem:[#allocation15 + $0xe8] sm:$0xff]
    %v1603 = vld [vmem:[#allocation15 + $0xf0] sm:$0xff]
    %v1604 = vld [vmem:[#allocation15 + $0xf8] sm:$0xff]
    %v1605 = vld [vmem:[#allocation15 + $0x100] sm:$0xff]
    %v1606 = vld [vmem:[#allocation15 + $0x108] sm:$0xff]
    %v1607 = vld [vmem:[#allocation15 + $0x110] sm:$0xff]
    %v1608 = vld [vmem:[#allocation15 + $0x118] sm:$0xff]
    %v1609 = vld [vmem:[#allocation15 + $0x120] sm:$0xff]
    %v1610 = vld [vmem:[#allocation15 + $0x128] sm:$0xff]
    %v1611 = vld [vmem:[#allocation15 + $0x130] sm:$0xff]
    %v1612 = vld [vmem:[#allocation15 + $0x138] sm:$0xff]
    %v1613 = vld [vmem:[#allocation15 + $0x140] sm:$0xff]
    %v1614 = vld [vmem:[#allocation15 + $0x148] sm:$0xff]
    %v1615 = vld [vmem:[#allocation15 + $0x150] sm:$0xff]
    %v1616 = vld [vmem:[#allocation15 + $0x158] sm:$0xff]
    %v1617 = vld [vmem:[#allocation15 + $0x160] sm:$0xff]
    %v1618 = vld [vmem:[#allocation15 + $0x168] sm:$0xff]
    %v1619 = vld [vmem:[#allocation15 + $0x170] sm:$0xff]
    %v1620 = vld [vmem:[#allocation15 + $0x178] sm:$0xff]
    %v1621 = vld [vmem:[#allocation16] sm:$0x1]
    %v1623 = vlaneseq
    %v1624 = vshrl.u32 %v1623, 7
    %v1625 = vsub.s32 0, %v1624
    %v1626 = vrot.slane %v1621, %v1625
    %1628 = vmatprep.subr.mxu0 0.0
    %1629 = vmatpush1.msra.mxu0 %v1573
    %1630 = vmatprep.subr.mxu0 0.0
    %1631 = vmatpush1.msra.mxu0 %v1574
    %1632 = vmatprep.subr.mxu0 0.0
    %1633 = vmatpush1.msra.mxu0 %v1575
    %1634 = vmatprep.subr.mxu0 0.0
    %1635 = vmatpush1.msra.mxu0 %v1576
    %1636 = vmatprep.subr.mxu0 0.0
    %1637 = vmatpush1.msra.mxu0 %v1577
    %1638 = vmatprep.subr.mxu0 0.0
    %1639 = vmatpush1.msra.mxu0 %v1578
    %1640 = vmatprep.subr.mxu0 0.0
    %1641 = vmatpush1.msra.mxu0 %v1579
    %1642 = vmatprep.subr.mxu0 0.0
    %1643 = vmatpush1.msra.mxu0 %v1580
    %1644 = vmatprep.subr.mxu0 0.0
    %1645 = vmatpush1.msra.mxu0 %v1581
    %1646 = vmatprep.subr.mxu0 0.0
    %1647 = vmatpush1.msra.mxu0 %v1582
    %1648 = vmatprep.subr.mxu0 0.0
    %1649 = vmatpush1.msra.mxu0 %v1583
    %1650 = vmatprep.subr.mxu0 0.0
    %1651 = vmatpush1.msra.mxu0 %v1584
    %1652 = vmatprep.subr.mxu0 0.0
    %1653 = vmatpush1.msra.mxu0 %v1585
    %1654 = vmatprep.subr.mxu0 0.0
    %1655 = vmatpush1.msra.mxu0 %v1586
    %1656 = vmatprep.subr.mxu0 0.0
    %1657 = vmatpush1.msra.mxu0 %v1587
    %1658 = vmatprep.subr.mxu0 0.0
    %1659 = vmatpush1.msra.mxu0 %v1588
    %1660 = vmatprep.subr.mxu0 0.0
    %1661 = vmatpush1.msra.mxu0 %v1589
    %1662 = vmatprep.subr.mxu0 0.0
    %1663 = vmatpush1.msra.mxu0 %v1590
    %1664 = vmatprep.subr.mxu0 0.0
    %1665 = vmatpush1.msra.mxu0 %v1591
    %1666 = vmatprep.subr.mxu0 0.0
    %1667 = vmatpush1.msra.mxu0 %v1592
    %1668 = vmatprep.subr.mxu0 0.0
    %1669 = vmatpush1.msra.mxu0 %v1593
    %1670 = vmatprep.subr.mxu0 0.0
    %1671 = vmatpush1.msra.mxu0 %v1594
    %1672 = vmatprep.subr.mxu0 0.0
    %1673 = vmatpush1.msra.mxu0 %v1595
    %1674 = vmatprep.subr.mxu0 0.0
    %1675 = vmatpush1.msra.mxu0 %v1596
    %1676 = vmatprep.subr.mxu0 0.0
    %1677 = vmatpush1.msra.mxu0 %v1597
    %1678 = vmatprep.subr.mxu0 0.0
    %1679 = vmatpush1.msra.mxu0 %v1598
    %1680 = vmatprep.subr.mxu0 0.0
    %1681 = vmatpush1.msra.mxu0 %v1599
    %1682 = vmatprep.subr.mxu0 0.0
    %1683 = vmatpush1.msra.mxu0 %v1600
    %1684 = vmatprep.subr.mxu0 0.0
    %1685 = vmatpush1.msra.mxu0 %v1601
    %1686 = vmatprep.subr.mxu0 0.0
    %1687 = vmatpush1.msra.mxu0 %v1602
    %1688 = vmatprep.subr.mxu0 0.0
    %1689 = vmatpush1.msra.mxu0 %v1603
    %1690 = vmatprep.subr.mxu0 0.0
    %1691 = vmatpush1.msra.mxu0 %v1604
    %1692 = vmatprep.mubr.f32.mxu0 %v1416
    %1693 = vmatmul.mubr.f32.gmra.mrb[0].mxu0 %v1262
    %v1694 = vpop.f32.mrb[0].mxu0
    %v1695 = vadd.f32 %v1626, %v1694
    %v1696 = vpop.f32.mrb[0].mxu0
    %1697 = vdwg.mxu0
    %1698 = vmatprep.subr.mxu0 0.0
    %1699 = vmatpush1.msra.mxu0 %v1605
    %1700 = vmatprep.subr.mxu0 0.0
    %1701 = vmatpush1.msra.mxu0 %v1606
    %1702 = vmatprep.subr.mxu0 0.0
    %1703 = vmatpush1.msra.mxu0 %v1607
    %1704 = vmatprep.subr.mxu0 0.0
    %1705 = vmatpush1.msra.mxu0 %v1608
    %1706 = vmatprep.subr.mxu0 0.0
    %1707 = vmatpush1.msra.mxu0 %v1609
    %1708 = vmatprep.subr.mxu0 0.0
    %1709 = vmatpush1.msra.mxu0 %v1610
    %1710 = vmatprep.subr.mxu0 0.0
    %1711 = vmatpush1.msra.mxu0 %v1611
    %1712 = vmatprep.subr.mxu0 0.0
    %1713 = vmatpush1.msra.mxu0 %v1612
    %1714 = vmatprep.subr.mxu0 0.0
    %1715 = vmatpush1.msra.mxu0 %v1613
    %1716 = vmatprep.subr.mxu0 0.0
    %1717 = vmatpush1.msra.mxu0 %v1614
    %1718 = vmatprep.subr.mxu0 0.0
    %1719 = vmatpush1.msra.mxu0 %v1615
    %1720 = vmatprep.subr.mxu0 0.0
    %1721 = vmatpush1.msra.mxu0 %v1616
    %1722 = vmatprep.subr.mxu0 0.0
    %1723 = vmatpush1.msra.mxu0 %v1617
    %1724 = vmatprep.subr.mxu0 0.0
    %1725 = vmatpush1.msra.mxu0 %v1618
    %1726 = vmatprep.subr.mxu0 0.0
    %1727 = vmatpush1.msra.mxu0 %v1619
    %1728 = vmatprep.subr.mxu0 0.0
    %1729 = vmatpush1.msra.mxu0 %v1620
    %1730 = vmatprep.subr.mxu0 0.0
    %1731 = vmatpush1.msra.mxu0 0.0
    %1732 = vmatprep.subr.mxu0 0.0
    %1733 = vmatpush1.msra.mxu0 0.0
    %1734 = vmatprep.subr.mxu0 0.0
    %1735 = vmatpush1.msra.mxu0 0.0
    %1736 = vmatprep.subr.mxu0 0.0
    %1737 = vmatpush1.msra.mxu0 0.0
    %1738 = vmatprep.subr.mxu0 0.0
    %1739 = vmatpush1.msra.mxu0 0.0
    %1740 = vmatprep.subr.mxu0 0.0
    %1741 = vmatpush1.msra.mxu0 0.0
    %1742 = vmatprep.subr.mxu0 0.0
    %1743 = vmatpush1.msra.mxu0 0.0
    %1744 = vmatprep.subr.mxu0 0.0
    %1745 = vmatpush1.msra.mxu0 0.0
    %1746 = vmatprep.subr.mxu0 0.0
    %1747 = vmatpush1.msra.mxu0 0.0
    %1748 = vmatprep.subr.mxu0 0.0
    %1749 = vmatpush1.msra.mxu0 0.0
    %1750 = vmatprep.subr.mxu0 0.0
    %1751 = vmatpush1.msra.mxu0 0.0
    %1752 = vmatprep.subr.mxu0 0.0
    %1753 = vmatpush1.msra.mxu0 0.0
    %1754 = vmatprep.subr.mxu0 0.0
    %1755 = vmatpush1.msra.mxu0 0.0
    %1756 = vmatprep.subr.mxu0 0.0
    %1757 = vmatpush1.msra.mxu0 0.0
    %1758 = vmatprep.subr.mxu0 0.0
    %1759 = vmatpush1.msra.mxu0 0.0
    %1760 = vmatprep.subr.mxu0 0.0
    %1761 = vmatpush1.msra.mxu0 0.0
    %1762 = vmatprep.mubr.f32.mxu0 0.0
    %1763 = vmatmul.mubr.f32.gmra.mrb[0].mxu0 %v1570
    %v1764 = vpop.f32.mrb[0].mxu0
    %v1765 = vadd.f32 %v1695, %v1764
    %v1766 = vpop.f32.mrb[0].mxu0
    %1767 = vdwg.mxu0
    %v1768 = vadd.f32 %v555, %v1765
    %v1769 = vld [vmem:[#allocation18] sm:$0x1]
    %v1770 = vld [vmem:[#allocation19] sm:$0x1]
    %1771 = vadd.xlane.f32.xlu0 %v1768
    %v1772 = vpop.xlane.xlu0 %1771
    %v1773 = vmul.f32 %v1768, %v1768
    %1774 = vadd.xlane.f32.xlu0 %v1773
    %v1775 = vpop.xlane.xlu0 %1774
    %v1776 = vmul.f32 %v1772, 0.033333335
    %v1777 = vmul.f32 %v1775, 0.033333335
    %v1778 = vmul.f32 %v1776, %v1776
    %v1779 = vsub.f32 %v1777, %v1778
    %v1780 = vmax.f32 %v1779, 0.0
    %v1781 = vsub.f32 %v1768, %v1776
    %v1782 = vadd.f32 %v1780, 1e-05
    %v1783 = vrsqrt.pop %v1782
    %v1784 = vmul.f32 %v1781, %v1783
    %v1786 = vlaneseq
    %v1787 = vshrl.u32 %v1786, 7
    %v1788 = vsub.s32 0, %v1787
    %v1789 = vrot.slane %v1769, %v1788
    %v1791 = vmul.f32 %v1784, %v1789
    %v1793 = vlaneseq
    %v1794 = vshrl.u32 %v1793, 7
    %v1795 = vsub.s32 0, %v1794
    %v1796 = vrot.slane %v1770, %v1795
    %v1798 = vadd.f32 %v1791, %v1796
    %v1799 = vld [vmem:[#allocation21] sm:$0xff]
    %v1800 = vld [vmem:[#allocation21 + $0x8] sm:$0xff]
    %v1801 = vld [vmem:[#allocation21 + $0x10] sm:$0xff]
    %v1802 = vld [vmem:[#allocation21 + $0x18] sm:$0xff]
    %v1803 = vld [vmem:[#allocation21 + $0x20] sm:$0xff]
    %v1804 = vld [vmem:[#allocation21 + $0x28] sm:$0xff]
    %v1805 = vld [vmem:[#allocation21 + $0x30] sm:$0xff]
    %v1806 = vld [vmem:[#allocation21 + $0x38] sm:$0xff]
    %v1807 = vld [vmem:[#allocation21 + $0x40] sm:$0xff]
    %v1808 = vld [vmem:[#allocation21 + $0x48] sm:$0xff]
    %v1809 = vld [vmem:[#allocation21 + $0x50] sm:$0xff]
    %v1810 = vld [vmem:[#allocation21 + $0x58] sm:$0xff]
    %v1811 = vld [vmem:[#allocation21 + $0x60] sm:$0xff]
    %v1812 = vld [vmem:[#allocation21 + $0x68] sm:$0xff]
    %v1813 = vld [vmem:[#allocation21 + $0x70] sm:$0xff]
    %v1814 = vld [vmem:[#allocation21 + $0x78] sm:$0xff]
    %v1815 = vld [vmem:[#allocation21 + $0x80] sm:$0xff]
    %v1816 = vld [vmem:[#allocation21 + $0x88] sm:$0xff]
    %v1817 = vld [vmem:[#allocation21 + $0x90] sm:$0xff]
    %v1818 = vld [vmem:[#allocation21 + $0x98] sm:$0xff]
    %v1819 = vld [vmem:[#allocation21 + $0xa0] sm:$0xff]
    %v1820 = vld [vmem:[#allocation21 + $0xa8] sm:$0xff]
    %v1821 = vld [vmem:[#allocation21 + $0xb0] sm:$0xff]
    %v1822 = vld [vmem:[#allocation21 + $0xb8] sm:$0xff]
    %v1823 = vld [vmem:[#allocation21 + $0xc0] sm:$0xff]
    %v1824 = vld [vmem:[#allocation21 + $0xc8] sm:$0xff]
    %v1825 = vld [vmem:[#allocation21 + $0xd0] sm:$0xff]
    %v1826 = vld [vmem:[#allocation21 + $0xd8] sm:$0xff]
    %v1827 = vld [vmem:[#allocation21 + $0xe0] sm:$0xff]
    %v1828 = vld [vmem:[#allocation21 + $0xe8] sm:$0xff]
    %v1829 = vld [vmem:[#allocation21 + $0xf0] sm:$0xff]
    %v1830 = vld [vmem:[#allocation21 + $0xf8] sm:$0xff]
    %v1831 = vld [vmem:[#allocation21 + $0x100] sm:$0xff]
    %v1832 = vld [vmem:[#allocation21 + $0x108] sm:$0xff]
    %v1833 = vld [vmem:[#allocation21 + $0x110] sm:$0xff]
    %v1834 = vld [vmem:[#allocation21 + $0x118] sm:$0xff]
    %v1835 = vld [vmem:[#allocation21 + $0x120] sm:$0xff]
    %v1836 = vld [vmem:[#allocation21 + $0x128] sm:$0xff]
    %v1837 = vld [vmem:[#allocation21 + $0x130] sm:$0xff]
    %v1838 = vld [vmem:[#allocation21 + $0x138] sm:$0xff]
    %v1839 = vld [vmem:[#allocation21 + $0x140] sm:$0xff]
    %v1840 = vld [vmem:[#allocation21 + $0x148] sm:$0xff]
    %v1841 = vld [vmem:[#allocation21 + $0x150] sm:$0xff]
    %v1842 = vld [vmem:[#allocation21 + $0x158] sm:$0xff]
    %v1843 = vld [vmem:[#allocation21 + $0x160] sm:$0xff]
    %v1844 = vld [vmem:[#allocation21 + $0x168] sm:$0xff]
    %v1845 = vld [vmem:[#allocation21 + $0x170] sm:$0xff]
    %v1846 = vld [vmem:[#allocation21 + $0x178] sm:$0xff]
    %v1847 = vld [vmem:[#allocation21 + $0x180] sm:$0xff]
    %v1848 = vld [vmem:[#allocation21 + $0x188] sm:$0xff]
    %v1849 = vld [vmem:[#allocation21 + $0x190] sm:$0xff]
    %v1850 = vld [vmem:[#allocation21 + $0x198] sm:$0xff]
    %v1851 = vld [vmem:[#allocation21 + $0x1a0] sm:$0xff]
    %v1852 = vld [vmem:[#allocation21 + $0x1a8] sm:$0xff]
    %v1853 = vld [vmem:[#allocation21 + $0x1b0] sm:$0xff]
    %v1854 = vld [vmem:[#allocation21 + $0x1b8] sm:$0xff]
    %v1855 = vld [vmem:[#allocation21 + $0x1c0] sm:$0xff]
    %v1856 = vld [vmem:[#allocation21 + $0x1c8] sm:$0xff]
    %v1857 = vld [vmem:[#allocation21 + $0x1d0] sm:$0xff]
    %v1858 = vld [vmem:[#allocation21 + $0x1d8] sm:$0xff]
    %v1859 = vld [vmem:[#allocation21 + $0x1e0] sm:$0xff]
    %v1860 = vld [vmem:[#allocation21 + $0x1e8] sm:$0xff]
    %v1861 = vld [vmem:[#allocation21 + $0x1f0] sm:$0xff]
    %v1862 = vld [vmem:[#allocation21 + $0x1f8] sm:$0xff]
    %v1863 = vld [vmem:[#allocation22] sm:$0xf]
    %v1865 = vlaneseq
    %v1866 = vshrl.u32 %v1865, 7
    %v1867 = vsub.s32 0, %v1866
    %v1868 = vrot.slane %v1863, %v1867
    %v1869 = vlaneseq
    %v1870 = vshrl.u32 %v1869, 7
    %v1871 = vsub.s32 1, %v1870
    %v1872 = vrot.slane %v1863, %v1871
    %v1873 = vlaneseq
    %v1874 = vshrl.u32 %v1873, 7
    %v1875 = vsub.s32 2, %v1874
    %v1876 = vrot.slane %v1863, %v1875
    %v1877 = vlaneseq
    %v1878 = vshrl.u32 %v1877, 7
    %v1879 = vsub.s32 3, %v1878
    %v1880 = vrot.slane %v1863, %v1879
    %1885 = vmatprep.subr.mxu0 %v1800
    %1886 = vmatpush1.msra.mxu0 %v1799
    %1887 = vmatprep.subr.mxu0 %v1804
    %1888 = vmatpush1.msra.mxu0 %v1803
    %1889 = vmatprep.subr.mxu0 %v1808
    %1890 = vmatpush1.msra.mxu0 %v1807
    %1891 = vmatprep.subr.mxu0 %v1812
    %1892 = vmatpush1.msra.mxu0 %v1811
    %1893 = vmatprep.subr.mxu0 %v1816
    %1894 = vmatpush1.msra.mxu0 %v1815
    %1895 = vmatprep.subr.mxu0 %v1820
    %1896 = vmatpush1.msra.mxu0 %v1819
    %1897 = vmatprep.subr.mxu0 %v1824
    %1898 = vmatpush1.msra.mxu0 %v1823
    %1899 = vmatprep.subr.mxu0 %v1828
    %1900 = vmatpush1.msra.mxu0 %v1827
    %1901 = vmatprep.subr.mxu0 %v1832
    %1902 = vmatpush1.msra.mxu0 %v1831
    %1903 = vmatprep.subr.mxu0 %v1836
    %1904 = vmatpush1.msra.mxu0 %v1835
    %1905 = vmatprep.subr.mxu0 %v1840
    %1906 = vmatpush1.msra.mxu0 %v1839
    %1907 = vmatprep.subr.mxu0 %v1844
    %1908 = vmatpush1.msra.mxu0 %v1843
    %1909 = vmatprep.subr.mxu0 %v1848
    %1910 = vmatpush1.msra.mxu0 %v1847
    %1911 = vmatprep.subr.mxu0 %v1852
    %1912 = vmatpush1.msra.mxu0 %v1851
    %1913 = vmatprep.subr.mxu0 %v1856
    %1914 = vmatpush1.msra.mxu0 %v1855
    %1915 = vmatprep.subr.mxu0 %v1860
    %1916 = vmatpush1.msra.mxu0 %v1859
    %1917 = vmatprep.subr.mxu0 0.0
    %1918 = vmatpush1.msra.mxu0 0.0
    %1919 = vmatprep.subr.mxu0 0.0
    %1920 = vmatpush1.msra.mxu0 0.0
    %1921 = vmatprep.subr.mxu0 0.0
    %1922 = vmatpush1.msra.mxu0 0.0
    %1923 = vmatprep.subr.mxu0 0.0
    %1924 = vmatpush1.msra.mxu0 0.0
    %1925 = vmatprep.subr.mxu0 0.0
    %1926 = vmatpush1.msra.mxu0 0.0
    %1927 = vmatprep.subr.mxu0 0.0
    %1928 = vmatpush1.msra.mxu0 0.0
    %1929 = vmatprep.subr.mxu0 0.0
    %1930 = vmatpush1.msra.mxu0 0.0
    %1931 = vmatprep.subr.mxu0 0.0
    %1932 = vmatpush1.msra.mxu0 0.0
    %1933 = vmatprep.subr.mxu0 0.0
    %1934 = vmatpush1.msra.mxu0 0.0
    %1935 = vmatprep.subr.mxu0 0.0
    %1936 = vmatpush1.msra.mxu0 0.0
    %1937 = vmatprep.subr.mxu0 0.0
    %1938 = vmatpush1.msra.mxu0 0.0
    %1939 = vmatprep.subr.mxu0 0.0
    %1940 = vmatpush1.msra.mxu0 0.0
    %1941 = vmatprep.subr.mxu0 0.0
    %1942 = vmatpush1.msra.mxu0 0.0
    %1943 = vmatprep.subr.mxu0 0.0
    %1944 = vmatpush1.msra.mxu0 0.0
    %1945 = vmatprep.subr.mxu0 0.0
    %1946 = vmatpush1.msra.mxu0 0.0
    %1947 = vmatprep.subr.mxu0 0.0
    %1948 = vmatpush1.msra.mxu0 0.0
    %1949 = vmatprep.mubr.f32.mxu0 0.0
    %1950 = vmatmul.mubr.f32.gmra.mrb[0].mxu0 %v1798
    %v1951 = vpop.f32.mrb[0].mxu0
    %v1952 = vadd.f32 %v1868, %v1951
    %v1953 = vpop.f32.mrb[0].mxu0
    %v1954 = vadd.f32 %v1872, %v1953
    %1955 = vdwg.mxu0
    %1956 = vmatprep.subr.mxu0 %v1802
    %1957 = vmatpush1.msra.mxu0 %v1801
    %1958 = vmatprep.subr.mxu0 %v1806
    %1959 = vmatpush1.msra.mxu0 %v1805
    %1960 = vmatprep.subr.mxu0 %v1810
    %1961 = vmatpush1.msra.mxu0 %v1809
    %1962 = vmatprep.subr.mxu0 %v1814
    %1963 = vmatpush1.msra.mxu0 %v1813
    %1964 = vmatprep.subr.mxu0 %v1818
    %1965 = vmatpush1.msra.mxu0 %v1817
    %1966 = vmatprep.subr.mxu0 %v1822
    %1967 = vmatpush1.msra.mxu0 %v1821
    %1968 = vmatprep.subr.mxu0 %v1826
    %1969 = vmatpush1.msra.mxu0 %v1825
    %1970 = vmatprep.subr.mxu0 %v1830
    %1971 = vmatpush1.msra.mxu0 %v1829
    %1972 = vmatprep.subr.mxu0 %v1834
    %1973 = vmatpush1.msra.mxu0 %v1833
    %1974 = vmatprep.subr.mxu0 %v1838
    %1975 = vmatpush1.msra.mxu0 %v1837
    %1976 = vmatprep.subr.mxu0 %v1842
    %1977 = vmatpush1.msra.mxu0 %v1841
    %1978 = vmatprep.subr.mxu0 %v1846
    %1979 = vmatpush1.msra.mxu0 %v1845
    %1980 = vmatprep.subr.mxu0 %v1850
    %1981 = vmatpush1.msra.mxu0 %v1849
    %1982 = vmatprep.subr.mxu0 %v1854
    %1983 = vmatpush1.msra.mxu0 %v1853
    %1984 = vmatprep.subr.mxu0 %v1858
    %1985 = vmatpush1.msra.mxu0 %v1857
    %1986 = vmatprep.subr.mxu0 %v1862
    %1987 = vmatpush1.msra.mxu0 %v1861
    %1988 = vmatprep.subr.mxu0 0.0
    %1989 = vmatpush1.msra.mxu0 0.0
    %1990 = vmatprep.subr.mxu0 0.0
    %1991 = vmatpush1.msra.mxu0 0.0
    %1992 = vmatprep.subr.mxu0 0.0
    %1993 = vmatpush1.msra.mxu0 0.0
    %1994 = vmatprep.subr.mxu0 0.0
    %1995 = vmatpush1.msra.mxu0 0.0
    %1996 = vmatprep.subr.mxu0 0.0
    %1997 = vmatpush1.msra.mxu0 0.0
    %1998 = vmatprep.subr.mxu0 0.0
    %1999 = vmatpush1.msra.mxu0 0.0
    %2000 = vmatprep.subr.mxu0 0.0
    %2001 = vmatpush1.msra.mxu0 0.0
    %2002 = vmatprep.subr.mxu0 0.0
    %2003 = vmatpush1.msra.mxu0 0.0
    %2004 = vmatprep.subr.mxu0 0.0
    %2005 = vmatpush1.msra.mxu0 0.0
    %2006 = vmatprep.subr.mxu0 0.0
    %2007 = vmatpush1.msra.mxu0 0.0
    %2008 = vmatprep.subr.mxu0 0.0
    %2009 = vmatpush1.msra.mxu0 0.0
    %2010 = vmatprep.subr.mxu0 0.0
    %2011 = vmatpush1.msra.mxu0 0.0
    %2012 = vmatprep.subr.mxu0 0.0
    %2013 = vmatpush1.msra.mxu0 0.0
    %2014 = vmatprep.subr.mxu0 0.0
    %2015 = vmatpush1.msra.mxu0 0.0
    %2016 = vmatprep.subr.mxu0 0.0
    %2017 = vmatpush1.msra.mxu0 0.0
    %2018 = vmatprep.subr.mxu0 0.0
    %2019 = vmatpush1.msra.mxu0 0.0
    %2020 = vmatprep.mubr.f32.mxu0 0.0
    %2021 = vmatmul.mubr.f32.gmra.mrb[0].mxu0 %v1798
    %v2022 = vpop.f32.mrb[0].mxu0
    %v2023 = vadd.f32 %v1876, %v2022
    %v2024 = vpop.f32.mrb[0].mxu0
    %v2025 = vadd.f32 %v1880, %v2024
    %2026 = vdwg.mxu0
    %v2027 = vmax.f32 %v1952, 0.0
    %v2028 = vmax.f32 %v1954, 0.0
    %v2029 = vmax.f32 %v2023, 0.0
    %v2030 = vmax.f32 %v2025, 0.0
    %v2031 = vld [vmem:[#allocation24] sm:$0xff]
    %v2032 = vld [vmem:[#allocation24 + $0x8] sm:$0xff]
    %v2033 = vld [vmem:[#allocation24 + $0x10] sm:$0xff]
    %v2034 = vld [vmem:[#allocation24 + $0x18] sm:$0xff]
    %v2035 = vld [vmem:[#allocation24 + $0x20] sm:$0xff]
    %v2036 = vld [vmem:[#allocation24 + $0x28] sm:$0xff]
    %v2037 = vld [vmem:[#allocation24 + $0x30] sm:$0xff]
    %v2038 = vld [vmem:[#allocation24 + $0x38] sm:$0xff]
    %v2039 = vld [vmem:[#allocation24 + $0x40] sm:$0xff]
    %v2040 = vld [vmem:[#allocation24 + $0x48] sm:$0xff]
    %v2041 = vld [vmem:[#allocation24 + $0x50] sm:$0xff]
    %v2042 = vld [vmem:[#allocation24 + $0x58] sm:$0xff]
    %v2043 = vld [vmem:[#allocation24 + $0x60] sm:$0xff]
    %v2044 = vld [vmem:[#allocation24 + $0x68] sm:$0xff]
    %v2045 = vld [vmem:[#allocation24 + $0x70] sm:$0xff]
    %v2046 = vld [vmem:[#allocation24 + $0x78] sm:$0xff]
    %v2047 = vld [vmem:[#allocation24 + $0x80] sm:$0xff]
    %v2048 = vld [vmem:[#allocation24 + $0x88] sm:$0xff]
    %v2049 = vld [vmem:[#allocation24 + $0x90] sm:$0xff]
    %v2050 = vld [vmem:[#allocation24 + $0x98] sm:$0xff]
    %v2051 = vld [vmem:[#allocation24 + $0xa0] sm:$0xff]
    %v2052 = vld [vmem:[#allocation24 + $0xa8] sm:$0xff]
    %v2053 = vld [vmem:[#allocation24 + $0xb0] sm:$0xff]
    %v2054 = vld [vmem:[#allocation24 + $0xb8] sm:$0xff]
    %v2055 = vld [vmem:[#allocation24 + $0xc0] sm:$0xff]
    %v2056 = vld [vmem:[#allocation24 + $0xc8] sm:$0xff]
    %v2057 = vld [vmem:[#allocation24 + $0xd0] sm:$0xff]
    %v2058 = vld [vmem:[#allocation24 + $0xd8] sm:$0xff]
    %v2059 = vld [vmem:[#allocation24 + $0xe0] sm:$0xff]
    %v2060 = vld [vmem:[#allocation24 + $0xe8] sm:$0xff]
    %v2061 = vld [vmem:[#allocation24 + $0xf0] sm:$0xff]
    %v2062 = vld [vmem:[#allocation24 + $0xf8] sm:$0xff]
    %v2063 = vld [vmem:[#allocation24 + $0x100] sm:$0xff]
    %v2064 = vld [vmem:[#allocation24 + $0x108] sm:$0xff]
    %v2065 = vld [vmem:[#allocation24 + $0x110] sm:$0xff]
    %v2066 = vld [vmem:[#allocation24 + $0x118] sm:$0xff]
    %v2067 = vld [vmem:[#allocation24 + $0x120] sm:$0xff]
    %v2068 = vld [vmem:[#allocation24 + $0x128] sm:$0xff]
    %v2069 = vld [vmem:[#allocation24 + $0x130] sm:$0xff]
    %v2070 = vld [vmem:[#allocation24 + $0x138] sm:$0xff]
    %v2071 = vld [vmem:[#allocation24 + $0x140] sm:$0xff]
    %v2072 = vld [vmem:[#allocation24 + $0x148] sm:$0xff]
    %v2073 = vld [vmem:[#allocation24 + $0x150] sm:$0xff]
    %v2074 = vld [vmem:[#allocation24 + $0x158] sm:$0xff]
    %v2075 = vld [vmem:[#allocation24 + $0x160] sm:$0xff]
    %v2076 = vld [vmem:[#allocation24 + $0x168] sm:$0xff]
    %v2077 = vld [vmem:[#allocation24 + $0x170] sm:$0xff]
    %v2078 = vld [vmem:[#allocation24 + $0x178] sm:$0xff]
    %v2079 = vld [vmem:[#allocation24 + $0x180] sm:$0xff]
    %v2080 = vld [vmem:[#allocation24 + $0x188] sm:$0xff]
    %v2081 = vld [vmem:[#allocation24 + $0x190] sm:$0xff]
    %v2082 = vld [vmem:[#allocation24 + $0x198] sm:$0xff]
    %v2083 = vld [vmem:[#allocation24 + $0x1a0] sm:$0xff]
    %v2084 = vld [vmem:[#allocation24 + $0x1a8] sm:$0xff]
    %v2085 = vld [vmem:[#allocation24 + $0x1b0] sm:$0xff]
    %v2086 = vld [vmem:[#allocation24 + $0x1b8] sm:$0xff]
    %v2087 = vld [vmem:[#allocation24 + $0x1c0] sm:$0xff]
    %v2088 = vld [vmem:[#allocation24 + $0x1c8] sm:$0xff]
    %v2089 = vld [vmem:[#allocation24 + $0x1d0] sm:$0xff]
    %v2090 = vld [vmem:[#allocation24 + $0x1d8] sm:$0xff]
    %v2091 = vld [vmem:[#allocation24 + $0x1e0] sm:$0xff]
    %v2092 = vld [vmem:[#allocation24 + $0x1e8] sm:$0xff]
    %v2093 = vld [vmem:[#allocation24 + $0x1f0] sm:$0xff]
    %v2094 = vld [vmem:[#allocation24 + $0x1f8] sm:$0xff]
    %v2095 = vld [vmem:[#allocation25] sm:$0x1]
    %v2097 = vlaneseq
    %v2098 = vshrl.u32 %v2097, 7
    %v2099 = vsub.s32 0, %v2098
    %v2100 = vrot.slane %v2095, %v2099
    %2102 = vmatprep.subr.mxu0 0.0
    %2103 = vmatpush1.msra.mxu0 %v2031
    %2104 = vmatprep.subr.mxu0 0.0
    %2105 = vmatpush1.msra.mxu0 %v2032
    %2106 = vmatprep.subr.mxu0 0.0
    %2107 = vmatpush1.msra.mxu0 %v2033
    %2108 = vmatprep.subr.mxu0 0.0
    %2109 = vmatpush1.msra.mxu0 %v2034
    %2110 = vmatprep.subr.mxu0 0.0
    %2111 = vmatpush1.msra.mxu0 %v2035
    %2112 = vmatprep.subr.mxu0 0.0
    %2113 = vmatpush1.msra.mxu0 %v2036
    %2114 = vmatprep.subr.mxu0 0.0
    %2115 = vmatpush1.msra.mxu0 %v2037
    %2116 = vmatprep.subr.mxu0 0.0
    %2117 = vmatpush1.msra.mxu0 %v2038
    %2118 = vmatprep.subr.mxu0 0.0
    %2119 = vmatpush1.msra.mxu0 %v2039
    %2120 = vmatprep.subr.mxu0 0.0
    %2121 = vmatpush1.msra.mxu0 %v2040
    %2122 = vmatprep.subr.mxu0 0.0
    %2123 = vmatpush1.msra.mxu0 %v2041
    %2124 = vmatprep.subr.mxu0 0.0
    %2125 = vmatpush1.msra.mxu0 %v2042
    %2126 = vmatprep.subr.mxu0 0.0
    %2127 = vmatpush1.msra.mxu0 %v2043
    %2128 = vmatprep.subr.mxu0 0.0
    %2129 = vmatpush1.msra.mxu0 %v2044
    %2130 = vmatprep.subr.mxu0 0.0
    %2131 = vmatpush1.msra.mxu0 %v2045
    %2132 = vmatprep.subr.mxu0 0.0
    %2133 = vmatpush1.msra.mxu0 %v2046
    %2134 = vmatprep.subr.mxu0 0.0
    %2135 = vmatpush1.msra.mxu0 %v2047
    %2136 = vmatprep.subr.mxu0 0.0
    %2137 = vmatpush1.msra.mxu0 %v2048
    %2138 = vmatprep.subr.mxu0 0.0
    %2139 = vmatpush1.msra.mxu0 %v2049
    %2140 = vmatprep.subr.mxu0 0.0
    %2141 = vmatpush1.msra.mxu0 %v2050
    %2142 = vmatprep.subr.mxu0 0.0
    %2143 = vmatpush1.msra.mxu0 %v2051
    %2144 = vmatprep.subr.mxu0 0.0
    %2145 = vmatpush1.msra.mxu0 %v2052
    %2146 = vmatprep.subr.mxu0 0.0
    %2147 = vmatpush1.msra.mxu0 %v2053
    %2148 = vmatprep.subr.mxu0 0.0
    %2149 = vmatpush1.msra.mxu0 %v2054
    %2150 = vmatprep.subr.mxu0 0.0
    %2151 = vmatpush1.msra.mxu0 %v2055
    %2152 = vmatprep.subr.mxu0 0.0
    %2153 = vmatpush1.msra.mxu0 %v2056
    %2154 = vmatprep.subr.mxu0 0.0
    %2155 = vmatpush1.msra.mxu0 %v2057
    %2156 = vmatprep.subr.mxu0 0.0
    %2157 = vmatpush1.msra.mxu0 %v2058
    %2158 = vmatprep.subr.mxu0 0.0
    %2159 = vmatpush1.msra.mxu0 %v2059
    %2160 = vmatprep.subr.mxu0 0.0
    %2161 = vmatpush1.msra.mxu0 %v2060
    %2162 = vmatprep.subr.mxu0 0.0
    %2163 = vmatpush1.msra.mxu0 %v2061
    %2164 = vmatprep.subr.mxu0 0.0
    %2165 = vmatpush1.msra.mxu0 %v2062
    %2166 = vmatprep.mubr.f32.mxu0 %v2028
    %2167 = vmatmul.mubr.f32.gmra.mrb[0].mxu0 %v2027
    %v2168 = vpop.f32.mrb[0].mxu0
    %v2169 = vadd.f32 %v2100, %v2168
    %v2170 = vpop.f32.mrb[0].mxu0
    %2171 = vdwg.mxu0
    %2172 = vmatprep.subr.mxu0 0.0
    %2173 = vmatpush1.msra.mxu0 %v2063
    %2174 = vmatprep.subr.mxu0 0.0
    %2175 = vmatpush1.msra.mxu0 %v2064
    %2176 = vmatprep.subr.mxu0 0.0
    %2177 = vmatpush1.msra.mxu0 %v2065
    %2178 = vmatprep.subr.mxu0 0.0
    %2179 = vmatpush1.msra.mxu0 %v2066
    %2180 = vmatprep.subr.mxu0 0.0
    %2181 = vmatpush1.msra.mxu0 %v2067
    %2182 = vmatprep.subr.mxu0 0.0
    %2183 = vmatpush1.msra.mxu0 %v2068
    %2184 = vmatprep.subr.mxu0 0.0
    %2185 = vmatpush1.msra.mxu0 %v2069
    %2186 = vmatprep.subr.mxu0 0.0
    %2187 = vmatpush1.msra.mxu0 %v2070
    %2188 = vmatprep.subr.mxu0 0.0
    %2189 = vmatpush1.msra.mxu0 %v2071
    %2190 = vmatprep.subr.mxu0 0.0
    %2191 = vmatpush1.msra.mxu0 %v2072
    %2192 = vmatprep.subr.mxu0 0.0
    %2193 = vmatpush1.msra.mxu0 %v2073
    %2194 = vmatprep.subr.mxu0 0.0
    %2195 = vmatpush1.msra.mxu0 %v2074
    %2196 = vmatprep.subr.mxu0 0.0
    %2197 = vmatpush1.msra.mxu0 %v2075
    %2198 = vmatprep.subr.mxu0 0.0
    %2199 = vmatpush1.msra.mxu0 %v2076
    %2200 = vmatprep.subr.mxu0 0.0
    %2201 = vmatpush1.msra.mxu0 %v2077
    %2202 = vmatprep.subr.mxu0 0.0
    %2203 = vmatpush1.msra.mxu0 %v2078
    %2204 = vmatprep.subr.mxu0 0.0
    %2205 = vmatpush1.msra.mxu0 %v2079
    %2206 = vmatprep.subr.mxu0 0.0
    %2207 = vmatpush1.msra.mxu0 %v2080
    %2208 = vmatprep.subr.mxu0 0.0
    %2209 = vmatpush1.msra.mxu0 %v2081
    %2210 = vmatprep.subr.mxu0 0.0
    %2211 = vmatpush1.msra.mxu0 %v2082
    %2212 = vmatprep.subr.mxu0 0.0
    %2213 = vmatpush1.msra.mxu0 %v2083
    %2214 = vmatprep.subr.mxu0 0.0
    %2215 = vmatpush1.msra.mxu0 %v2084
    %2216 = vmatprep.subr.mxu0 0.0
    %2217 = vmatpush1.msra.mxu0 %v2085
    %2218 = vmatprep.subr.mxu0 0.0
    %2219 = vmatpush1.msra.mxu0 %v2086
    %2220 = vmatprep.subr.mxu0 0.0
    %2221 = vmatpush1.msra.mxu0 %v2087
    %2222 = vmatprep.subr.mxu0 0.0
    %2223 = vmatpush1.msra.mxu0 %v2088
    %2224 = vmatprep.subr.mxu0 0.0
    %2225 = vmatpush1.msra.mxu0 %v2089
    %2226 = vmatprep.subr.mxu0 0.0
    %2227 = vmatpush1.msra.mxu0 %v2090
    %2228 = vmatprep.subr.mxu0 0.0
    %2229 = vmatpush1.msra.mxu0 %v2091
    %2230 = vmatprep.subr.mxu0 0.0
    %2231 = vmatpush1.msra.mxu0 %v2092
    %2232 = vmatprep.subr.mxu0 0.0
    %2233 = vmatpush1.msra.mxu0 %v2093
    %2234 = vmatprep.subr.mxu0 0.0
    %2235 = vmatpush1.msra.mxu0 %v2094
    %2236 = vmatprep.mubr.f32.mxu0 %v2030
    %2237 = vmatmul.mubr.f32.gmra.mrb[0].mxu0 %v2029
    %v2238 = vpop.f32.mrb[0].mxu0
    %v2239 = vadd.f32 %v2169, %v2238
    %v2240 = vpop.f32.mrb[0].mxu0
    %2241 = vdwg.mxu0
    %v2242 = vadd.f32 %v1798, %v2239
    %v2243 = vld [vmem:[#allocation27] sm:$0x1]
    %v2244 = vld [vmem:[#allocation28] sm:$0x1]
    %2245 = vadd.xlane.f32.xlu0 %v2242
    %v2246 = vpop.xlane.xlu0 %2245
    %v2247 = vmul.f32 %v2242, %v2242
    %2248 = vadd.xlane.f32.xlu0 %v2247
    %v2249 = vpop.xlane.xlu0 %2248
    %v2250 = vmul.f32 %v2246, 0.033333335
    %v2251 = vmul.f32 %v2249, 0.033333335
    %v2252 = vmul.f32 %v2250, %v2250
    %v2253 = vsub.f32 %v2251, %v2252
    %v2254 = vmax.f32 %v2253, 0.0
    %v2255 = vsub.f32 %v2242, %v2250
    %v2256 = vadd.f32 %v2254, 1e-05
    %v2257 = vrsqrt.pop %v2256
    %v2258 = vmul.f32 %v2255, %v2257
    %v2260 = vlaneseq
    %v2261 = vshrl.u32 %v2260, 7
    %v2262 = vsub.s32 0, %v2261
    %v2263 = vrot.slane %v2243, %v2262
    %v2265 = vmul.f32 %v2258, %v2263
    %v2267 = vlaneseq
    %v2268 = vshrl.u32 %v2267, 7
    %v2269 = vsub.s32 0, %v2268
    %v2270 = vrot.slane %v2244, %v2269
    %v2272 = vadd.f32 %v2265, %v2270
    %s2273 = scalar_lea.vmem [#allocation12], 1152
    %v2274 = vld [vmem:[%s2273] sm:$0xff]
    %v2275 = vld [vmem:[%s2273 + $0x8] sm:$0xff]
    %v2276 = vld [vmem:[%s2273 + $0x10] sm:$0xff]
    %v2277 = vld [vmem:[%s2273 + $0x18] sm:$0xff]
    %v2278 = vld [vmem:[%s2273 + $0x20] sm:$0xff]
    %v2279 = vld [vmem:[%s2273 + $0x28] sm:$0xff]
    %v2280 = vld [vmem:[%s2273 + $0x30] sm:$0xff]
    %v2281 = vld [vmem:[%s2273 + $0x38] sm:$0xff]
    %v2282 = vld [vmem:[%s2273 + $0x40] sm:$0xff]
    %v2283 = vld [vmem:[%s2273 + $0x48] sm:$0xff]
    %v2284 = vld [vmem:[%s2273 + $0x50] sm:$0xff]
    %v2285 = vld [vmem:[%s2273 + $0x58] sm:$0xff]
    %v2286 = vld [vmem:[%s2273 + $0x60] sm:$0xff]
    %v2287 = vld [vmem:[%s2273 + $0x68] sm:$0xff]
    %v2288 = vld [vmem:[%s2273 + $0x70] sm:$0xff]
    %v2289 = vld [vmem:[%s2273 + $0x78] sm:$0xff]
    %v2290 = vld [vmem:[%s2273 + $0x80] sm:$0xff]
    %v2291 = vld [vmem:[%s2273 + $0x88] sm:$0xff]
    %v2292 = vld [vmem:[%s2273 + $0x90] sm:$0xff]
    %v2293 = vld [vmem:[%s2273 + $0x98] sm:$0xff]
    %v2294 = vld [vmem:[%s2273 + $0xa0] sm:$0xff]
    %v2295 = vld [vmem:[%s2273 + $0xa8] sm:$0xff]
    %v2296 = vld [vmem:[%s2273 + $0xb0] sm:$0xff]
    %v2297 = vld [vmem:[%s2273 + $0xb8] sm:$0xff]
    %v2298 = vld [vmem:[%s2273 + $0xc0] sm:$0xff]
    %v2299 = vld [vmem:[%s2273 + $0xc8] sm:$0xff]
    %v2300 = vld [vmem:[%s2273 + $0xd0] sm:$0xff]
    %v2301 = vld [vmem:[%s2273 + $0xd8] sm:$0xff]
    %v2302 = vld [vmem:[%s2273 + $0xe0] sm:$0xff]
    %v2303 = vld [vmem:[%s2273 + $0xe8] sm:$0xff]
    %v2304 = vld [vmem:[%s2273 + $0xf0] sm:$0xff]
    %v2305 = vld [vmem:[%s2273 + $0xf8] sm:$0xff]
    %v2306 = vld [vmem:[%s2273 + $0x100] sm:$0xff]
    %v2307 = vld [vmem:[%s2273 + $0x108] sm:$0xff]
    %v2308 = vld [vmem:[%s2273 + $0x110] sm:$0xff]
    %v2309 = vld [vmem:[%s2273 + $0x118] sm:$0xff]
    %v2310 = vld [vmem:[%s2273 + $0x120] sm:$0xff]
    %v2311 = vld [vmem:[%s2273 + $0x128] sm:$0xff]
    %v2312 = vld [vmem:[%s2273 + $0x130] sm:$0xff]
    %v2313 = vld [vmem:[%s2273 + $0x138] sm:$0xff]
    %v2314 = vld [vmem:[%s2273 + $0x140] sm:$0xff]
    %v2315 = vld [vmem:[%s2273 + $0x148] sm:$0xff]
    %v2316 = vld [vmem:[%s2273 + $0x150] sm:$0xff]
    %v2317 = vld [vmem:[%s2273 + $0x158] sm:$0xff]
    %v2318 = vld [vmem:[%s2273 + $0x160] sm:$0xff]
    %v2319 = vld [vmem:[%s2273 + $0x168] sm:$0xff]
    %v2320 = vld [vmem:[%s2273 + $0x170] sm:$0xff]
    %v2321 = vld [vmem:[%s2273 + $0x178] sm:$0xff]
    %v2322 = vld [vmem:[%s2273 + $0x180] sm:$0xff]
    %v2323 = vld [vmem:[%s2273 + $0x188] sm:$0xff]
    %v2324 = vld [vmem:[%s2273 + $0x190] sm:$0xff]
    %v2325 = vld [vmem:[%s2273 + $0x198] sm:$0xff]
    %v2326 = vld [vmem:[%s2273 + $0x1a0] sm:$0xff]
    %v2327 = vld [vmem:[%s2273 + $0x1a8] sm:$0xff]
    %v2328 = vld [vmem:[%s2273 + $0x1b0] sm:$0xff]
    %v2329 = vld [vmem:[%s2273 + $0x1b8] sm:$0xff]
    %v2330 = vld [vmem:[%s2273 + $0x1c0] sm:$0xff]
    %v2331 = vld [vmem:[%s2273 + $0x1c8] sm:$0xff]
    %v2332 = vld [vmem:[%s2273 + $0x1d0] sm:$0xff]
    %v2333 = vld [vmem:[%s2273 + $0x1d8] sm:$0xff]
    %v2334 = vld [vmem:[%s2273 + $0x1e0] sm:$0xff]
    %v2335 = vld [vmem:[%s2273 + $0x1e8] sm:$0xff]
    %v2336 = vld [vmem:[%s2273 + $0x1f0] sm:$0xff]
    %v2337 = vld [vmem:[%s2273 + $0x1f8] sm:$0xff]
    %v2338 = vld [vmem:[%s2273 + $0x200] sm:$0xff]
    %v2339 = vld [vmem:[%s2273 + $0x208] sm:$0xff]
    %v2340 = vld [vmem:[%s2273 + $0x210] sm:$0xff]
    %v2341 = vld [vmem:[%s2273 + $0x218] sm:$0xff]
    %v2342 = vld [vmem:[%s2273 + $0x220] sm:$0xff]
    %v2343 = vld [vmem:[%s2273 + $0x228] sm:$0xff]
    %v2344 = vld [vmem:[%s2273 + $0x230] sm:$0xff]
    %v2345 = vld [vmem:[%s2273 + $0x238] sm:$0xff]
    %v2346 = vld [vmem:[%s2273 + $0x240] sm:$0xff]
    %v2347 = vld [vmem:[%s2273 + $0x248] sm:$0xff]
    %v2348 = vld [vmem:[%s2273 + $0x250] sm:$0xff]
    %v2349 = vld [vmem:[%s2273 + $0x258] sm:$0xff]
    %v2350 = vld [vmem:[%s2273 + $0x260] sm:$0xff]
    %v2351 = vld [vmem:[%s2273 + $0x268] sm:$0xff]
    %v2352 = vld [vmem:[%s2273 + $0x270] sm:$0xff]
    %v2353 = vld [vmem:[%s2273 + $0x278] sm:$0xff]
    %v2354 = vld [vmem:[%s2273 + $0x280] sm:$0xff]
    %v2355 = vld [vmem:[%s2273 + $0x288] sm:$0xff]
    %v2356 = vld [vmem:[%s2273 + $0x290] sm:$0xff]
    %v2357 = vld [vmem:[%s2273 + $0x298] sm:$0xff]
    %v2358 = vld [vmem:[%s2273 + $0x2a0] sm:$0xff]
    %v2359 = vld [vmem:[%s2273 + $0x2a8] sm:$0xff]
    %v2360 = vld [vmem:[%s2273 + $0x2b0] sm:$0xff]
    %v2361 = vld [vmem:[%s2273 + $0x2b8] sm:$0xff]
    %v2362 = vld [vmem:[%s2273 + $0x2c0] sm:$0xff]
    %v2363 = vld [vmem:[%s2273 + $0x2c8] sm:$0xff]
    %v2364 = vld [vmem:[%s2273 + $0x2d0] sm:$0xff]
    %v2365 = vld [vmem:[%s2273 + $0x2d8] sm:$0xff]
    %v2366 = vld [vmem:[%s2273 + $0x2e0] sm:$0xff]
    %v2367 = vld [vmem:[%s2273 + $0x2e8] sm:$0xff]
    %v2368 = vld [vmem:[%s2273 + $0x2f0] sm:$0xff]
    %v2369 = vld [vmem:[%s2273 + $0x2f8] sm:$0xff]
    %v2370 = vld [vmem:[%s2273 + $0x300] sm:$0xff]
    %v2371 = vld [vmem:[%s2273 + $0x308] sm:$0xff]
    %v2372 = vld [vmem:[%s2273 + $0x310] sm:$0xff]
    %v2373 = vld [vmem:[%s2273 + $0x318] sm:$0xff]
    %v2374 = vld [vmem:[%s2273 + $0x320] sm:$0xff]
    %v2375 = vld [vmem:[%s2273 + $0x328] sm:$0xff]
    %v2376 = vld [vmem:[%s2273 + $0x330] sm:$0xff]
    %v2377 = vld [vmem:[%s2273 + $0x338] sm:$0xff]
    %v2378 = vld [vmem:[%s2273 + $0x340] sm:$0xff]
    %v2379 = vld [vmem:[%s2273 + $0x348] sm:$0xff]
    %v2380 = vld [vmem:[%s2273 + $0x350] sm:$0xff]
    %v2381 = vld [vmem:[%s2273 + $0x358] sm:$0xff]
    %v2382 = vld [vmem:[%s2273 + $0x360] sm:$0xff]
    %v2383 = vld [vmem:[%s2273 + $0x368] sm:$0xff]
    %v2384 = vld [vmem:[%s2273 + $0x370] sm:$0xff]
    %v2385 = vld [vmem:[%s2273 + $0x378] sm:$0xff]
    %v2386 = vld [vmem:[%s2273 + $0x380] sm:$0xff]
    %v2387 = vld [vmem:[%s2273 + $0x388] sm:$0xff]
    %v2388 = vld [vmem:[%s2273 + $0x390] sm:$0xff]
    %v2389 = vld [vmem:[%s2273 + $0x398] sm:$0xff]
    %v2390 = vld [vmem:[%s2273 + $0x3a0] sm:$0xff]
    %v2391 = vld [vmem:[%s2273 + $0x3a8] sm:$0xff]
    %v2392 = vld [vmem:[%s2273 + $0x3b0] sm:$0xff]
    %v2393 = vld [vmem:[%s2273 + $0x3b8] sm:$0xff]
    %v2394 = vld [vmem:[%s2273 + $0x3c0] sm:$0xff]
    %v2395 = vld [vmem:[%s2273 + $0x3c8] sm:$0xff]
    %v2396 = vld [vmem:[%s2273 + $0x3d0] sm:$0xff]
    %v2397 = vld [vmem:[%s2273 + $0x3d8] sm:$0xff]
    %v2398 = vld [vmem:[%s2273 + $0x3e0] sm:$0xff]
    %v2399 = vld [vmem:[%s2273 + $0x3e8] sm:$0xff]
    %v2400 = vld [vmem:[%s2273 + $0x3f0] sm:$0xff]
    %v2401 = vld [vmem:[%s2273 + $0x3f8] sm:$0xff]
    %v2402 = vld [vmem:[%s2273 + $0x400] sm:$0xff]
    %v2403 = vld [vmem:[%s2273 + $0x408] sm:$0xff]
    %v2404 = vld [vmem:[%s2273 + $0x410] sm:$0xff]
    %v2405 = vld [vmem:[%s2273 + $0x418] sm:$0xff]
    %v2406 = vld [vmem:[%s2273 + $0x420] sm:$0xff]
    %v2407 = vld [vmem:[%s2273 + $0x428] sm:$0xff]
    %v2408 = vld [vmem:[%s2273 + $0x430] sm:$0xff]
    %v2409 = vld [vmem:[%s2273 + $0x438] sm:$0xff]
    %v2410 = vld [vmem:[%s2273 + $0x440] sm:$0xff]
    %v2411 = vld [vmem:[%s2273 + $0x448] sm:$0xff]
    %v2412 = vld [vmem:[%s2273 + $0x450] sm:$0xff]
    %v2413 = vld [vmem:[%s2273 + $0x458] sm:$0xff]
    %v2414 = vld [vmem:[%s2273 + $0x460] sm:$0xff]
    %v2415 = vld [vmem:[%s2273 + $0x468] sm:$0xff]
    %v2416 = vld [vmem:[%s2273 + $0x470] sm:$0xff]
    %v2417 = vld [vmem:[%s2273 + $0x478] sm:$0xff]
    %s2418 = scalar_lea.vmem [#allocation13], 9
    %v2419 = vld [vmem:[%s2418] sm:$0xff]
    %v2420 = vld [vmem:[%s2418 + $0x8] sm:$0x1]
    %v2423 = vlaneseq
    %v2424 = vshrl.u32 %v2423, 7
    %v2425 = vsub.s32 0, %v2424
    %v2426 = vrot.slane %v2419, %v2425
    %v2427 = vlaneseq
    %v2428 = vshrl.u32 %v2427, 7
    %v2429 = vsub.s32 1, %v2428
    %v2430 = vrot.slane %v2419, %v2429
    %v2431 = vlaneseq
    %v2432 = vshrl.u32 %v2431, 7
    %v2433 = vsub.s32 2, %v2432
    %v2434 = vrot.slane %v2419, %v2433
    %v2435 = vlaneseq
    %v2436 = vshrl.u32 %v2435, 7
    %v2437 = vsub.s32 3, %v2436
    %v2438 = vrot.slane %v2419, %v2437
    %v2439 = vlaneseq
    %v2440 = vshrl.u32 %v2439, 7
    %v2441 = vsub.s32 4, %v2440
    %v2442 = vrot.slane %v2419, %v2441
    %v2443 = vlaneseq
    %v2444 = vshrl.u32 %v2443, 7
    %v2445 = vsub.s32 5, %v2444
    %v2446 = vrot.slane %v2419, %v2445
    %v2447 = vlaneseq
    %v2448 = vshrl.u32 %v2447, 7
    %v2449 = vsub.s32 6, %v2448
    %v2450 = vrot.slane %v2419, %v2449
    %v2451 = vlaneseq
    %v2452 = vshrl.u32 %v2451, 7
    %v2453 = vsub.s32 7, %v2452
    %v2454 = vrot.slane %v2419, %v2453
    %v2455 = vlaneseq
    %v2456 = vshrl.u32 %v2455, 7
    %v2457 = vsub.s32 0, %v2456
    %v2458 = vrot.slane %v2420, %v2457
    %2468 = vmatprep.subr.mxu0 %v2275
    %2469 = vmatpush1.msra.mxu0 %v2274
    %2470 = vmatprep.subr.mxu0 %v2284
    %2471 = vmatpush1.msra.mxu0 %v2283
    %2472 = vmatprep.subr.mxu0 %v2293
    %2473 = vmatpush1.msra.mxu0 %v2292
    %2474 = vmatprep.subr.mxu0 %v2302
    %2475 = vmatpush1.msra.mxu0 %v2301
    %2476 = vmatprep.subr.mxu0 %v2311
    %2477 = vmatpush1.msra.mxu0 %v2310
    %2478 = vmatprep.subr.mxu0 %v2320
    %2479 = vmatpush1.msra.mxu0 %v2319
    %2480 = vmatprep.subr.mxu0 %v2329
    %2481 = vmatpush1.msra.mxu0 %v2328
    %2482 = vmatprep.subr.mxu0 %v2338
    %2483 = vmatpush1.msra.mxu0 %v2337
    %2484 = vmatprep.subr.mxu0 %v2347
    %2485 = vmatpush1.msra.mxu0 %v2346
    %2486 = vmatprep.subr.mxu0 %v2356
    %2487 = vmatpush1.msra.mxu0 %v2355
    %2488 = vmatprep.subr.mxu0 %v2365
    %2489 = vmatpush1.msra.mxu0 %v2364
    %2490 = vmatprep.subr.mxu0 %v2374
    %2491 = vmatpush1.msra.mxu0 %v2373
    %2492 = vmatprep.subr.mxu0 %v2383
    %2493 = vmatpush1.msra.mxu0 %v2382
    %2494 = vmatprep.subr.mxu0 %v2392
    %2495 = vmatpush1.msra.mxu0 %v2391
    %2496 = vmatprep.subr.mxu0 %v2401
    %2497 = vmatpush1.msra.mxu0 %v2400
    %2498 = vmatprep.subr.mxu0 %v2410
    %2499 = vmatpush1.msra.mxu0 %v2409
    %2500 = vmatprep.subr.mxu0 0.0
    %2501 = vmatpush1.msra.mxu0 0.0
    %2502 = vmatprep.subr.mxu0 0.0
    %2503 = vmatpush1.msra.mxu0 0.0
    %2504 = vmatprep.subr.mxu0 0.0
    %2505 = vmatpush1.msra.mxu0 0.0
    %2506 = vmatprep.subr.mxu0 0.0
    %2507 = vmatpush1.msra.mxu0 0.0
    %2508 = vmatprep.subr.mxu0 0.0
    %2509 = vmatpush1.msra.mxu0 0.0
    %2510 = vmatprep.subr.mxu0 0.0
    %2511 = vmatpush1.msra.mxu0 0.0
    %2512 = vmatprep.subr.mxu0 0.0
    %2513 = vmatpush1.msra.mxu0 0.0
    %2514 = vmatprep.subr.mxu0 0.0
    %2515 = vmatpush1.msra.mxu0 0.0
    %2516 = vmatprep.subr.mxu0 0.0
    %2517 = vmatpush1.msra.mxu0 0.0
    %2518 = vmatprep.subr.mxu0 0.0
    %2519 = vmatpush1.msra.mxu0 0.0
    %2520 = vmatprep.subr.mxu0 0.0
    %2521 = vmatpush1.msra.mxu0 0.0
    %2522 = vmatprep.subr.mxu0 0.0
    %2523 = vmatpush1.msra.mxu0 0.0
    %2524 = vmatprep.subr.mxu0 0.0
    %2525 = vmatpush1.msra.mxu0 0.0
    %2526 = vmatprep.subr.mxu0 0.0
    %2527 = vmatpush1.msra.mxu0 0.0
    %2528 = vmatprep.subr.mxu0 0.0
    %2529 = vmatpush1.msra.mxu0 0.0
    %2530 = vmatprep.subr.mxu0 0.0
    %2531 = vmatpush1.msra.mxu0 0.0
    %2532 = vmatprep.mubr.f32.mxu0 0.0
    %2533 = vmatmul.mubr.f32.gmra.mrb[0].mxu0 %v2272
    %v2534 = vpop.f32.mrb[0].mxu0
    %v2535 = vadd.f32 %v2426, %v2534
    %v2536 = vpop.f32.mrb[0].mxu0
    %v2537 = vadd.f32 %v2430, %v2536
    %2538 = vdwg.mxu0
    %2539 = vmatprep.subr.mxu0 %v2277
    %2540 = vmatpush1.msra.mxu0 %v2276
    %2541 = vmatprep.subr.mxu0 %v2286
    %2542 = vmatpush1.msra.mxu0 %v2285
    %2543 = vmatprep.subr.mxu0 %v2295
    %2544 = vmatpush1.msra.mxu0 %v2294
    %2545 = vmatprep.subr.mxu0 %v2304
    %2546 = vmatpush1.msra.mxu0 %v2303
    %2547 = vmatprep.subr.mxu0 %v2313
    %2548 = vmatpush1.msra.mxu0 %v2312
    %2549 = vmatprep.subr.mxu0 %v2322
    %2550 = vmatpush1.msra.mxu0 %v2321
    %2551 = vmatprep.subr.mxu0 %v2331
    %2552 = vmatpush1.msra.mxu0 %v2330
    %2553 = vmatprep.subr.mxu0 %v2340
    %2554 = vmatpush1.msra.mxu0 %v2339
    %2555 = vmatprep.subr.mxu0 %v2349
    %2556 = vmatpush1.msra.mxu0 %v2348
    %2557 = vmatprep.subr.mxu0 %v2358
    %2558 = vmatpush1.msra.mxu0 %v2357
    %2559 = vmatprep.subr.mxu0 %v2367
    %2560 = vmatpush1.msra.mxu0 %v2366
    %2561 = vmatprep.subr.mxu0 %v2376
    %2562 = vmatpush1.msra.mxu0 %v2375
    %2563 = vmatprep.subr.mxu0 %v2385
    %2564 = vmatpush1.msra.mxu0 %v2384
    %2565 = vmatprep.subr.mxu0 %v2394
    %2566 = vmatpush1.msra.mxu0 %v2393
    %2567 = vmatprep.subr.mxu0 %v2403
    %2568 = vmatpush1.msra.mxu0 %v2402
    %2569 = vmatprep.subr.mxu0 %v2412
    %2570 = vmatpush1.msra.mxu0 %v2411
    %2571 = vmatprep.subr.mxu0 0.0
    %2572 = vmatpush1.msra.mxu0 0.0
    %2573 = vmatprep.subr.mxu0 0.0
    %2574 = vmatpush1.msra.mxu0 0.0
    %2575 = vmatprep.subr.mxu0 0.0
    %2576 = vmatpush1.msra.mxu0 0.0
    %2577 = vmatprep.subr.mxu0 0.0
    %2578 = vmatpush1.msra.mxu0 0.0
    %2579 = vmatprep.subr.mxu0 0.0
    %2580 = vmatpush1.msra.mxu0 0.0
    %2581 = vmatprep.subr.mxu0 0.0
    %2582 = vmatpush1.msra.mxu0 0.0
    %2583 = vmatprep.subr.mxu0 0.0
    %2584 = vmatpush1.msra.mxu0 0.0
    %2585 = vmatprep.subr.mxu0 0.0
    %2586 = vmatpush1.msra.mxu0 0.0
    %2587 = vmatprep.subr.mxu0 0.0
    %2588 = vmatpush1.msra.mxu0 0.0
    %2589 = vmatprep.subr.mxu0 0.0
    %2590 = vmatpush1.msra.mxu0 0.0
    %2591 = vmatprep.subr.mxu0 0.0
    %2592 = vmatpush1.msra.mxu0 0.0
    %2593 = vmatprep.subr.mxu0 0.0
    %2594 = vmatpush1.msra.mxu0 0.0
    %2595 = vmatprep.subr.mxu0 0.0
    %2596 = vmatpush1.msra.mxu0 0.0
    %2597 = vmatprep.subr.mxu0 0.0
    %2598 = vmatpush1.msra.mxu0 0.0
    %2599 = vmatprep.subr.mxu0 0.0
    %2600 = vmatpush1.msra.mxu0 0.0
    %2601 = vmatprep.subr.mxu0 0.0
    %2602 = vmatpush1.msra.mxu0 0.0
    %2603 = vmatprep.mubr.f32.mxu0 0.0
    %2604 = vmatmul.mubr.f32.gmra.mrb[0].mxu0 %v2272
    %v2605 = vpop.f32.mrb[0].mxu0
    %v2606 = vadd.f32 %v2434, %v2605
    %v2607 = vpop.f32.mrb[0].mxu0
    %v2608 = vadd.f32 %v2438, %v2607
    %2609 = vdwg.mxu0
    %2610 = vmatprep.subr.mxu0 %v2279
    %2611 = vmatpush1.msra.mxu0 %v2278
    %2612 = vmatprep.subr.mxu0 %v2288
    %2613 = vmatpush1.msra.mxu0 %v2287
    %2614 = vmatprep.subr.mxu0 %v2297
    %2615 = vmatpush1.msra.mxu0 %v2296
    %2616 = vmatprep.subr.mxu0 %v2306
    %2617 = vmatpush1.msra.mxu0 %v2305
    %2618 = vmatprep.subr.mxu0 %v2315
    %2619 = vmatpush1.msra.mxu0 %v2314
    %2620 = vmatprep.subr.mxu0 %v2324
    %2621 = vmatpush1.msra.mxu0 %v2323
    %2622 = vmatprep.subr.mxu0 %v2333
    %2623 = vmatpush1.msra.mxu0 %v2332
    %2624 = vmatprep.subr.mxu0 %v2342
    %2625 = vmatpush1.msra.mxu0 %v2341
    %2626 = vmatprep.subr.mxu0 %v2351
    %2627 = vmatpush1.msra.mxu0 %v2350
    %2628 = vmatprep.subr.mxu0 %v2360
    %2629 = vmatpush1.msra.mxu0 %v2359
    %2630 = vmatprep.subr.mxu0 %v2369
    %2631 = vmatpush1.msra.mxu0 %v2368
    %2632 = vmatprep.subr.mxu0 %v2378
    %2633 = vmatpush1.msra.mxu0 %v2377
    %2634 = vmatprep.subr.mxu0 %v2387
    %2635 = vmatpush1.msra.mxu0 %v2386
    %2636 = vmatprep.subr.mxu0 %v2396
    %2637 = vmatpush1.msra.mxu0 %v2395
    %2638 = vmatprep.subr.mxu0 %v2405
    %2639 = vmatpush1.msra.mxu0 %v2404
    %2640 = vmatprep.subr.mxu0 %v2414
    %2641 = vmatpush1.msra.mxu0 %v2413
    %2642 = vmatprep.subr.mxu0 0.0
    %2643 = vmatpush1.msra.mxu0 0.0
    %2644 = vmatprep.subr.mxu0 0.0
    %2645 = vmatpush1.msra.mxu0 0.0
    %2646 = vmatprep.subr.mxu0 0.0
    %2647 = vmatpush1.msra.mxu0 0.0
    %2648 = vmatprep.subr.mxu0 0.0
    %2649 = vmatpush1.msra.mxu0 0.0
    %2650 = vmatprep.subr.mxu0 0.0
    %2651 = vmatpush1.msra.mxu0 0.0
    %2652 = vmatprep.subr.mxu0 0.0
    %2653 = vmatpush1.msra.mxu0 0.0
    %2654 = vmatprep.subr.mxu0 0.0
    %2655 = vmatpush1.msra.mxu0 0.0
    %2656 = vmatprep.subr.mxu0 0.0
    %2657 = vmatpush1.msra.mxu0 0.0
    %2658 = vmatprep.subr.mxu0 0.0
    %2659 = vmatpush1.msra.mxu0 0.0
    %2660 = vmatprep.subr.mxu0 0.0
    %2661 = vmatpush1.msra.mxu0 0.0
    %2662 = vmatprep.subr.mxu0 0.0
    %2663 = vmatpush1.msra.mxu0 0.0
    %2664 = vmatprep.subr.mxu0 0.0
    %2665 = vmatpush1.msra.mxu0 0.0
    %2666 = vmatprep.subr.mxu0 0.0
    %2667 = vmatpush1.msra.mxu0 0.0
    %2668 = vmatprep.subr.mxu0 0.0
    %2669 = vmatpush1.msra.mxu0 0.0
    %2670 = vmatprep.subr.mxu0 0.0
    %2671 = vmatpush1.msra.mxu0 0.0
    %2672 = vmatprep.subr.mxu0 0.0
    %2673 = vmatpush1.msra.mxu0 0.0
    %2674 = vmatprep.mubr.f32.mxu0 0.0
    %2675 = vmatmul.mubr.f32.gmra.mrb[0].mxu0 %v2272
    %v2676 = vpop.f32.mrb[0].mxu0
    %v2677 = vadd.f32 %v2442, %v2676
    %v2678 = vpop.f32.mrb[0].mxu0
    %v2679 = vadd.f32 %v2446, %v2678
    %2680 = vdwg.mxu0
    %2681 = vmatprep.subr.mxu0 %v2281
    %2682 = vmatpush1.msra.mxu0 %v2280
    %2683 = vmatprep.subr.mxu0 %v2290
    %2684 = vmatpush1.msra.mxu0 %v2289
    %2685 = vmatprep.subr.mxu0 %v2299
    %2686 = vmatpush1.msra.mxu0 %v2298
    %2687 = vmatprep.subr.mxu0 %v2308
    %2688 = vmatpush1.msra.mxu0 %v2307
    %2689 = vmatprep.subr.mxu0 %v2317
    %2690 = vmatpush1.msra.mxu0 %v2316
    %2691 = vmatprep.subr.mxu0 %v2326
    %2692 = vmatpush1.msra.mxu0 %v2325
    %2693 = vmatprep.subr.mxu0 %v2335
    %2694 = vmatpush1.msra.mxu0 %v2334
    %2695 = vmatprep.subr.mxu0 %v2344
    %2696 = vmatpush1.msra.mxu0 %v2343
    %2697 = vmatprep.subr.mxu0 %v2353
    %2698 = vmatpush1.msra.mxu0 %v2352
    %2699 = vmatprep.subr.mxu0 %v2362
    %2700 = vmatpush1.msra.mxu0 %v2361
    %2701 = vmatprep.subr.mxu0 %v2371
    %2702 = vmatpush1.msra.mxu0 %v2370
    %2703 = vmatprep.subr.mxu0 %v2380
    %2704 = vmatpush1.msra.mxu0 %v2379
    %2705 = vmatprep.subr.mxu0 %v2389
    %2706 = vmatpush1.msra.mxu0 %v2388
    %2707 = vmatprep.subr.mxu0 %v2398
    %2708 = vmatpush1.msra.mxu0 %v2397
    %2709 = vmatprep.subr.mxu0 %v2407
    %2710 = vmatpush1.msra.mxu0 %v2406
    %2711 = vmatprep.subr.mxu0 %v2416
    %2712 = vmatpush1.msra.mxu0 %v2415
    %2713 = vmatprep.subr.mxu0 0.0
    %2714 = vmatpush1.msra.mxu0 0.0
    %2715 = vmatprep.subr.mxu0 0.0
    %2716 = vmatpush1.msra.mxu0 0.0
    %2717 = vmatprep.subr.mxu0 0.0
    %2718 = vmatpush1.msra.mxu0 0.0
    %2719 = vmatprep.subr.mxu0 0.0
    %2720 = vmatpush1.msra.mxu0 0.0
    %2721 = vmatprep.subr.mxu0 0.0
    %2722 = vmatpush1.msra.mxu0 0.0
    %2723 = vmatprep.subr.mxu0 0.0
    %2724 = vmatpush1.msra.mxu0 0.0
    %2725 = vmatprep.subr.mxu0 0.0
    %2726 = vmatpush1.msra.mxu0 0.0
    %2727 = vmatprep.subr.mxu0 0.0
    %2728 = vmatpush1.msra.mxu0 0.0
    %2729 = vmatprep.subr.mxu0 0.0
    %2730 = vmatpush1.msra.mxu0 0.0
    %2731 = vmatprep.subr.mxu0 0.0
    %2732 = vmatpush1.msra.mxu0 0.0
    %2733 = vmatprep.subr.mxu0 0.0
    %2734 = vmatpush1.msra.mxu0 0.0
    %2735 = vmatprep.subr.mxu0 0.0
    %2736 = vmatpush1.msra.mxu0 0.0
    %2737 = vmatprep.subr.mxu0 0.0
    %2738 = vmatpush1.msra.mxu0 0.0
    %2739 = vmatprep.subr.mxu0 0.0
    %2740 = vmatpush1.msra.mxu0 0.0
    %2741 = vmatprep.subr.mxu0 0.0
    %2742 = vmatpush1.msra.mxu0 0.0
    %2743 = vmatprep.subr.mxu0 0.0
    %2744 = vmatpush1.msra.mxu0 0.0
    %2745 = vmatprep.mubr.f32.mxu0 0.0
    %2746 = vmatmul.mubr.f32.gmra.mrb[0].mxu0 %v2272
    %v2747 = vpop.f32.mrb[0].mxu0
    %v2748 = vadd.f32 %v2450, %v2747
    %v2749 = vpop.f32.mrb[0].mxu0
    %v2750 = vadd.f32 %v2454, %v2749
    %2751 = vdwg.mxu0
    %2752 = vmatprep.subr.mxu0 0.0
    %2753 = vmatpush1.msra.mxu0 %v2282
    %2754 = vmatprep.subr.mxu0 0.0
    %2755 = vmatpush1.msra.mxu0 %v2291
    %2756 = vmatprep.subr.mxu0 0.0
    %2757 = vmatpush1.msra.mxu0 %v2300
    %2758 = vmatprep.subr.mxu0 0.0
    %2759 = vmatpush1.msra.mxu0 %v2309
    %2760 = vmatprep.subr.mxu0 0.0
    %2761 = vmatpush1.msra.mxu0 %v2318
    %2762 = vmatprep.subr.mxu0 0.0
    %2763 = vmatpush1.msra.mxu0 %v2327
    %2764 = vmatprep.subr.mxu0 0.0
    %2765 = vmatpush1.msra.mxu0 %v2336
    %2766 = vmatprep.subr.mxu0 0.0
    %2767 = vmatpush1.msra.mxu0 %v2345
    %2768 = vmatprep.subr.mxu0 0.0
    %2769 = vmatpush1.msra.mxu0 %v2354
    %2770 = vmatprep.subr.mxu0 0.0
    %2771 = vmatpush1.msra.mxu0 %v2363
    %2772 = vmatprep.subr.mxu0 0.0
    %2773 = vmatpush1.msra.mxu0 %v2372
    %2774 = vmatprep.subr.mxu0 0.0
    %2775 = vmatpush1.msra.mxu0 %v2381
    %2776 = vmatprep.subr.mxu0 0.0
    %2777 = vmatpush1.msra.mxu0 %v2390
    %2778 = vmatprep.subr.mxu0 0.0
    %2779 = vmatpush1.msra.mxu0 %v2399
    %2780 = vmatprep.subr.mxu0 0.0
    %2781 = vmatpush1.msra.mxu0 %v2408
    %2782 = vmatprep.subr.mxu0 0.0
    %2783 = vmatpush1.msra.mxu0 %v2417
    %2784 = vmatprep.subr.mxu0 0.0
    %2785 = vmatpush1.msra.mxu0 0.0
    %2786 = vmatprep.subr.mxu0 0.0
    %2787 = vmatpush1.msra.mxu0 0.0
    %2788 = vmatprep.subr.mxu0 0.0
    %2789 = vmatpush1.msra.mxu0 0.0
    %2790 = vmatprep.subr.mxu0 0.0
    %2791 = vmatpush1.msra.mxu0 0.0
    %2792 = vmatprep.subr.mxu0 0.0
    %2793 = vmatpush1.msra.mxu0 0.0
    %2794 = vmatprep.subr.mxu0 0.0
    %2795 = vmatpush1.msra.mxu0 0.0
    %2796 = vmatprep.subr.mxu0 0.0
    %2797 = vmatpush1.msra.mxu0 0.0
    %2798 = vmatprep.subr.mxu0 0.0
    %2799 = vmatpush1.msra.mxu0 0.0
    %2800 = vmatprep.subr.mxu0 0.0
    %2801 = vmatpush1.msra.mxu0 0.0
    %2802 = vmatprep.subr.mxu0 0.0
    %2803 = vmatpush1.msra.mxu0 0.0
    %2804 = vmatprep.subr.mxu0 0.0
    %2805 = vmatpush1.msra.mxu0 0.0
    %2806 = vmatprep.subr.mxu0 0.0
    %2807 = vmatpush1.msra.mxu0 0.0
    %2808 = vmatprep.subr.mxu0 0.0
    %2809 = vmatpush1.msra.mxu0 0.0
    %2810 = vmatprep.subr.mxu0 0.0
    %2811 = vmatpush1.msra.mxu0 0.0
    %2812 = vmatprep.subr.mxu0 0.0
    %2813 = vmatpush1.msra.mxu0 0.0
    %2814 = vmatprep.subr.mxu0 0.0
    %2815 = vmatpush1.msra.mxu0 0.0
    %2816 = vmatprep.mubr.f32.mxu0 0.0
    %2817 = vmatmul.mubr.f32.gmra.mrb[0].mxu0 %v2272
    %v2818 = vpop.f32.mrb[0].mxu0
    %v2819 = vadd.f32 %v2458, %v2818
    %v2820 = vpop.f32.mrb[0].mxu0
    %2821 = vdwg.mxu0
    %2822 = vmatprep.subr.mxu0 0.0
    %2823 = vmatpush1.xpose.msra.mxu0 %v2608
    %2824 = vmatprep.subr.mxu0 0.0
    %2825 = vmatpush1.xpose.msra.mxu0 0.0
    %2826 = vmatprep.subr.mxu0 0.0
    %2827 = vmatpush1.xpose.msra.mxu0 0.0
    %2828 = vmatprep.subr.mxu0 0.0
    %2829 = vmatpush1.xpose.msra.mxu0 0.0
    %2830 = vmatprep.subr.mxu0 0.0
    %2831 = vmatpush1.xpose.msra.mxu0 0.0
    %2832 = vmatprep.subr.mxu0 0.0
    %2833 = vmatpush1.xpose.msra.mxu0 0.0
    %2834 = vmatprep.subr.mxu0 0.0
    %2835 = vmatpush1.xpose.msra.mxu0 0.0
    %2836 = vmatprep.subr.mxu0 0.0
    %2837 = vmatpush1.xpose.msra.mxu0 0.0
    %2838 = vmatprep.subr.mxu0 0.0
    %2839 = vmatpush1.xpose.msra.mxu0 0.0
    %2840 = vmatprep.subr.mxu0 0.0
    %2841 = vmatpush1.xpose.msra.mxu0 0.0
    %2842 = vmatprep.subr.mxu0 0.0
    %2843 = vmatpush1.xpose.msra.mxu0 0.0
    %2844 = vmatprep.subr.mxu0 0.0
    %2845 = vmatpush1.xpose.msra.mxu0 0.0
    %2846 = vmatprep.subr.mxu0 0.0
    %2847 = vmatpush1.xpose.msra.mxu0 0.0
    %2848 = vmatprep.subr.mxu0 0.0
    %2849 = vmatpush1.xpose.msra.mxu0 0.0
    %2850 = vmatprep.subr.mxu0 0.0
    %2851 = vmatpush1.xpose.msra.mxu0 0.0
    %2852 = vmatprep.subr.mxu0 0.0
    %2853 = vmatpush1.xpose.msra.mxu0 0.0
    %2854 = vmatprep.subr.mxu0 0.0
    %2855 = vmatpush1.xpose.msra.mxu0 0.0
    %2856 = vmatprep.subr.mxu0 0.0
    %2857 = vmatpush1.xpose.msra.mxu0 0.0
    %2858 = vmatprep.subr.mxu0 0.0
    %2859 = vmatpush1.xpose.msra.mxu0 0.0
    %2860 = vmatprep.subr.mxu0 0.0
    %2861 = vmatpush1.xpose.msra.mxu0 0.0
    %2862 = vmatprep.subr.mxu0 0.0
    %2863 = vmatpush1.xpose.msra.mxu0 0.0
    %2864 = vmatprep.subr.mxu0 0.0
    %2865 = vmatpush1.xpose.msra.mxu0 0.0
    %2866 = vmatprep.subr.mxu0 0.0
    %2867 = vmatpush1.xpose.msra.mxu0 0.0
    %2868 = vmatprep.subr.mxu0 0.0
    %2869 = vmatpush1.xpose.msra.mxu0 0.0
    %2870 = vmatprep.subr.mxu0 0.0
    %2871 = vmatpush1.xpose.msra.mxu0 0.0
    %2872 = vmatprep.subr.mxu0 0.0
    %2873 = vmatpush1.xpose.msra.mxu0 0.0
    %2874 = vmatprep.subr.mxu0 0.0
    %2875 = vmatpush1.xpose.msra.mxu0 0.0
    %2876 = vmatprep.subr.mxu0 0.0
    %2877 = vmatpush1.xpose.msra.mxu0 0.0
    %2878 = vmatprep.subr.mxu0 0.0
    %2879 = vmatpush1.xpose.msra.mxu0 0.0
    %2880 = vmatprep.subr.mxu0 0.0
    %2881 = vmatpush1.xpose.msra.mxu0 0.0
    %2882 = vmatprep.subr.mxu0 0.0
    %2883 = vmatpush1.xpose.msra.mxu0 0.0
    %2884 = vmatprep.subr.mxu0 0.0
    %2885 = vmatpush1.xpose.msra.mxu0 0.0
    %2886 = vmatprep.mubr.f32.mxu0 0.0
    %2887 = vmatmul.mubr.f32.gmra.mrb[0].mxu0 %v2535
    %v2888 = vpop.f32.mrb[0].mxu0
    %v2889 = vadd.f32 %v1108, %v2888
    %v2890 = vpop.f32.mrb[0].mxu0
    %2891 = vdwg.mxu0
    %v2892 = vsel %vm1180, %v2889, -inf
    %2893 = vmax.xlane.f32.xlu0 %v2892
    %v2894 = vpop.xlane.xlu0 %2893
    %v2895 = vsub.f32 %v2889, %v2894
    %v2896 = vmul.f32 %v2895, 1.442695
    %v2897 = vpow.pop %v2896
    %v2898 = vsel %vm1180, %v2897, 0.0
    %2899 = vadd.xlane.f32.xlu0 %v2898
    %v2900 = vpop.xlane.xlu0 %2899
    %v2901 = vrcp.pop %v2900
    %v2902 = vmul.f32 %v2897, %v2901
    %v2904 = vsel %vm1180, %v2902, 0
    %2906 = vmatprep.subr.mxu0 0.0
    %2907 = vmatpush1.msra.mxu0 %v2748
    %2908 = vmatprep.subr.mxu0 0.0
    %2909 = vmatpush1.msra.mxu0 0.0
    %2910 = vmatprep.subr.mxu0 0.0
    %2911 = vmatpush1.msra.mxu0 0.0
    %2912 = vmatprep.subr.mxu0 0.0
    %2913 = vmatpush1.msra.mxu0 0.0
    %2914 = vmatprep.subr.mxu0 0.0
    %2915 = vmatpush1.msra.mxu0 0.0
    %2916 = vmatprep.subr.mxu0 0.0
    %2917 = vmatpush1.msra.mxu0 0.0
    %2918 = vmatprep.subr.mxu0 0.0
    %2919 = vmatpush1.msra.mxu0 0.0
    %2920 = vmatprep.subr.mxu0 0.0
    %2921 = vmatpush1.msra.mxu0 0.0
    %2922 = vmatprep.subr.mxu0 0.0
    %2923 = vmatpush1.msra.mxu0 0.0
    %2924 = vmatprep.subr.mxu0 0.0
    %2925 = vmatpush1.msra.mxu0 0.0
    %2926 = vmatprep.subr.mxu0 0.0
    %2927 = vmatpush1.msra.mxu0 0.0
    %2928 = vmatprep.subr.mxu0 0.0
    %2929 = vmatpush1.msra.mxu0 0.0
    %2930 = vmatprep.subr.mxu0 0.0
    %2931 = vmatpush1.msra.mxu0 0.0
    %2932 = vmatprep.subr.mxu0 0.0
    %2933 = vmatpush1.msra.mxu0 0.0
    %2934 = vmatprep.subr.mxu0 0.0
    %2935 = vmatpush1.msra.mxu0 0.0
    %2936 = vmatprep.subr.mxu0 0.0
    %2937 = vmatpush1.msra.mxu0 0.0
    %2938 = vmatprep.subr.mxu0 0.0
    %2939 = vmatpush1.msra.mxu0 0.0
    %2940 = vmatprep.subr.mxu0 0.0
    %2941 = vmatpush1.msra.mxu0 0.0
    %2942 = vmatprep.subr.mxu0 0.0
    %2943 = vmatpush1.msra.mxu0 0.0
    %2944 = vmatprep.subr.mxu0 0.0
    %2945 = vmatpush1.msra.mxu0 0.0
    %2946 = vmatprep.subr.mxu0 0.0
    %2947 = vmatpush1.msra.mxu0 0.0
    %2948 = vmatprep.subr.mxu0 0.0
    %2949 = vmatpush1.msra.mxu0 0.0
    %2950 = vmatprep.subr.mxu0 0.0
    %2951 = vmatpush1.msra.mxu0 0.0
    %2952 = vmatprep.subr.mxu0 0.0
    %2953 = vmatpush1.msra.mxu0 0.0
    %2954 = vmatprep.subr.mxu0 0.0
    %2955 = vmatpush1.msra.mxu0 0.0
    %2956 = vmatprep.subr.mxu0 0.0
    %2957 = vmatpush1.msra.mxu0 0.0
    %2958 = vmatprep.subr.mxu0 0.0
    %2959 = vmatpush1.msra.mxu0 0.0
    %2960 = vmatprep.subr.mxu0 0.0
    %2961 = vmatpush1.msra.mxu0 0.0
    %2962 = vmatprep.subr.mxu0 0.0
    %2963 = vmatpush1.msra.mxu0 0.0
    %2964 = vmatprep.subr.mxu0 0.0
    %2965 = vmatpush1.msra.mxu0 0.0
    %2966 = vmatprep.subr.mxu0 0.0
    %2967 = vmatpush1.msra.mxu0 0.0
    %2968 = vmatprep.subr.mxu0 0.0
    %2969 = vmatpush1.msra.mxu0 0.0
    %2970 = vmatprep.mubr.f32.mxu0 0.0
    %2971 = vmatmul.mubr.f32.gmra.mrb[0].mxu0 %v2904
    %v2972 = vpop.f32.mrb[0].mxu0
    %v2973 = vadd.f32 0.0, %v2972
    %v2974 = vpop.f32.mrb[0].mxu0
    %2975 = vdwg.mxu0
    %2976 = vmatprep.subr.mxu0 0.0
    %2977 = vmatpush1.xpose.msra.mxu0 %v2677
    %2978 = vmatprep.subr.mxu0 0.0
    %2979 = vmatpush1.xpose.msra.mxu0 0.0
    %2980 = vmatprep.subr.mxu0 0.0
    %2981 = vmatpush1.xpose.msra.mxu0 0.0
    %2982 = vmatprep.subr.mxu0 0.0
    %2983 = vmatpush1.xpose.msra.mxu0 0.0
    %2984 = vmatprep.subr.mxu0 0.0
    %2985 = vmatpush1.xpose.msra.mxu0 0.0
    %2986 = vmatprep.subr.mxu0 0.0
    %2987 = vmatpush1.xpose.msra.mxu0 0.0
    %2988 = vmatprep.subr.mxu0 0.0
    %2989 = vmatpush1.xpose.msra.mxu0 0.0
    %2990 = vmatprep.subr.mxu0 0.0
    %2991 = vmatpush1.xpose.msra.mxu0 0.0
    %2992 = vmatprep.subr.mxu0 0.0
    %2993 = vmatpush1.xpose.msra.mxu0 0.0
    %2994 = vmatprep.subr.mxu0 0.0
    %2995 = vmatpush1.xpose.msra.mxu0 0.0
    %2996 = vmatprep.subr.mxu0 0.0
    %2997 = vmatpush1.xpose.msra.mxu0 0.0
    %2998 = vmatprep.subr.mxu0 0.0
    %2999 = vmatpush1.xpose.msra.mxu0 0.0
    %3000 = vmatprep.subr.mxu0 0.0
    %3001 = vmatpush1.xpose.msra.mxu0 0.0
    %3002 = vmatprep.subr.mxu0 0.0
    %3003 = vmatpush1.xpose.msra.mxu0 0.0
    %3004 = vmatprep.subr.mxu0 0.0
    %3005 = vmatpush1.xpose.msra.mxu0 0.0
    %3006 = vmatprep.subr.mxu0 0.0
    %3007 = vmatpush1.xpose.msra.mxu0 0.0
    %3008 = vmatprep.subr.mxu0 0.0
    %3009 = vmatpush1.xpose.msra.mxu0 0.0
    %3010 = vmatprep.subr.mxu0 0.0
    %3011 = vmatpush1.xpose.msra.mxu0 0.0
    %3012 = vmatprep.subr.mxu0 0.0
    %3013 = vmatpush1.xpose.msra.mxu0 0.0
    %3014 = vmatprep.subr.mxu0 0.0
    %3015 = vmatpush1.xpose.msra.mxu0 0.0
    %3016 = vmatprep.subr.mxu0 0.0
    %3017 = vmatpush1.xpose.msra.mxu0 0.0
    %3018 = vmatprep.subr.mxu0 0.0
    %3019 = vmatpush1.xpose.msra.mxu0 0.0
    %3020 = vmatprep.subr.mxu0 0.0
    %3021 = vmatpush1.xpose.msra.mxu0 0.0
    %3022 = vmatprep.subr.mxu0 0.0
    %3023 = vmatpush1.xpose.msra.mxu0 0.0
    %3024 = vmatprep.subr.mxu0 0.0
    %3025 = vmatpush1.xpose.msra.mxu0 0.0
    %3026 = vmatprep.subr.mxu0 0.0
    %3027 = vmatpush1.xpose.msra.mxu0 0.0
    %3028 = vmatprep.subr.mxu0 0.0
    %3029 = vmatpush1.xpose.msra.mxu0 0.0
    %3030 = vmatprep.subr.mxu0 0.0
    %3031 = vmatpush1.xpose.msra.mxu0 0.0
    %3032 = vmatprep.subr.mxu0 0.0
    %3033 = vmatpush1.xpose.msra.mxu0 0.0
    %3034 = vmatprep.subr.mxu0 0.0
    %3035 = vmatpush1.xpose.msra.mxu0 0.0
    %3036 = vmatprep.subr.mxu0 0.0
    %3037 = vmatpush1.xpose.msra.mxu0 0.0
    %3038 = vmatprep.subr.mxu0 0.0
    %3039 = vmatpush1.xpose.msra.mxu0 0.0
    %3040 = vmatprep.mubr.f32.mxu0 0.0
    %3041 = vmatmul.mubr.f32.gmra.mrb[0].mxu0 %v2537
    %v3042 = vpop.f32.mrb[0].mxu0
    %v3043 = vadd.f32 %v1108, %v3042
    %v3044 = vpop.f32.mrb[0].mxu0
    %3045 = vdwg.mxu0
    %v3046 = vsel %vm1180, %v3043, -inf
    %3047 = vmax.xlane.f32.xlu0 %v3046
    %v3048 = vpop.xlane.xlu0 %3047
    %v3049 = vsub.f32 %v3043, %v3048
    %v3050 = vmul.f32 %v3049, 1.442695
    %v3051 = vpow.pop %v3050
    %v3052 = vsel %vm1180, %v3051, 0.0
    %3053 = vadd.xlane.f32.xlu0 %v3052
    %v3054 = vpop.xlane.xlu0 %3053
    %v3055 = vrcp.pop %v3054
    %v3056 = vmul.f32 %v3051, %v3055
    %v3058 = vsel %vm1180, %v3056, 0
    %3060 = vmatprep.subr.mxu0 0.0
    %3061 = vmatpush1.msra.mxu0 %v2750
    %3062 = vmatprep.subr.mxu0 0.0
    %3063 = vmatpush1.msra.mxu0 0.0
    %3064 = vmatprep.subr.mxu0 0.0
    %3065 = vmatpush1.msra.mxu0 0.0
    %3066 = vmatprep.subr.mxu0 0.0
    %3067 = vmatpush1.msra.mxu0 0.0
    %3068 = vmatprep.subr.mxu0 0.0
    %3069 = vmatpush1.msra.mxu0 0.0
    %3070 = vmatprep.subr.mxu0 0.0
    %3071 = vmatpush1.msra.mxu0 0.0
    %3072 = vmatprep.subr.mxu0 0.0
    %3073 = vmatpush1.msra.mxu0 0.0
    %3074 = vmatprep.subr.mxu0 0.0
    %3075 = vmatpush1.msra.mxu0 0.0
    %3076 = vmatprep.subr.mxu0 0.0
    %3077 = vmatpush1.msra.mxu0 0.0
    %3078 = vmatprep.subr.mxu0 0.0
    %3079 = vmatpush1.msra.mxu0 0.0
    %3080 = vmatprep.subr.mxu0 0.0
    %3081 = vmatpush1.msra.mxu0 0.0
    %3082 = vmatprep.subr.mxu0 0.0
    %3083 = vmatpush1.msra.mxu0 0.0
    %3084 = vmatprep.subr.mxu0 0.0
    %3085 = vmatpush1.msra.mxu0 0.0
    %3086 = vmatprep.subr.mxu0 0.0
    %3087 = vmatpush1.msra.mxu0 0.0
    %3088 = vmatprep.subr.mxu0 0.0
    %3089 = vmatpush1.msra.mxu0 0.0
    %3090 = vmatprep.subr.mxu0 0.0
    %3091 = vmatpush1.msra.mxu0 0.0
    %3092 = vmatprep.subr.mxu0 0.0
    %3093 = vmatpush1.msra.mxu0 0.0
    %3094 = vmatprep.subr.mxu0 0.0
    %3095 = vmatpush1.msra.mxu0 0.0
    %3096 = vmatprep.subr.mxu0 0.0
    %3097 = vmatpush1.msra.mxu0 0.0
    %3098 = vmatprep.subr.mxu0 0.0
    %3099 = vmatpush1.msra.mxu0 0.0
    %3100 = vmatprep.subr.mxu0 0.0
    %3101 = vmatpush1.msra.mxu0 0.0
    %3102 = vmatprep.subr.mxu0 0.0
    %3103 = vmatpush1.msra.mxu0 0.0
    %3104 = vmatprep.subr.mxu0 0.0
    %3105 = vmatpush1.msra.mxu0 0.0
    %3106 = vmatprep.subr.mxu0 0.0
    %3107 = vmatpush1.msra.mxu0 0.0
    %3108 = vmatprep.subr.mxu0 0.0
    %3109 = vmatpush1.msra.mxu0 0.0
    %3110 = vmatprep.subr.mxu0 0.0
    %3111 = vmatpush1.msra.mxu0 0.0
    %3112 = vmatprep.subr.mxu0 0.0
    %3113 = vmatpush1.msra.mxu0 0.0
    %3114 = vmatprep.subr.mxu0 0.0
    %3115 = vmatpush1.msra.mxu0 0.0
    %3116 = vmatprep.subr.mxu0 0.0
    %3117 = vmatpush1.msra.mxu0 0.0
    %3118 = vmatprep.subr.mxu0 0.0
    %3119 = vmatpush1.msra.mxu0 0.0
    %3120 = vmatprep.subr.mxu0 0.0
    %3121 = vmatpush1.msra.mxu0 0.0
    %3122 = vmatprep.subr.mxu0 0.0
    %3123 = vmatpush1.msra.mxu0 0.0
    %3124 = vmatprep.mubr.f32.mxu0 0.0
    %3125 = vmatmul.mubr.f32.gmra.mrb[0].mxu0 %v3058
    %v3126 = vpop.f32.mrb[0].mxu0
    %v3127 = vadd.f32 0.0, %v3126
    %v3128 = vpop.f32.mrb[0].mxu0
    %3129 = vdwg.mxu0
    %3130 = vmatprep.subr.mxu0 0.0
    %3131 = vmatpush1.xpose.msra.mxu0 %v2679
    %3132 = vmatprep.subr.mxu0 0.0
    %3133 = vmatpush1.xpose.msra.mxu0 0.0
    %3134 = vmatprep.subr.mxu0 0.0
    %3135 = vmatpush1.xpose.msra.mxu0 0.0
    %3136 = vmatprep.subr.mxu0 0.0
    %3137 = vmatpush1.xpose.msra.mxu0 0.0
    %3138 = vmatprep.subr.mxu0 0.0
    %3139 = vmatpush1.xpose.msra.mxu0 0.0
    %3140 = vmatprep.subr.mxu0 0.0
    %3141 = vmatpush1.xpose.msra.mxu0 0.0
    %3142 = vmatprep.subr.mxu0 0.0
    %3143 = vmatpush1.xpose.msra.mxu0 0.0
    %3144 = vmatprep.subr.mxu0 0.0
    %3145 = vmatpush1.xpose.msra.mxu0 0.0
    %3146 = vmatprep.subr.mxu0 0.0
    %3147 = vmatpush1.xpose.msra.mxu0 0.0
    %3148 = vmatprep.subr.mxu0 0.0
    %3149 = vmatpush1.xpose.msra.mxu0 0.0
    %3150 = vmatprep.subr.mxu0 0.0
    %3151 = vmatpush1.xpose.msra.mxu0 0.0
    %3152 = vmatprep.subr.mxu0 0.0
    %3153 = vmatpush1.xpose.msra.mxu0 0.0
    %3154 = vmatprep.subr.mxu0 0.0
    %3155 = vmatpush1.xpose.msra.mxu0 0.0
    %3156 = vmatprep.subr.mxu0 0.0
    %3157 = vmatpush1.xpose.msra.mxu0 0.0
    %3158 = vmatprep.subr.mxu0 0.0
    %3159 = vmatpush1.xpose.msra.mxu0 0.0
    %3160 = vmatprep.subr.mxu0 0.0
    %3161 = vmatpush1.xpose.msra.mxu0 0.0
    %3162 = vmatprep.subr.mxu0 0.0
    %3163 = vmatpush1.xpose.msra.mxu0 0.0
    %3164 = vmatprep.subr.mxu0 0.0
    %3165 = vmatpush1.xpose.msra.mxu0 0.0
    %3166 = vmatprep.subr.mxu0 0.0
    %3167 = vmatpush1.xpose.msra.mxu0 0.0
    %3168 = vmatprep.subr.mxu0 0.0
    %3169 = vmatpush1.xpose.msra.mxu0 0.0
    %3170 = vmatprep.subr.mxu0 0.0
    %3171 = vmatpush1.xpose.msra.mxu0 0.0
    %3172 = vmatprep.subr.mxu0 0.0
    %3173 = vmatpush1.xpose.msra.mxu0 0.0
    %3174 = vmatprep.subr.mxu0 0.0
    %3175 = vmatpush1.xpose.msra.mxu0 0.0
    %3176 = vmatprep.subr.mxu0 0.0
    %3177 = vmatpush1.xpose.msra.mxu0 0.0
    %3178 = vmatprep.subr.mxu0 0.0
    %3179 = vmatpush1.xpose.msra.mxu0 0.0
    %3180 = vmatprep.subr.mxu0 0.0
    %3181 = vmatpush1.xpose.msra.mxu0 0.0
    %3182 = vmatprep.subr.mxu0 0.0
    %3183 = vmatpush1.xpose.msra.mxu0 0.0
    %3184 = vmatprep.subr.mxu0 0.0
    %3185 = vmatpush1.xpose.msra.mxu0 0.0
    %3186 = vmatprep.subr.mxu0 0.0
    %3187 = vmatpush1.xpose.msra.mxu0 0.0
    %3188 = vmatprep.subr.mxu0 0.0
    %3189 = vmatpush1.xpose.msra.mxu0 0.0
    %3190 = vmatprep.subr.mxu0 0.0
    %3191 = vmatpush1.xpose.msra.mxu0 0.0
    %3192 = vmatprep.subr.mxu0 0.0
    %3193 = vmatpush1.xpose.msra.mxu0 0.0
    %3194 = vmatprep.mubr.f32.mxu0 0.0
    %3195 = vmatmul.mubr.f32.gmra.mrb[0].mxu0 %v2606
    %v3196 = vpop.f32.mrb[0].mxu0
    %v3197 = vadd.f32 %v1108, %v3196
    %v3198 = vpop.f32.mrb[0].mxu0
    %3199 = vdwg.mxu0
    %v3200 = vsel %vm1180, %v3197, -inf
    %3201 = vmax.xlane.f32.xlu0 %v3200
    %v3202 = vpop.xlane.xlu0 %3201
    %v3203 = vsub.f32 %v3197, %v3202
    %v3204 = vmul.f32 %v3203, 1.442695
    %v3205 = vpow.pop %v3204
    %v3206 = vsel %vm1180, %v3205, 0.0
    %3207 = vadd.xlane.f32.xlu0 %v3206
    %v3208 = vpop.xlane.xlu0 %3207
    %v3209 = vrcp.pop %v3208
    %v3210 = vmul.f32 %v3205, %v3209
    %v3212 = vsel %vm1180, %v3210, 0
    %3214 = vmatprep.subr.mxu0 0.0
    %3215 = vmatpush1.msra.mxu0 %v2819
    %3216 = vmatprep.subr.mxu0 0.0
    %3217 = vmatpush1.msra.mxu0 0.0
    %3218 = vmatprep.subr.mxu0 0.0
    %3219 = vmatpush1.msra.mxu0 0.0
    %3220 = vmatprep.subr.mxu0 0.0
    %3221 = vmatpush1.msra.mxu0 0.0
    %3222 = vmatprep.subr.mxu0 0.0
    %3223 = vmatpush1.msra.mxu0 0.0
    %3224 = vmatprep.subr.mxu0 0.0
    %3225 = vmatpush1.msra.mxu0 0.0
    %3226 = vmatprep.subr.mxu0 0.0
    %3227 = vmatpush1.msra.mxu0 0.0
    %3228 = vmatprep.subr.mxu0 0.0
    %3229 = vmatpush1.msra.mxu0 0.0
    %3230 = vmatprep.subr.mxu0 0.0
    %3231 = vmatpush1.msra.mxu0 0.0
    %3232 = vmatprep.subr.mxu0 0.0
    %3233 = vmatpush1.msra.mxu0 0.0
    %3234 = vmatprep.subr.mxu0 0.0
    %3235 = vmatpush1.msra.mxu0 0.0
    %3236 = vmatprep.subr.mxu0 0.0
    %3237 = vmatpush1.msra.mxu0 0.0
    %3238 = vmatprep.subr.mxu0 0.0
    %3239 = vmatpush1.msra.mxu0 0.0
    %3240 = vmatprep.subr.mxu0 0.0
    %3241 = vmatpush1.msra.mxu0 0.0
    %3242 = vmatprep.subr.mxu0 0.0
    %3243 = vmatpush1.msra.mxu0 0.0
    %3244 = vmatprep.subr.mxu0 0.0
    %3245 = vmatpush1.msra.mxu0 0.0
    %3246 = vmatprep.subr.mxu0 0.0
    %3247 = vmatpush1.msra.mxu0 0.0
    %3248 = vmatprep.subr.mxu0 0.0
    %3249 = vmatpush1.msra.mxu0 0.0
    %3250 = vmatprep.subr.mxu0 0.0
    %3251 = vmatpush1.msra.mxu0 0.0
    %3252 = vmatprep.subr.mxu0 0.0
    %3253 = vmatpush1.msra.mxu0 0.0
    %3254 = vmatprep.subr.mxu0 0.0
    %3255 = vmatpush1.msra.mxu0 0.0
    %3256 = vmatprep.subr.mxu0 0.0
    %3257 = vmatpush1.msra.mxu0 0.0
    %3258 = vmatprep.subr.mxu0 0.0
    %3259 = vmatpush1.msra.mxu0 0.0
    %3260 = vmatprep.subr.mxu0 0.0
    %3261 = vmatpush1.msra.mxu0 0.0
    %3262 = vmatprep.subr.mxu0 0.0
    %3263 = vmatpush1.msra.mxu0 0.0
    %3264 = vmatprep.subr.mxu0 0.0
    %3265 = vmatpush1.msra.mxu0 0.0
    %3266 = vmatprep.subr.mxu0 0.0
    %3267 = vmatpush1.msra.mxu0 0.0
    %3268 = vmatprep.subr.mxu0 0.0
    %3269 = vmatpush1.msra.mxu0 0.0
    %3270 = vmatprep.subr.mxu0 0.0
    %3271 = vmatpush1.msra.mxu0 0.0
    %3272 = vmatprep.subr.mxu0 0.0
    %3273 = vmatpush1.msra.mxu0 0.0
    %3274 = vmatprep.subr.mxu0 0.0
    %3275 = vmatpush1.msra.mxu0 0.0
    %3276 = vmatprep.subr.mxu0 0.0
    %3277 = vmatpush1.msra.mxu0 0.0
    %3278 = vmatprep.mubr.f32.mxu0 0.0
    %3279 = vmatmul.mubr.f32.gmra.mrb[0].mxu0 %v3212
    %v3280 = vpop.f32.mrb[0].mxu0
    %v3281 = vadd.f32 0.0, %v3280
    %v3282 = vpop.f32.mrb[0].mxu0
    %3283 = vdwg.mxu0
    %s3284 = scalar_lea.vmem [#allocation15], 384
    %v3285 = vld [vmem:[%s3284] sm:$0xff]
    %v3286 = vld [vmem:[%s3284 + $0x8] sm:$0xff]
    %v3287 = vld [vmem:[%s3284 + $0x10] sm:$0xff]
    %v3288 = vld [vmem:[%s3284 + $0x18] sm:$0xff]
    %v3289 = vld [vmem:[%s3284 + $0x20] sm:$0xff]
    %v3290 = vld [vmem:[%s3284 + $0x28] sm:$0xff]
    %v3291 = vld [vmem:[%s3284 + $0x30] sm:$0xff]
    %v3292 = vld [vmem:[%s3284 + $0x38] sm:$0xff]
    %v3293 = vld [vmem:[%s3284 + $0x40] sm:$0xff]
    %v3294 = vld [vmem:[%s3284 + $0x48] sm:$0xff]
    %v3295 = vld [vmem:[%s3284 + $0x50] sm:$0xff]
    %v3296 = vld [vmem:[%s3284 + $0x58] sm:$0xff]
    %v3297 = vld [vmem:[%s3284 + $0x60] sm:$0xff]
    %v3298 = vld [vmem:[%s3284 + $0x68] sm:$0xff]
    %v3299 = vld [vmem:[%s3284 + $0x70] sm:$0xff]
    %v3300 = vld [vmem:[%s3284 + $0x78] sm:$0xff]
    %v3301 = vld [vmem:[%s3284 + $0x80] sm:$0xff]
    %v3302 = vld [vmem:[%s3284 + $0x88] sm:$0xff]
    %v3303 = vld [vmem:[%s3284 + $0x90] sm:$0xff]
    %v3304 = vld [vmem:[%s3284 + $0x98] sm:$0xff]
    %v3305 = vld [vmem:[%s3284 + $0xa0] sm:$0xff]
    %v3306 = vld [vmem:[%s3284 + $0xa8] sm:$0xff]
    %v3307 = vld [vmem:[%s3284 + $0xb0] sm:$0xff]
    %v3308 = vld [vmem:[%s3284 + $0xb8] sm:$0xff]
    %v3309 = vld [vmem:[%s3284 + $0xc0] sm:$0xff]
    %v3310 = vld [vmem:[%s3284 + $0xc8] sm:$0xff]
    %v3311 = vld [vmem:[%s3284 + $0xd0] sm:$0xff]
    %v3312 = vld [vmem:[%s3284 + $0xd8] sm:$0xff]
    %v3313 = vld [vmem:[%s3284 + $0xe0] sm:$0xff]
    %v3314 = vld [vmem:[%s3284 + $0xe8] sm:$0xff]
    %v3315 = vld [vmem:[%s3284 + $0xf0] sm:$0xff]
    %v3316 = vld [vmem:[%s3284 + $0xf8] sm:$0xff]
    %v3317 = vld [vmem:[%s3284 + $0x100] sm:$0xff]
    %v3318 = vld [vmem:[%s3284 + $0x108] sm:$0xff]
    %v3319 = vld [vmem:[%s3284 + $0x110] sm:$0xff]
    %v3320 = vld [vmem:[%s3284 + $0x118] sm:$0xff]
    %v3321 = vld [vmem:[%s3284 + $0x120] sm:$0xff]
    %v3322 = vld [vmem:[%s3284 + $0x128] sm:$0xff]
    %v3323 = vld [vmem:[%s3284 + $0x130] sm:$0xff]
    %v3324 = vld [vmem:[%s3284 + $0x138] sm:$0xff]
    %v3325 = vld [vmem:[%s3284 + $0x140] sm:$0xff]
    %v3326 = vld [vmem:[%s3284 + $0x148] sm:$0xff]
    %v3327 = vld [vmem:[%s3284 + $0x150] sm:$0xff]
    %v3328 = vld [vmem:[%s3284 + $0x158] sm:$0xff]
    %v3329 = vld [vmem:[%s3284 + $0x160] sm:$0xff]
    %v3330 = vld [vmem:[%s3284 + $0x168] sm:$0xff]
    %v3331 = vld [vmem:[%s3284 + $0x170] sm:$0xff]
    %v3332 = vld [vmem:[%s3284 + $0x178] sm:$0xff]
    %s3333 = scalar_lea.vmem [#allocation16], 1
    %v3334 = vld [vmem:[%s3333] sm:$0x1]
    %v3336 = vlaneseq
    %v3337 = vshrl.u32 %v3336, 7
    %v3338 = vsub.s32 0, %v3337
    %v3339 = vrot.slane %v3334, %v3338
    %3341 = vmatprep.subr.mxu0 0.0
    %3342 = vmatpush1.msra.mxu0 %v3285
    %3343 = vmatprep.subr.mxu0 0.0
    %3344 = vmatpush1.msra.mxu0 %v3286
    %3345 = vmatprep.subr.mxu0 0.0
    %3346 = vmatpush1.msra.mxu0 %v3287
    %3347 = vmatprep.subr.mxu0 0.0
    %3348 = vmatpush1.msra.mxu0 %v3288
    %3349 = vmatprep.subr.mxu0 0.0
    %3350 = vmatpush1.msra.mxu0 %v3289
    %3351 = vmatprep.subr.mxu0 0.0
    %3352 = vmatpush1.msra.mxu0 %v3290
    %3353 = vmatprep.subr.mxu0 0.0
    %3354 = vmatpush1.msra.mxu0 %v3291
    %3355 = vmatprep.subr.mxu0 0.0
    %3356 = vmatpush1.msra.mxu0 %v3292
    %3357 = vmatprep.subr.mxu0 0.0
    %3358 = vmatpush1.msra.mxu0 %v3293
    %3359 = vmatprep.subr.mxu0 0.0
    %3360 = vmatpush1.msra.mxu0 %v3294
    %3361 = vmatprep.subr.mxu0 0.0
    %3362 = vmatpush1.msra.mxu0 %v3295
    %3363 = vmatprep.subr.mxu0 0.0
    %3364 = vmatpush1.msra.mxu0 %v3296
    %3365 = vmatprep.subr.mxu0 0.0
    %3366 = vmatpush1.msra.mxu0 %v3297
    %3367 = vmatprep.subr.mxu0 0.0
    %3368 = vmatpush1.msra.mxu0 %v3298
    %3369 = vmatprep.subr.mxu0 0.0
    %3370 = vmatpush1.msra.mxu0 %v3299
    %3371 = vmatprep.subr.mxu0 0.0
    %3372 = vmatpush1.msra.mxu0 %v3300
    %3373 = vmatprep.subr.mxu0 0.0
    %3374 = vmatpush1.msra.mxu0 %v3301
    %3375 = vmatprep.subr.mxu0 0.0
    %3376 = vmatpush1.msra.mxu0 %v3302
    %3377 = vmatprep.subr.mxu0 0.0
    %3378 = vmatpush1.msra.mxu0 %v3303
    %3379 = vmatprep.subr.mxu0 0.0
    %3380 = vmatpush1.msra.mxu0 %v3304
    %3381 = vmatprep.subr.mxu0 0.0
    %3382 = vmatpush1.msra.mxu0 %v3305
    %3383 = vmatprep.subr.mxu0 0.0
    %3384 = vmatpush1.msra.mxu0 %v3306
    %3385 = vmatprep.subr.mxu0 0.0
    %3386 = vmatpush1.msra.mxu0 %v3307
    %3387 = vmatprep.subr.mxu0 0.0
    %3388 = vmatpush1.msra.mxu0 %v3308
    %3389 = vmatprep.subr.mxu0 0.0
    %3390 = vmatpush1.msra.mxu0 %v3309
    %3391 = vmatprep.subr.mxu0 0.0
    %3392 = vmatpush1.msra.mxu0 %v3310
    %3393 = vmatprep.subr.mxu0 0.0
    %3394 = vmatpush1.msra.mxu0 %v3311
    %3395 = vmatprep.subr.mxu0 0.0
    %3396 = vmatpush1.msra.mxu0 %v3312
    %3397 = vmatprep.subr.mxu0 0.0
    %3398 = vmatpush1.msra.mxu0 %v3313
    %3399 = vmatprep.subr.mxu0 0.0
    %3400 = vmatpush1.msra.mxu0 %v3314
    %3401 = vmatprep.subr.mxu0 0.0
    %3402 = vmatpush1.msra.mxu0 %v3315
    %3403 = vmatprep.subr.mxu0 0.0
    %3404 = vmatpush1.msra.mxu0 %v3316
    %3405 = vmatprep.mubr.f32.mxu0 %v3127
    %3406 = vmatmul.mubr.f32.gmra.mrb[0].mxu0 %v2973
    %v3407 = vpop.f32.mrb[0].mxu0
    %v3408 = vadd.f32 %v3339, %v3407
    %v3409 = vpop.f32.mrb[0].mxu0
    %3410 = vdwg.mxu0
    %3411 = vmatprep.subr.mxu0 0.0
    %3412 = vmatpush1.msra.mxu0 %v3317
    %3413 = vmatprep.subr.mxu0 0.0
    %3414 = vmatpush1.msra.mxu0 %v3318
    %3415 = vmatprep.subr.mxu0 0.0
    %3416 = vmatpush1.msra.mxu0 %v3319
    %3417 = vmatprep.subr.mxu0 0.0
    %3418 = vmatpush1.msra.mxu0 %v3320
    %3419 = vmatprep.subr.mxu0 0.0
    %3420 = vmatpush1.msra.mxu0 %v3321
    %3421 = vmatprep.subr.mxu0 0.0
    %3422 = vmatpush1.msra.mxu0 %v3322
    %3423 = vmatprep.subr.mxu0 0.0
    %3424 = vmatpush1.msra.mxu0 %v3323
    %3425 = vmatprep.subr.mxu0 0.0
    %3426 = vmatpush1.msra.mxu0 %v3324
    %3427 = vmatprep.subr.mxu0 0.0
    %3428 = vmatpush1.msra.mxu0 %v3325
    %3429 = vmatprep.subr.mxu0 0.0
    %3430 = vmatpush1.msra.mxu0 %v3326
    %3431 = vmatprep.subr.mxu0 0.0
    %3432 = vmatpush1.msra.mxu0 %v3327
    %3433 = vmatprep.subr.mxu0 0.0
    %3434 = vmatpush1.msra.mxu0 %v3328
    %3435 = vmatprep.subr.mxu0 0.0
    %3436 = vmatpush1.msra.mxu0 %v3329
    %3437 = vmatprep.subr.mxu0 0.0
    %3438 = vmatpush1.msra.mxu0 %v3330
    %3439 = vmatprep.subr.mxu0 0.0
    %3440 = vmatpush1.msra.mxu0 %v3331
    %3441 = vmatprep.subr.mxu0 0.0
    %3442 = vmatpush1.msra.mxu0 %v3332
    %3443 = vmatprep.subr.mxu0 0.0
    %3444 = vmatpush1.msra.mxu0 0.0
    %3445 = vmatprep.subr.mxu0 0.0
    %3446 = vmatpush1.msra.mxu0 0.0
    %3447 = vmatprep.subr.mxu0 0.0
    %3448 = vmatpush1.msra.mxu0 0.0
    %3449 = vmatprep.subr.mxu0 0.0
    %3450 = vmatpush1.msra.mxu0 0.0
    %3451 = vmatprep.subr.mxu0 0.0
    %3452 = vmatpush1.msra.mxu0 0.0
    %3453 = vmatprep.subr.mxu0 0.0
    %3454 = vmatpush1.msra.mxu0 0.0
    %3455 = vmatprep.subr.mxu0 0.0
    %3456 = vmatpush1.msra.mxu0 0.0
    %3457 = vmatprep.subr.mxu0 0.0
    %3458 = vmatpush1.msra.mxu0 0.0
    %3459 = vmatprep.subr.mxu0 0.0
    %3460 = vmatpush1.msra.mxu0 0.0
    %3461 = vmatprep.subr.mxu0 0.0
    %3462 = vmatpush1.msra.mxu0 0.0
    %3463 = vmatprep.subr.mxu0 0.0
    %3464 = vmatpush1.msra.mxu0 0.0
    %3465 = vmatprep.subr.mxu0 0.0
    %3466 = vmatpush1.msra.mxu0 0.0
    %3467 = vmatprep.subr.mxu0 0.0
    %3468 = vmatpush1.msra.mxu0 0.0
    %3469 = vmatprep.subr.mxu0 0.0
    %3470 = vmatpush1.msra.mxu0 0.0
    %3471 = vmatprep.subr.mxu0 0.0
    %3472 = vmatpush1.msra.mxu0 0.0
    %3473 = vmatprep.subr.mxu0 0.0
    %3474 = vmatpush1.msra.mxu0 0.0
    %3475 = vmatprep.mubr.f32.mxu0 0.0
    %3476 = vmatmul.mubr.f32.gmra.mrb[0].mxu0 %v3281
    %v3477 = vpop.f32.mrb[0].mxu0
    %v3478 = vadd.f32 %v3408, %v3477
    %v3479 = vpop.f32.mrb[0].mxu0
    %3480 = vdwg.mxu0
    %v3481 = vadd.f32 %v2272, %v3478
    %s3482 = scalar_lea.vmem [#allocation18], 1
    %v3483 = vld [vmem:[%s3482] sm:$0x1]
    %s3484 = scalar_lea.vmem [#allocation19], 1
    %v3485 = vld [vmem:[%s3484] sm:$0x1]
    %3486 = vadd.xlane.f32.xlu0 %v3481
    %v3487 = vpop.xlane.xlu0 %3486
    %v3488 = vmul.f32 %v3481, %v3481
    %3489 = vadd.xlane.f32.xlu0 %v3488
    %v3490 = vpop.xlane.xlu0 %3489
    %v3491 = vmul.f32 %v3487, 0.033333335
    %v3492 = vmul.f32 %v3490, 0.033333335
    %v3493 = vmul.f32 %v3491, %v3491
    %v3494 = vsub.f32 %v3492, %v3493
    %v3495 = vmax.f32 %v3494, 0.0
    %v3496 = vsub.f32 %v3481, %v3491
    %v3497 = vadd.f32 %v3495, 1e-05
    %v3498 = vrsqrt.pop %v3497
    %v3499 = vmul.f32 %v3496, %v3498
    %v3501 = vlaneseq
    %v3502 = vshrl.u32 %v3501, 7
    %v3503 = vsub.s32 0, %v3502
    %v3504 = vrot.slane %v3483, %v3503
    %v3506 = vmul.f32 %v3499, %v3504
    %v3508 = vlaneseq
    %v3509 = vshrl.u32 %v3508, 7
    %v3510 = vsub.s32 0, %v3509
    %v3511 = vrot.slane %v3485, %v3510
    %v3513 = vadd.f32 %v3506, %v3511
    %s3514 = scalar_lea.vmem [#allocation21], 512
    %v3515 = vld [vmem:[%s3514] sm:$0xff]
    %v3516 = vld [vmem:[%s3514 + $0x8] sm:$0xff]
    %v3517 = vld [vmem:[%s3514 + $0x10] sm:$0xff]
    %v3518 = vld [vmem:[%s3514 + $0x18] sm:$0xff]
    %v3519 = vld [vmem:[%s3514 + $0x20] sm:$0xff]
    %v3520 = vld [vmem:[%s3514 + $0x28] sm:$0xff]
    %v3521 = vld [vmem:[%s3514 + $0x30] sm:$0xff]
    %v3522 = vld [vmem:[%s3514 + $0x38] sm:$0xff]
    %v3523 = vld [vmem:[%s3514 + $0x40] sm:$0xff]
    %v3524 = vld [vmem:[%s3514 + $0x48] sm:$0xff]
    %v3525 = vld [vmem:[%s3514 + $0x50] sm:$0xff]
    %v3526 = vld [vmem:[%s3514 + $0x58] sm:$0xff]
    %v3527 = vld [vmem:[%s3514 + $0x60] sm:$0xff]
    %v3528 = vld [vmem:[%s3514 + $0x68] sm:$0xff]
    %v3529 = vld [vmem:[%s3514 + $0x70] sm:$0xff]
    %v3530 = vld [vmem:[%s3514 + $0x78] sm:$0xff]
    %v3531 = vld [vmem:[%s3514 + $0x80] sm:$0xff]
    %v3532 = vld [vmem:[%s3514 + $0x88] sm:$0xff]
    %v3533 = vld [vmem:[%s3514 + $0x90] sm:$0xff]
    %v3534 = vld [vmem:[%s3514 + $0x98] sm:$0xff]
    %v3535 = vld [vmem:[%s3514 + $0xa0] sm:$0xff]
    %v3536 = vld [vmem:[%s3514 + $0xa8] sm:$0xff]
    %v3537 = vld [vmem:[%s3514 + $0xb0] sm:$0xff]
    %v3538 = vld [vmem:[%s3514 + $0xb8] sm:$0xff]
    %v3539 = vld [vmem:[%s3514 + $0xc0] sm:$0xff]
    %v3540 = vld [vmem:[%s3514 + $0xc8] sm:$0xff]
    %v3541 = vld [vmem:[%s3514 + $0xd0] sm:$0xff]
    %v3542 = vld [vmem:[%s3514 + $0xd8] sm:$0xff]
    %v3543 = vld [vmem:[%s3514 + $0xe0] sm:$0xff]
    %v3544 = vld [vmem:[%s3514 + $0xe8] sm:$0xff]
    %v3545 = vld [vmem:[%s3514 + $0xf0] sm:$0xff]
    %v3546 = vld [vmem:[%s3514 + $0xf8] sm:$0xff]
    %v3547 = vld [vmem:[%s3514 + $0x100] sm:$0xff]
    %v3548 = vld [vmem:[%s3514 + $0x108] sm:$0xff]
    %v3549 = vld [vmem:[%s3514 + $0x110] sm:$0xff]
    %v3550 = vld [vmem:[%s3514 + $0x118] sm:$0xff]
    %v3551 = vld [vmem:[%s3514 + $0x120] sm:$0xff]
    %v3552 = vld [vmem:[%s3514 + $0x128] sm:$0xff]
    %v3553 = vld [vmem:[%s3514 + $0x130] sm:$0xff]
    %v3554 = vld [vmem:[%s3514 + $0x138] sm:$0xff]
    %v3555 = vld [vmem:[%s3514 + $0x140] sm:$0xff]
    %v3556 = vld [vmem:[%s3514 + $0x148] sm:$0xff]
    %v3557 = vld [vmem:[%s3514 + $0x150] sm:$0xff]
    %v3558 = vld [vmem:[%s3514 + $0x158] sm:$0xff]
    %v3559 = vld [vmem:[%s3514 + $0x160] sm:$0xff]
    %v3560 = vld [vmem:[%s3514 + $0x168] sm:$0xff]
    %v3561 = vld [vmem:[%s3514 + $0x170] sm:$0xff]
    %v3562 = vld [vmem:[%s3514 + $0x178] sm:$0xff]
    %v3563 = vld [vmem:[%s3514 + $0x180] sm:$0xff]
    %v3564 = vld [vmem:[%s3514 + $0x188] sm:$0xff]
    %v3565 = vld [vmem:[%s3514 + $0x190] sm:$0xff]
    %v3566 = vld [vmem:[%s3514 + $0x198] sm:$0xff]
    %v3567 = vld [vmem:[%s3514 + $0x1a0] sm:$0xff]
    %v3568 = vld [vmem:[%s3514 + $0x1a8] sm:$0xff]
    %v3569 = vld [vmem:[%s3514 + $0x1b0] sm:$0xff]
    %v3570 = vld [vmem:[%s3514 + $0x1b8] sm:$0xff]
    %v3571 = vld [vmem:[%s3514 + $0x1c0] sm:$0xff]
    %v3572 = vld [vmem:[%s3514 + $0x1c8] sm:$0xff]
    %v3573 = vld [vmem:[%s3514 + $0x1d0] sm:$0xff]
    %v3574 = vld [vmem:[%s3514 + $0x1d8] sm:$0xff]
    %v3575 = vld [vmem:[%s3514 + $0x1e0] sm:$0xff]
    %v3576 = vld [vmem:[%s3514 + $0x1e8] sm:$0xff]
    %v3577 = vld [vmem:[%s3514 + $0x1f0] sm:$0xff]
    %v3578 = vld [vmem:[%s3514 + $0x1f8] sm:$0xff]
    %s3579 = scalar_lea.vmem [#allocation22], 4
    %v3580 = vld [vmem:[%s3579] sm:$0xf]
    %v3582 = vlaneseq
    %v3583 = vshrl.u32 %v3582, 7
    %v3584 = vsub.s32 0, %v3583
    %v3585 = vrot.slane %v3580, %v3584
    %v3586 = vlaneseq
    %v3587 = vshrl.u32 %v3586, 7
    %v3588 = vsub.s32 1, %v3587
    %v3589 = vrot.slane %v3580, %v3588
    %v3590 = vlaneseq
    %v3591 = vshrl.u32 %v3590, 7
    %v3592 = vsub.s32 2, %v3591
    %v3593 = vrot.slane %v3580, %v3592
    %v3594 = vlaneseq
    %v3595 = vshrl.u32 %v3594, 7
    %v3596 = vsub.s32 3, %v3595
    %v3597 = vrot.slane %v3580, %v3596
    %3602 = vmatprep.subr.mxu0 %v3516
    %3603 = vmatpush1.msra.mxu0 %v3515
    %3604 = vmatprep.subr.mxu0 %v3520
    %3605 = vmatpush1.msra.mxu0 %v3519
    %3606 = vmatprep.subr.mxu0 %v3524
    %3607 = vmatpush1.msra.mxu0 %v3523
    %3608 = vmatprep.subr.mxu0 %v3528
    %3609 = vmatpush1.msra.mxu0 %v3527
    %3610 = vmatprep.subr.mxu0 %v3532
    %3611 = vmatpush1.msra.mxu0 %v3531
    %3612 = vmatprep.subr.mxu0 %v3536
    %3613 = vmatpush1.msra.mxu0 %v3535
    %3614 = vmatprep.subr.mxu0 %v3540
    %3615 = vmatpush1.msra.mxu0 %v3539
    %3616 = vmatprep.subr.mxu0 %v3544
    %3617 = vmatpush1.msra.mxu0 %v3543
    %3618 = vmatprep.subr.mxu0 %v3548
    %3619 = vmatpush1.msra.mxu0 %v3547
    %3620 = vmatprep.subr.mxu0 %v3552
    %3621 = vmatpush1.msra.mxu0 %v3551
    %3622 = vmatprep.subr.mxu0 %v3556
    %3623 = vmatpush1.msra.mxu0 %v3555
    %3624 = vmatprep.subr.mxu0 %v3560
    %3625 = vmatpush1.msra.mxu0 %v3559
    %3626 = vmatprep.subr.mxu0 %v3564
    %3627 = vmatpush1.msra.mxu0 %v3563
    %3628 = vmatprep.subr.mxu0 %v3568
    %3629 = vmatpush1.msra.mxu0 %v3567
    %3630 = vmatprep.subr.mxu0 %v3572
    %3631 = vmatpush1.msra.mxu0 %v3571
    %3632 = vmatprep.subr.mxu0 %v3576
    %3633 = vmatpush1.msra.mxu0 %v3575
    %3634 = vmatprep.subr.mxu0 0.0
    %3635 = vmatpush1.msra.mxu0 0.0
    %3636 = vmatprep.subr.mxu0 0.0
    %3637 = vmatpush1.msra.mxu0 0.0
    %3638 = vmatprep.subr.mxu0 0.0
    %3639 = vmatpush1.msra.mxu0 0.0
    %3640 = vmatprep.subr.mxu0 0.0
    %3641 = vmatpush1.msra.mxu0 0.0
    %3642 = vmatprep.subr.mxu0 0.0
    %3643 = vmatpush1.msra.mxu0 0.0
    %3644 = vmatprep.subr.mxu0 0.0
    %3645 = vmatpush1.msra.mxu0 0.0
    %3646 = vmatprep.subr.mxu0 0.0
    %3647 = vmatpush1.msra.mxu0 0.0
    %3648 = vmatprep.subr.mxu0 0.0
    %3649 = vmatpush1.msra.mxu0 0.0
    %3650 = vmatprep.subr.mxu0 0.0
    %3651 = vmatpush1.msra.mxu0 0.0
    %3652 = vmatprep.subr.mxu0 0.0
    %3653 = vmatpush1.msra.mxu0 0.0
    %3654 = vmatprep.subr.mxu0 0.0
    %3655 = vmatpush1.msra.mxu0 0.0
    %3656 = vmatprep.subr.mxu0 0.0
    %3657 = vmatpush1.msra.mxu0 0.0
    %3658 = vmatprep.subr.mxu0 0.0
    %3659 = vmatpush1.msra.mxu0 0.0
    %3660 = vmatprep.subr.mxu0 0.0
    %3661 = vmatpush1.msra.mxu0 0.0
    %3662 = vmatprep.subr.mxu0 0.0
    %3663 = vmatpush1.msra.mxu0 0.0
    %3664 = vmatprep.subr.mxu0 0.0
    %3665 = vmatpush1.msra.mxu0 0.0
    %3666 = vmatprep.mubr.f32.mxu0 0.0
    %3667 = vmatmul.mubr.f32.gmra.mrb[0].mxu0 %v3513
    %v3668 = vpop.f32.mrb[0].mxu0
    %v3669 = vadd.f32 %v3585, %v3668
    %v3670 = vpop.f32.mrb[0].mxu0
    %v3671 = vadd.f32 %v3589, %v3670
    %3672 = vdwg.mxu0
    %3673 = vmatprep.subr.mxu0 %v3518
    %3674 = vmatpush1.msra.mxu0 %v3517
    %3675 = vmatprep.subr.mxu0 %v3522
    %3676 = vmatpush1.msra.mxu0 %v3521
    %3677 = vmatprep.subr.mxu0 %v3526
    %3678 = vmatpush1.msra.mxu0 %v3525
    %3679 = vmatprep.subr.mxu0 %v3530
    %3680 = vmatpush1.msra.mxu0 %v3529
    %3681 = vmatprep.subr.mxu0 %v3534
    %3682 = vmatpush1.msra.mxu0 %v3533
    %3683 = vmatprep.subr.mxu0 %v3538
    %3684 = vmatpush1.msra.mxu0 %v3537
    %3685 = vmatprep.subr.mxu0 %v3542
    %3686 = vmatpush1.msra.mxu0 %v3541
    %3687 = vmatprep.subr.mxu0 %v3546
    %3688 = vmatpush1.msra.mxu0 %v3545
    %3689 = vmatprep.subr.mxu0 %v3550
    %3690 = vmatpush1.msra.mxu0 %v3549
    %3691 = vmatprep.subr.mxu0 %v3554
    %3692 = vmatpush1.msra.mxu0 %v3553
    %3693 = vmatprep.subr.mxu0 %v3558
    %3694 = vmatpush1.msra.mxu0 %v3557
    %3695 = vmatprep.subr.mxu0 %v3562
    %3696 = vmatpush1.msra.mxu0 %v3561
    %3697 = vmatprep.subr.mxu0 %v3566
    %3698 = vmatpush1.msra.mxu0 %v3565
    %3699 = vmatprep.subr.mxu0 %v3570
    %3700 = vmatpush1.msra.mxu0 %v3569
    %3701 = vmatprep.subr.mxu0 %v3574
    %3702 = vmatpush1.msra.mxu0 %v3573
    %3703 = vmatprep.subr.mxu0 %v3578
    %3704 = vmatpush1.msra.mxu0 %v3577
    %3705 = vmatprep.subr.mxu0 0.0
    %3706 = vmatpush1.msra.mxu0 0.0
    %3707 = vmatprep.subr.mxu0 0.0
    %3708 = vmatpush1.msra.mxu0 0.0
    %3709 = vmatprep.subr.mxu0 0.0
    %3710 = vmatpush1.msra.mxu0 0.0
    %3711 = vmatprep.subr.mxu0 0.0
    %3712 = vmatpush1.msra.mxu0 0.0
    %3713 = vmatprep.subr.mxu0 0.0
    %3714 = vmatpush1.msra.mxu0 0.0
    %3715 = vmatprep.subr.mxu0 0.0
    %3716 = vmatpush1.msra.mxu0 0.0
    %3717 = vmatprep.subr.mxu0 0.0
    %3718 = vmatpush1.msra.mxu0 0.0
    %3719 = vmatprep.subr.mxu0 0.0
    %3720 = vmatpush1.msra.mxu0 0.0
    %3721 = vmatprep.subr.mxu0 0.0
    %3722 = vmatpush1.msra.mxu0 0.0
    %3723 = vmatprep.subr.mxu0 0.0
    %3724 = vmatpush1.msra.mxu0 0.0
    %3725 = vmatprep.subr.mxu0 0.0
    %3726 = vmatpush1.msra.mxu0 0.0
    %3727 = vmatprep.subr.mxu0 0.0
    %3728 = vmatpush1.msra.mxu0 0.0
    %3729 = vmatprep.subr.mxu0 0.0
    %3730 = vmatpush1.msra.mxu0 0.0
    %3731 = vmatprep.subr.mxu0 0.0
    %3732 = vmatpush1.msra.mxu0 0.0
    %3733 = vmatprep.subr.mxu0 0.0
    %3734 = vmatpush1.msra.mxu0 0.0
    %3735 = vmatprep.subr.mxu0 0.0
    %3736 = vmatpush1.msra.mxu0 0.0
    %3737 = vmatprep.mubr.f32.mxu0 0.0
    %3738 = vmatmul.mubr.f32.gmra.mrb[0].mxu0 %v3513
    %v3739 = vpop.f32.mrb[0].mxu0
    %v3740 = vadd.f32 %v3593, %v3739
    %v3741 = vpop.f32.mrb[0].mxu0
    %v3742 = vadd.f32 %v3597, %v3741
    %3743 = vdwg.mxu0
    %v3744 = vmax.f32 %v3669, 0.0
    %v3745 = vmax.f32 %v3671, 0.0
    %v3746 = vmax.f32 %v3740, 0.0
    %v3747 = vmax.f32 %v3742, 0.0
    %s3748 = scalar_lea.vmem [#allocation24], 512
    %v3749 = vld [vmem:[%s3748] sm:$0xff]
    %v3750 = vld [vmem:[%s3748 + $0x8] sm:$0xff]
    %v3751 = vld [vmem:[%s3748 + $0x10] sm:$0xff]
    %v3752 = vld [vmem:[%s3748 + $0x18] sm:$0xff]
    %v3753 = vld [vmem:[%s3748 + $0x20] sm:$0xff]
    %v3754 = vld [vmem:[%s3748 + $0x28] sm:$0xff]
    %v3755 = vld [vmem:[%s3748 + $0x30] sm:$0xff]
    %v3756 = vld [vmem:[%s3748 + $0x38] sm:$0xff]
    %v3757 = vld [vmem:[%s3748 + $0x40] sm:$0xff]
    %v3758 = vld [vmem:[%s3748 + $0x48] sm:$0xff]
    %v3759 = vld [vmem:[%s3748 + $0x50] sm:$0xff]
    %v3760 = vld [vmem:[%s3748 + $0x58] sm:$0xff]
    %v3761 = vld [vmem:[%s3748 + $0x60] sm:$0xff]
    %v3762 = vld [vmem:[%s3748 + $0x68] sm:$0xff]
    %v3763 = vld [vmem:[%s3748 + $0x70] sm:$0xff]
    %v3764 = vld [vmem:[%s3748 + $0x78] sm:$0xff]
    %v3765 = vld [vmem:[%s3748 + $0x80] sm:$0xff]
    %v3766 = vld [vmem:[%s3748 + $0x88] sm:$0xff]
    %v3767 = vld [vmem:[%s3748 + $0x90] sm:$0xff]
    %v3768 = vld [vmem:[%s3748 + $0x98] sm:$0xff]
    %v3769 = vld [vmem:[%s3748 + $0xa0] sm:$0xff]
    %v3770 = vld [vmem:[%s3748 + $0xa8] sm:$0xff]
    %v3771 = vld [vmem:[%s3748 + $0xb0] sm:$0xff]
    %v3772 = vld [vmem:[%s3748 + $0xb8] sm:$0xff]
    %v3773 = vld [vmem:[%s3748 + $0xc0] sm:$0xff]
    %v3774 = vld [vmem:[%s3748 + $0xc8] sm:$0xff]
    %v3775 = vld [vmem:[%s3748 + $0xd0] sm:$0xff]
    %v3776 = vld [vmem:[%s3748 + $0xd8] sm:$0xff]
    %v3777 = vld [vmem:[%s3748 + $0xe0] sm:$0xff]
    %v3778 = vld [vmem:[%s3748 + $0xe8] sm:$0xff]
    %v3779 = vld [vmem:[%s3748 + $0xf0] sm:$0xff]
    %v3780 = vld [vmem:[%s3748 + $0xf8] sm:$0xff]
    %v3781 = vld [vmem:[%s3748 + $0x100] sm:$0xff]
    %v3782 = vld [vmem:[%s3748 + $0x108] sm:$0xff]
    %v3783 = vld [vmem:[%s3748 + $0x110] sm:$0xff]
    %v3784 = vld [vmem:[%s3748 + $0x118] sm:$0xff]
    %v3785 = vld [vmem:[%s3748 + $0x120] sm:$0xff]
    %v3786 = vld [vmem:[%s3748 + $0x128] sm:$0xff]
    %v3787 = vld [vmem:[%s3748 + $0x130] sm:$0xff]
    %v3788 = vld [vmem:[%s3748 + $0x138] sm:$0xff]
    %v3789 = vld [vmem:[%s3748 + $0x140] sm:$0xff]
    %v3790 = vld [vmem:[%s3748 + $0x148] sm:$0xff]
    %v3791 = vld [vmem:[%s3748 + $0x150] sm:$0xff]
    %v3792 = vld [vmem:[%s3748 + $0x158] sm:$0xff]
    %v3793 = vld [vmem:[%s3748 + $0x160] sm:$0xff]
    %v3794 = vld [vmem:[%s3748 + $0x168] sm:$0xff]
    %v3795 = vld [vmem:[%s3748 + $0x170] sm:$0xff]
    %v3796 = vld [vmem:[%s3748 + $0x178] sm:$0xff]
    %v3797 = vld [vmem:[%s3748 + $0x180] sm:$0xff]
    %v3798 = vld [vmem:[%s3748 + $0x188] sm:$0xff]
    %v3799 = vld [vmem:[%s3748 + $0x190] sm:$0xff]
    %v3800 = vld [vmem:[%s3748 + $0x198] sm:$0xff]
    %v3801 = vld [vmem:[%s3748 + $0x1a0] sm:$0xff]
    %v3802 = vld [vmem:[%s3748 + $0x1a8] sm:$0xff]
    %v3803 = vld [vmem:[%s3748 + $0x1b0] sm:$0xff]
    %v3804 = vld [vmem:[%s3748 + $0x1b8] sm:$0xff]
    %v3805 = vld [vmem:[%s3748 + $0x1c0] sm:$0xff]
    %v3806 = vld [vmem:[%s3748 + $0x1c8] sm:$0xff]
    %v3807 = vld [vmem:[%s3748 + $0x1d0] sm:$0xff]
    %v3808 = vld [vmem:[%s3748 + $0x1d8] sm:$0xff]
    %v3809 = vld [vmem:[%s3748 + $0x1e0] sm:$0xff]
    %v3810 = vld [vmem:[%s3748 + $0x1e8] sm:$0xff]
    %v3811 = vld [vmem:[%s3748 + $0x1f0] sm:$0xff]
    %v3812 = vld [vmem:[%s3748 + $0x1f8] sm:$0xff]
    %s3813 = scalar_lea.vmem [#allocation25], 1
    %v3814 = vld [vmem:[%s3813] sm:$0x1]
    %v3816 = vlaneseq
    %v3817 = vshrl.u32 %v3816, 7
    %v3818 = vsub.s32 0, %v3817
    %v3819 = vrot.slane %v3814, %v3818
    %3821 = vmatprep.subr.mxu0 0.0
    %3822 = vmatpush1.msra.mxu0 %v3749
    %3823 = vmatprep.subr.mxu0 0.0
    %3824 = vmatpush1.msra.mxu0 %v3750
    %3825 = vmatprep.subr.mxu0 0.0
    %3826 = vmatpush1.msra.mxu0 %v3751
    %3827 = vmatprep.subr.mxu0 0.0
    %3828 = vmatpush1.msra.mxu0 %v3752
    %3829 = vmatprep.subr.mxu0 0.0
    %3830 = vmatpush1.msra.mxu0 %v3753
    %3831 = vmatprep.subr.mxu0 0.0
    %3832 = vmatpush1.msra.mxu0 %v3754
    %3833 = vmatprep.subr.mxu0 0.0
    %3834 = vmatpush1.msra.mxu0 %v3755
    %3835 = vmatprep.subr.mxu0 0.0
    %3836 = vmatpush1.msra.mxu0 %v3756
    %3837 = vmatprep.subr.mxu0 0.0
    %3838 = vmatpush1.msra.mxu0 %v3757
    %3839 = vmatprep.subr.mxu0 0.0
    %3840 = vmatpush1.msra.mxu0 %v3758
    %3841 = vmatprep.subr.mxu0 0.0
    %3842 = vmatpush1.msra.mxu0 %v3759
    %3843 = vmatprep.subr.mxu0 0.0
    %3844 = vmatpush1.msra.mxu0 %v3760
    %3845 = vmatprep.subr.mxu0 0.0
    %3846 = vmatpush1.msra.mxu0 %v3761
    %3847 = vmatprep.subr.mxu0 0.0
    %3848 = vmatpush1.msra.mxu0 %v3762
    %3849 = vmatprep.subr.mxu0 0.0
    %3850 = vmatpush1.msra.mxu0 %v3763
    %3851 = vmatprep.subr.mxu0 0.0
    %3852 = vmatpush1.msra.mxu0 %v3764
    %3853 = vmatprep.subr.mxu0 0.0
    %3854 = vmatpush1.msra.mxu0 %v3765
    %3855 = vmatprep.subr.mxu0 0.0
    %3856 = vmatpush1.msra.mxu0 %v3766
    %3857 = vmatprep.subr.mxu0 0.0
    %3858 = vmatpush1.msra.mxu0 %v3767
    %3859 = vmatprep.subr.mxu0 0.0
    %3860 = vmatpush1.msra.mxu0 %v3768
    %3861 = vmatprep.subr.mxu0 0.0
    %3862 = vmatpush1.msra.mxu0 %v3769
    %3863 = vmatprep.subr.mxu0 0.0
    %3864 = vmatpush1.msra.mxu0 %v3770
    %3865 = vmatprep.subr.mxu0 0.0
    %3866 = vmatpush1.msra.mxu0 %v3771
    %3867 = vmatprep.subr.mxu0 0.0
    %3868 = vmatpush1.msra.mxu0 %v3772
    %3869 = vmatprep.subr.mxu0 0.0
    %3870 = vmatpush1.msra.mxu0 %v3773
    %3871 = vmatprep.subr.mxu0 0.0
    %3872 = vmatpush1.msra.mxu0 %v3774
    %3873 = vmatprep.subr.mxu0 0.0
    %3874 = vmatpush1.msra.mxu0 %v3775
    %3875 = vmatprep.subr.mxu0 0.0
    %3876 = vmatpush1.msra.mxu0 %v3776
    %3877 = vmatprep.subr.mxu0 0.0
    %3878 = vmatpush1.msra.mxu0 %v3777
    %3879 = vmatprep.subr.mxu0 0.0
    %3880 = vmatpush1.msra.mxu0 %v3778
    %3881 = vmatprep.subr.mxu0 0.0
    %3882 = vmatpush1.msra.mxu0 %v3779
    %3883 = vmatprep.subr.mxu0 0.0
    %3884 = vmatpush1.msra.mxu0 %v3780
    %3885 = vmatprep.mubr.f32.mxu0 %v3745
    %3886 = vmatmul.mubr.f32.gmra.mrb[0].mxu0 %v3744
    %v3887 = vpop.f32.mrb[0].mxu0
    %v3888 = vadd.f32 %v3819, %v3887
    %v3889 = vpop.f32.mrb[0].mxu0
    %3890 = vdwg.mxu0
    %3891 = vmatprep.subr.mxu0 0.0
    %3892 = vmatpush1.msra.mxu0 %v3781
    %3893 = vmatprep.subr.mxu0 0.0
    %3894 = vmatpush1.msra.mxu0 %v3782
    %3895 = vmatprep.subr.mxu0 0.0
    %3896 = vmatpush1.msra.mxu0 %v3783
    %3897 = vmatprep.subr.mxu0 0.0
    %3898 = vmatpush1.msra.mxu0 %v3784
    %3899 = vmatprep.subr.mxu0 0.0
    %3900 = vmatpush1.msra.mxu0 %v3785
    %3901 = vmatprep.subr.mxu0 0.0
    %3902 = vmatpush1.msra.mxu0 %v3786
    %3903 = vmatprep.subr.mxu0 0.0
    %3904 = vmatpush1.msra.mxu0 %v3787
    %3905 = vmatprep.subr.mxu0 0.0
    %3906 = vmatpush1.msra.mxu0 %v3788
    %3907 = vmatprep.subr.mxu0 0.0
    %3908 = vmatpush1.msra.mxu0 %v3789
    %3909 = vmatprep.subr.mxu0 0.0
    %3910 = vmatpush1.msra.mxu0 %v3790
    %3911 = vmatprep.subr.mxu0 0.0
    %3912 = vmatpush1.msra.mxu0 %v3791
    %3913 = vmatprep.subr.mxu0 0.0
    %3914 = vmatpush1.msra.mxu0 %v3792
    %3915 = vmatprep.subr.mxu0 0.0
    %3916 = vmatpush1.msra.mxu0 %v3793
    %3917 = vmatprep.subr.mxu0 0.0
    %3918 = vmatpush1.msra.mxu0 %v3794
    %3919 = vmatprep.subr.mxu0 0.0
    %3920 = vmatpush1.msra.mxu0 %v3795
    %3921 = vmatprep.subr.mxu0 0.0
    %3922 = vmatpush1.msra.mxu0 %v3796
    %3923 = vmatprep.subr.mxu0 0.0
    %3924 = vmatpush1.msra.mxu0 %v3797
    %3925 = vmatprep.subr.mxu0 0.0
    %3926 = vmatpush1.msra.mxu0 %v3798
    %3927 = vmatprep.subr.mxu0 0.0
    %3928 = vmatpush1.msra.mxu0 %v3799
    %3929 = vmatprep.subr.mxu0 0.0
    %3930 = vmatpush1.msra.mxu0 %v3800
    %3931 = vmatprep.subr.mxu0 0.0
    %3932 = vmatpush1.msra.mxu0 %v3801
    %3933 = vmatprep.subr.mxu0 0.0
    %3934 = vmatpush1.msra.mxu0 %v3802
    %3935 = vmatprep.subr.mxu0 0.0
    %3936 = vmatpush1.msra.mxu0 %v3803
    %3937 = vmatprep.subr.mxu0 0.0
    %3938 = vmatpush1.msra.mxu0 %v3804
    %3939 = vmatprep.subr.mxu0 0.0
    %3940 = vmatpush1.msra.mxu0 %v3805
    %3941 = vmatprep.subr.mxu0 0.0
    %3942 = vmatpush1.msra.mxu0 %v3806
    %3943 = vmatprep.subr.mxu0 0.0
    %3944 = vmatpush1.msra.mxu0 %v3807
    %3945 = vmatprep.subr.mxu0 0.0
    %3946 = vmatpush1.msra.mxu0 %v3808
    %3947 = vmatprep.subr.mxu0 0.0
    %3948 = vmatpush1.msra.mxu0 %v3809
    %3949 = vmatprep.subr.mxu0 0.0
    %3950 = vmatpush1.msra.mxu0 %v3810
    %3951 = vmatprep.subr.mxu0 0.0
    %3952 = vmatpush1.msra.mxu0 %v3811
    %3953 = vmatprep.subr.mxu0 0.0
    %3954 = vmatpush1.msra.mxu0 %v3812
    %3955 = vmatprep.mubr.f32.mxu0 %v3747
    %3956 = vmatmul.mubr.f32.gmra.mrb[0].mxu0 %v3746
    %v3957 = vpop.f32.mrb[0].mxu0
    %v3958 = vadd.f32 %v3888, %v3957
    %v3959 = vpop.f32.mrb[0].mxu0
    %3960 = vdwg.mxu0
    %v3961 = vadd.f32 %v3513, %v3958
    %s3962 = scalar_lea.vmem [#allocation27], 1
    %v3963 = vld [vmem:[%s3962] sm:$0x1]
    %s3964 = scalar_lea.vmem [#allocation28], 1
    %v3965 = vld [vmem:[%s3964] sm:$0x1]
    %3966 = vadd.xlane.f32.xlu0 %v3961
    %v3967 = vpop.xlane.xlu0 %3966
    %v3968 = vmul.f32 %v3961, %v3961
    %3969 = vadd.xlane.f32.xlu0 %v3968
    %v3970 = vpop.xlane.xlu0 %3969
    %v3971 = vmul.f32 %v3967, 0.033333335
    %v3972 = vmul.f32 %v3970, 0.033333335
    %v3973 = vmul.f32 %v3971, %v3971
    %v3974 = vsub.f32 %v3972, %v3973
    %v3975 = vmax.f32 %v3974, 0.0
    %v3976 = vsub.f32 %v3961, %v3971
    %v3977 = vadd.f32 %v3975, 1e-05
    %v3978 = vrsqrt.pop %v3977
    %v3979 = vmul.f32 %v3976, %v3978
    %v3981 = vlaneseq
    %v3982 = vshrl.u32 %v3981, 7
    %v3983 = vsub.s32 0, %v3982
    %v3984 = vrot.slane %v3963, %v3983
    %v3986 = vmul.f32 %v3979, %v3984
    %v3988 = vlaneseq
    %v3989 = vshrl.u32 %v3988, 7
    %v3990 = vsub.s32 0, %v3989
    %v3991 = vrot.slane %v3965, %v3990
    %v3993 = vadd.f32 %v3986, %v3991
    %s3994 = scalar_lea.vmem [#allocation12], 2304
    %v3995 = vld [vmem:[%s3994] sm:$0xff]
    %v3996 = vld [vmem:[%s3994 + $0x8] sm:$0xff]
    %v3997 = vld [vmem:[%s3994 + $0x10] sm:$0xff]
    %v3998 = vld [vmem:[%s3994 + $0x18] sm:$0xff]
    %v3999 = vld [vmem:[%s3994 + $0x20] sm:$0xff]
    %v4000 = vld [vmem:[%s3994 + $0x28] sm:$0xff]
    %v4001 = vld [vmem:[%s3994 + $0x30] sm:$0xff]
    %v4002 = vld [vmem:[%s3994 + $0x38] sm:$0xff]
    %v4003 = vld [vmem:[%s3994 + $0x40] sm:$0xff]
    %v4004 = vld [vmem:[%s3994 + $0x48] sm:$0xff]
    %v4005 = vld [vmem:[%s3994 + $0x50] sm:$0xff]
    %v4006 = vld [vmem:[%s3994 + $0x58] sm:$0xff]
    %v4007 = vld [vmem:[%s3994 + $0x60] sm:$0xff]
    %v4008 = vld [vmem:[%s3994 + $0x68] sm:$0xff]
    %v4009 = vld [vmem:[%s3994 + $0x70] sm:$0xff]
    %v4010 = vld [vmem:[%s3994 + $0x78] sm:$0xff]
    %v4011 = vld [vmem:[%s3994 + $0x80] sm:$0xff]
    %v4012 = vld [vmem:[%s3994 + $0x88] sm:$0xff]
    %v4013 = vld [vmem:[%s3994 + $0x90] sm:$0xff]
    %v4014 = vld [vmem:[%s3994 + $0x98] sm:$0xff]
    %v4015 = vld [vmem:[%s3994 + $0xa0] sm:$0xff]
    %v4016 = vld [vmem:[%s3994 + $0xa8] sm:$0xff]
    %v4017 = vld [vmem:[%s3994 + $0xb0] sm:$0xff]
    %v4018 = vld [vmem:[%s3994 + $0xb8] sm:$0xff]
    %v4019 = vld [vmem:[%s3994 + $0xc0] sm:$0xff]
    %v4020 = vld [vmem:[%s3994 + $0xc8] sm:$0xff]
    %v4021 = vld [vmem:[%s3994 + $0xd0] sm:$0xff]
    %v4022 = vld [vmem:[%s3994 + $0xd8] sm:$0xff]
    %v4023 = vld [vmem:[%s3994 + $0xe0] sm:$0xff]
    %v4024 = vld [vmem:[%s3994 + $0xe8] sm:$0xff]
    %v4025 = vld [vmem:[%s3994 + $0xf0] sm:$0xff]
    %v4026 = vld [vmem:[%s3994 + $0xf8] sm:$0xff]
    %v4027 = vld [vmem:[%s3994 + $0x100] sm:$0xff]
    %v4028 = vld [vmem:[%s3994 + $0x108] sm:$0xff]
    %v4029 = vld [vmem:[%s3994 + $0x110] sm:$0xff]
    %v4030 = vld [vmem:[%s3994 + $0x118] sm:$0xff]
    %v4031 = vld [vmem:[%s3994 + $0x120] sm:$0xff]
    %v4032 = vld [vmem:[%s3994 + $0x128] sm:$0xff]
    %v4033 = vld [vmem:[%s3994 + $0x130] sm:$0xff]
    %v4034 = vld [vmem:[%s3994 + $0x138] sm:$0xff]
    %v4035 = vld [vmem:[%s3994 + $0x140] sm:$0xff]
    %v4036 = vld [vmem:[%s3994 + $0x148] sm:$0xff]
    %v4037 = vld [vmem:[%s3994 + $0x150] sm:$0xff]
    %v4038 = vld [vmem:[%s3994 + $0x158] sm:$0xff]
    %v4039 = vld [vmem:[%s3994 + $0x160] sm:$0xff]
    %v4040 = vld [vmem:[%s3994 + $0x168] sm:$0xff]
    %v4041 = vld [vmem:[%s3994 + $0x170] sm:$0xff]
    %v4042 = vld [vmem:[%s3994 + $0x178] sm:$0xff]
    %v4043 = vld [vmem:[%s3994 + $0x180] sm:$0xff]
    %v4044 = vld [vmem:[%s3994 + $0x188] sm:$0xff]
    %v4045 = vld [vmem:[%s3994 + $0x190] sm:$0xff]
    %v4046 = vld [vmem:[%s3994 + $0x198] sm:$0xff]
    %v4047 = vld [vmem:[%s3994 + $0x1a0] sm:$0xff]
    %v4048 = vld [vmem:[%s3994 + $0x1a8] sm:$0xff]
    %v4049 = vld [vmem:[%s3994 + $0x1b0] sm:$0xff]
    %v4050 = vld [vmem:[%s3994 + $0x1b8] sm:$0xff]
    %v4051 = vld [vmem:[%s3994 + $0x1c0] sm:$0xff]
    %v4052 = vld [vmem:[%s3994 + $0x1c8] sm:$0xff]
    %v4053 = vld [vmem:[%s3994 + $0x1d0] sm:$0xff]
    %v4054 = vld [vmem:[%s3994 + $0x1d8] sm:$0xff]
    %v4055 = vld [vmem:[%s3994 + $0x1e0] sm:$0xff]
    %v4056 = vld [vmem:[%s3994 + $0x1e8] sm:$0xff]
    %v4057 = vld [vmem:[%s3994 + $0x1f0] sm:$0xff]
    %v4058 = vld [vmem:[%s3994 + $0x1f8] sm:$0xff]
    %v4059 = vld [vmem:[%s3994 + $0x200] sm:$0xff]
    %v4060 = vld [vmem:[%s3994 + $0x208] sm:$0xff]
    %v4061 = vld [vmem:[%s3994 + $0x210] sm:$0xff]
    %v4062 = vld [vmem:[%s3994 + $0x218] sm:$0xff]
    %v4063 = vld [vmem:[%s3994 + $0x220] sm:$0xff]
    %v4064 = vld [vmem:[%s3994 + $0x228] sm:$0xff]
    %v4065 = vld [vmem:[%s3994 + $0x230] sm:$0xff]
    %v4066 = vld [vmem:[%s3994 + $0x238] sm:$0xff]
    %v4067 = vld [vmem:[%s3994 + $0x240] sm:$0xff]
    %v4068 = vld [vmem:[%s3994 + $0x248] sm:$0xff]
    %v4069 = vld [vmem:[%s3994 + $0x250] sm:$0xff]
    %v4070 = vld [vmem:[%s3994 + $0x258] sm:$0xff]
    %v4071 = vld [vmem:[%s3994 + $0x260] sm:$0xff]
    %v4072 = vld [vmem:[%s3994 + $0x268] sm:$0xff]
    %v4073 = vld [vmem:[%s3994 + $0x270] sm:$0xff]
    %v4074 = vld [vmem:[%s3994 + $0x278] sm:$0xff]
    %v4075 = vld [vmem:[%s3994 + $0x280] sm:$0xff]
    %v4076 = vld [vmem:[%s3994 + $0x288] sm:$0xff]
    %v4077 = vld [vmem:[%s3994 + $0x290] sm:$0xff]
    %v4078 = vld [vmem:[%s3994 + $0x298] sm:$0xff]
    %v4079 = vld [vmem:[%s3994 + $0x2a0] sm:$0xff]
    %v4080 = vld [vmem:[%s3994 + $0x2a8] sm:$0xff]
    %v4081 = vld [vmem:[%s3994 + $0x2b0] sm:$0xff]
    %v4082 = vld [vmem:[%s3994 + $0x2b8] sm:$0xff]
    %v4083 = vld [vmem:[%s3994 + $0x2c0] sm:$0xff]
    %v4084 = vld [vmem:[%s3994 + $0x2c8] sm:$0xff]
    %v4085 = vld [vmem:[%s3994 + $0x2d0] sm:$0xff]
    %v4086 = vld [vmem:[%s3994 + $0x2d8] sm:$0xff]
    %v4087 = vld [vmem:[%s3994 + $0x2e0] sm:$0xff]
    %v4088 = vld [vmem:[%s3994 + $0x2e8] sm:$0xff]
    %v4089 = vld [vmem:[%s3994 + $0x2f0] sm:$0xff]
    %v4090 = vld [vmem:[%s3994 + $0x2f8] sm:$0xff]
    %v4091 = vld [vmem:[%s3994 + $0x300] sm:$0xff]
    %v4092 = vld [vmem:[%s3994 + $0x308] sm:$0xff]
    %v4093 = vld [vmem:[%s3994 + $0x310] sm:$0xff]
    %v4094 = vld [vmem:[%s3994 + $0x318] sm:$0xff]
    %v4095 = vld [vmem:[%s3994 + $0x320] sm:$0xff]
    %v4096 = vld [vmem:[%s3994 + $0x328] sm:$0xff]
    %v4097 = vld [vmem:[%s3994 + $0x330] sm:$0xff]
    %v4098 = vld [vmem:[%s3994 + $0x338] sm:$0xff]
    %v4099 = vld [vmem:[%s3994 + $0x340] sm:$0xff]
    %v4100 = vld [vmem:[%s3994 + $0x348] sm:$0xff]
    %v4101 = vld [vmem:[%s3994 + $0x350] sm:$0xff]
    %v4102 = vld [vmem:[%s3994 + $0x358] sm:$0xff]
    %v4103 = vld [vmem:[%s3994 + $0x360] sm:$0xff]
    %v4104 = vld [vmem:[%s3994 + $0x368] sm:$0xff]
    %v4105 = vld [vmem:[%s3994 + $0x370] sm:$0xff]
    %v4106 = vld [vmem:[%s3994 + $0x378] sm:$0xff]
    %v4107 = vld [vmem:[%s3994 + $0x380] sm:$0xff]
    %v4108 = vld [vmem:[%s3994 + $0x388] sm:$0xff]
    %v4109 = vld [vmem:[%s3994 + $0x390] sm:$0xff]
    %v4110 = vld [vmem:[%s3994 + $0x398] sm:$0xff]
    %v4111 = vld [vmem:[%s3994 + $0x3a0] sm:$0xff]
    %v4112 = vld [vmem:[%s3994 + $0x3a8] sm:$0xff]
    %v4113 = vld [vmem:[%s3994 + $0x3b0] sm:$0xff]
    %v4114 = vld [vmem:[%s3994 + $0x3b8] sm:$0xff]
    %v4115 = vld [vmem:[%s3994 + $0x3c0] sm:$0xff]
    %v4116 = vld [vmem:[%s3994 + $0x3c8] sm:$0xff]
    %v4117 = vld [vmem:[%s3994 + $0x3d0] sm:$0xff]
    %v4118 = vld [vmem:[%s3994 + $0x3d8] sm:$0xff]
    %v4119 = vld [vmem:[%s3994 + $0x3e0] sm:$0xff]
    %v4120 = vld [vmem:[%s3994 + $0x3e8] sm:$0xff]
    %v4121 = vld [vmem:[%s3994 + $0x3f0] sm:$0xff]
    %v4122 = vld [vmem:[%s3994 + $0x3f8] sm:$0xff]
    %v4123 = vld [vmem:[%s3994 + $0x400] sm:$0xff]
    %v4124 = vld [vmem:[%s3994 + $0x408] sm:$0xff]
    %v4125 = vld [vmem:[%s3994 + $0x410] sm:$0xff]
    %v4126 = vld [vmem:[%s3994 + $0x418] sm:$0xff]
    %v4127 = vld [vmem:[%s3994 + $0x420] sm:$0xff]
    %v4128 = vld [vmem:[%s3994 + $0x428] sm:$0xff]
    %v4129 = vld [vmem:[%s3994 + $0x430] sm:$0xff]
    %v4130 = vld [vmem:[%s3994 + $0x438] sm:$0xff]
    %v4131 = vld [vmem:[%s3994 + $0x440] sm:$0xff]
    %v4132 = vld [vmem:[%s3994 + $0x448] sm:$0xff]
    %v4133 = vld [vmem:[%s3994 + $0x450] sm:$0xff]
    %v4134 = vld [vmem:[%s3994 + $0x458] sm:$0xff]
    %v4135 = vld [vmem:[%s3994 + $0x460] sm:$0xff]
    %v4136 = vld [vmem:[%s3994 + $0x468] sm:$0xff]
    %v4137 = vld [vmem:[%s3994 + $0x470] sm:$0xff]
    %v4138 = vld [vmem:[%s3994 + $0x478] sm:$0xff]
    %s4139 = scalar_lea.vmem [#allocation13], 18
    %v4140 = vld [vmem:[%s4139] sm:$0xff]
    %v4141 = vld [vmem:[%s4139 + $0x8] sm:$0x1]
    %v4144 = vlaneseq
    %v4145 = vshrl.u32 %v4144, 7
    %v4146 = vsub.s32 0, %v4145
    %v4147 = vrot.slane %v4140, %v4146
    %v4148 = vlaneseq
    %v4149 = vshrl.u32 %v4148, 7
    %v4150 = vsub.s32 1, %v4149
    %v4151 = vrot.slane %v4140, %v4150
    %v4152 = vlaneseq
    %v4153 = vshrl.u32 %v4152, 7
    %v4154 = vsub.s32 2, %v4153
    %v4155 = vrot.slane %v4140, %v4154
    %v4156 = vlaneseq
    %v4157 = vshrl.u32 %v4156, 7
    %v4158 = vsub.s32 3, %v4157
    %v4159 = vrot.slane %v4140, %v4158
    %v4160 = vlaneseq
    %v4161 = vshrl.u32 %v4160, 7
    %v4162 = vsub.s32 4, %v4161
    %v4163 = vrot.slane %v4140, %v4162
    %v4164 = vlaneseq
    %v4165 = vshrl.u32 %v4164, 7
    %v4166 = vsub.s32 5, %v4165
    %v4167 = vrot.slane %v4140, %v4166
    %v4168 = vlaneseq
    %v4169 = vshrl.u32 %v4168, 7
    %v4170 = vsub.s32 6, %v4169
    %v4171 = vrot.slane %v4140, %v4170
    %v4172 = vlaneseq
    %v4173 = vshrl.u32 %v4172, 7
    %v4174 = vsub.s32 7, %v4173
    %v4175 = vrot.slane %v4140, %v4174
    %v4176 = vlaneseq
    %v4177 = vshrl.u32 %v4176, 7
    %v4178 = vsub.s32 0, %v4177
    %v4179 = vrot.slane %v4141, %v4178
    %4189 = vmatprep.subr.mxu0 %v3996
    %4190 = vmatpush1.msra.mxu0 %v3995
    %4191 = vmatprep.subr.mxu0 %v4005
    %4192 = vmatpush1.msra.mxu0 %v4004
    %4193 = vmatprep.subr.mxu0 %v4014
    %4194 = vmatpush1.msra.mxu0 %v4013
    %4195 = vmatprep.subr.mxu0 %v4023
    %4196 = vmatpush1.msra.mxu0 %v4022
    %4197 = vmatprep.subr.mxu0 %v4032
    %4198 = vmatpush1.msra.mxu0 %v4031
    %4199 = vmatprep.subr.mxu0 %v4041
    %4200 = vmatpush1.msra.mxu0 %v4040
    %4201 = vmatprep.subr.mxu0 %v4050
    %4202 = vmatpush1.msra.mxu0 %v4049
    %4203 = vmatprep.subr.mxu0 %v4059
    %4204 = vmatpush1.msra.mxu0 %v4058
    %4205 = vmatprep.subr.mxu0 %v4068
    %4206 = vmatpush1.msra.mxu0 %v4067
    %4207 = vmatprep.subr.mxu0 %v4077
    %4208 = vmatpush1.msra.mxu0 %v4076
    %4209 = vmatprep.subr.mxu0 %v4086
    %4210 = vmatpush1.msra.mxu0 %v4085
    %4211 = vmatprep.subr.mxu0 %v4095
    %4212 = vmatpush1.msra.mxu0 %v4094
    %4213 = vmatprep.subr.mxu0 %v4104
    %4214 = vmatpush1.msra.mxu0 %v4103
    %4215 = vmatprep.subr.mxu0 %v4113
    %4216 = vmatpush1.msra.mxu0 %v4112
    %4217 = vmatprep.subr.mxu0 %v4122
    %4218 = vmatpush1.msra.mxu0 %v4121
    %4219 = vmatprep.subr.mxu0 %v4131
    %4220 = vmatpush1.msra.mxu0 %v4130
    %4221 = vmatprep.subr.mxu0 0.0
    %4222 = vmatpush1.msra.mxu0 0.0
    %4223 = vmatprep.subr.mxu0 0.0
    %4224 = vmatpush1.msra.mxu0 0.0
    %4225 = vmatprep.subr.mxu0 0.0
    %4226 = vmatpush1.msra.mxu0 0.0
    %4227 = vmatprep.subr.mxu0 0.0
    %4228 = vmatpush1.msra.mxu0 0.0
    %4229 = vmatprep.subr.mxu0 0.0
    %4230 = vmatpush1.msra.mxu0 0.0
    %4231 = vmatprep.subr.mxu0 0.0
    %4232 = vmatpush1.msra.mxu0 0.0
    %4233 = vmatprep.subr.mxu0 0.0
    %4234 = vmatpush1.msra.mxu0 0.0
    %4235 = vmatprep.subr.mxu0 0.0
    %4236 = vmatpush1.msra.mxu0 0.0
    %4237 = vmatprep.subr.mxu0 0.0
    %4238 = vmatpush1.msra.mxu0 0.0
    %4239 = vmatprep.subr.mxu0 0.0
    %4240 = vmatpush1.msra.mxu0 0.0
    %4241 = vmatprep.subr.mxu0 0.0
    %4242 = vmatpush1.msra.mxu0 0.0
    %4243 = vmatprep.subr.mxu0 0.0
    %4244 = vmatpush1.msra.mxu0 0.0
    %4245 = vmatprep.subr.mxu0 0.0
    %4246 = vmatpush1.msra.mxu0 0.0
    %4247 = vmatprep.subr.mxu0 0.0
    %4248 = vmatpush1.msra.mxu0 0.0
    %4249 = vmatprep.subr.mxu0 0.0
    %4250 = vmatpush1.msra.mxu0 0.0
    %4251 = vmatprep.subr.mxu0 0.0
    %4252 = vmatpush1.msra.mxu0 0.0
    %4253 = vmatprep.mubr.f32.mxu0 0.0
    %4254 = vmatmul.mubr.f32.gmra.mrb[0].mxu0 %v3993
    %v4255 = vpop.f32.mrb[0].mxu0
    %v4256 = vadd.f32 %v4147, %v4255
    %v4257 = vpop.f32.mrb[0].mxu0
    %v4258 = vadd.f32 %v4151, %v4257
    %4259 = vdwg.mxu0
    %4260 = vmatprep.subr.mxu0 %v3998
    %4261 = vmatpush1.msra.mxu0 %v3997
    %4262 = vmatprep.subr.mxu0 %v4007
    %4263 = vmatpush1.msra.mxu0 %v4006
    %4264 = vmatprep.subr.mxu0 %v4016
    %4265 = vmatpush1.msra.mxu0 %v4015
    %4266 = vmatprep.subr.mxu0 %v4025
    %4267 = vmatpush1.msra.mxu0 %v4024
    %4268 = vmatprep.subr.mxu0 %v4034
    %4269 = vmatpush1.msra.mxu0 %v4033
    %4270 = vmatprep.subr.mxu0 %v4043
    %4271 = vmatpush1.msra.mxu0 %v4042
    %4272 = vmatprep.subr.mxu0 %v4052
    %4273 = vmatpush1.msra.mxu0 %v4051
    %4274 = vmatprep.subr.mxu0 %v4061
    %4275 = vmatpush1.msra.mxu0 %v4060
    %4276 = vmatprep.subr.mxu0 %v4070
    %4277 = vmatpush1.msra.mxu0 %v4069
    %4278 = vmatprep.subr.mxu0 %v4079
    %4279 = vmatpush1.msra.mxu0 %v4078
    %4280 = vmatprep.subr.mxu0 %v4088
    %4281 = vmatpush1.msra.mxu0 %v4087
    %4282 = vmatprep.subr.mxu0 %v4097
    %4283 = vmatpush1.msra.mxu0 %v4096
    %4284 = vmatprep.subr.mxu0 %v4106
    %4285 = vmatpush1.msra.mxu0 %v4105
    %4286 = vmatprep.subr.mxu0 %v4115
    %4287 = vmatpush1.msra.mxu0 %v4114
    %4288 = vmatprep.subr.mxu0 %v4124
    %4289 = vmatpush1.msra.mxu0 %v4123
    %4290 = vmatprep.subr.mxu0 %v4133
    %4291 = vmatpush1.msra.mxu0 %v4132
    %4292 = vmatprep.subr.mxu0 0.0
    %4293 = vmatpush1.msra.mxu0 0.0
    %4294 = vmatprep.subr.mxu0 0.0
    %4295 = vmatpush1.msra.mxu0 0.0
    %4296 = vmatprep.subr.mxu0 0.0
    %4297 = vmatpush1.msra.mxu0 0.0
    %4298 = vmatprep.subr.mxu0 0.0
    %4299 = vmatpush1.msra.mxu0 0.0
    %4300 = vmatprep.subr.mxu0 0.0
    %4301 = vmatpush1.msra.mxu0 0.0
    %4302 = vmatprep.subr.mxu0 0.0
    %4303 = vmatpush1.msra.mxu0 0.0
    %4304 = vmatprep.subr.mxu0 0.0
    %4305 = vmatpush1.msra.mxu0 0.0
    %4306 = vmatprep.subr.mxu0 0.0
    %4307 = vmatpush1.msra.mxu0 0.0
    %4308 = vmatprep.subr.mxu0 0.0
    %4309 = vmatpush1.msra.mxu0 0.0
    %4310 = vmatprep.subr.mxu0 0.0
    %4311 = vmatpush1.msra.mxu0 0.0
    %4312 = vmatprep.subr.mxu0 0.0
    %4313 = vmatpush1.msra.mxu0 0.0
    %4314 = vmatprep.subr.mxu0 0.0
    %4315 = vmatpush1.msra.mxu0 0.0
    %4316 = vmatprep.subr.mxu0 0.0
    %4317 = vmatpush1.msra.mxu0 0.0
    %4318 = vmatprep.subr.mxu0 0.0
    %4319 = vmatpush1.msra.mxu0 0.0
    %4320 = vmatprep.subr.mxu0 0.0
    %4321 = vmatpush1.msra.mxu0 0.0
    %4322 = vmatprep.subr.mxu0 0.0
    %4323 = vmatpush1.msra.mxu0 0.0
    %4324 = vmatprep.mubr.f32.mxu0 0.0
    %4325 = vmatmul.mubr.f32.gmra.mrb[0].mxu0 %v3993
    %v4326 = vpop.f32.mrb[0].mxu0
    %v4327 = vadd.f32 %v4155, %v4326
    %v4328 = vpop.f32.mrb[0].mxu0
    %v4329 = vadd.f32 %v4159, %v4328
    %4330 = vdwg.mxu0
    %4331 = vmatprep.subr.mxu0 %v4000
    %4332 = vmatpush1.msra.mxu0 %v3999
    %4333 = vmatprep.subr.mxu0 %v4009
    %4334 = vmatpush1.msra.mxu0 %v4008
    %4335 = vmatprep.subr.mxu0 %v4018
    %4336 = vmatpush1.msra.mxu0 %v4017
    %4337 = vmatprep.subr.mxu0 %v4027
    %4338 = vmatpush1.msra.mxu0 %v4026
    %4339 = vmatprep.subr.mxu0 %v4036
    %4340 = vmatpush1.msra.mxu0 %v4035
    %4341 = vmatprep.subr.mxu0 %v4045
    %4342 = vmatpush1.msra.mxu0 %v4044
    %4343 = vmatprep.subr.mxu0 %v4054
    %4344 = vmatpush1.msra.mxu0 %v4053
    %4345 = vmatprep.subr.mxu0 %v4063
    %4346 = vmatpush1.msra.mxu0 %v4062
    %4347 = vmatprep.subr.mxu0 %v4072
    %4348 = vmatpush1.msra.mxu0 %v4071
    %4349 = vmatprep.subr.mxu0 %v4081
    %4350 = vmatpush1.msra.mxu0 %v4080
    %4351 = vmatprep.subr.mxu0 %v4090
    %4352 = vmatpush1.msra.mxu0 %v4089
    %4353 = vmatprep.subr.mxu0 %v4099
    %4354 = vmatpush1.msra.mxu0 %v4098
    %4355 = vmatprep.subr.mxu0 %v4108
    %4356 = vmatpush1.msra.mxu0 %v4107
    %4357 = vmatprep.subr.mxu0 %v4117
    %4358 = vmatpush1.msra.mxu0 %v4116
    %4359 = vmatprep.subr.mxu0 %v4126
    %4360 = vmatpush1.msra.mxu0 %v4125
    %4361 = vmatprep.subr.mxu0 %v4135
    %4362 = vmatpush1.msra.mxu0 %v4134
    %4363 = vmatprep.subr.mxu0 0.0
    %4364 = vmatpush1.msra.mxu0 0.0
    %4365 = vmatprep.subr.mxu0 0.0
    %4366 = vmatpush1.msra.mxu0 0.0
    %4367 = vmatprep.subr.mxu0 0.0
    %4368 = vmatpush1.msra.mxu0 0.0
    %4369 = vmatprep.subr.mxu0 0.0
    %4370 = vmatpush1.msra.mxu0 0.0
    %4371 = vmatprep.subr.mxu0 0.0
    %4372 = vmatpush1.msra.mxu0 0.0
    %4373 = vmatprep.subr.mxu0 0.0
    %4374 = vmatpush1.msra.mxu0 0.0
    %4375 = vmatprep.subr.mxu0 0.0
    %4376 = vmatpush1.msra.mxu0 0.0
    %4377 = vmatprep.subr.mxu0 0.0
    %4378 = vmatpush1.msra.mxu0 0.0
    %4379 = vmatprep.subr.mxu0 0.0
    %4380 = vmatpush1.msra.mxu0 0.0
    %4381 = vmatprep.subr.mxu0 0.0
    %4382 = vmatpush1.msra.mxu0 0.0
    %4383 = vmatprep.subr.mxu0 0.0
    %4384 = vmatpush1.msra.mxu0 0.0
    %4385 = vmatprep.subr.mxu0 0.0
    %4386 = vmatpush1.msra.mxu0 0.0
    %4387 = vmatprep.subr.mxu0 0.0
    %4388 = vmatpush1.msra.mxu0 0.0
    %4389 = vmatprep.subr.mxu0 0.0
    %4390 = vmatpush1.msra.mxu0 0.0
    %4391 = vmatprep.subr.mxu0 0.0
    %4392 = vmatpush1.msra.mxu0 0.0
    %4393 = vmatprep.subr.mxu0 0.0
    %4394 = vmatpush1.msra.mxu0 0.0
    %4395 = vmatprep.mubr.f32.mxu0 0.0
    %4396 = vmatmul.mubr.f32.gmra.mrb[0].mxu0 %v3993
    %v4397 = vpop.f32.mrb[0].mxu0
    %v4398 = vadd.f32 %v4163, %v4397
    %v4399 = vpop.f32.mrb[0].mxu0
    %v4400 = vadd.f32 %v4167, %v4399
    %4401 = vdwg.mxu0
    %4402 = vmatprep.subr.mxu0 %v4002
    %4403 = vmatpush1.msra.mxu0 %v4001
    %4404 = vmatprep.subr.mxu0 %v4011
    %4405 = vmatpush1.msra.mxu0 %v4010
    %4406 = vmatprep.subr.mxu0 %v4020
    %4407 = vmatpush1.msra.mxu0 %v4019
    %4408 = vmatprep.subr.mxu0 %v4029
    %4409 = vmatpush1.msra.mxu0 %v4028
    %4410 = vmatprep.subr.mxu0 %v4038
    %4411 = vmatpush1.msra.mxu0 %v4037
    %4412 = vmatprep.subr.mxu0 %v4047
    %4413 = vmatpush1.msra.mxu0 %v4046
    %4414 = vmatprep.subr.mxu0 %v4056
    %4415 = vmatpush1.msra.mxu0 %v4055
    %4416 = vmatprep.subr.mxu0 %v4065
    %4417 = vmatpush1.msra.mxu0 %v4064
    %4418 = vmatprep.subr.mxu0 %v4074
    %4419 = vmatpush1.msra.mxu0 %v4073
    %4420 = vmatprep.subr.mxu0 %v4083
    %4421 = vmatpush1.msra.mxu0 %v4082
    %4422 = vmatprep.subr.mxu0 %v4092
    %4423 = vmatpush1.msra.mxu0 %v4091
    %4424 = vmatprep.subr.mxu0 %v4101
    %4425 = vmatpush1.msra.mxu0 %v4100
    %4426 = vmatprep.subr.mxu0 %v4110
    %4427 = vmatpush1.msra.mxu0 %v4109
    %4428 = vmatprep.subr.mxu0 %v4119
    %4429 = vmatpush1.msra.mxu0 %v4118
    %4430 = vmatprep.subr.mxu0 %v4128
    %4431 = vmatpush1.msra.mxu0 %v4127
    %4432 = vmatprep.subr.mxu0 %v4137
    %4433 = vmatpush1.msra.mxu0 %v4136
    %4434 = vmatprep.subr.mxu0 0.0
    %4435 = vmatpush1.msra.mxu0 0.0
    %4436 = vmatprep.subr.mxu0 0.0
    %4437 = vmatpush1.msra.mxu0 0.0
    %4438 = vmatprep.subr.mxu0 0.0
    %4439 = vmatpush1.msra.mxu0 0.0
    %4440 = vmatprep.subr.mxu0 0.0
    %4441 = vmatpush1.msra.mxu0 0.0
    %4442 = vmatprep.subr.mxu0 0.0
    %4443 = vmatpush1.msra.mxu0 0.0
    %4444 = vmatprep.subr.mxu0 0.0
    %4445 = vmatpush1.msra.mxu0 0.0
    %4446 = vmatprep.subr.mxu0 0.0
    %4447 = vmatpush1.msra.mxu0 0.0
    %4448 = vmatprep.subr.mxu0 0.0
    %4449 = vmatpush1.msra.mxu0 0.0
    %4450 = vmatprep.subr.mxu0 0.0
    %4451 = vmatpush1.msra.mxu0 0.0
    %4452 = vmatprep.subr.mxu0 0.0
    %4453 = vmatpush1.msra.mxu0 0.0
    %4454 = vmatprep.subr.mxu0 0.0
    %4455 = vmatpush1.msra.mxu0 0.0
    %4456 = vmatprep.subr.mxu0 0.0
    %4457 = vmatpush1.msra.mxu0 0.0
    %4458 = vmatprep.subr.mxu0 0.0
    %4459 = vmatpush1.msra.mxu0 0.0
    %4460 = vmatprep.subr.mxu0 0.0
    %4461 = vmatpush1.msra.mxu0 0.0
    %4462 = vmatprep.subr.mxu0 0.0
    %4463 = vmatpush1.msra.mxu0 0.0
    %4464 = vmatprep.subr.mxu0 0.0
    %4465 = vmatpush1.msra.mxu0 0.0
    %4466 = vmatprep.mubr.f32.mxu0 0.0
    %4467 = vmatmul.mubr.f32.gmra.mrb[0].mxu0 %v3993
    %v4468 = vpop.f32.mrb[0].mxu0
    %v4469 = vadd.f32 %v4171, %v4468
    %v4470 = vpop.f32.mrb[0].mxu0
    %v4471 = vadd.f32 %v4175, %v4470
    %4472 = vdwg.mxu0
    %4473 = vmatprep.subr.mxu0 0.0
    %4474 = vmatpush1.msra.mxu0 %v4003
    %4475 = vmatprep.subr.mxu0 0.0
    %4476 = vmatpush1.msra.mxu0 %v4012
    %4477 = vmatprep.subr.mxu0 0.0
    %4478 = vmatpush1.msra.mxu0 %v4021
    %4479 = vmatprep.subr.mxu0 0.0
    %4480 = vmatpush1.msra.mxu0 %v4030
    %4481 = vmatprep.subr.mxu0 0.0
    %4482 = vmatpush1.msra.mxu0 %v4039
    %4483 = vmatprep.subr.mxu0 0.0
    %4484 = vmatpush1.msra.mxu0 %v4048
    %4485 = vmatprep.subr.mxu0 0.0
    %4486 = vmatpush1.msra.mxu0 %v4057
    %4487 = vmatprep.subr.mxu0 0.0
    %4488 = vmatpush1.msra.mxu0 %v4066
    %4489 = vmatprep.subr.mxu0 0.0
    %4490 = vmatpush1.msra.mxu0 %v4075
    %4491 = vmatprep.subr.mxu0 0.0
    %4492 = vmatpush1.msra.mxu0 %v4084
    %4493 = vmatprep.subr.mxu0 0.0
    %4494 = vmatpush1.msra.mxu0 %v4093
    %4495 = vmatprep.subr.mxu0 0.0
    %4496 = vmatpush1.msra.mxu0 %v4102
    %4497 = vmatprep.subr.mxu0 0.0
    %4498 = vmatpush1.msra.mxu0 %v4111
    %4499 = vmatprep.subr.mxu0 0.0
    %4500 = vmatpush1.msra.mxu0 %v4120
    %4501 = vmatprep.subr.mxu0 0.0
    %4502 = vmatpush1.msra.mxu0 %v4129
    %4503 = vmatprep.subr.mxu0 0.0
    %4504 = vmatpush1.msra.mxu0 %v4138
    %4505 = vmatprep.subr.mxu0 0.0
    %4506 = vmatpush1.msra.mxu0 0.0
    %4507 = vmatprep.subr.mxu0 0.0
    %4508 = vmatpush1.msra.mxu0 0.0
    %4509 = vmatprep.subr.mxu0 0.0
    %4510 = vmatpush1.msra.mxu0 0.0
    %4511 = vmatprep.subr.mxu0 0.0
    %4512 = vmatpush1.msra.mxu0 0.0
    %4513 = vmatprep.subr.mxu0 0.0
    %4514 = vmatpush1.msra.mxu0 0.0
    %4515 = vmatprep.subr.mxu0 0.0
    %4516 = vmatpush1.msra.mxu0 0.0
    %4517 = vmatprep.subr.mxu0 0.0
    %4518 = vmatpush1.msra.mxu0 0.0
    %4519 = vmatprep.subr.mxu0 0.0
    %4520 = vmatpush1.msra.mxu0 0.0
    %4521 = vmatprep.subr.mxu0 0.0
    %4522 = vmatpush1.msra.mxu0 0.0
    %4523 = vmatprep.subr.mxu0 0.0
    %4524 = vmatpush1.msra.mxu0 0.0
    %4525 = vmatprep.subr.mxu0 0.0
    %4526 = vmatpush1.msra.mxu0 0.0
    %4527 = vmatprep.subr.mxu0 0.0
    %4528 = vmatpush1.msra.mxu0 0.0
    %4529 = vmatprep.subr.mxu0 0.0
    %4530 = vmatpush1.msra.mxu0 0.0
    %4531 = vmatprep.subr.mxu0 0.0
    %4532 = vmatpush1.msra.mxu0 0.0
    %4533 = vmatprep.subr.mxu0 0.0
    %4534 = vmatpush1.msra.mxu0 0.0
    %4535 = vmatprep.subr.mxu0 0.0
    %4536 = vmatpush1.msra.mxu0 0.0
    %4537 = vmatprep.mubr.f32.mxu0 0.0
    %4538 = vmatmul.mubr.f32.gmra.mrb[0].mxu0 %v3993
    %v4539 = vpop.f32.mrb[0].mxu0
    %v4540 = vadd.f32 %v4179, %v4539
    %v4541 = vpop.f32.mrb[0].mxu0
    %4542 = vdwg.mxu0
    %4543 = vmatprep.subr.mxu0 0.0
    %4544 = vmatpush1.xpose.msra.mxu0 %v4329
    %4545 = vmatprep.subr.mxu0 0.0
    %4546 = vmatpush1.xpose.msra.mxu0 0.0
    %4547 = vmatprep.subr.mxu0 0.0
    %4548 = vmatpush1.xpose.msra.mxu0 0.0
    %4549 = vmatprep.subr.mxu0 0.0
    %4550 = vmatpush1.xpose.msra.mxu0 0.0
    %4551 = vmatprep.subr.mxu0 0.0
    %4552 = vmatpush1.xpose.msra.mxu0 0.0
    %4553 = vmatprep.subr.mxu0 0.0
    %4554 = vmatpush1.xpose.msra.mxu0 0.0
    %4555 = vmatprep.subr.mxu0 0.0
    %4556 = vmatpush1.xpose.msra.mxu0 0.0
    %4557 = vmatprep.subr.mxu0 0.0
    %4558 = vmatpush1.xpose.msra.mxu0 0.0
    %4559 = vmatprep.subr.mxu0 0.0
    %4560 = vmatpush1.xpose.msra.mxu0 0.0
    %4561 = vmatprep.subr.mxu0 0.0
    %4562 = vmatpush1.xpose.msra.mxu0 0.0
    %4563 = vmatprep.subr.mxu0 0.0
    %4564 = vmatpush1.xpose.msra.mxu0 0.0
    %4565 = vmatprep.subr.mxu0 0.0
    %4566 = vmatpush1.xpose.msra.mxu0 0.0
    %4567 = vmatprep.subr.mxu0 0.0
    %4568 = vmatpush1.xpose.msra.mxu0 0.0
    %4569 = vmatprep.subr.mxu0 0.0
    %4570 = vmatpush1.xpose.msra.mxu0 0.0
    %4571 = vmatprep.subr.mxu0 0.0
    %4572 = vmatpush1.xpose.msra.mxu0 0.0
    %4573 = vmatprep.subr.mxu0 0.0
    %4574 = vmatpush1.xpose.msra.mxu0 0.0
    %4575 = vmatprep.subr.mxu0 0.0
    %4576 = vmatpush1.xpose.msra.mxu0 0.0
    %4577 = vmatprep.subr.mxu0 0.0
    %4578 = vmatpush1.xpose.msra.mxu0 0.0
    %4579 = vmatprep.subr.mxu0 0.0
    %4580 = vmatpush1.xpose.msra.mxu0 0.0
    %4581 = vmatprep.subr.mxu0 0.0
    %4582 = vmatpush1.xpose.msra.mxu0 0.0
    %4583 = vmatprep.subr.mxu0 0.0
    %4584 = vmatpush1.xpose.msra.mxu0 0.0
    %4585 = vmatprep.subr.mxu0 0.0
    %4586 = vmatpush1.xpose.msra.mxu0 0.0
    %4587 = vmatprep.subr.mxu0 0.0
    %4588 = vmatpush1.xpose.msra.mxu0 0.0
    %4589 = vmatprep.subr.mxu0 0.0
    %4590 = vmatpush1.xpose.msra.mxu0 0.0
    %4591 = vmatprep.subr.mxu0 0.0
    %4592 = vmatpush1.xpose.msra.mxu0 0.0
    %4593 = vmatprep.subr.mxu0 0.0
    %4594 = vmatpush1.xpose.msra.mxu0 0.0
    %4595 = vmatprep.subr.mxu0 0.0
    %4596 = vmatpush1.xpose.msra.mxu0 0.0
    %4597 = vmatprep.subr.mxu0 0.0
    %4598 = vmatpush1.xpose.msra.mxu0 0.0
    %4599 = vmatprep.subr.mxu0 0.0
    %4600 = vmatpush1.xpose.msra.mxu0 0.0
    %4601 = vmatprep.subr.mxu0 0.0
    %4602 = vmatpush1.xpose.msra.mxu0 0.0
    %4603 = vmatprep.subr.mxu0 0.0
    %4604 = vmatpush1.xpose.msra.mxu0 0.0
    %4605 = vmatprep.subr.mxu0 0.0
    %4606 = vmatpush1.xpose.msra.mxu0 0.0
    %4607 = vmatprep.mubr.f32.mxu0 0.0
    %4608 = vmatmul.mubr.f32.gmra.mrb[0].mxu0 %v4256
    %v4609 = vpop.f32.mrb[0].mxu0
    %v4610 = vadd.f32 %v1108, %v4609
    %v4611 = vpop.f32.mrb[0].mxu0
    %4612 = vdwg.mxu0
    %v4613 = vsel %vm1180, %v4610, -inf
    %4614 = vmax.xlane.f32.xlu0 %v4613
    %v4615 = vpop.xlane.xlu0 %4614
    %v4616 = vsub.f32 %v4610, %v4615
    %v4617 = vmul.f32 %v4616, 1.442695
    %v4618 = vpow.pop %v4617
    %v4619 = vsel %vm1180, %v4618, 0.0
    %4620 = vadd.xlane.f32.xlu0 %v4619
    %v4621 = vpop.xlane.xlu0 %4620
    %v4622 = vrcp.pop %v4621
    %v4623 = vmul.f32 %v4618, %v4622
    %v4625 = vsel %vm1180, %v4623, 0
    %4627 = vmatprep.subr.mxu0 0.0
    %4628 = vmatpush1.msra.mxu0 %v4469
    %4629 = vmatprep.subr.mxu0 0.0
    %4630 = vmatpush1.msra.mxu0 0.0
    %4631 = vmatprep.subr.mxu0 0.0
    %4632 = vmatpush1.msra.mxu0 0.0
    %4633 = vmatprep.subr.mxu0 0.0
    %4634 = vmatpush1.msra.mxu0 0.0
    %4635 = vmatprep.subr.mxu0 0.0
    %4636 = vmatpush1.msra.mxu0 0.0
    %4637 = vmatprep.subr.mxu0 0.0
    %4638 = vmatpush1.msra.mxu0 0.0
    %4639 = vmatprep.subr.mxu0 0.0
    %4640 = vmatpush1.msra.mxu0 0.0
    %4641 = vmatprep.subr.mxu0 0.0
    %4642 = vmatpush1.msra.mxu0 0.0
    %4643 = vmatprep.subr.mxu0 0.0
    %4644 = vmatpush1.msra.mxu0 0.0
    %4645 = vmatprep.subr.mxu0 0.0
    %4646 = vmatpush1.msra.mxu0 0.0
    %4647 = vmatprep.subr.mxu0 0.0
    %4648 = vmatpush1.msra.mxu0 0.0
    %4649 = vmatprep.subr.mxu0 0.0
    %4650 = vmatpush1.msra.mxu0 0.0
    %4651 = vmatprep.subr.mxu0 0.0
    %4652 = vmatpush1.msra.mxu0 0.0
    %4653 = vmatprep.subr.mxu0 0.0
    %4654 = vmatpush1.msra.mxu0 0.0
    %4655 = vmatprep.subr.mxu0 0.0
    %4656 = vmatpush1.msra.mxu0 0.0
    %4657 = vmatprep.subr.mxu0 0.0
    %4658 = vmatpush1.msra.mxu0 0.0
    %4659 = vmatprep.subr.mxu0 0.0
    %4660 = vmatpush1.msra.mxu0 0.0
    %4661 = vmatprep.subr.mxu0 0.0
    %4662 = vmatpush1.msra.mxu0 0.0
    %4663 = vmatprep.subr.mxu0 0.0
    %4664 = vmatpush1.msra.mxu0 0.0
    %4665 = vmatprep.subr.mxu0 0.0
    %4666 = vmatpush1.msra.mxu0 0.0
    %4667 = vmatprep.subr.mxu0 0.0
    %4668 = vmatpush1.msra.mxu0 0.0
    %4669 = vmatprep.subr.mxu0 0.0
    %4670 = vmatpush1.msra.mxu0 0.0
    %4671 = vmatprep.subr.mxu0 0.0
    %4672 = vmatpush1.msra.mxu0 0.0
    %4673 = vmatprep.subr.mxu0 0.0
    %4674 = vmatpush1.msra.mxu0 0.0
    %4675 = vmatprep.subr.mxu0 0.0
    %4676 = vmatpush1.msra.mxu0 0.0
    %4677 = vmatprep.subr.mxu0 0.0
    %4678 = vmatpush1.msra.mxu0 0.0
    %4679 = vmatprep.subr.mxu0 0.0
    %4680 = vmatpush1.msra.mxu0 0.0
    %4681 = vmatprep.subr.mxu0 0.0
    %4682 = vmatpush1.msra.mxu0 0.0
    %4683 = vmatprep.subr.mxu0 0.0
    %4684 = vmatpush1.msra.mxu0 0.0
    %4685 = vmatprep.subr.mxu0 0.0
    %4686 = vmatpush1.msra.mxu0 0.0
    %4687 = vmatprep.subr.mxu0 0.0
    %4688 = vmatpush1.msra.mxu0 0.0
    %4689 = vmatprep.subr.mxu0 0.0
    %4690 = vmatpush1.msra.mxu0 0.0
    %4691 = vmatprep.mubr.f32.mxu0 0.0
    %4692 = vmatmul.mubr.f32.gmra.mrb[0].mxu0 %v4625
    %v4693 = vpop.f32.mrb[0].mxu0
    %v4694 = vadd.f32 0.0, %v4693
    %v4695 = vpop.f32.mrb[0].mxu0
    %4696 = vdwg.mxu0
    %4697 = vmatprep.subr.mxu0 0.0
    %4698 = vmatpush1.xpose.msra.mxu0 %v4398
    %4699 = vmatprep.subr.mxu0 0.0
    %4700 = vmatpush1.xpose.msra.mxu0 0.0
    %4701 = vmatprep.subr.mxu0 0.0
    %4702 = vmatpush1.xpose.msra.mxu0 0.0
    %4703 = vmatprep.subr.mxu0 0.0
    %4704 = vmatpush1.xpose.msra.mxu0 0.0
    %4705 = vmatprep.subr.mxu0 0.0
    %4706 = vmatpush1.xpose.msra.mxu0 0.0
    %4707 = vmatprep.subr.mxu0 0.0
    %4708 = vmatpush1.xpose.msra.mxu0 0.0
    %4709 = vmatprep.subr.mxu0 0.0
    %4710 = vmatpush1.xpose.msra.mxu0 0.0
    %4711 = vmatprep.subr.mxu0 0.0
    %4712 = vmatpush1.xpose.msra.mxu0 0.0
    %4713 = vmatprep.subr.mxu0 0.0
    %4714 = vmatpush1.xpose.msra.mxu0 0.0
    %4715 = vmatprep.subr.mxu0 0.0
    %4716 = vmatpush1.xpose.msra.mxu0 0.0
    %4717 = vmatprep.subr.mxu0 0.0
    %4718 = vmatpush1.xpose.msra.mxu0 0.0
    %4719 = vmatprep.subr.mxu0 0.0
    %4720 = vmatpush1.xpose.msra.mxu0 0.0
    %4721 = vmatprep.subr.mxu0 0.0
    %4722 = vmatpush1.xpose.msra.mxu0 0.0
    %4723 = vmatprep.subr.mxu0 0.0
    %4724 = vmatpush1.xpose.msra.mxu0 0.0
    %4725 = vmatprep.subr.mxu0 0.0
    %4726 = vmatpush1.xpose.msra.mxu0 0.0
    %4727 = vmatprep.subr.mxu0 0.0
    %4728 = vmatpush1.xpose.msra.mxu0 0.0
    %4729 = vmatprep.subr.mxu0 0.0
    %4730 = vmatpush1.xpose.msra.mxu0 0.0
    %4731 = vmatprep.subr.mxu0 0.0
    %4732 = vmatpush1.xpose.msra.mxu0 0.0
    %4733 = vmatprep.subr.mxu0 0.0
    %4734 = vmatpush1.xpose.msra.mxu0 0.0
    %4735 = vmatprep.subr.mxu0 0.0
    %4736 = vmatpush1.xpose.msra.mxu0 0.0
    %4737 = vmatprep.subr.mxu0 0.0
    %4738 = vmatpush1.xpose.msra.mxu0 0.0
    %4739 = vmatprep.subr.mxu0 0.0
    %4740 = vmatpush1.xpose.msra.mxu0 0.0
    %4741 = vmatprep.subr.mxu0 0.0
    %4742 = vmatpush1.xpose.msra.mxu0 0.0
    %4743 = vmatprep.subr.mxu0 0.0
    %4744 = vmatpush1.xpose.msra.mxu0 0.0
    %4745 = vmatprep.subr.mxu0 0.0
    %4746 = vmatpush1.xpose.msra.mxu0 0.0
    %4747 = vmatprep.subr.mxu0 0.0
    %4748 = vmatpush1.xpose.msra.mxu0 0.0
    %4749 = vmatprep.subr.mxu0 0.0
    %4750 = vmatpush1.xpose.msra.mxu0 0.0
    %4751 = vmatprep.subr.mxu0 0.0
    %4752 = vmatpush1.xpose.msra.mxu0 0.0
    %4753 = vmatprep.subr.mxu0 0.0
    %4754 = vmatpush1.xpose.msra.mxu0 0.0
    %4755 = vmatprep.subr.mxu0 0.0
    %4756 = vmatpush1.xpose.msra.mxu0 0.0
    %4757 = vmatprep.subr.mxu0 0.0
    %4758 = vmatpush1.xpose.msra.mxu0 0.0
    %4759 = vmatprep.subr.mxu0 0.0
    %4760 = vmatpush1.xpose.msra.mxu0 0.0
    %4761 = vmatprep.mubr.f32.mxu0 0.0
    %4762 = vmatmul.mubr.f32.gmra.mrb[0].mxu0 %v4258
    %v4763 = vpop.f32.mrb[0].mxu0
    %v4764 = vadd.f32 %v1108, %v4763
    %v4765 = vpop.f32.mrb[0].mxu0
    %4766 = vdwg.mxu0
    %v4767 = vsel %vm1180, %v4764, -inf
    %4768 = vmax.xlane.f32.xlu0 %v4767
    %v4769 = vpop.xlane.xlu0 %4768
    %v4770 = vsub.f32 %v4764, %v4769
    %v4771 = vmul.f32 %v4770, 1.442695
    %v4772 = vpow.pop %v4771
    %v4773 = vsel %vm1180, %v4772, 0.0
    %4774 = vadd.xlane.f32.xlu0 %v4773
    %v4775 = vpop.xlane.xlu0 %4774
    %v4776 = vrcp.pop %v4775
    %v4777 = vmul.f32 %v4772, %v4776
    %v4779 = vsel %vm1180, %v4777, 0
    %4781 = vmatprep.subr.mxu0 0.0
    %4782 = vmatpush1.msra.mxu0 %v4471
    %4783 = vmatprep.subr.mxu0 0.0
    %4784 = vmatpush1.msra.mxu0 0.0
    %4785 = vmatprep.subr.mxu0 0.0
    %4786 = vmatpush1.msra.mxu0 0.0
    %4787 = vmatprep.subr.mxu0 0.0
    %4788 = vmatpush1.msra.mxu0 0.0
    %4789 = vmatprep.subr.mxu0 0.0
    %4790 = vmatpush1.msra.mxu0 0.0
    %4791 = vmatprep.subr.mxu0 0.0
    %4792 = vmatpush1.msra.mxu0 0.0
    %4793 = vmatprep.subr.mxu0 0.0
    %4794 = vmatpush1.msra.mxu0 0.0
    %4795 = vmatprep.subr.mxu0 0.0
    %4796 = vmatpush1.msra.mxu0 0.0
    %4797 = vmatprep.subr.mxu0 0.0
    %4798 = vmatpush1.msra.mxu0 0.0
    %4799 = vmatprep.subr.mxu0 0.0
    %4800 = vmatpush1.msra.mxu0 0.0
    %4801 = vmatprep.subr.mxu0 0.0
    %4802 = vmatpush1.msra.mxu0 0.0
    %4803 = vmatprep.subr.mxu0 0.0
    %4804 = vmatpush1.msra.mxu0 0.0
    %4805 = vmatprep.subr.mxu0 0.0
    %4806 = vmatpush1.msra.mxu0 0.0
    %4807 = vmatprep.subr.mxu0 0.0
    %4808 = vmatpush1.msra.mxu0 0.0
    %4809 = vmatprep.subr.mxu0 0.0
    %4810 = vmatpush1.msra.mxu0 0.0
    %4811 = vmatprep.subr.mxu0 0.0
    %4812 = vmatpush1.msra.mxu0 0.0
    %4813 = vmatprep.subr.mxu0 0.0
    %4814 = vmatpush1.msra.mxu0 0.0
    %4815 = vmatprep.subr.mxu0 0.0
    %4816 = vmatpush1.msra.mxu0 0.0
    %4817 = vmatprep.subr.mxu0 0.0
    %4818 = vmatpush1.msra.mxu0 0.0
    %4819 = vmatprep.subr.mxu0 0.0
    %4820 = vmatpush1.msra.mxu0 0.0
    %4821 = vmatprep.subr.mxu0 0.0
    %4822 = vmatpush1.msra.mxu0 0.0
    %4823 = vmatprep.subr.mxu0 0.0
    %4824 = vmatpush1.msra.mxu0 0.0
    %4825 = vmatprep.subr.mxu0 0.0
    %4826 = vmatpush1.msra.mxu0 0.0
    %4827 = vmatprep.subr.mxu0 0.0
    %4828 = vmatpush1.msra.mxu0 0.0
    %4829 = vmatprep.subr.mxu0 0.0
    %4830 = vmatpush1.msra.mxu0 0.0
    %4831 = vmatprep.subr.mxu0 0.0
    %4832 = vmatpush1.msra.mxu0 0.0
    %4833 = vmatprep.subr.mxu0 0.0
    %4834 = vmatpush1.msra.mxu0 0.0
    %4835 = vmatprep.subr.mxu0 0.0
    %4836 = vmatpush1.msra.mxu0 0.0
    %4837 = vmatprep.subr.mxu0 0.0
    %4838 = vmatpush1.msra.mxu0 0.0
    %4839 = vmatprep.subr.mxu0 0.0
    %4840 = vmatpush1.msra.mxu0 0.0
    %4841 = vmatprep.subr.mxu0 0.0
    %4842 = vmatpush1.msra.mxu0 0.0
    %4843 = vmatprep.subr.mxu0 0.0
    %4844 = vmatpush1.msra.mxu0 0.0
    %4845 = vmatprep.mubr.f32.mxu0 0.0
    %4846 = vmatmul.mubr.f32.gmra.mrb[0].mxu0 %v4779
    %v4847 = vpop.f32.mrb[0].mxu0
    %v4848 = vadd.f32 0.0, %v4847
    %v4849 = vpop.f32.mrb[0].mxu0
    %4850 = vdwg.mxu0
    %4851 = vmatprep.subr.mxu0 0.0
    %4852 = vmatpush1.xpose.msra.mxu0 %v4400
    %4853 = vmatprep.subr.mxu0 0.0
    %4854 = vmatpush1.xpose.msra.mxu0 0.0
    %4855 = vmatprep.subr.mxu0 0.0
    %4856 = vmatpush1.xpose.msra.mxu0 0.0
    %4857 = vmatprep.subr.mxu0 0.0
    %4858 = vmatpush1.xpose.msra.mxu0 0.0
    %4859 = vmatprep.subr.mxu0 0.0
    %4860 = vmatpush1.xpose.msra.mxu0 0.0
    %4861 = vmatprep.subr.mxu0 0.0
    %4862 = vmatpush1.xpose.msra.mxu0 0.0
    %4863 = vmatprep.subr.mxu0 0.0
    %4864 = vmatpush1.xpose.msra.mxu0 0.0
    %4865 = vmatprep.subr.mxu0 0.0
    %4866 = vmatpush1.xpose.msra.mxu0 0.0
    %4867 = vmatprep.subr.mxu0 0.0
    %4868 = vmatpush1.xpose.msra.mxu0 0.0
    %4869 = vmatprep.subr.mxu0 0.0
    %4870 = vmatpush1.xpose.msra.mxu0 0.0
    %4871 = vmatprep.subr.mxu0 0.0
    %4872 = vmatpush1.xpose.msra.mxu0 0.0
    %4873 = vmatprep.subr.mxu0 0.0
    %4874 = vmatpush1.xpose.msra.mxu0 0.0
    %4875 = vmatprep.subr.mxu0 0.0
    %4876 = vmatpush1.xpose.msra.mxu0 0.0
    %4877 = vmatprep.subr.mxu0 0.0
    %4878 = vmatpush1.xpose.msra.mxu0 0.0
    %4879 = vmatprep.subr.mxu0 0.0
    %4880 = vmatpush1.xpose.msra.mxu0 0.0
    %4881 = vmatprep.subr.mxu0 0.0
    %4882 = vmatpush1.xpose.msra.mxu0 0.0
    %4883 = vmatprep.subr.mxu0 0.0
    %4884 = vmatpush1.xpose.msra.mxu0 0.0
    %4885 = vmatprep.subr.mxu0 0.0
    %4886 = vmatpush1.xpose.msra.mxu0 0.0
    %4887 = vmatprep.subr.mxu0 0.0
    %4888 = vmatpush1.xpose.msra.mxu0 0.0
    %4889 = vmatprep.subr.mxu0 0.0
    %4890 = vmatpush1.xpose.msra.mxu0 0.0
    %4891 = vmatprep.subr.mxu0 0.0
    %4892 = vmatpush1.xpose.msra.mxu0 0.0
    %4893 = vmatprep.subr.mxu0 0.0
    %4894 = vmatpush1.xpose.msra.mxu0 0.0
    %4895 = vmatprep.subr.mxu0 0.0
    %4896 = vmatpush1.xpose.msra.mxu0 0.0
    %4897 = vmatprep.subr.mxu0 0.0
    %4898 = vmatpush1.xpose.msra.mxu0 0.0
    %4899 = vmatprep.subr.mxu0 0.0
    %4900 = vmatpush1.xpose.msra.mxu0 0.0
    %4901 = vmatprep.subr.mxu0 0.0
    %4902 = vmatpush1.xpose.msra.mxu0 0.0
    %4903 = vmatprep.subr.mxu0 0.0
    %4904 = vmatpush1.xpose.msra.mxu0 0.0
    %4905 = vmatprep.subr.mxu0 0.0
    %4906 = vmatpush1.xpose.msra.mxu0 0.0
    %4907 = vmatprep.subr.mxu0 0.0
    %4908 = vmatpush1.xpose.msra.mxu0 0.0
    %4909 = vmatprep.subr.mxu0 0.0
    %4910 = vmatpush1.xpose.msra.mxu0 0.0
    %4911 = vmatprep.subr.mxu0 0.0
    %4912 = vmatpush1.xpose.msra.mxu0 0.0
    %4913 = vmatprep.subr.mxu0 0.0
    %4914 = vmatpush1.xpose.msra.mxu0 0.0
    %4915 = vmatprep.mubr.f32.mxu0 0.0
    %4916 = vmatmul.mubr.f32.gmra.mrb[0].mxu0 %v4327
    %v4917 = vpop.f32.mrb[0].mxu0
    %v4918 = vadd.f32 %v1108, %v4917
    %v4919 = vpop.f32.mrb[0].mxu0
    %4920 = vdwg.mxu0
    %v4921 = vsel %vm1180, %v4918, -inf
    %4922 = vmax.xlane.f32.xlu0 %v4921
    %v4923 = vpop.xlane.xlu0 %4922
    %v4924 = vsub.f32 %v4918, %v4923
    %v4925 = vmul.f32 %v4924, 1.442695
    %v4926 = vpow.pop %v4925
    %v4927 = vsel %vm1180, %v4926, 0.0
    %4928 = vadd.xlane.f32.xlu0 %v4927
    %v4929 = vpop.xlane.xlu0 %4928
    %v4930 = vrcp.pop %v4929
    %v4931 = vmul.f32 %v4926, %v4930
    %v4933 = vsel %vm1180, %v4931, 0
    %4935 = vmatprep.subr.mxu0 0.0
    %4936 = vmatpush1.msra.mxu0 %v4540
    %4937 = vmatprep.subr.mxu0 0.0
    %4938 = vmatpush1.msra.mxu0 0.0
    %4939 = vmatprep.subr.mxu0 0.0
    %4940 = vmatpush1.msra.mxu0 0.0
    %4941 = vmatprep.subr.mxu0 0.0
    %4942 = vmatpush1.msra.mxu0 0.0
    %4943 = vmatprep.subr.mxu0 0.0
    %4944 = vmatpush1.msra.mxu0 0.0
    %4945 = vmatprep.subr.mxu0 0.0
    %4946 = vmatpush1.msra.mxu0 0.0
    %4947 = vmatprep.subr.mxu0 0.0
    %4948 = vmatpush1.msra.mxu0 0.0
    %4949 = vmatprep.subr.mxu0 0.0
    %4950 = vmatpush1.msra.mxu0 0.0
    %4951 = vmatprep.subr.mxu0 0.0
    %4952 = vmatpush1.msra.mxu0 0.0
    %4953 = vmatprep.subr.mxu0 0.0
    %4954 = vmatpush1.msra.mxu0 0.0
    %4955 = vmatprep.subr.mxu0 0.0
    %4956 = vmatpush1.msra.mxu0 0.0
    %4957 = vmatprep.subr.mxu0 0.0
    %4958 = vmatpush1.msra.mxu0 0.0
    %4959 = vmatprep.subr.mxu0 0.0
    %4960 = vmatpush1.msra.mxu0 0.0
    %4961 = vmatprep.subr.mxu0 0.0
    %4962 = vmatpush1.msra.mxu0 0.0
    %4963 = vmatprep.subr.mxu0 0.0
    %4964 = vmatpush1.msra.mxu0 0.0
    %4965 = vmatprep.subr.mxu0 0.0
    %4966 = vmatpush1.msra.mxu0 0.0
    %4967 = vmatprep.subr.mxu0 0.0
    %4968 = vmatpush1.msra.mxu0 0.0
    %4969 = vmatprep.subr.mxu0 0.0
    %4970 = vmatpush1.msra.mxu0 0.0
    %4971 = vmatprep.subr.mxu0 0.0
    %4972 = vmatpush1.msra.mxu0 0.0
    %4973 = vmatprep.subr.mxu0 0.0
    %4974 = vmatpush1.msra.mxu0 0.0
    %4975 = vmatprep.subr.mxu0 0.0
    %4976 = vmatpush1.msra.mxu0 0.0
    %4977 = vmatprep.subr.mxu0 0.0
    %4978 = vmatpush1.msra.mxu0 0.0
    %4979 = vmatprep.subr.mxu0 0.0
    %4980 = vmatpush1.msra.mxu0 0.0
    %4981 = vmatprep.subr.mxu0 0.0
    %4982 = vmatpush1.msra.mxu0 0.0
    %4983 = vmatprep.subr.mxu0 0.0
    %4984 = vmatpush1.msra.mxu0 0.0
    %4985 = vmatprep.subr.mxu0 0.0
    %4986 = vmatpush1.msra.mxu0 0.0
    %4987 = vmatprep.subr.mxu0 0.0
    %4988 = vmatpush1.msra.mxu0 0.0
    %4989 = vmatprep.subr.mxu0 0.0
    %4990 = vmatpush1.msra.mxu0 0.0
    %4991 = vmatprep.subr.mxu0 0.0
    %4992 = vmatpush1.msra.mxu0 0.0
    %4993 = vmatprep.subr.mxu0 0.0
    %4994 = vmatpush1.msra.mxu0 0.0
    %4995 = vmatprep.subr.mxu0 0.0
    %4996 = vmatpush1.msra.mxu0 0.0
    %4997 = vmatprep.subr.mxu0 0.0
    %4998 = vmatpush1.msra.mxu0 0.0
    %4999 = vmatprep.mubr.f32.mxu0 0.0
    %5000 = vmatmul.mubr.f32.gmra.mrb[0].mxu0 %v4933
    %v5001 = vpop.f32.mrb[0].mxu0
    %v5002 = vadd.f32 0.0, %v5001
    %v5003 = vpop.f32.mrb[0].mxu0
    %5004 = vdwg.mxu0
    %s5005 = scalar_lea.vmem [#allocation15], 768
    %v5006 = vld [vmem:[%s5005] sm:$0xff]
    %v5007 = vld [vmem:[%s5005 + $0x8] sm:$0xff]
    %v5008 = vld [vmem:[%s5005 + $0x10] sm:$0xff]
    %v5009 = vld [vmem:[%s5005 + $0x18] sm:$0xff]
    %v5010 = vld [vmem:[%s5005 + $0x20] sm:$0xff]
    %v5011 = vld [vmem:[%s5005 + $0x28] sm:$0xff]
    %v5012 = vld [vmem:[%s5005 + $0x30] sm:$0xff]
    %v5013 = vld [vmem:[%s5005 + $0x38] sm:$0xff]
    %v5014 = vld [vmem:[%s5005 + $0x40] sm:$0xff]
    %v5015 = vld [vmem:[%s5005 + $0x48] sm:$0xff]
    %v5016 = vld [vmem:[%s5005 + $0x50] sm:$0xff]
    %v5017 = vld [vmem:[%s5005 + $0x58] sm:$0xff]
    %v5018 = vld [vmem:[%s5005 + $0x60] sm:$0xff]
    %v5019 = vld [vmem:[%s5005 + $0x68] sm:$0xff]
    %v5020 = vld [vmem:[%s5005 + $0x70] sm:$0xff]
    %v5021 = vld [vmem:[%s5005 + $0x78] sm:$0xff]
    %v5022 = vld [vmem:[%s5005 + $0x80] sm:$0xff]
    %v5023 = vld [vmem:[%s5005 + $0x88] sm:$0xff]
    %v5024 = vld [vmem:[%s5005 + $0x90] sm:$0xff]
    %v5025 = vld [vmem:[%s5005 + $0x98] sm:$0xff]
    %v5026 = vld [vmem:[%s5005 + $0xa0] sm:$0xff]
    %v5027 = vld [vmem:[%s5005 + $0xa8] sm:$0xff]
    %v5028 = vld [vmem:[%s5005 + $0xb0] sm:$0xff]
    %v5029 = vld [vmem:[%s5005 + $0xb8] sm:$0xff]
    %v5030 = vld [vmem:[%s5005 + $0xc0] sm:$0xff]
    %v5031 = vld [vmem:[%s5005 + $0xc8] sm:$0xff]
    %v5032 = vld [vmem:[%s5005 + $0xd0] sm:$0xff]
    %v5033 = vld [vmem:[%s5005 + $0xd8] sm:$0xff]
    %v5034 = vld [vmem:[%s5005 + $0xe0] sm:$0xff]
    %v5035 = vld [vmem:[%s5005 + $0xe8] sm:$0xff]
    %v5036 = vld [vmem:[%s5005 + $0xf0] sm:$0xff]
    %v5037 = vld [vmem:[%s5005 + $0xf8] sm:$0xff]
    %v5038 = vld [vmem:[%s5005 + $0x100] sm:$0xff]
    %v5039 = vld [vmem:[%s5005 + $0x108] sm:$0xff]
    %v5040 = vld [vmem:[%s5005 + $0x110] sm:$0xff]
    %v5041 = vld [vmem:[%s5005 + $0x118] sm:$0xff]
    %v5042 = vld [vmem:[%s5005 + $0x120] sm:$0xff]
    %v5043 = vld [vmem:[%s5005 + $0x128] sm:$0xff]
    %v5044 = vld [vmem:[%s5005 + $0x130] sm:$0xff]
    %v5045 = vld [vmem:[%s5005 + $0x138] sm:$0xff]
    %v5046 = vld [vmem:[%s5005 + $0x140] sm:$0xff]
    %v5047 = vld [vmem:[%s5005 + $0x148] sm:$0xff]
    %v5048 = vld [vmem:[%s5005 + $0x150] sm:$0xff]
    %v5049 = vld [vmem:[%s5005 + $0x158] sm:$0xff]
    %v5050 = vld [vmem:[%s5005 + $0x160] sm:$0xff]
    %v5051 = vld [vmem:[%s5005 + $0x168] sm:$0xff]
    %v5052 = vld [vmem:[%s5005 + $0x170] sm:$0xff]
    %v5053 = vld [vmem:[%s5005 + $0x178] sm:$0xff]
    %s5054 = scalar_lea.vmem [#allocation16], 2
    %v5055 = vld [vmem:[%s5054] sm:$0x1]
    %v5057 = vlaneseq
    %v5058 = vshrl.u32 %v5057, 7
    %v5059 = vsub.s32 0, %v5058
    %v5060 = vrot.slane %v5055, %v5059
    %5062 = vmatprep.subr.mxu0 0.0
    %5063 = vmatpush1.msra.mxu0 %v5006
    %5064 = vmatprep.subr.mxu0 0.0
    %5065 = vmatpush1.msra.mxu0 %v5007
    %5066 = vmatprep.subr.mxu0 0.0
    %5067 = vmatpush1.msra.mxu0 %v5008
    %5068 = vmatprep.subr.mxu0 0.0
    %5069 = vmatpush1.msra.mxu0 %v5009
    %5070 = vmatprep.subr.mxu0 0.0
    %5071 = vmatpush1.msra.mxu0 %v5010
    %5072 = vmatprep.subr.mxu0 0.0
    %5073 = vmatpush1.msra.mxu0 %v5011
    %5074 = vmatprep.subr.mxu0 0.0
    %5075 = vmatpush1.msra.mxu0 %v5012
    %5076 = vmatprep.subr.mxu0 0.0
    %5077 = vmatpush1.msra.mxu0 %v5013
    %5078 = vmatprep.subr.mxu0 0.0
    %5079 = vmatpush1.msra.mxu0 %v5014
    %5080 = vmatprep.subr.mxu0 0.0
    %5081 = vmatpush1.msra.mxu0 %v5015
    %5082 = vmatprep.subr.mxu0 0.0
    %5083 = vmatpush1.msra.mxu0 %v5016
    %5084 = vmatprep.subr.mxu0 0.0
    %5085 = vmatpush1.msra.mxu0 %v5017
    %5086 = vmatprep.subr.mxu0 0.0
    %5087 = vmatpush1.msra.mxu0 %v5018
    %5088 = vmatprep.subr.mxu0 0.0
    %5089 = vmatpush1.msra.mxu0 %v5019
    %5090 = vmatprep.subr.mxu0 0.0
    %5091 = vmatpush1.msra.mxu0 %v5020
    %5092 = vmatprep.subr.mxu0 0.0
    %5093 = vmatpush1.msra.mxu0 %v5021
    %5094 = vmatprep.subr.mxu0 0.0
    %5095 = vmatpush1.msra.mxu0 %v5022
    %5096 = vmatprep.subr.mxu0 0.0
    %5097 = vmatpush1.msra.mxu0 %v5023
    %5098 = vmatprep.subr.mxu0 0.0
    %5099 = vmatpush1.msra.mxu0 %v5024
    %5100 = vmatprep.subr.mxu0 0.0
    %5101 = vmatpush1.msra.mxu0 %v5025
    %5102 = vmatprep.subr.mxu0 0.0
    %5103 = vmatpush1.msra.mxu0 %v5026
    %5104 = vmatprep.subr.mxu0 0.0
    %5105 = vmatpush1.msra.mxu0 %v5027
    %5106 = vmatprep.subr.mxu0 0.0
    %5107 = vmatpush1.msra.mxu0 %v5028
    %5108 = vmatprep.subr.mxu0 0.0
    %5109 = vmatpush1.msra.mxu0 %v5029
    %5110 = vmatprep.subr.mxu0 0.0
    %5111 = vmatpush1.msra.mxu0 %v5030
    %5112 = vmatprep.subr.mxu0 0.0
    %5113 = vmatpush1.msra.mxu0 %v5031
    %5114 = vmatprep.subr.mxu0 0.0
    %5115 = vmatpush1.msra.mxu0 %v5032
    %5116 = vmatprep.subr.mxu0 0.0
    %5117 = vmatpush1.msra.mxu0 %v5033
    %5118 = vmatprep.subr.mxu0 0.0
    %5119 = vmatpush1.msra.mxu0 %v5034
    %5120 = vmatprep.subr.mxu0 0.0
    %5121 = vmatpush1.msra.mxu0 %v5035
    %5122 = vmatprep.subr.mxu0 0.0
    %5123 = vmatpush1.msra.mxu0 %v5036
    %5124 = vmatprep.subr.mxu0 0.0
    %5125 = vmatpush1.msra.mxu0 %v5037
    %5126 = vmatprep.mubr.f32.mxu0 %v4848
    %5127 = vmatmul.mubr.f32.gmra.mrb[0].mxu0 %v4694
    %v5128 = vpop.f32.mrb[0].mxu0
    %v5129 = vadd.f32 %v5060, %v5128
    %v5130 = vpop.f32.mrb[0].mxu0
    %5131 = vdwg.mxu0
    %5132 = vmatprep.subr.mxu0 0.0
    %5133 = vmatpush1.msra.mxu0 %v5038
    %5134 = vmatprep.subr.mxu0 0.0
    %5135 = vmatpush1.msra.mxu0 %v5039
    %5136 = vmatprep.subr.mxu0 0.0
    %5137 = vmatpush1.msra.mxu0 %v5040
    %5138 = vmatprep.subr.mxu0 0.0
    %5139 = vmatpush1.msra.mxu0 %v5041
    %5140 = vmatprep.subr.mxu0 0.0
    %5141 = vmatpush1.msra.mxu0 %v5042
    %5142 = vmatprep.subr.mxu0 0.0
    %5143 = vmatpush1.msra.mxu0 %v5043
    %5144 = vmatprep.subr.mxu0 0.0
    %5145 = vmatpush1.msra.mxu0 %v5044
    %5146 = vmatprep.subr.mxu0 0.0
    %5147 = vmatpush1.msra.mxu0 %v5045
    %5148 = vmatprep.subr.mxu0 0.0
    %5149 = vmatpush1.msra.mxu0 %v5046
    %5150 = vmatprep.subr.mxu0 0.0
    %5151 = vmatpush1.msra.mxu0 %v5047
    %5152 = vmatprep.subr.mxu0 0.0
    %5153 = vmatpush1.msra.mxu0 %v5048
    %5154 = vmatprep.subr.mxu0 0.0
    %5155 = vmatpush1.msra.mxu0 %v5049
    %5156 = vmatprep.subr.mxu0 0.0
    %5157 = vmatpush1.msra.mxu0 %v5050
    %5158 = vmatprep.subr.mxu0 0.0
    %5159 = vmatpush1.msra.mxu0 %v5051
    %5160 = vmatprep.subr.mxu0 0.0
    %5161 = vmatpush1.msra.mxu0 %v5052
    %5162 = vmatprep.subr.mxu0 0.0
    %5163 = vmatpush1.msra.mxu0 %v5053
    %5164 = vmatprep.subr.mxu0 0.0
    %5165 = vmatpush1.msra.mxu0 0.0
    %5166 = vmatprep.subr.mxu0 0.0
    %5167 = vmatpush1.msra.mxu0 0.0
    %5168 = vmatprep.subr.mxu0 0.0
    %5169 = vmatpush1.msra.mxu0 0.0
    %5170 = vmatprep.subr.mxu0 0.0
    %5171 = vmatpush1.msra.mxu0 0.0
    %5172 = vmatprep.subr.mxu0 0.0
    %5173 = vmatpush1.msra.mxu0 0.0
    %5174 = vmatprep.subr.mxu0 0.0
    %5175 = vmatpush1.msra.mxu0 0.0
    %5176 = vmatprep.subr.mxu0 0.0
    %5177 = vmatpush1.msra.mxu0 0.0
    %5178 = vmatprep.subr.mxu0 0.0
    %5179 = vmatpush1.msra.mxu0 0.0
    %5180 = vmatprep.subr.mxu0 0.0
    %5181 = vmatpush1.msra.mxu0 0.0
    %5182 = vmatprep.subr.mxu0 0.0
    %5183 = vmatpush1.msra.mxu0 0.0
    %5184 = vmatprep.subr.mxu0 0.0
    %5185 = vmatpush1.msra.mxu0 0.0
    %5186 = vmatprep.subr.mxu0 0.0
    %5187 = vmatpush1.msra.mxu0 0.0
    %5188 = vmatprep.subr.mxu0 0.0
    %5189 = vmatpush1.msra.mxu0 0.0
    %5190 = vmatprep.subr.mxu0 0.0
    %5191 = vmatpush1.msra.mxu0 0.0
    %5192 = vmatprep.subr.mxu0 0.0
    %5193 = vmatpush1.msra.mxu0 0.0
    %5194 = vmatprep.subr.mxu0 0.0
    %5195 = vmatpush1.msra.mxu0 0.0
    %5196 = vmatprep.mubr.f32.mxu0 0.0
    %5197 = vmatmul.mubr.f32.gmra.mrb[0].mxu0 %v5002
    %v5198 = vpop.f32.mrb[0].mxu0
    %v5199 = vadd.f32 %v5129, %v5198
    %v5200 = vpop.f32.mrb[0].mxu0
    %5201 = vdwg.mxu0
    %v5202 = vadd.f32 %v3993, %v5199
    %s5203 = scalar_lea.vmem [#allocation18], 2
    %v5204 = vld [vmem:[%s5203] sm:$0x1]
    %s5205 = scalar_lea.vmem [#allocation19], 2
    %v5206 = vld [vmem:[%s5205] sm:$0x1]
    %5207 = vadd.xlane.f32.xlu0 %v5202
    %v5208 = vpop.xlane.xlu0 %5207
    %v5209 = vmul.f32 %v5202, %v5202
    %5210 = vadd.xlane.f32.xlu0 %v5209
    %v5211 = vpop.xlane.xlu0 %5210
    %v5212 = vmul.f32 %v5208, 0.033333335
    %v5213 = vmul.f32 %v5211, 0.033333335
    %v5214 = vmul.f32 %v5212, %v5212
    %v5215 = vsub.f32 %v5213, %v5214
    %v5216 = vmax.f32 %v5215, 0.0
    %v5217 = vsub.f32 %v5202, %v5212
    %v5218 = vadd.f32 %v5216, 1e-05
    %v5219 = vrsqrt.pop %v5218
    %v5220 = vmul.f32 %v5217, %v5219
    %v5222 = vlaneseq
    %v5223 = vshrl.u32 %v5222, 7
    %v5224 = vsub.s32 0, %v5223
    %v5225 = vrot.slane %v5204, %v5224
    %v5227 = vmul.f32 %v5220, %v5225
    %v5229 = vlaneseq
    %v5230 = vshrl.u32 %v5229, 7
    %v5231 = vsub.s32 0, %v5230
    %v5232 = vrot.slane %v5206, %v5231
    %v5234 = vadd.f32 %v5227, %v5232
    %s5235 = scalar_lea.vmem [#allocation21], 1024
    %v5236 = vld [vmem:[%s5235] sm:$0xff]
    %v5237 = vld [vmem:[%s5235 + $0x8] sm:$0xff]
    %v5238 = vld [vmem:[%s5235 + $0x10] sm:$0xff]
    %v5239 = vld [vmem:[%s5235 + $0x18] sm:$0xff]
    %v5240 = vld [vmem:[%s5235 + $0x20] sm:$0xff]
    %v5241 = vld [vmem:[%s5235 + $0x28] sm:$0xff]
    %v5242 = vld [vmem:[%s5235 + $0x30] sm:$0xff]
    %v5243 = vld [vmem:[%s5235 + $0x38] sm:$0xff]
    %v5244 = vld [vmem:[%s5235 + $0x40] sm:$0xff]
    %v5245 = vld [vmem:[%s5235 + $0x48] sm:$0xff]
    %v5246 = vld [vmem:[%s5235 + $0x50] sm:$0xff]
    %v5247 = vld [vmem:[%s5235 + $0x58] sm:$0xff]
    %v5248 = vld [vmem:[%s5235 + $0x60] sm:$0xff]
    %v5249 = vld [vmem:[%s5235 + $0x68] sm:$0xff]
    %v5250 = vld [vmem:[%s5235 + $0x70] sm:$0xff]
    %v5251 = vld [vmem:[%s5235 + $0x78] sm:$0xff]
    %v5252 = vld [vmem:[%s5235 + $0x80] sm:$0xff]
    %v5253 = vld [vmem:[%s5235 + $0x88] sm:$0xff]
    %v5254 = vld [vmem:[%s5235 + $0x90] sm:$0xff]
    %v5255 = vld [vmem:[%s5235 + $0x98] sm:$0xff]
    %v5256 = vld [vmem:[%s5235 + $0xa0] sm:$0xff]
    %v5257 = vld [vmem:[%s5235 + $0xa8] sm:$0xff]
    %v5258 = vld [vmem:[%s5235 + $0xb0] sm:$0xff]
    %v5259 = vld [vmem:[%s5235 + $0xb8] sm:$0xff]
    %v5260 = vld [vmem:[%s5235 + $0xc0] sm:$0xff]
    %v5261 = vld [vmem:[%s5235 + $0xc8] sm:$0xff]
    %v5262 = vld [vmem:[%s5235 + $0xd0] sm:$0xff]
    %v5263 = vld [vmem:[%s5235 + $0xd8] sm:$0xff]
    %v5264 = vld [vmem:[%s5235 + $0xe0] sm:$0xff]
    %v5265 = vld [vmem:[%s5235 + $0xe8] sm:$0xff]
    %v5266 = vld [vmem:[%s5235 + $0xf0] sm:$0xff]
    %v5267 = vld [vmem:[%s5235 + $0xf8] sm:$0xff]
    %v5268 = vld [vmem:[%s5235 + $0x100] sm:$0xff]
    %v5269 = vld [vmem:[%s5235 + $0x108] sm:$0xff]
    %v5270 = vld [vmem:[%s5235 + $0x110] sm:$0xff]
    %v5271 = vld [vmem:[%s5235 + $0x118] sm:$0xff]
    %v5272 = vld [vmem:[%s5235 + $0x120] sm:$0xff]
    %v5273 = vld [vmem:[%s5235 + $0x128] sm:$0xff]
    %v5274 = vld [vmem:[%s5235 + $0x130] sm:$0xff]
    %v5275 = vld [vmem:[%s5235 + $0x138] sm:$0xff]
    %v5276 = vld [vmem:[%s5235 + $0x140] sm:$0xff]
    %v5277 = vld [vmem:[%s5235 + $0x148] sm:$0xff]
    %v5278 = vld [vmem:[%s5235 + $0x150] sm:$0xff]
    %v5279 = vld [vmem:[%s5235 + $0x158] sm:$0xff]
    %v5280 = vld [vmem:[%s5235 + $0x160] sm:$0xff]
    %v5281 = vld [vmem:[%s5235 + $0x168] sm:$0xff]
    %v5282 = vld [vmem:[%s5235 + $0x170] sm:$0xff]
    %v5283 = vld [vmem:[%s5235 + $0x178] sm:$0xff]
    %v5284 = vld [vmem:[%s5235 + $0x180] sm:$0xff]
    %v5285 = vld [vmem:[%s5235 + $0x188] sm:$0xff]
    %v5286 = vld [vmem:[%s5235 + $0x190] sm:$0xff]
    %v5287 = vld [vmem:[%s5235 + $0x198] sm:$0xff]
    %v5288 = vld [vmem:[%s5235 + $0x1a0] sm:$0xff]
    %v5289 = vld [vmem:[%s5235 + $0x1a8] sm:$0xff]
    %v5290 = vld [vmem:[%s5235 + $0x1b0] sm:$0xff]
    %v5291 = vld [vmem:[%s5235 + $0x1b8] sm:$0xff]
    %v5292 = vld [vmem:[%s5235 + $0x1c0] sm:$0xff]
    %v5293 = vld [vmem:[%s5235 + $0x1c8] sm:$0xff]
    %v5294 = vld [vmem:[%s5235 + $0x1d0] sm:$0xff]
    %v5295 = vld [vmem:[%s5235 + $0x1d8] sm:$0xff]
    %v5296 = vld [vmem:[%s5235 + $0x1e0] sm:$0xff]
    %v5297 = vld [vmem:[%s5235 + $0x1e8] sm:$0xff]
    %v5298 = vld [vmem:[%s5235 + $0x1f0] sm:$0xff]
    %v5299 = vld [vmem:[%s5235 + $0x1f8] sm:$0xff]
    %s5300 = scalar_lea.vmem [#allocation22], 8
    %v5301 = vld [vmem:[%s5300] sm:$0xf]
    %v5303 = vlaneseq
    %v5304 = vshrl.u32 %v5303, 7
    %v5305 = vsub.s32 0, %v5304
    %v5306 = vrot.slane %v5301, %v5305
    %v5307 = vlaneseq
    %v5308 = vshrl.u32 %v5307, 7
    %v5309 = vsub.s32 1, %v5308
    %v5310 = vrot.slane %v5301, %v5309
    %v5311 = vlaneseq
    %v5312 = vshrl.u32 %v5311, 7
    %v5313 = vsub.s32 2, %v5312
    %v5314 = vrot.slane %v5301, %v5313
    %v5315 = vlaneseq
    %v5316 = vshrl.u32 %v5315, 7
    %v5317 = vsub.s32 3, %v5316
    %v5318 = vrot.slane %v5301, %v5317
    %5323 = vmatprep.subr.mxu0 %v5237
    %5324 = vmatpush1.msra.mxu0 %v5236
    %5325 = vmatprep.subr.mxu0 %v5241
    %5326 = vmatpush1.msra.mxu0 %v5240
    %5327 = vmatprep.subr.mxu0 %v5245
    %5328 = vmatpush1.msra.mxu0 %v5244
    %5329 = vmatprep.subr.mxu0 %v5249
    %5330 = vmatpush1.msra.mxu0 %v5248
    %5331 = vmatprep.subr.mxu0 %v5253
    %5332 = vmatpush1.msra.mxu0 %v5252
    %5333 = vmatprep.subr.mxu0 %v5257
    %5334 = vmatpush1.msra.mxu0 %v5256
    %5335 = vmatprep.subr.mxu0 %v5261
    %5336 = vmatpush1.msra.mxu0 %v5260
    %5337 = vmatprep.subr.mxu0 %v5265
    %5338 = vmatpush1.msra.mxu0 %v5264
    %5339 = vmatprep.subr.mxu0 %v5269
    %5340 = vmatpush1.msra.mxu0 %v5268
    %5341 = vmatprep.subr.mxu0 %v5273
    %5342 = vmatpush1.msra.mxu0 %v5272
    %5343 = vmatprep.subr.mxu0 %v5277
    %5344 = vmatpush1.msra.mxu0 %v5276
    %5345 = vmatprep.subr.mxu0 %v5281
    %5346 = vmatpush1.msra.mxu0 %v5280
    %5347 = vmatprep.subr.mxu0 %v5285
    %5348 = vmatpush1.msra.mxu0 %v5284
    %5349 = vmatprep.subr.mxu0 %v5289
    %5350 = vmatpush1.msra.mxu0 %v5288
    %5351 = vmatprep.subr.mxu0 %v5293
    %5352 = vmatpush1.msra.mxu0 %v5292
    %5353 = vmatprep.subr.mxu0 %v5297
    %5354 = vmatpush1.msra.mxu0 %v5296
    %5355 = vmatprep.subr.mxu0 0.0
    %5356 = vmatpush1.msra.mxu0 0.0
    %5357 = vmatprep.subr.mxu0 0.0
    %5358 = vmatpush1.msra.mxu0 0.0
    %5359 = vmatprep.subr.mxu0 0.0
    %5360 = vmatpush1.msra.mxu0 0.0
    %5361 = vmatprep.subr.mxu0 0.0
    %5362 = vmatpush1.msra.mxu0 0.0
    %5363 = vmatprep.subr.mxu0 0.0
    %5364 = vmatpush1.msra.mxu0 0.0
    %5365 = vmatprep.subr.mxu0 0.0
    %5366 = vmatpush1.msra.mxu0 0.0
    %5367 = vmatprep.subr.mxu0 0.0
    %5368 = vmatpush1.msra.mxu0 0.0
    %5369 = vmatprep.subr.mxu0 0.0
    %5370 = vmatpush1.msra.mxu0 0.0
    %5371 = vmatprep.subr.mxu0 0.0
    %5372 = vmatpush1.msra.mxu0 0.0
    %5373 = vmatprep.subr.mxu0 0.0
    %5374 = vmatpush1.msra.mxu0 0.0
    %5375 = vmatprep.subr.mxu0 0.0
    %5376 = vmatpush1.msra.mxu0 0.0
    %5377 = vmatprep.subr.mxu0 0.0
    %5378 = vmatpush1.msra.mxu0 0.0
    %5379 = vmatprep.subr.mxu0 0.0
    %5380 = vmatpush1.msra.mxu0 0.0
    %5381 = vmatprep.subr.mxu0 0.0
    %5382 = vmatpush1.msra.mxu0 0.0
    %5383 = vmatprep.subr.mxu0 0.0
    %5384 = vmatpush1.msra.mxu0 0.0
    %5385 = vmatprep.subr.mxu0 0.0
    %5386 = vmatpush1.msra.mxu0 0.0
    %5387 = vmatprep.mubr.f32.mxu0 0.0
    %5388 = vmatmul.mubr.f32.gmra.mrb[0].mxu0 %v5234
    %v5389 = vpop.f32.mrb[0].mxu0
    %v5390 = vadd.f32 %v5306, %v5389
    %v5391 = vpop.f32.mrb[0].mxu0
    %v5392 = vadd.f32 %v5310, %v5391
    %5393 = vdwg.mxu0
    %5394 = vmatprep.subr.mxu0 %v5239
    %5395 = vmatpush1.msra.mxu0 %v5238
    %5396 = vmatprep.subr.mxu0 %v5243
    %5397 = vmatpush1.msra.mxu0 %v5242
    %5398 = vmatprep.subr.mxu0 %v5247
    %5399 = vmatpush1.msra.mxu0 %v5246
    %5400 = vmatprep.subr.mxu0 %v5251
    %5401 = vmatpush1.msra.mxu0 %v5250
    %5402 = vmatprep.subr.mxu0 %v5255
    %5403 = vmatpush1.msra.mxu0 %v5254
    %5404 = vmatprep.subr.mxu0 %v5259
    %5405 = vmatpush1.msra.mxu0 %v5258
    %5406 = vmatprep.subr.mxu0 %v5263
    %5407 = vmatpush1.msra.mxu0 %v5262
    %5408 = vmatprep.subr.mxu0 %v5267
    %5409 = vmatpush1.msra.mxu0 %v5266
    %5410 = vmatprep.subr.mxu0 %v5271
    %5411 = vmatpush1.msra.mxu0 %v5270
    %5412 = vmatprep.subr.mxu0 %v5275
    %5413 = vmatpush1.msra.mxu0 %v5274
    %5414 = vmatprep.subr.mxu0 %v5279
    %5415 = vmatpush1.msra.mxu0 %v5278
    %5416 = vmatprep.subr.mxu0 %v5283
    %5417 = vmatpush1.msra.mxu0 %v5282
    %5418 = vmatprep.subr.mxu0 %v5287
    %5419 = vmatpush1.msra.mxu0 %v5286
    %5420 = vmatprep.subr.mxu0 %v5291
    %5421 = vmatpush1.msra.mxu0 %v5290
    %5422 = vmatprep.subr.mxu0 %v5295
    %5423 = vmatpush1.msra.mxu0 %v5294
    %5424 = vmatprep.subr.mxu0 %v5299
    %5425 = vmatpush1.msra.mxu0 %v5298
    %5426 = vmatprep.subr.mxu0 0.0
    %5427 = vmatpush1.msra.mxu0 0.0
    %5428 = vmatprep.subr.mxu0 0.0
    %5429 = vmatpush1.msra.mxu0 0.0
    %5430 = vmatprep.subr.mxu0 0.0
    %5431 = vmatpush1.msra.mxu0 0.0
    %5432 = vmatprep.subr.mxu0 0.0
    %5433 = vmatpush1.msra.mxu0 0.0
    %5434 = vmatprep.subr.mxu0 0.0
    %5435 = vmatpush1.msra.mxu0 0.0
    %5436 = vmatprep.subr.mxu0 0.0
    %5437 = vmatpush1.msra.mxu0 0.0
    %5438 = vmatprep.subr.mxu0 0.0
    %5439 = vmatpush1.msra.mxu0 0.0
    %5440 = vmatprep.subr.mxu0 0.0
    %5441 = vmatpush1.msra.mxu0 0.0
    %5442 = vmatprep.subr.mxu0 0.0
    %5443 = vmatpush1.msra.mxu0 0.0
    %5444 = vmatprep.subr.mxu0 0.0
    %5445 = vmatpush1.msra.mxu0 0.0
    %5446 = vmatprep.subr.mxu0 0.0
    %5447 = vmatpush1.msra.mxu0 0.0
    %5448 = vmatprep.subr.mxu0 0.0
    %5449 = vmatpush1.msra.mxu0 0.0
    %5450 = vmatprep.subr.mxu0 0.0
    %5451 = vmatpush1.msra.mxu0 0.0
    %5452 = vmatprep.subr.mxu0 0.0
    %5453 = vmatpush1.msra.mxu0 0.0
    %5454 = vmatprep.subr.mxu0 0.0
    %5455 = vmatpush1.msra.mxu0 0.0
    %5456 = vmatprep.subr.mxu0 0.0
    %5457 = vmatpush1.msra.mxu0 0.0
    %5458 = vmatprep.mubr.f32.mxu0 0.0
    %5459 = vmatmul.mubr.f32.gmra.mrb[0].mxu0 %v5234
    %v5460 = vpop.f32.mrb[0].mxu0
    %v5461 = vadd.f32 %v5314, %v5460
    %v5462 = vpop.f32.mrb[0].mxu0
    %v5463 = vadd.f32 %v5318, %v5462
    %5464 = vdwg.mxu0
    %v5465 = vmax.f32 %v5390, 0.0
    %v5466 = vmax.f32 %v5392, 0.0
    %v5467 = vmax.f32 %v5461, 0.0
    %v5468 = vmax.f32 %v5463, 0.0
    %s5469 = scalar_lea.vmem [#allocation24], 1024
    %v5470 = vld [vmem:[%s5469] sm:$0xff]
    %v5471 = vld [vmem:[%s5469 + $0x8] sm:$0xff]
    %v5472 = vld [vmem:[%s5469 + $0x10] sm:$0xff]
    %v5473 = vld [vmem:[%s5469 + $0x18] sm:$0xff]
    %v5474 = vld [vmem:[%s5469 + $0x20] sm:$0xff]
    %v5475 = vld [vmem:[%s5469 + $0x28] sm:$0xff]
    %v5476 = vld [vmem:[%s5469 + $0x30] sm:$0xff]
    %v5477 = vld [vmem:[%s5469 + $0x38] sm:$0xff]
    %v5478 = vld [vmem:[%s5469 + $0x40] sm:$0xff]
    %v5479 = vld [vmem:[%s5469 + $0x48] sm:$0xff]
    %v5480 = vld [vmem:[%s5469 + $0x50] sm:$0xff]
    %v5481 = vld [vmem:[%s5469 + $0x58] sm:$0xff]
    %v5482 = vld [vmem:[%s5469 + $0x60] sm:$0xff]
    %v5483 = vld [vmem:[%s5469 + $0x68] sm:$0xff]
    %v5484 = vld [vmem:[%s5469 + $0x70] sm:$0xff]
    %v5485 = vld [vmem:[%s5469 + $0x78] sm:$0xff]
    %v5486 = vld [vmem:[%s5469 + $0x80] sm:$0xff]
    %v5487 = vld [vmem:[%s5469 + $0x88] sm:$0xff]
    %v5488 = vld [vmem:[%s5469 + $0x90] sm:$0xff]
    %v5489 = vld [vmem:[%s5469 + $0x98] sm:$0xff]
    %v5490 = vld [vmem:[%s5469 + $0xa0] sm:$0xff]
    %v5491 = vld [vmem:[%s5469 + $0xa8] sm:$0xff]
    %v5492 = vld [vmem:[%s5469 + $0xb0] sm:$0xff]
    %v5493 = vld [vmem:[%s5469 + $0xb8] sm:$0xff]
    %v5494 = vld [vmem:[%s5469 + $0xc0] sm:$0xff]
    %v5495 = vld [vmem:[%s5469 + $0xc8] sm:$0xff]
    %v5496 = vld [vmem:[%s5469 + $0xd0] sm:$0xff]
    %v5497 = vld [vmem:[%s5469 + $0xd8] sm:$0xff]
    %v5498 = vld [vmem:[%s5469 + $0xe0] sm:$0xff]
    %v5499 = vld [vmem:[%s5469 + $0xe8] sm:$0xff]
    %v5500 = vld [vmem:[%s5469 + $0xf0] sm:$0xff]
    %v5501 = vld [vmem:[%s5469 + $0xf8] sm:$0xff]
    %v5502 = vld [vmem:[%s5469 + $0x100] sm:$0xff]
    %v5503 = vld [vmem:[%s5469 + $0x108] sm:$0xff]
    %v5504 = vld [vmem:[%s5469 + $0x110] sm:$0xff]
    %v5505 = vld [vmem:[%s5469 + $0x118] sm:$0xff]
    %v5506 = vld [vmem:[%s5469 + $0x120] sm:$0xff]
    %v5507 = vld [vmem:[%s5469 + $0x128] sm:$0xff]
    %v5508 = vld [vmem:[%s5469 + $0x130] sm:$0xff]
    %v5509 = vld [vmem:[%s5469 + $0x138] sm:$0xff]
    %v5510 = vld [vmem:[%s5469 + $0x140] sm:$0xff]
    %v5511 = vld [vmem:[%s5469 + $0x148] sm:$0xff]
    %v5512 = vld [vmem:[%s5469 + $0x150] sm:$0xff]
    %v5513 = vld [vmem:[%s5469 + $0x158] sm:$0xff]
    %v5514 = vld [vmem:[%s5469 + $0x160] sm:$0xff]
    %v5515 = vld [vmem:[%s5469 + $0x168] sm:$0xff]
    %v5516 = vld [vmem:[%s5469 + $0x170] sm:$0xff]
    %v5517 = vld [vmem:[%s5469 + $0x178] sm:$0xff]
    %v5518 = vld [vmem:[%s5469 + $0x180] sm:$0xff]
    %v5519 = vld [vmem:[%s5469 + $0x188] sm:$0xff]
    %v5520 = vld [vmem:[%s5469 + $0x190] sm:$0xff]
    %v5521 = vld [vmem:[%s5469 + $0x198] sm:$0xff]
    %v5522 = vld [vmem:[%s5469 + $0x1a0] sm:$0xff]
    %v5523 = vld [vmem:[%s5469 + $0x1a8] sm:$0xff]
    %v5524 = vld [vmem:[%s5469 + $0x1b0] sm:$0xff]
    %v5525 = vld [vmem:[%s5469 + $0x1b8] sm:$0xff]
    %v5526 = vld [vmem:[%s5469 + $0x1c0] sm:$0xff]
    %v5527 = vld [vmem:[%s5469 + $0x1c8] sm:$0xff]
    %v5528 = vld [vmem:[%s5469 + $0x1d0] sm:$0xff]
    %v5529 = vld [vmem:[%s5469 + $0x1d8] sm:$0xff]
    %v5530 = vld [vmem:[%s5469 + $0x1e0] sm:$0xff]
    %v5531 = vld [vmem:[%s5469 + $0x1e8] sm:$0xff]
    %v5532 = vld [vmem:[%s5469 + $0x1f0] sm:$0xff]
    %v5533 = vld [vmem:[%s5469 + $0x1f8] sm:$0xff]
    %s5534 = scalar_lea.vmem [#allocation25], 2
    %v5535 = vld [vmem:[%s5534] sm:$0x1]
    %v5537 = vlaneseq
    %v5538 = vshrl.u32 %v5537, 7
    %v5539 = vsub.s32 0, %v5538
    %v5540 = vrot.slane %v5535, %v5539
    %5542 = vmatprep.subr.mxu0 0.0
    %5543 = vmatpush1.msra.mxu0 %v5470
    %5544 = vmatprep.subr.mxu0 0.0
    %5545 = vmatpush1.msra.mxu0 %v5471
    %5546 = vmatprep.subr.mxu0 0.0
    %5547 = vmatpush1.msra.mxu0 %v5472
    %5548 = vmatprep.subr.mxu0 0.0
    %5549 = vmatpush1.msra.mxu0 %v5473
    %5550 = vmatprep.subr.mxu0 0.0
    %5551 = vmatpush1.msra.mxu0 %v5474
    %5552 = vmatprep.subr.mxu0 0.0
    %5553 = vmatpush1.msra.mxu0 %v5475
    %5554 = vmatprep.subr.mxu0 0.0
    %5555 = vmatpush1.msra.mxu0 %v5476
    %5556 = vmatprep.subr.mxu0 0.0
    %5557 = vmatpush1.msra.mxu0 %v5477
    %5558 = vmatprep.subr.mxu0 0.0
    %5559 = vmatpush1.msra.mxu0 %v5478
    %5560 = vmatprep.subr.mxu0 0.0
    %5561 = vmatpush1.msra.mxu0 %v5479
    %5562 = vmatprep.subr.mxu0 0.0
    %5563 = vmatpush1.msra.mxu0 %v5480
    %5564 = vmatprep.subr.mxu0 0.0
    %5565 = vmatpush1.msra.mxu0 %v5481
    %5566 = vmatprep.subr.mxu0 0.0
    %5567 = vmatpush1.msra.mxu0 %v5482
    %5568 = vmatprep.subr.mxu0 0.0
    %5569 = vmatpush1.msra.mxu0 %v5483
    %5570 = vmatprep.subr.mxu0 0.0
    %5571 = vmatpush1.msra.mxu0 %v5484
    %5572 = vmatprep.subr.mxu0 0.0
    %5573 = vmatpush1.msra.mxu0 %v5485
    %5574 = vmatprep.subr.mxu0 0.0
    %5575 = vmatpush1.msra.mxu0 %v5486
    %5576 = vmatprep.subr.mxu0 0.0
    %5577 = vmatpush1.msra.mxu0 %v5487
    %5578 = vmatprep.subr.mxu0 0.0
    %5579 = vmatpush1.msra.mxu0 %v5488
    %5580 = vmatprep.subr.mxu0 0.0
    %5581 = vmatpush1.msra.mxu0 %v5489
    %5582 = vmatprep.subr.mxu0 0.0
    %5583 = vmatpush1.msra.mxu0 %v5490
    %5584 = vmatprep.subr.mxu0 0.0
    %5585 = vmatpush1.msra.mxu0 %v5491
    %5586 = vmatprep.subr.mxu0 0.0
    %5587 = vmatpush1.msra.mxu0 %v5492
    %5588 = vmatprep.subr.mxu0 0.0
    %5589 = vmatpush1.msra.mxu0 %v5493
    %5590 = vmatprep.subr.mxu0 0.0
    %5591 = vmatpush1.msra.mxu0 %v5494
    %5592 = vmatprep.subr.mxu0 0.0
    %5593 = vmatpush1.msra.mxu0 %v5495
    %5594 = vmatprep.subr.mxu0 0.0
    %5595 = vmatpush1.msra.mxu0 %v5496
    %5596 = vmatprep.subr.mxu0 0.0
    %5597 = vmatpush1.msra.mxu0 %v5497
    %5598 = vmatprep.subr.mxu0 0.0
    %5599 = vmatpush1.msra.mxu0 %v5498
    %5600 = vmatprep.subr.mxu0 0.0
    %5601 = vmatpush1.msra.mxu0 %v5499
    %5602 = vmatprep.subr.mxu0 0.0
    %5603 = vmatpush1.msra.mxu0 %v5500
    %5604 = vmatprep.subr.mxu0 0.0
    %5605 = vmatpush1.msra.mxu0 %v5501
    %5606 = vmatprep.mubr.f32.mxu0 %v5466
    %5607 = vmatmul.mubr.f32.gmra.mrb[0].mxu0 %v5465
    %v5608 = vpop.f32.mrb[0].mxu0
    %v5609 = vadd.f32 %v5540, %v5608
    %v5610 = vpop.f32.mrb[0].mxu0
    %5611 = vdwg.mxu0
    %5612 = vmatprep.subr.mxu0 0.0
    %5613 = vmatpush1.msra.mxu0 %v5502
    %5614 = vmatprep.subr.mxu0 0.0
    %5615 = vmatpush1.msra.mxu0 %v5503
    %5616 = vmatprep.subr.mxu0 0.0
    %5617 = vmatpush1.msra.mxu0 %v5504
    %5618 = vmatprep.subr.mxu0 0.0
    %5619 = vmatpush1.msra.mxu0 %v5505
    %5620 = vmatprep.subr.mxu0 0.0
    %5621 = vmatpush1.msra.mxu0 %v5506
    %5622 = vmatprep.subr.mxu0 0.0
    %5623 = vmatpush1.msra.mxu0 %v5507
    %5624 = vmatprep.subr.mxu0 0.0
    %5625 = vmatpush1.msra.mxu0 %v5508
    %5626 = vmatprep.subr.mxu0 0.0
    %5627 = vmatpush1.msra.mxu0 %v5509
    %5628 = vmatprep.subr.mxu0 0.0
    %5629 = vmatpush1.msra.mxu0 %v5510
    %5630 = vmatprep.subr.mxu0 0.0
    %5631 = vmatpush1.msra.mxu0 %v5511
    %5632 = vmatprep.subr.mxu0 0.0
    %5633 = vmatpush1.msra.mxu0 %v5512
    %5634 = vmatprep.subr.mxu0 0.0
    %5635 = vmatpush1.msra.mxu0 %v5513
    %5636 = vmatprep.subr.mxu0 0.0
    %5637 = vmatpush1.msra.mxu0 %v5514
    %5638 = vmatprep.subr.mxu0 0.0
    %5639 = vmatpush1.msra.mxu0 %v5515
    %5640 = vmatprep.subr.mxu0 0.0
    %5641 = vmatpush1.msra.mxu0 %v5516
    %5642 = vmatprep.subr.mxu0 0.0
    %5643 = vmatpush1.msra.mxu0 %v5517
    %5644 = vmatprep.subr.mxu0 0.0
    %5645 = vmatpush1.msra.mxu0 %v5518
    %5646 = vmatprep.subr.mxu0 0.0
    %5647 = vmatpush1.msra.mxu0 %v5519
    %5648 = vmatprep.subr.mxu0 0.0
    %5649 = vmatpush1.msra.mxu0 %v5520
    %5650 = vmatprep.subr.mxu0 0.0
    %5651 = vmatpush1.msra.mxu0 %v5521
    %5652 = vmatprep.subr.mxu0 0.0
    %5653 = vmatpush1.msra.mxu0 %v5522
    %5654 = vmatprep.subr.mxu0 0.0
    %5655 = vmatpush1.msra.mxu0 %v5523
    %5656 = vmatprep.subr.mxu0 0.0
    %5657 = vmatpush1.msra.mxu0 %v5524
    %5658 = vmatprep.subr.mxu0 0.0
    %5659 = vmatpush1.msra.mxu0 %v5525
    %5660 = vmatprep.subr.mxu0 0.0
    %5661 = vmatpush1.msra.mxu0 %v5526
    %5662 = vmatprep.subr.mxu0 0.0
    %5663 = vmatpush1.msra.mxu0 %v5527
    %5664 = vmatprep.subr.mxu0 0.0
    %5665 = vmatpush1.msra.mxu0 %v5528
    %5666 = vmatprep.subr.mxu0 0.0
    %5667 = vmatpush1.msra.mxu0 %v5529
    %5668 = vmatprep.subr.mxu0 0.0
    %5669 = vmatpush1.msra.mxu0 %v5530
    %5670 = vmatprep.subr.mxu0 0.0
    %5671 = vmatpush1.msra.mxu0 %v5531
    %5672 = vmatprep.subr.mxu0 0.0
    %5673 = vmatpush1.msra.mxu0 %v5532
    %5674 = vmatprep.subr.mxu0 0.0
    %5675 = vmatpush1.msra.mxu0 %v5533
    %5676 = vmatprep.mubr.f32.mxu0 %v5468
    %5677 = vmatmul.mubr.f32.gmra.mrb[0].mxu0 %v5467
    %v5678 = vpop.f32.mrb[0].mxu0
    %v5679 = vadd.f32 %v5609, %v5678
    %v5680 = vpop.f32.mrb[0].mxu0
    %5681 = vdwg.mxu0
    %v5682 = vadd.f32 %v5234, %v5679
    %s5683 = scalar_lea.vmem [#allocation27], 2
    %v5684 = vld [vmem:[%s5683] sm:$0x1]
    %s5685 = scalar_lea.vmem [#allocation28], 2
    %v5686 = vld [vmem:[%s5685] sm:$0x1]
    %5687 = vadd.xlane.f32.xlu0 %v5682
    %v5688 = vpop.xlane.xlu0 %5687
    %v5689 = vmul.f32 %v5682, %v5682
    %5690 = vadd.xlane.f32.xlu0 %v5689
    %v5691 = vpop.xlane.xlu0 %5690
    %v5692 = vmul.f32 %v5688, 0.033333335
    %v5693 = vmul.f32 %v5691, 0.033333335
    %v5694 = vmul.f32 %v5692, %v5692
    %v5695 = vsub.f32 %v5693, %v5694
    %v5696 = vmax.f32 %v5695, 0.0
    %v5697 = vsub.f32 %v5682, %v5692
    %v5698 = vadd.f32 %v5696, 1e-05
    %v5699 = vrsqrt.pop %v5698
    %v5700 = vmul.f32 %v5697, %v5699
    %v5702 = vlaneseq
    %v5703 = vshrl.u32 %v5702, 7
    %v5704 = vsub.s32 0, %v5703
    %v5705 = vrot.slane %v5684, %v5704
    %v5707 = vmul.f32 %v5700, %v5705
    %v5709 = vlaneseq
    %v5710 = vshrl.u32 %v5709, 7
    %v5711 = vsub.s32 0, %v5710
    %v5712 = vrot.slane %v5686, %v5711
    %v5714 = vadd.f32 %v5707, %v5712
    %s5715 = scalar_lea.vmem [#allocation12], 3456
    %v5716 = vld [vmem:[%s5715] sm:$0xff]
    %v5717 = vld [vmem:[%s5715 + $0x8] sm:$0xff]
    %v5718 = vld [vmem:[%s5715 + $0x10] sm:$0xff]
    %v5719 = vld [vmem:[%s5715 + $0x18] sm:$0xff]
    %v5720 = vld [vmem:[%s5715 + $0x20] sm:$0xff]
    %v5721 = vld [vmem:[%s5715 + $0x28] sm:$0xff]
    %v5722 = vld [vmem:[%s5715 + $0x30] sm:$0xff]
    %v5723 = vld [vmem:[%s5715 + $0x38] sm:$0xff]
    %v5724 = vld [vmem:[%s5715 + $0x40] sm:$0xff]
    %v5725 = vld [vmem:[%s5715 + $0x48] sm:$0xff]
    %v5726 = vld [vmem:[%s5715 + $0x50] sm:$0xff]
    %v5727 = vld [vmem:[%s5715 + $0x58] sm:$0xff]
    %v5728 = vld [vmem:[%s5715 + $0x60] sm:$0xff]
    %v5729 = vld [vmem:[%s5715 + $0x68] sm:$0xff]
    %v5730 = vld [vmem:[%s5715 + $0x70] sm:$0xff]
    %v5731 = vld [vmem:[%s5715 + $0x78] sm:$0xff]
    %v5732 = vld [vmem:[%s5715 + $0x80] sm:$0xff]
    %v5733 = vld [vmem:[%s5715 + $0x88] sm:$0xff]
    %v5734 = vld [vmem:[%s5715 + $0x90] sm:$0xff]
    %v5735 = vld [vmem:[%s5715 + $0x98] sm:$0xff]
    %v5736 = vld [vmem:[%s5715 + $0xa0] sm:$0xff]
    %v5737 = vld [vmem:[%s5715 + $0xa8] sm:$0xff]
    %v5738 = vld [vmem:[%s5715 + $0xb0] sm:$0xff]
    %v5739 = vld [vmem:[%s5715 + $0xb8] sm:$0xff]
    %v5740 = vld [vmem:[%s5715 + $0xc0] sm:$0xff]
    %v5741 = vld [vmem:[%s5715 + $0xc8] sm:$0xff]
    %v5742 = vld [vmem:[%s5715 + $0xd0] sm:$0xff]
    %v5743 = vld [vmem:[%s5715 + $0xd8] sm:$0xff]
    %v5744 = vld [vmem:[%s5715 + $0xe0] sm:$0xff]
    %v5745 = vld [vmem:[%s5715 + $0xe8] sm:$0xff]
    %v5746 = vld [vmem:[%s5715 + $0xf0] sm:$0xff]
    %v5747 = vld [vmem:[%s5715 + $0xf8] sm:$0xff]
    %v5748 = vld [vmem:[%s5715 + $0x100] sm:$0xff]
    %v5749 = vld [vmem:[%s5715 + $0x108] sm:$0xff]
    %v5750 = vld [vmem:[%s5715 + $0x110] sm:$0xff]
    %v5751 = vld [vmem:[%s5715 + $0x118] sm:$0xff]
    %v5752 = vld [vmem:[%s5715 + $0x120] sm:$0xff]
    %v5753 = vld [vmem:[%s5715 + $0x128] sm:$0xff]
    %v5754 = vld [vmem:[%s5715 + $0x130] sm:$0xff]
    %v5755 = vld [vmem:[%s5715 + $0x138] sm:$0xff]
    %v5756 = vld [vmem:[%s5715 + $0x140] sm:$0xff]
    %v5757 = vld [vmem:[%s5715 + $0x148] sm:$0xff]
    %v5758 = vld [vmem:[%s5715 + $0x150] sm:$0xff]
    %v5759 = vld [vmem:[%s5715 + $0x158] sm:$0xff]
    %v5760 = vld [vmem:[%s5715 + $0x160] sm:$0xff]
    %v5761 = vld [vmem:[%s5715 + $0x168] sm:$0xff]
    %v5762 = vld [vmem:[%s5715 + $0x170] sm:$0xff]
    %v5763 = vld [vmem:[%s5715 + $0x178] sm:$0xff]
    %v5764 = vld [vmem:[%s5715 + $0x180] sm:$0xff]
    %v5765 = vld [vmem:[%s5715 + $0x188] sm:$0xff]
    %v5766 = vld [vmem:[%s5715 + $0x190] sm:$0xff]
    %v5767 = vld [vmem:[%s5715 + $0x198] sm:$0xff]
    %v5768 = vld [vmem:[%s5715 + $0x1a0] sm:$0xff]
    %v5769 = vld [vmem:[%s5715 + $0x1a8] sm:$0xff]
    %v5770 = vld [vmem:[%s5715 + $0x1b0] sm:$0xff]
    %v5771 = vld [vmem:[%s5715 + $0x1b8] sm:$0xff]
    %v5772 = vld [vmem:[%s5715 + $0x1c0] sm:$0xff]
    %v5773 = vld [vmem:[%s5715 + $0x1c8] sm:$0xff]
    %v5774 = vld [vmem:[%s5715 + $0x1d0] sm:$0xff]
    %v5775 = vld [vmem:[%s5715 + $0x1d8] sm:$0xff]
    %v5776 = vld [vmem:[%s5715 + $0x1e0] sm:$0xff]
    %v5777 = vld [vmem:[%s5715 + $0x1e8] sm:$0xff]
    %v5778 = vld [vmem:[%s5715 + $0x1f0] sm:$0xff]
    %v5779 = vld [vmem:[%s5715 + $0x1f8] sm:$0xff]
    %v5780 = vld [vmem:[%s5715 + $0x200] sm:$0xff]
    %v5781 = vld [vmem:[%s5715 + $0x208] sm:$0xff]
    %v5782 = vld [vmem:[%s5715 + $0x210] sm:$0xff]
    %v5783 = vld [vmem:[%s5715 + $0x218] sm:$0xff]
    %v5784 = vld [vmem:[%s5715 + $0x220] sm:$0xff]
    %v5785 = vld [vmem:[%s5715 + $0x228] sm:$0xff]
    %v5786 = vld [vmem:[%s5715 + $0x230] sm:$0xff]
    %v5787 = vld [vmem:[%s5715 + $0x238] sm:$0xff]
    %v5788 = vld [vmem:[%s5715 + $0x240] sm:$0xff]
    %v5789 = vld [vmem:[%s5715 + $0x248] sm:$0xff]
    %v5790 = vld [vmem:[%s5715 + $0x250] sm:$0xff]
    %v5791 = vld [vmem:[%s5715 + $0x258] sm:$0xff]
    %v5792 = vld [vmem:[%s5715 + $0x260] sm:$0xff]
    %v5793 = vld [vmem:[%s5715 + $0x268] sm:$0xff]
    %v5794 = vld [vmem:[%s5715 + $0x270] sm:$0xff]
    %v5795 = vld [vmem:[%s5715 + $0x278] sm:$0xff]
    %v5796 = vld [vmem:[%s5715 + $0x280] sm:$0xff]
    %v5797 = vld [vmem:[%s5715 + $0x288] sm:$0xff]
    %v5798 = vld [vmem:[%s5715 + $0x290] sm:$0xff]
    %v5799 = vld [vmem:[%s5715 + $0x298] sm:$0xff]
    %v5800 = vld [vmem:[%s5715 + $0x2a0] sm:$0xff]
    %v5801 = vld [vmem:[%s5715 + $0x2a8] sm:$0xff]
    %v5802 = vld [vmem:[%s5715 + $0x2b0] sm:$0xff]
    %v5803 = vld [vmem:[%s5715 + $0x2b8] sm:$0xff]
    %v5804 = vld [vmem:[%s5715 + $0x2c0] sm:$0xff]
    %v5805 = vld [vmem:[%s5715 + $0x2c8] sm:$0xff]
    %v5806 = vld [vmem:[%s5715 + $0x2d0] sm:$0xff]
    %v5807 = vld [vmem:[%s5715 + $0x2d8] sm:$0xff]
    %v5808 = vld [vmem:[%s5715 + $0x2e0] sm:$0xff]
    %v5809 = vld [vmem:[%s5715 + $0x2e8] sm:$0xff]
    %v5810 = vld [vmem:[%s5715 + $0x2f0] sm:$0xff]
    %v5811 = vld [vmem:[%s5715 + $0x2f8] sm:$0xff]
    %v5812 = vld [vmem:[%s5715 + $0x300] sm:$0xff]
    %v5813 = vld [vmem:[%s5715 + $0x308] sm:$0xff]
    %v5814 = vld [vmem:[%s5715 + $0x310] sm:$0xff]
    %v5815 = vld [vmem:[%s5715 + $0x318] sm:$0xff]
    %v5816 = vld [vmem:[%s5715 + $0x320] sm:$0xff]
    %v5817 = vld [vmem:[%s5715 + $0x328] sm:$0xff]
    %v5818 = vld [vmem:[%s5715 + $0x330] sm:$0xff]
    %v5819 = vld [vmem:[%s5715 + $0x338] sm:$0xff]
    %v5820 = vld [vmem:[%s5715 + $0x340] sm:$0xff]
    %v5821 = vld [vmem:[%s5715 + $0x348] sm:$0xff]
    %v5822 = vld [vmem:[%s5715 + $0x350] sm:$0xff]
    %v5823 = vld [vmem:[%s5715 + $0x358] sm:$0xff]
    %v5824 = vld [vmem:[%s5715 + $0x360] sm:$0xff]
    %v5825 = vld [vmem:[%s5715 + $0x368] sm:$0xff]
    %v5826 = vld [vmem:[%s5715 + $0x370] sm:$0xff]
    %v5827 = vld [vmem:[%s5715 + $0x378] sm:$0xff]
    %v5828 = vld [vmem:[%s5715 + $0x380] sm:$0xff]
    %v5829 = vld [vmem:[%s5715 + $0x388] sm:$0xff]
    %v5830 = vld [vmem:[%s5715 + $0x390] sm:$0xff]
    %v5831 = vld [vmem:[%s5715 + $0x398] sm:$0xff]
    %v5832 = vld [vmem:[%s5715 + $0x3a0] sm:$0xff]
    %v5833 = vld [vmem:[%s5715 + $0x3a8] sm:$0xff]
    %v5834 = vld [vmem:[%s5715 + $0x3b0] sm:$0xff]
    %v5835 = vld [vmem:[%s5715 + $0x3b8] sm:$0xff]
    %v5836 = vld [vmem:[%s5715 + $0x3c0] sm:$0xff]
    %v5837 = vld [vmem:[%s5715 + $0x3c8] sm:$0xff]
    %v5838 = vld [vmem:[%s5715 + $0x3d0] sm:$0xff]
    %v5839 = vld [vmem:[%s5715 + $0x3d8] sm:$0xff]
    %v5840 = vld [vmem:[%s5715 + $0x3e0] sm:$0xff]
    %v5841 = vld [vmem:[%s5715 + $0x3e8] sm:$0xff]
    %v5842 = vld [vmem:[%s5715 + $0x3f0] sm:$0xff]
    %v5843 = vld [vmem:[%s5715 + $0x3f8] sm:$0xff]
    %v5844 = vld [vmem:[%s5715 + $0x400] sm:$0xff]
    %v5845 = vld [vmem:[%s5715 + $0x408] sm:$0xff]
    %v5846 = vld [vmem:[%s5715 + $0x410] sm:$0xff]
    %v5847 = vld [vmem:[%s5715 + $0x418] sm:$0xff]
    %v5848 = vld [vmem:[%s5715 + $0x420] sm:$0xff]
    %v5849 = vld [vmem:[%s5715 + $0x428] sm:$0xff]
    %v5850 = vld [vmem:[%s5715 + $0x430] sm:$0xff]
    %v5851 = vld [vmem:[%s5715 + $0x438] sm:$0xff]
    %v5852 = vld [vmem:[%s5715 + $0x440] sm:$0xff]
    %v5853 = vld [vmem:[%s5715 + $0x448] sm:$0xff]
    %v5854 = vld [vmem:[%s5715 + $0x450] sm:$0xff]
    %v5855 = vld [vmem:[%s5715 + $0x458] sm:$0xff]
    %v5856 = vld [vmem:[%s5715 + $0x460] sm:$0xff]
    %v5857 = vld [vmem:[%s5715 + $0x468] sm:$0xff]
    %v5858 = vld [vmem:[%s5715 + $0x470] sm:$0xff]
    %v5859 = vld [vmem:[%s5715 + $0x478] sm:$0xff]
    %s5860 = scalar_lea.vmem [#allocation13], 27
    %v5861 = vld [vmem:[%s5860] sm:$0xff]
    %v5862 = vld [vmem:[%s5860 + $0x8] sm:$0x1]
    %v5865 = vlaneseq
    %v5866 = vshrl.u32 %v5865, 7
    %v5867 = vsub.s32 0, %v5866
    %v5868 = vrot.slane %v5861, %v5867
    %v5869 = vlaneseq
    %v5870 = vshrl.u32 %v5869, 7
    %v5871 = vsub.s32 1, %v5870
    %v5872 = vrot.slane %v5861, %v5871
    %v5873 = vlaneseq
    %v5874 = vshrl.u32 %v5873, 7
    %v5875 = vsub.s32 2, %v5874
    %v5876 = vrot.slane %v5861, %v5875
    %v5877 = vlaneseq
    %v5878 = vshrl.u32 %v5877, 7
    %v5879 = vsub.s32 3, %v5878
    %v5880 = vrot.slane %v5861, %v5879
    %v5881 = vlaneseq
    %v5882 = vshrl.u32 %v5881, 7
    %v5883 = vsub.s32 4, %v5882
    %v5884 = vrot.slane %v5861, %v5883
    %v5885 = vlaneseq
    %v5886 = vshrl.u32 %v5885, 7
    %v5887 = vsub.s32 5, %v5886
    %v5888 = vrot.slane %v5861, %v5887
    %v5889 = vlaneseq
    %v5890 = vshrl.u32 %v5889, 7
    %v5891 = vsub.s32 6, %v5890
    %v5892 = vrot.slane %v5861, %v5891
    %v5893 = vlaneseq
    %v5894 = vshrl.u32 %v5893, 7
    %v5895 = vsub.s32 7, %v5894
    %v5896 = vrot.slane %v5861, %v5895
    %v5897 = vlaneseq
    %v5898 = vshrl.u32 %v5897, 7
    %v5899 = vsub.s32 0, %v5898
    %v5900 = vrot.slane %v5862, %v5899
    %5910 = vmatprep.subr.mxu0 %v5717
    %5911 = vmatpush1.msra.mxu0 %v5716
    %5912 = vmatprep.subr.mxu0 %v5726
    %5913 = vmatpush1.msra.mxu0 %v5725
    %5914 = vmatprep.subr.mxu0 %v5735
    %5915 = vmatpush1.msra.mxu0 %v5734
    %5916 = vmatprep.subr.mxu0 %v5744
    %5917 = vmatpush1.msra.mxu0 %v5743
    %5918 = vmatprep.subr.mxu0 %v5753
    %5919 = vmatpush1.msra.mxu0 %v5752
    %5920 = vmatprep.subr.mxu0 %v5762
    %5921 = vmatpush1.msra.mxu0 %v5761
    %5922 = vmatprep.subr.mxu0 %v5771
    %5923 = vmatpush1.msra.mxu0 %v5770
    %5924 = vmatprep.subr.mxu0 %v5780
    %5925 = vmatpush1.msra.mxu0 %v5779
    %5926 = vmatprep.subr.mxu0 %v5789
    %5927 = vmatpush1.msra.mxu0 %v5788
    %5928 = vmatprep.subr.mxu0 %v5798
    %5929 = vmatpush1.msra.mxu0 %v5797
    %5930 = vmatprep.subr.mxu0 %v5807
    %5931 = vmatpush1.msra.mxu0 %v5806
    %5932 = vmatprep.subr.mxu0 %v5816
    %5933 = vmatpush1.msra.mxu0 %v5815
    %5934 = vmatprep.subr.mxu0 %v5825
    %5935 = vmatpush1.msra.mxu0 %v5824
    %5936 = vmatprep.subr.mxu0 %v5834
    %5937 = vmatpush1.msra.mxu0 %v5833
    %5938 = vmatprep.subr.mxu0 %v5843
    %5939 = vmatpush1.msra.mxu0 %v5842
    %5940 = vmatprep.subr.mxu0 %v5852
    %5941 = vmatpush1.msra.mxu0 %v5851
    %5942 = vmatprep.subr.mxu0 0.0
    %5943 = vmatpush1.msra.mxu0 0.0
    %5944 = vmatprep.subr.mxu0 0.0
    %5945 = vmatpush1.msra.mxu0 0.0
    %5946 = vmatprep.subr.mxu0 0.0
    %5947 = vmatpush1.msra.mxu0 0.0
    %5948 = vmatprep.subr.mxu0 0.0
    %5949 = vmatpush1.msra.mxu0 0.0
    %5950 = vmatprep.subr.mxu0 0.0
    %5951 = vmatpush1.msra.mxu0 0.0
    %5952 = vmatprep.subr.mxu0 0.0
    %5953 = vmatpush1.msra.mxu0 0.0
    %5954 = vmatprep.subr.mxu0 0.0
    %5955 = vmatpush1.msra.mxu0 0.0
    %5956 = vmatprep.subr.mxu0 0.0
    %5957 = vmatpush1.msra.mxu0 0.0
    %5958 = vmatprep.subr.mxu0 0.0
    %5959 = vmatpush1.msra.mxu0 0.0
    %5960 = vmatprep.subr.mxu0 0.0
    %5961 = vmatpush1.msra.mxu0 0.0
    %5962 = vmatprep.subr.mxu0 0.0
    %5963 = vmatpush1.msra.mxu0 0.0
    %5964 = vmatprep.subr.mxu0 0.0
    %5965 = vmatpush1.msra.mxu0 0.0
    %5966 = vmatprep.subr.mxu0 0.0
    %5967 = vmatpush1.msra.mxu0 0.0
    %5968 = vmatprep.subr.mxu0 0.0
    %5969 = vmatpush1.msra.mxu0 0.0
    %5970 = vmatprep.subr.mxu0 0.0
    %5971 = vmatpush1.msra.mxu0 0.0
    %5972 = vmatprep.subr.mxu0 0.0
    %5973 = vmatpush1.msra.mxu0 0.0
    %5974 = vmatprep.mubr.f32.mxu0 0.0
    %5975 = vmatmul.mubr.f32.gmra.mrb[0].mxu0 %v5714
    %v5976 = vpop.f32.mrb[0].mxu0
    %v5977 = vadd.f32 %v5868, %v5976
    %v5978 = vpop.f32.mrb[0].mxu0
    %v5979 = vadd.f32 %v5872, %v5978
    %5980 = vdwg.mxu0
    %5981 = vmatprep.subr.mxu0 %v5719
    %5982 = vmatpush1.msra.mxu0 %v5718
    %5983 = vmatprep.subr.mxu0 %v5728
    %5984 = vmatpush1.msra.mxu0 %v5727
    %5985 = vmatprep.subr.mxu0 %v5737
    %5986 = vmatpush1.msra.mxu0 %v5736
    %5987 = vmatprep.subr.mxu0 %v5746
    %5988 = vmatpush1.msra.mxu0 %v5745
    %5989 = vmatprep.subr.mxu0 %v5755
    %5990 = vmatpush1.msra.mxu0 %v5754
    %5991 = vmatprep.subr.mxu0 %v5764
    %5992 = vmatpush1.msra.mxu0 %v5763
    %5993 = vmatprep.subr.mxu0 %v5773
    %5994 = vmatpush1.msra.mxu0 %v5772
    %5995 = vmatprep.subr.mxu0 %v5782
    %5996 = vmatpush1.msra.mxu0 %v5781
    %5997 = vmatprep.subr.mxu0 %v5791
    %5998 = vmatpush1.msra.mxu0 %v5790
    %5999 = vmatprep.subr.mxu0 %v5800
    %6000 = vmatpush1.msra.mxu0 %v5799
    %6001 = vmatprep.subr.mxu0 %v5809
    %6002 = vmatpush1.msra.mxu0 %v5808
    %6003 = vmatprep.subr.mxu0 %v5818
    %6004 = vmatpush1.msra.mxu0 %v5817
    %6005 = vmatprep.subr.mxu0 %v5827
    %6006 = vmatpush1.msra.mxu0 %v5826
    %6007 = vmatprep.subr.mxu0 %v5836
    %6008 = vmatpush1.msra.mxu0 %v5835
    %6009 = vmatprep.subr.mxu0 %v5845
    %6010 = vmatpush1.msra.mxu0 %v5844
    %6011 = vmatprep.subr.mxu0 %v5854
    %6012 = vmatpush1.msra.mxu0 %v5853
    %6013 = vmatprep.subr.mxu0 0.0
    %6014 = vmatpush1.msra.mxu0 0.0
    %6015 = vmatprep.subr.mxu0 0.0
    %6016 = vmatpush1.msra.mxu0 0.0
    %6017 = vmatprep.subr.mxu0 0.0
    %6018 = vmatpush1.msra.mxu0 0.0
    %6019 = vmatprep.subr.mxu0 0.0
    %6020 = vmatpush1.msra.mxu0 0.0
    %6021 = vmatprep.subr.mxu0 0.0
    %6022 = vmatpush1.msra.mxu0 0.0
    %6023 = vmatprep.subr.mxu0 0.0
    %6024 = vmatpush1.msra.mxu0 0.0
    %6025 = vmatprep.subr.mxu0 0.0
    %6026 = vmatpush1.msra.mxu0 0.0
    %6027 = vmatprep.subr.mxu0 0.0
    %6028 = vmatpush1.msra.mxu0 0.0
    %6029 = vmatprep.subr.mxu0 0.0
    %6030 = vmatpush1.msra.mxu0 0.0
    %6031 = vmatprep.subr.mxu0 0.0
    %6032 = vmatpush1.msra.mxu0 0.0
    %6033 = vmatprep.subr.mxu0 0.0
    %6034 = vmatpush1.msra.mxu0 0.0
    %6035 = vmatprep.subr.mxu0 0.0
    %6036 = vmatpush1.msra.mxu0 0.0
    %6037 = vmatprep.subr.mxu0 0.0
    %6038 = vmatpush1.msra.mxu0 0.0
    %6039 = vmatprep.subr.mxu0 0.0
    %6040 = vmatpush1.msra.mxu0 0.0
    %6041 = vmatprep.subr.mxu0 0.0
    %6042 = vmatpush1.msra.mxu0 0.0
    %6043 = vmatprep.subr.mxu0 0.0
    %6044 = vmatpush1.msra.mxu0 0.0
    %6045 = vmatprep.mubr.f32.mxu0 0.0
    %6046 = vmatmul.mubr.f32.gmra.mrb[0].mxu0 %v5714
    %v6047 = vpop.f32.mrb[0].mxu0
    %v6048 = vadd.f32 %v5876, %v6047
    %v6049 = vpop.f32.mrb[0].mxu0
    %v6050 = vadd.f32 %v5880, %v6049
    %6051 = vdwg.mxu0
    %6052 = vmatprep.subr.mxu0 %v5721
    %6053 = vmatpush1.msra.mxu0 %v5720
    %6054 = vmatprep.subr.mxu0 %v5730
    %6055 = vmatpush1.msra.mxu0 %v5729
    %6056 = vmatprep.subr.mxu0 %v5739
    %6057 = vmatpush1.msra.mxu0 %v5738
    %6058 = vmatprep.subr.mxu0 %v5748
    %6059 = vmatpush1.msra.mxu0 %v5747
    %6060 = vmatprep.subr.mxu0 %v5757
    %6061 = vmatpush1.msra.mxu0 %v5756
    %6062 = vmatprep.subr.mxu0 %v5766
    %6063 = vmatpush1.msra.mxu0 %v5765
    %6064 = vmatprep.subr.mxu0 %v5775
    %6065 = vmatpush1.msra.mxu0 %v5774
    %6066 = vmatprep.subr.mxu0 %v5784
    %6067 = vmatpush1.msra.mxu0 %v5783
    %6068 = vmatprep.subr.mxu0 %v5793
    %6069 = vmatpush1.msra.mxu0 %v5792
    %6070 = vmatprep.subr.mxu0 %v5802
    %6071 = vmatpush1.msra.mxu0 %v5801
    %6072 = vmatprep.subr.mxu0 %v5811
    %6073 = vmatpush1.msra.mxu0 %v5810
    %6074 = vmatprep.subr.mxu0 %v5820
    %6075 = vmatpush1.msra.mxu0 %v5819
    %6076 = vmatprep.subr.mxu0 %v5829
    %6077 = vmatpush1.msra.mxu0 %v5828
    %6078 = vmatprep.subr.mxu0 %v5838
    %6079 = vmatpush1.msra.mxu0 %v5837
    %6080 = vmatprep.subr.mxu0 %v5847
    %6081 = vmatpush1.msra.mxu0 %v5846
    %6082 = vmatprep.subr.mxu0 %v5856
    %6083 = vmatpush1.msra.mxu0 %v5855
    %6084 = vmatprep.subr.mxu0 0.0
    %6085 = vmatpush1.msra.mxu0 0.0
    %6086 = vmatprep.subr.mxu0 0.0
    %6087 = vmatpush1.msra.mxu0 0.0
    %6088 = vmatprep.subr.mxu0 0.0
    %6089 = vmatpush1.msra.mxu0 0.0
    %6090 = vmatprep.subr.mxu0 0.0
    %6091 = vmatpush1.msra.mxu0 0.0
    %6092 = vmatprep.subr.mxu0 0.0
    %6093 = vmatpush1.msra.mxu0 0.0
    %6094 = vmatprep.subr.mxu0 0.0
    %6095 = vmatpush1.msra.mxu0 0.0
    %6096 = vmatprep.subr.mxu0 0.0
    %6097 = vmatpush1.msra.mxu0 0.0
    %6098 = vmatprep.subr.mxu0 0.0
    %6099 = vmatpush1.msra.mxu0 0.0
    %6100 = vmatprep.subr.mxu0 0.0
    %6101 = vmatpush1.msra.mxu0 0.0
    %6102 = vmatprep.subr.mxu0 0.0
    %6103 = vmatpush1.msra.mxu0 0.0
    %6104 = vmatprep.subr.mxu0 0.0
    %6105 = vmatpush1.msra.mxu0 0.0
    %6106 = vmatprep.subr.mxu0 0.0
    %6107 = vmatpush1.msra.mxu0 0.0
    %6108 = vmatprep.subr.mxu0 0.0
    %6109 = vmatpush1.msra.mxu0 0.0
    %6110 = vmatprep.subr.mxu0 0.0
    %6111 = vmatpush1.msra.mxu0 0.0
    %6112 = vmatprep.subr.mxu0 0.0
    %6113 = vmatpush1.msra.mxu0 0.0
    %6114 = vmatprep.subr.mxu0 0.0
    %6115 = vmatpush1.msra.mxu0 0.0
    %6116 = vmatprep.mubr.f32.mxu0 0.0
    %6117 = vmatmul.mubr.f32.gmra.mrb[0].mxu0 %v5714
    %v6118 = vpop.f32.mrb[0].mxu0
    %v6119 = vadd.f32 %v5884, %v6118
    %v6120 = vpop.f32.mrb[0].mxu0
    %v6121 = vadd.f32 %v5888, %v6120
    %6122 = vdwg.mxu0
    %6123 = vmatprep.subr.mxu0 %v5723
    %6124 = vmatpush1.msra.mxu0 %v5722
    %6125 = vmatprep.subr.mxu0 %v5732
    %6126 = vmatpush1.msra.mxu0 %v5731
    %6127 = vmatprep.subr.mxu0 %v5741
    %6128 = vmatpush1.msra.mxu0 %v5740
    %6129 = vmatprep.subr.mxu0 %v5750
    %6130 = vmatpush1.msra.mxu0 %v5749
    %6131 = vmatprep.subr.mxu0 %v5759
    %6132 = vmatpush1.msra.mxu0 %v5758
    %6133 = vmatprep.subr.mxu0 %v5768
    %6134 = vmatpush1.msra.mxu0 %v5767
    %6135 = vmatprep.subr.mxu0 %v5777
    %6136 = vmatpush1.msra.mxu0 %v5776
    %6137 = vmatprep.subr.mxu0 %v5786
    %6138 = vmatpush1.msra.mxu0 %v5785
    %6139 = vmatprep.subr.mxu0 %v5795
    %6140 = vmatpush1.msra.mxu0 %v5794
    %6141 = vmatprep.subr.mxu0 %v5804
    %6142 = vmatpush1.msra.mxu0 %v5803
    %6143 = vmatprep.subr.mxu0 %v5813
    %6144 = vmatpush1.msra.mxu0 %v5812
    %6145 = vmatprep.subr.mxu0 %v5822
    %6146 = vmatpush1.msra.mxu0 %v5821
    %6147 = vmatprep.subr.mxu0 %v5831
    %6148 = vmatpush1.msra.mxu0 %v5830
    %6149 = vmatprep.subr.mxu0 %v5840
    %6150 = vmatpush1.msra.mxu0 %v5839
    %6151 = vmatprep.subr.mxu0 %v5849
    %6152 = vmatpush1.msra.mxu0 %v5848
    %6153 = vmatprep.subr.mxu0 %v5858
    %6154 = vmatpush1.msra.mxu0 %v5857
    %6155 = vmatprep.subr.mxu0 0.0
    %6156 = vmatpush1.msra.mxu0 0.0
    %6157 = vmatprep.subr.mxu0 0.0
    %6158 = vmatpush1.msra.mxu0 0.0
    %6159 = vmatprep.subr.mxu0 0.0
    %6160 = vmatpush1.msra.mxu0 0.0
    %6161 = vmatprep.subr.mxu0 0.0
    %6162 = vmatpush1.msra.mxu0 0.0
    %6163 = vmatprep.subr.mxu0 0.0
    %6164 = vmatpush1.msra.mxu0 0.0
    %6165 = vmatprep.subr.mxu0 0.0
    %6166 = vmatpush1.msra.mxu0 0.0
    %6167 = vmatprep.subr.mxu0 0.0
    %6168 = vmatpush1.msra.mxu0 0.0
    %6169 = vmatprep.subr.mxu0 0.0
    %6170 = vmatpush1.msra.mxu0 0.0
    %6171 = vmatprep.subr.mxu0 0.0
    %6172 = vmatpush1.msra.mxu0 0.0
    %6173 = vmatprep.subr.mxu0 0.0
    %6174 = vmatpush1.msra.mxu0 0.0
    %6175 = vmatprep.subr.mxu0 0.0
    %6176 = vmatpush1.msra.mxu0 0.0
    %6177 = vmatprep.subr.mxu0 0.0
    %6178 = vmatpush1.msra.mxu0 0.0
    %6179 = vmatprep.subr.mxu0 0.0
    %6180 = vmatpush1.msra.mxu0 0.0
    %6181 = vmatprep.subr.mxu0 0.0
    %6182 = vmatpush1.msra.mxu0 0.0
    %6183 = vmatprep.subr.mxu0 0.0
    %6184 = vmatpush1.msra.mxu0 0.0
    %6185 = vmatprep.subr.mxu0 0.0
    %6186 = vmatpush1.msra.mxu0 0.0
    %6187 = vmatprep.mubr.f32.mxu0 0.0
    %6188 = vmatmul.mubr.f32.gmra.mrb[0].mxu0 %v5714
    %v6189 = vpop.f32.mrb[0].mxu0
    %v6190 = vadd.f32 %v5892, %v6189
    %v6191 = vpop.f32.mrb[0].mxu0
    %v6192 = vadd.f32 %v5896, %v6191
    %6193 = vdwg.mxu0
    %6194 = vmatprep.subr.mxu0 0.0
    %6195 = vmatpush1.msra.mxu0 %v5724
    %6196 = vmatprep.subr.mxu0 0.0
    %6197 = vmatpush1.msra.mxu0 %v5733
    %6198 = vmatprep.subr.mxu0 0.0
    %6199 = vmatpush1.msra.mxu0 %v5742
    %6200 = vmatprep.subr.mxu0 0.0
    %6201 = vmatpush1.msra.mxu0 %v5751
    %6202 = vmatprep.subr.mxu0 0.0
    %6203 = vmatpush1.msra.mxu0 %v5760
    %6204 = vmatprep.subr.mxu0 0.0
    %6205 = vmatpush1.msra.mxu0 %v5769
    %6206 = vmatprep.subr.mxu0 0.0
    %6207 = vmatpush1.msra.mxu0 %v5778
    %6208 = vmatprep.subr.mxu0 0.0
    %6209 = vmatpush1.msra.mxu0 %v5787
    %6210 = vmatprep.subr.mxu0 0.0
    %6211 = vmatpush1.msra.mxu0 %v5796
    %6212 = vmatprep.subr.mxu0 0.0
    %6213 = vmatpush1.msra.mxu0 %v5805
    %6214 = vmatprep.subr.mxu0 0.0
    %6215 = vmatpush1.msra.mxu0 %v5814
    %6216 = vmatprep.subr.mxu0 0.0
    %6217 = vmatpush1.msra.mxu0 %v5823
    %6218 = vmatprep.subr.mxu0 0.0
    %6219 = vmatpush1.msra.mxu0 %v5832
    %6220 = vmatprep.subr.mxu0 0.0
    %6221 = vmatpush1.msra.mxu0 %v5841
    %6222 = vmatprep.subr.mxu0 0.0
    %6223 = vmatpush1.msra.mxu0 %v5850
    %6224 = vmatprep.subr.mxu0 0.0
    %6225 = vmatpush1.msra.mxu0 %v5859
    %6226 = vmatprep.subr.mxu0 0.0
    %6227 = vmatpush1.msra.mxu0 0.0
    %6228 = vmatprep.subr.mxu0 0.0
    %6229 = vmatpush1.msra.mxu0 0.0
    %6230 = vmatprep.subr.mxu0 0.0
    %6231 = vmatpush1.msra.mxu0 0.0
    %6232 = vmatprep.subr.mxu0 0.0
    %6233 = vmatpush1.msra.mxu0 0.0
    %6234 = vmatprep.subr.mxu0 0.0
    %6235 = vmatpush1.msra.mxu0 0.0
    %6236 = vmatprep.subr.mxu0 0.0
    %6237 = vmatpush1.msra.mxu0 0.0
    %6238 = vmatprep.subr.mxu0 0.0
    %6239 = vmatpush1.msra.mxu0 0.0
    %6240 = vmatprep.subr.mxu0 0.0
    %6241 = vmatpush1.msra.mxu0 0.0
    %6242 = vmatprep.subr.mxu0 0.0
    %6243 = vmatpush1.msra.mxu0 0.0
    %6244 = vmatprep.subr.mxu0 0.0
    %6245 = vmatpush1.msra.mxu0 0.0
    %6246 = vmatprep.subr.mxu0 0.0
    %6247 = vmatpush1.msra.mxu0 0.0
    %6248 = vmatprep.subr.mxu0 0.0
    %6249 = vmatpush1.msra.mxu0 0.0
    %6250 = vmatprep.subr.mxu0 0.0
    %6251 = vmatpush1.msra.mxu0 0.0
    %6252 = vmatprep.subr.mxu0 0.0
    %6253 = vmatpush1.msra.mxu0 0.0
    %6254 = vmatprep.subr.mxu0 0.0
    %6255 = vmatpush1.msra.mxu0 0.0
    %6256 = vmatprep.subr.mxu0 0.0
    %6257 = vmatpush1.msra.mxu0 0.0
    %6258 = vmatprep.mubr.f32.mxu0 0.0
    %6259 = vmatmul.mubr.f32.gmra.mrb[0].mxu0 %v5714
    %v6260 = vpop.f32.mrb[0].mxu0
    %v6261 = vadd.f32 %v5900, %v6260
    %v6262 = vpop.f32.mrb[0].mxu0
    %6263 = vdwg.mxu0
    %6264 = vmatprep.subr.mxu0 0.0
    %6265 = vmatpush1.xpose.msra.mxu0 %v6050
    %6266 = vmatprep.subr.mxu0 0.0
    %6267 = vmatpush1.xpose.msra.mxu0 0.0
    %6268 = vmatprep.subr.mxu0 0.0
    %6269 = vmatpush1.xpose.msra.mxu0 0.0
    %6270 = vmatprep.subr.mxu0 0.0
    %6271 = vmatpush1.xpose.msra.mxu0 0.0
    %6272 = vmatprep.subr.mxu0 0.0
    %6273 = vmatpush1.xpose.msra.mxu0 0.0
    %6274 = vmatprep.subr.mxu0 0.0
    %6275 = vmatpush1.xpose.msra.mxu0 0.0
    %6276 = vmatprep.subr.mxu0 0.0
    %6277 = vmatpush1.xpose.msra.mxu0 0.0
    %6278 = vmatprep.subr.mxu0 0.0
    %6279 = vmatpush1.xpose.msra.mxu0 0.0
    %6280 = vmatprep.subr.mxu0 0.0
    %6281 = vmatpush1.xpose.msra.mxu0 0.0
    %6282 = vmatprep.subr.mxu0 0.0
    %6283 = vmatpush1.xpose.msra.mxu0 0.0
    %6284 = vmatprep.subr.mxu0 0.0
    %6285 = vmatpush1.xpose.msra.mxu0 0.0
    %6286 = vmatprep.subr.mxu0 0.0
    %6287 = vmatpush1.xpose.msra.mxu0 0.0
    %6288 = vmatprep.subr.mxu0 0.0
    %6289 = vmatpush1.xpose.msra.mxu0 0.0
    %6290 = vmatprep.subr.mxu0 0.0
    %6291 = vmatpush1.xpose.msra.mxu0 0.0
    %6292 = vmatprep.subr.mxu0 0.0
    %6293 = vmatpush1.xpose.msra.mxu0 0.0
    %6294 = vmatprep.subr.mxu0 0.0
    %6295 = vmatpush1.xpose.msra.mxu0 0.0
    %6296 = vmatprep.subr.mxu0 0.0
    %6297 = vmatpush1.xpose.msra.mxu0 0.0
    %6298 = vmatprep.subr.mxu0 0.0
    %6299 = vmatpush1.xpose.msra.mxu0 0.0
    %6300 = vmatprep.subr.mxu0 0.0
    %6301 = vmatpush1.xpose.msra.mxu0 0.0
    %6302 = vmatprep.subr.mxu0 0.0
    %6303 = vmatpush1.xpose.msra.mxu0 0.0
    %6304 = vmatprep.subr.mxu0 0.0
    %6305 = vmatpush1.xpose.msra.mxu0 0.0
    %6306 = vmatprep.subr.mxu0 0.0
    %6307 = vmatpush1.xpose.msra.mxu0 0.0
    %6308 = vmatprep.subr.mxu0 0.0
    %6309 = vmatpush1.xpose.msra.mxu0 0.0
    %6310 = vmatprep.subr.mxu0 0.0
    %6311 = vmatpush1.xpose.msra.mxu0 0.0
    %6312 = vmatprep.subr.mxu0 0.0
    %6313 = vmatpush1.xpose.msra.mxu0 0.0
    %6314 = vmatprep.subr.mxu0 0.0
    %6315 = vmatpush1.xpose.msra.mxu0 0.0
    %6316 = vmatprep.subr.mxu0 0.0
    %6317 = vmatpush1.xpose.msra.mxu0 0.0
    %6318 = vmatprep.subr.mxu0 0.0
    %6319 = vmatpush1.xpose.msra.mxu0 0.0
    %6320 = vmatprep.subr.mxu0 0.0
    %6321 = vmatpush1.xpose.msra.mxu0 0.0
    %6322 = vmatprep.subr.mxu0 0.0
    %6323 = vmatpush1.xpose.msra.mxu0 0.0
    %6324 = vmatprep.subr.mxu0 0.0
    %6325 = vmatpush1.xpose.msra.mxu0 0.0
    %6326 = vmatprep.subr.mxu0 0.0
    %6327 = vmatpush1.xpose.msra.mxu0 0.0
    %6328 = vmatprep.mubr.f32.mxu0 0.0
    %6329 = vmatmul.mubr.f32.gmra.mrb[0].mxu0 %v5977
    %v6330 = vpop.f32.mrb[0].mxu0
    %v6331 = vadd.f32 %v1108, %v6330
    %v6332 = vpop.f32.mrb[0].mxu0
    %6333 = vdwg.mxu0
    %v6334 = vsel %vm1180, %v6331, -inf
    %6335 = vmax.xlane.f32.xlu0 %v6334
    %v6336 = vpop.xlane.xlu0 %6335
    %v6337 = vsub.f32 %v6331, %v6336
    %v6338 = vmul.f32 %v6337, 1.442695
    %v6339 = vpow.pop %v6338
    %v6340 = vsel %vm1180, %v6339, 0.0
    %6341 = vadd.xlane.f32.xlu0 %v6340
    %v6342 = vpop.xlane.xlu0 %6341
    %v6343 = vrcp.pop %v6342
    %v6344 = vmul.f32 %v6339, %v6343
    %v6346 = vsel %vm1180, %v6344, 0
    %6348 = vmatprep.subr.mxu0 0.0
    %6349 = vmatpush1.msra.mxu0 %v6190
    %6350 = vmatprep.subr.mxu0 0.0
    %6351 = vmatpush1.msra.mxu0 0.0
    %6352 = vmatprep.subr.mxu0 0.0
    %6353 = vmatpush1.msra.mxu0 0.0
    %6354 = vmatprep.subr.mxu0 0.0
    %6355 = vmatpush1.msra.mxu0 0.0
    %6356 = vmatprep.subr.mxu0 0.0
    %6357 = vmatpush1.msra.mxu0 0.0
    %6358 = vmatprep.subr.mxu0 0.0
    %6359 = vmatpush1.msra.mxu0 0.0
    %6360 = vmatprep.subr.mxu0 0.0
    %6361 = vmatpush1.msra.mxu0 0.0
    %6362 = vmatprep.subr.mxu0 0.0
    %6363 = vmatpush1.msra.mxu0 0.0
    %6364 = vmatprep.subr.mxu0 0.0
    %6365 = vmatpush1.msra.mxu0 0.0
    %6366 = vmatprep.subr.mxu0 0.0
    %6367 = vmatpush1.msra.mxu0 0.0
    %6368 = vmatprep.subr.mxu0 0.0
    %6369 = vmatpush1.msra.mxu0 0.0
    %6370 = vmatprep.subr.mxu0 0.0
    %6371 = vmatpush1.msra.mxu0 0.0
    %6372 = vmatprep.subr.mxu0 0.0
    %6373 = vmatpush1.msra.mxu0 0.0
    %6374 = vmatprep.subr.mxu0 0.0
    %6375 = vmatpush1.msra.mxu0 0.0
    %6376 = vmatprep.subr.mxu0 0.0
    %6377 = vmatpush1.msra.mxu0 0.0
    %6378 = vmatprep.subr.mxu0 0.0
    %6379 = vmatpush1.msra.mxu0 0.0
    %6380 = vmatprep.subr.mxu0 0.0
    %6381 = vmatpush1.msra.mxu0 0.0
    %6382 = vmatprep.subr.mxu0 0.0
    %6383 = vmatpush1.msra.mxu0 0.0
    %6384 = vmatprep.subr.mxu0 0.0
    %6385 = vmatpush1.msra.mxu0 0.0
    %6386 = vmatprep.subr.mxu0 0.0
    %6387 = vmatpush1.msra.mxu0 0.0
    %6388 = vmatprep.subr.mxu0 0.0
    %6389 = vmatpush1.msra.mxu0 0.0
    %6390 = vmatprep.subr.mxu0 0.0
    %6391 = vmatpush1.msra.mxu0 0.0
    %6392 = vmatprep.subr.mxu0 0.0
    %6393 = vmatpush1.msra.mxu0 0.0
    %6394 = vmatprep.subr.mxu0 0.0
    %6395 = vmatpush1.msra.mxu0 0.0
    %6396 = vmatprep.subr.mxu0 0.0
    %6397 = vmatpush1.msra.mxu0 0.0
    %6398 = vmatprep.subr.mxu0 0.0
    %6399 = vmatpush1.msra.mxu0 0.0
    %6400 = vmatprep.subr.mxu0 0.0
    %6401 = vmatpush1.msra.mxu0 0.0
    %6402 = vmatprep.subr.mxu0 0.0
    %6403 = vmatpush1.msra.mxu0 0.0
    %6404 = vmatprep.subr.mxu0 0.0
    %6405 = vmatpush1.msra.mxu0 0.0
    %6406 = vmatprep.subr.mxu0 0.0
    %6407 = vmatpush1.msra.mxu0 0.0
    %6408 = vmatprep.subr.mxu0 0.0
    %6409 = vmatpush1.msra.mxu0 0.0
    %6410 = vmatprep.subr.mxu0 0.0
    %6411 = vmatpush1.msra.mxu0 0.0
    %6412 = vmatprep.mubr.f32.mxu0 0.0
    %6413 = vmatmul.mubr.f32.gmra.mrb[0].mxu0 %v6346
    %v6414 = vpop.f32.mrb[0].mxu0
    %v6415 = vadd.f32 0.0, %v6414
    %v6416 = vpop.f32.mrb[0].mxu0
    %6417 = vdwg.mxu0
    %6418 = vmatprep.subr.mxu0 0.0
    %6419 = vmatpush1.xpose.msra.mxu0 %v6119
    %6420 = vmatprep.subr.mxu0 0.0
    %6421 = vmatpush1.xpose.msra.mxu0 0.0
    %6422 = vmatprep.subr.mxu0 0.0
    %6423 = vmatpush1.xpose.msra.mxu0 0.0
    %6424 = vmatprep.subr.mxu0 0.0
    %6425 = vmatpush1.xpose.msra.mxu0 0.0
    %6426 = vmatprep.subr.mxu0 0.0
    %6427 = vmatpush1.xpose.msra.mxu0 0.0
    %6428 = vmatprep.subr.mxu0 0.0
    %6429 = vmatpush1.xpose.msra.mxu0 0.0
    %6430 = vmatprep.subr.mxu0 0.0
    %6431 = vmatpush1.xpose.msra.mxu0 0.0
    %6432 = vmatprep.subr.mxu0 0.0
    %6433 = vmatpush1.xpose.msra.mxu0 0.0
    %6434 = vmatprep.subr.mxu0 0.0
    %6435 = vmatpush1.xpose.msra.mxu0 0.0
    %6436 = vmatprep.subr.mxu0 0.0
    %6437 = vmatpush1.xpose.msra.mxu0 0.0
    %6438 = vmatprep.subr.mxu0 0.0
    %6439 = vmatpush1.xpose.msra.mxu0 0.0
    %6440 = vmatprep.subr.mxu0 0.0
    %6441 = vmatpush1.xpose.msra.mxu0 0.0
    %6442 = vmatprep.subr.mxu0 0.0
    %6443 = vmatpush1.xpose.msra.mxu0 0.0
    %6444 = vmatprep.subr.mxu0 0.0
    %6445 = vmatpush1.xpose.msra.mxu0 0.0
    %6446 = vmatprep.subr.mxu0 0.0
    %6447 = vmatpush1.xpose.msra.mxu0 0.0
    %6448 = vmatprep.subr.mxu0 0.0
    %6449 = vmatpush1.xpose.msra.mxu0 0.0
    %6450 = vmatprep.subr.mxu0 0.0
    %6451 = vmatpush1.xpose.msra.mxu0 0.0
    %6452 = vmatprep.subr.mxu0 0.0
    %6453 = vmatpush1.xpose.msra.mxu0 0.0
    %6454 = vmatprep.subr.mxu0 0.0
    %6455 = vmatpush1.xpose.msra.mxu0 0.0
    %6456 = vmatprep.subr.mxu0 0.0
    %6457 = vmatpush1.xpose.msra.mxu0 0.0
    %6458 = vmatprep.subr.mxu0 0.0
    %6459 = vmatpush1.xpose.msra.mxu0 0.0
    %6460 = vmatprep.subr.mxu0 0.0
    %6461 = vmatpush1.xpose.msra.mxu0 0.0
    %6462 = vmatprep.subr.mxu0 0.0
    %6463 = vmatpush1.xpose.msra.mxu0 0.0
    %6464 = vmatprep.subr.mxu0 0.0
    %6465 = vmatpush1.xpose.msra.mxu0 0.0
    %6466 = vmatprep.subr.mxu0 0.0
    %6467 = vmatpush1.xpose.msra.mxu0 0.0
    %6468 = vmatprep.subr.mxu0 0.0
    %6469 = vmatpush1.xpose.msra.mxu0 0.0
    %6470 = vmatprep.subr.mxu0 0.0
    %6471 = vmatpush1.xpose.msra.mxu0 0.0
    %6472 = vmatprep.subr.mxu0 0.0
    %6473 = vmatpush1.xpose.msra.mxu0 0.0
    %6474 = vmatprep.subr.mxu0 0.0
    %6475 = vmatpush1.xpose.msra.mxu0 0.0
    %6476 = vmatprep.subr.mxu0 0.0
    %6477 = vmatpush1.xpose.msra.mxu0 0.0
    %6478 = vmatprep.subr.mxu0 0.0
    %6479 = vmatpush1.xpose.msra.mxu0 0.0
    %6480 = vmatprep.subr.mxu0 0.0
    %6481 = vmatpush1.xpose.msra.mxu0 0.0
    %6482 = vmatprep.mubr.f32.mxu0 0.0
    %6483 = vmatmul.mubr.f32.gmra.mrb[0].mxu0 %v5979
    %v6484 = vpop.f32.mrb[0].mxu0
    %v6485 = vadd.f32 %v1108, %v6484
    %v6486 = vpop.f32.mrb[0].mxu0
    %6487 = vdwg.mxu0
    %v6488 = vsel %vm1180, %v6485, -inf
    %6489 = vmax.xlane.f32.xlu0 %v6488
    %v6490 = vpop.xlane.xlu0 %6489
    %v6491 = vsub.f32 %v6485, %v6490
    %v6492 = vmul.f32 %v6491, 1.442695
    %v6493 = vpow.pop %v6492
    %v6494 = vsel %vm1180, %v6493, 0.0
    %6495 = vadd.xlane.f32.xlu0 %v6494
    %v6496 = vpop.xlane.xlu0 %6495
    %v6497 = vrcp.pop %v6496
    %v6498 = vmul.f32 %v6493, %v6497
    %v6500 = vsel %vm1180, %v6498, 0
    %6502 = vmatprep.subr.mxu0 0.0
    %6503 = vmatpush1.msra.mxu0 %v6192
    %6504 = vmatprep.subr.mxu0 0.0
    %6505 = vmatpush1.msra.mxu0 0.0
    %6506 = vmatprep.subr.mxu0 0.0
    %6507 = vmatpush1.msra.mxu0 0.0
    %6508 = vmatprep.subr.mxu0 0.0
    %6509 = vmatpush1.msra.mxu0 0.0
    %6510 = vmatprep.subr.mxu0 0.0
    %6511 = vmatpush1.msra.mxu0 0.0
    %6512 = vmatprep.subr.mxu0 0.0
    %6513 = vmatpush1.msra.mxu0 0.0
    %6514 = vmatprep.subr.mxu0 0.0
    %6515 = vmatpush1.msra.mxu0 0.0
    %6516 = vmatprep.subr.mxu0 0.0
    %6517 = vmatpush1.msra.mxu0 0.0
    %6518 = vmatprep.subr.mxu0 0.0
    %6519 = vmatpush1.msra.mxu0 0.0
    %6520 = vmatprep.subr.mxu0 0.0
    %6521 = vmatpush1.msra.mxu0 0.0
    %6522 = vmatprep.subr.mxu0 0.0
    %6523 = vmatpush1.msra.mxu0 0.0
    %6524 = vmatprep.subr.mxu0 0.0
    %6525 = vmatpush1.msra.mxu0 0.0
    %6526 = vmatprep.subr.mxu0 0.0
    %6527 = vmatpush1.msra.mxu0 0.0
    %6528 = vmatprep.subr.mxu0 0.0
    %6529 = vmatpush1.msra.mxu0 0.0
    %6530 = vmatprep.subr.mxu0 0.0
    %6531 = vmatpush1.msra.mxu0 0.0
    %6532 = vmatprep.subr.mxu0 0.0
    %6533 = vmatpush1.msra.mxu0 0.0
    %6534 = vmatprep.subr.mxu0 0.0
    %6535 = vmatpush1.msra.mxu0 0.0
    %6536 = vmatprep.subr.mxu0 0.0
    %6537 = vmatpush1.msra.mxu0 0.0
    %6538 = vmatprep.subr.mxu0 0.0
    %6539 = vmatpush1.msra.mxu0 0.0
    %6540 = vmatprep.subr.mxu0 0.0
    %6541 = vmatpush1.msra.mxu0 0.0
    %6542 = vmatprep.subr.mxu0 0.0
    %6543 = vmatpush1.msra.mxu0 0.0
    %6544 = vmatprep.subr.mxu0 0.0
    %6545 = vmatpush1.msra.mxu0 0.0
    %6546 = vmatprep.subr.mxu0 0.0
    %6547 = vmatpush1.msra.mxu0 0.0
    %6548 = vmatprep.subr.mxu0 0.0
    %6549 = vmatpush1.msra.mxu0 0.0
    %6550 = vmatprep.subr.mxu0 0.0
    %6551 = vmatpush1.msra.mxu0 0.0
    %6552 = vmatprep.subr.mxu0 0.0
    %6553 = vmatpush1.msra.mxu0 0.0
    %6554 = vmatprep.subr.mxu0 0.0
    %6555 = vmatpush1.msra.mxu0 0.0
    %6556 = vmatprep.subr.mxu0 0.0
    %6557 = vmatpush1.msra.mxu0 0.0
    %6558 = vmatprep.subr.mxu0 0.0
    %6559 = vmatpush1.msra.mxu0 0.0
    %6560 = vmatprep.subr.mxu0 0.0
    %6561 = vmatpush1.msra.mxu0 0.0
    %6562 = vmatprep.subr.mxu0 0.0
    %6563 = vmatpush1.msra.mxu0 0.0
    %6564 = vmatprep.subr.mxu0 0.0
    %6565 = vmatpush1.msra.mxu0 0.0
    %6566 = vmatprep.mubr.f32.mxu0 0.0
    %6567 = vmatmul.mubr.f32.gmra.mrb[0].mxu0 %v6500
    %v6568 = vpop.f32.mrb[0].mxu0
    %v6569 = vadd.f32 0.0, %v6568
    %v6570 = vpop.f32.mrb[0].mxu0
    %6571 = vdwg.mxu0
    %6572 = vmatprep.subr.mxu0 0.0
    %6573 = vmatpush1.xpose.msra.mxu0 %v6121
    %6574 = vmatprep.subr.mxu0 0.0
    %6575 = vmatpush1.xpose.msra.mxu0 0.0
    %6576 = vmatprep.subr.mxu0 0.0
    %6577 = vmatpush1.xpose.msra.mxu0 0.0
    %6578 = vmatprep.subr.mxu0 0.0
    %6579 = vmatpush1.xpose.msra.mxu0 0.0
    %6580 = vmatprep.subr.mxu0 0.0
    %6581 = vmatpush1.xpose.msra.mxu0 0.0
    %6582 = vmatprep.subr.mxu0 0.0
    %6583 = vmatpush1.xpose.msra.mxu0 0.0
    %6584 = vmatprep.subr.mxu0 0.0
    %6585 = vmatpush1.xpose.msra.mxu0 0.0
    %6586 = vmatprep.subr.mxu0 0.0
    %6587 = vmatpush1.xpose.msra.mxu0 0.0
    %6588 = vmatprep.subr.mxu0 0.0
    %6589 = vmatpush1.xpose.msra.mxu0 0.0
    %6590 = vmatprep.subr.mxu0 0.0
    %6591 = vmatpush1.xpose.msra.mxu0 0.0
    %6592 = vmatprep.subr.mxu0 0.0
    %6593 = vmatpush1.xpose.msra.mxu0 0.0
    %6594 = vmatprep.subr.mxu0 0.0
    %6595 = vmatpush1.xpose.msra.mxu0 0.0
    %6596 = vmatprep.subr.mxu0 0.0
    %6597 = vmatpush1.xpose.msra.mxu0 0.0
    %6598 = vmatprep.subr.mxu0 0.0
    %6599 = vmatpush1.xpose.msra.mxu0 0.0
    %6600 = vmatprep.subr.mxu0 0.0
    %6601 = vmatpush1.xpose.msra.mxu0 0.0
    %6602 = vmatprep.subr.mxu0 0.0
    %6603 = vmatpush1.xpose.msra.mxu0 0.0
    %6604 = vmatprep.subr.mxu0 0.0
    %6605 = vmatpush1.xpose.msra.mxu0 0.0
    %6606 = vmatprep.subr.mxu0 0.0
    %6607 = vmatpush1.xpose.msra.mxu0 0.0
    %6608 = vmatprep.subr.mxu0 0.0
    %6609 = vmatpush1.xpose.msra.mxu0 0.0
    %6610 = vmatprep.subr.mxu0 0.0
    %6611 = vmatpush1.xpose.msra.mxu0 0.0
    %6612 = vmatprep.subr.mxu0 0.0
    %6613 = vmatpush1.xpose.msra.mxu0 0.0
    %6614 = vmatprep.subr.mxu0 0.0
    %6615 = vmatpush1.xpose.msra.mxu0 0.0
    %6616 = vmatprep.subr.mxu0 0.0
    %6617 = vmatpush1.xpose.msra.mxu0 0.0
    %6618 = vmatprep.subr.mxu0 0.0
    %6619 = vmatpush1.xpose.msra.mxu0 0.0
    %6620 = vmatprep.subr.mxu0 0.0
    %6621 = vmatpush1.xpose.msra.mxu0 0.0
    %6622 = vmatprep.subr.mxu0 0.0
    %6623 = vmatpush1.xpose.msra.mxu0 0.0
    %6624 = vmatprep.subr.mxu0 0.0
    %6625 = vmatpush1.xpose.msra.mxu0 0.0
    %6626 = vmatprep.subr.mxu0 0.0
    %6627 = vmatpush1.xpose.msra.mxu0 0.0
    %6628 = vmatprep.subr.mxu0 0.0
    %6629 = vmatpush1.xpose.msra.mxu0 0.0
    %6630 = vmatprep.subr.mxu0 0.0
    %6631 = vmatpush1.xpose.msra.mxu0 0.0
    %6632 = vmatprep.subr.mxu0 0.0
    %6633 = vmatpush1.xpose.msra.mxu0 0.0
    %6634 = vmatprep.subr.mxu0 0.0
    %6635 = vmatpush1.xpose.msra.mxu0 0.0
    %6636 = vmatprep.mubr.f32.mxu0 0.0
    %6637 = vmatmul.mubr.f32.gmra.mrb[0].mxu0 %v6048
    %v6638 = vpop.f32.mrb[0].mxu0
    %v6639 = vadd.f32 %v1108, %v6638
    %v6640 = vpop.f32.mrb[0].mxu0
    %6641 = vdwg.mxu0
    %v6642 = vsel %vm1180, %v6639, -inf
    %6643 = vmax.xlane.f32.xlu0 %v6642
    %v6644 = vpop.xlane.xlu0 %6643
    %v6645 = vsub.f32 %v6639, %v6644
    %v6646 = vmul.f32 %v6645, 1.442695
    %v6647 = vpow.pop %v6646
    %v6648 = vsel %vm1180, %v6647, 0.0
    %6649 = vadd.xlane.f32.xlu0 %v6648
    %v6650 = vpop.xlane.xlu0 %6649
    %v6651 = vrcp.pop %v6650
    %v6652 = vmul.f32 %v6647, %v6651
    %v6654 = vsel %vm1180, %v6652, 0
    %6656 = vmatprep.subr.mxu0 0.0
    %6657 = vmatpush1.msra.mxu0 %v6261
    %6658 = vmatprep.subr.mxu0 0.0
    %6659 = vmatpush1.msra.mxu0 0.0
    %6660 = vmatprep.subr.mxu0 0.0
    %6661 = vmatpush1.msra.mxu0 0.0
    %6662 = vmatprep.subr.mxu0 0.0
    %6663 = vmatpush1.msra.mxu0 0.0
    %6664 = vmatprep.subr.mxu0 0.0
    %6665 = vmatpush1.msra.mxu0 0.0
    %6666 = vmatprep.subr.mxu0 0.0
    %6667 = vmatpush1.msra.mxu0 0.0
    %6668 = vmatprep.subr.mxu0 0.0
    %6669 = vmatpush1.msra.mxu0 0.0
    %6670 = vmatprep.subr.mxu0 0.0
    %6671 = vmatpush1.msra.mxu0 0.0
    %6672 = vmatprep.subr.mxu0 0.0
    %6673 = vmatpush1.msra.mxu0 0.0
    %6674 = vmatprep.subr.mxu0 0.0
    %6675 = vmatpush1.msra.mxu0 0.0
    %6676 = vmatprep.subr.mxu0 0.0
    %6677 = vmatpush1.msra.mxu0 0.0
    %6678 = vmatprep.subr.mxu0 0.0
    %6679 = vmatpush1.msra.mxu0 0.0
    %6680 = vmatprep.subr.mxu0 0.0
    %6681 = vmatpush1.msra.mxu0 0.0
    %6682 = vmatprep.subr.mxu0 0.0
    %6683 = vmatpush1.msra.mxu0 0.0
    %6684 = vmatprep.subr.mxu0 0.0
    %6685 = vmatpush1.msra.mxu0 0.0
    %6686 = vmatprep.subr.mxu0 0.0
    %6687 = vmatpush1.msra.mxu0 0.0
    %6688 = vmatprep.subr.mxu0 0.0
    %6689 = vmatpush1.msra.mxu0 0.0
    %6690 = vmatprep.subr.mxu0 0.0
    %6691 = vmatpush1.msra.mxu0 0.0
    %6692 = vmatprep.subr.mxu0 0.0
    %6693 = vmatpush1.msra.mxu0 0.0
    %6694 = vmatprep.subr.mxu0 0.0
    %6695 = vmatpush1.msra.mxu0 0.0
    %6696 = vmatprep.subr.mxu0 0.0
    %6697 = vmatpush1.msra.mxu0 0.0
    %6698 = vmatprep.subr.mxu0 0.0
    %6699 = vmatpush1.msra.mxu0 0.0
    %6700 = vmatprep.subr.mxu0 0.0
    %6701 = vmatpush1.msra.mxu0 0.0
    %6702 = vmatprep.subr.mxu0 0.0
    %6703 = vmatpush1.msra.mxu0 0.0
    %6704 = vmatprep.subr.mxu0 0.0
    %6705 = vmatpush1.msra.mxu0 0.0
    %6706 = vmatprep.subr.mxu0 0.0
    %6707 = vmatpush1.msra.mxu0 0.0
    %6708 = vmatprep.subr.mxu0 0.0
    %6709 = vmatpush1.msra.mxu0 0.0
    %6710 = vmatprep.subr.mxu0 0.0
    %6711 = vmatpush1.msra.mxu0 0.0
    %6712 = vmatprep.subr.mxu0 0.0
    %6713 = vmatpush1.msra.mxu0 0.0
    %6714 = vmatprep.subr.mxu0 0.0
    %6715 = vmatpush1.msra.mxu0 0.0
    %6716 = vmatprep.subr.mxu0 0.0
    %6717 = vmatpush1.msra.mxu0 0.0
    %6718 = vmatprep.subr.mxu0 0.0
    %6719 = vmatpush1.msra.mxu0 0.0
    %6720 = vmatprep.mubr.f32.mxu0 0.0
    %6721 = vmatmul.mubr.f32.gmra.mrb[0].mxu0 %v6654
    %v6722 = vpop.f32.mrb[0].mxu0
    %v6723 = vadd.f32 0.0, %v6722
    %v6724 = vpop.f32.mrb[0].mxu0
    %6725 = vdwg.mxu0
    %s6726 = scalar_lea.vmem [#allocation15], 1152
    %v6727 = vld [vmem:[%s6726] sm:$0xff]
    %v6728 = vld [vmem:[%s6726 + $0x8] sm:$0xff]
    %v6729 = vld [vmem:[%s6726 + $0x10] sm:$0xff]
    %v6730 = vld [vmem:[%s6726 + $0x18] sm:$0xff]
    %v6731 = vld [vmem:[%s6726 + $0x20] sm:$0xff]
    %v6732 = vld [vmem:[%s6726 + $0x28] sm:$0xff]
    %v6733 = vld [vmem:[%s6726 + $0x30] sm:$0xff]
    %v6734 = vld [vmem:[%s6726 + $0x38] sm:$0xff]
    %v6735 = vld [vmem:[%s6726 + $0x40] sm:$0xff]
    %v6736 = vld [vmem:[%s6726 + $0x48] sm:$0xff]
    %v6737 = vld [vmem:[%s6726 + $0x50] sm:$0xff]
    %v6738 = vld [vmem:[%s6726 + $0x58] sm:$0xff]
    %v6739 = vld [vmem:[%s6726 + $0x60] sm:$0xff]
    %v6740 = vld [vmem:[%s6726 + $0x68] sm:$0xff]
    %v6741 = vld [vmem:[%s6726 + $0x70] sm:$0xff]
    %v6742 = vld [vmem:[%s6726 + $0x78] sm:$0xff]
    %v6743 = vld [vmem:[%s6726 + $0x80] sm:$0xff]
    %v6744 = vld [vmem:[%s6726 + $0x88] sm:$0xff]
    %v6745 = vld [vmem:[%s6726 + $0x90] sm:$0xff]
    %v6746 = vld [vmem:[%s6726 + $0x98] sm:$0xff]
    %v6747 = vld [vmem:[%s6726 + $0xa0] sm:$0xff]
    %v6748 = vld [vmem:[%s6726 + $0xa8] sm:$0xff]
    %v6749 = vld [vmem:[%s6726 + $0xb0] sm:$0xff]
    %v6750 = vld [vmem:[%s6726 + $0xb8] sm:$0xff]
    %v6751 = vld [vmem:[%s6726 + $0xc0] sm:$0xff]
    %v6752 = vld [vmem:[%s6726 + $0xc8] sm:$0xff]
    %v6753 = vld [vmem:[%s6726 + $0xd0] sm:$0xff]
    %v6754 = vld [vmem:[%s6726 + $0xd8] sm:$0xff]
    %v6755 = vld [vmem:[%s6726 + $0xe0] sm:$0xff]
    %v6756 = vld [vmem:[%s6726 + $0xe8] sm:$0xff]
    %v6757 = vld [vmem:[%s6726 + $0xf0] sm:$0xff]
    %v6758 = vld [vmem:[%s6726 + $0xf8] sm:$0xff]
    %v6759 = vld [vmem:[%s6726 + $0x100] sm:$0xff]
    %v6760 = vld [vmem:[%s6726 + $0x108] sm:$0xff]
    %v6761 = vld [vmem:[%s6726 + $0x110] sm:$0xff]
    %v6762 = vld [vmem:[%s6726 + $0x118] sm:$0xff]
    %v6763 = vld [vmem:[%s6726 + $0x120] sm:$0xff]
    %v6764 = vld [vmem:[%s6726 + $0x128] sm:$0xff]
    %v6765 = vld [vmem:[%s6726 + $0x130] sm:$0xff]
    %v6766 = vld [vmem:[%s6726 + $0x138] sm:$0xff]
    %v6767 = vld [vmem:[%s6726 + $0x140] sm:$0xff]
    %v6768 = vld [vmem:[%s6726 + $0x148] sm:$0xff]
    %v6769 = vld [vmem:[%s6726 + $0x150] sm:$0xff]
    %v6770 = vld [vmem:[%s6726 + $0x158] sm:$0xff]
    %v6771 = vld [vmem:[%s6726 + $0x160] sm:$0xff]
    %v6772 = vld [vmem:[%s6726 + $0x168] sm:$0xff]
    %v6773 = vld [vmem:[%s6726 + $0x170] sm:$0xff]
    %v6774 = vld [vmem:[%s6726 + $0x178] sm:$0xff]
    %s6775 = scalar_lea.vmem [#allocation16], 3
    %v6776 = vld [vmem:[%s6775] sm:$0x1]
    %v6778 = vlaneseq
    %v6779 = vshrl.u32 %v6778, 7
    %v6780 = vsub.s32 0, %v6779
    %v6781 = vrot.slane %v6776, %v6780
    %6783 = vmatprep.subr.mxu0 0.0
    %6784 = vmatpush1.msra.mxu0 %v6727
    %6785 = vmatprep.subr.mxu0 0.0
    %6786 = vmatpush1.msra.mxu0 %v6728
    %6787 = vmatprep.subr.mxu0 0.0
    %6788 = vmatpush1.msra.mxu0 %v6729
    %6789 = vmatprep.subr.mxu0 0.0
    %6790 = vmatpush1.msra.mxu0 %v6730
    %6791 = vmatprep.subr.mxu0 0.0
    %6792 = vmatpush1.msra.mxu0 %v6731
    %6793 = vmatprep.subr.mxu0 0.0
    %6794 = vmatpush1.msra.mxu0 %v6732
    %6795 = vmatprep.subr.mxu0 0.0
    %6796 = vmatpush1.msra.mxu0 %v6733
    %6797 = vmatprep.subr.mxu0 0.0
    %6798 = vmatpush1.msra.mxu0 %v6734
    %6799 = vmatprep.subr.mxu0 0.0
    %6800 = vmatpush1.msra.mxu0 %v6735
    %6801 = vmatprep.subr.mxu0 0.0
    %6802 = vmatpush1.msra.mxu0 %v6736
    %6803 = vmatprep.subr.mxu0 0.0
    %6804 = vmatpush1.msra.mxu0 %v6737
    %6805 = vmatprep.subr.mxu0 0.0
    %6806 = vmatpush1.msra.mxu0 %v6738
    %6807 = vmatprep.subr.mxu0 0.0
    %6808 = vmatpush1.msra.mxu0 %v6739
    %6809 = vmatprep.subr.mxu0 0.0
    %6810 = vmatpush1.msra.mxu0 %v6740
    %6811 = vmatprep.subr.mxu0 0.0
    %6812 = vmatpush1.msra.mxu0 %v6741
    %6813 = vmatprep.subr.mxu0 0.0
    %6814 = vmatpush1.msra.mxu0 %v6742
    %6815 = vmatprep.subr.mxu0 0.0
    %6816 = vmatpush1.msra.mxu0 %v6743
    %6817 = vmatprep.subr.mxu0 0.0
    %6818 = vmatpush1.msra.mxu0 %v6744
    %6819 = vmatprep.subr.mxu0 0.0
    %6820 = vmatpush1.msra.mxu0 %v6745
    %6821 = vmatprep.subr.mxu0 0.0
    %6822 = vmatpush1.msra.mxu0 %v6746
    %6823 = vmatprep.subr.mxu0 0.0
    %6824 = vmatpush1.msra.mxu0 %v6747
    %6825 = vmatprep.subr.mxu0 0.0
    %6826 = vmatpush1.msra.mxu0 %v6748
    %6827 = vmatprep.subr.mxu0 0.0
    %6828 = vmatpush1.msra.mxu0 %v6749
    %6829 = vmatprep.subr.mxu0 0.0
    %6830 = vmatpush1.msra.mxu0 %v6750
    %6831 = vmatprep.subr.mxu0 0.0
    %6832 = vmatpush1.msra.mxu0 %v6751
    %6833 = vmatprep.subr.mxu0 0.0
    %6834 = vmatpush1.msra.mxu0 %v6752
    %6835 = vmatprep.subr.mxu0 0.0
    %6836 = vmatpush1.msra.mxu0 %v6753
    %6837 = vmatprep.subr.mxu0 0.0
    %6838 = vmatpush1.msra.mxu0 %v6754
    %6839 = vmatprep.subr.mxu0 0.0
    %6840 = vmatpush1.msra.mxu0 %v6755
    %6841 = vmatprep.subr.mxu0 0.0
    %6842 = vmatpush1.msra.mxu0 %v6756
    %6843 = vmatprep.subr.mxu0 0.0
    %6844 = vmatpush1.msra.mxu0 %v6757
    %6845 = vmatprep.subr.mxu0 0.0
    %6846 = vmatpush1.msra.mxu0 %v6758
    %6847 = vmatprep.mubr.f32.mxu0 %v6569
    %6848 = vmatmul.mubr.f32.gmra.mrb[0].mxu0 %v6415
    %v6849 = vpop.f32.mrb[0].mxu0
    %v6850 = vadd.f32 %v6781, %v6849
    %v6851 = vpop.f32.mrb[0].mxu0
    %6852 = vdwg.mxu0
    %6853 = vmatprep.subr.mxu0 0.0
    %6854 = vmatpush1.msra.mxu0 %v6759
    %6855 = vmatprep.subr.mxu0 0.0
    %6856 = vmatpush1.msra.mxu0 %v6760
    %6857 = vmatprep.subr.mxu0 0.0
    %6858 = vmatpush1.msra.mxu0 %v6761
    %6859 = vmatprep.subr.mxu0 0.0
    %6860 = vmatpush1.msra.mxu0 %v6762
    %6861 = vmatprep.subr.mxu0 0.0
    %6862 = vmatpush1.msra.mxu0 %v6763
    %6863 = vmatprep.subr.mxu0 0.0
    %6864 = vmatpush1.msra.mxu0 %v6764
    %6865 = vmatprep.subr.mxu0 0.0
    %6866 = vmatpush1.msra.mxu0 %v6765
    %6867 = vmatprep.subr.mxu0 0.0
    %6868 = vmatpush1.msra.mxu0 %v6766
    %6869 = vmatprep.subr.mxu0 0.0
    %6870 = vmatpush1.msra.mxu0 %v6767
    %6871 = vmatprep.subr.mxu0 0.0
    %6872 = vmatpush1.msra.mxu0 %v6768
    %6873 = vmatprep.subr.mxu0 0.0
    %6874 = vmatpush1.msra.mxu0 %v6769
    %6875 = vmatprep.subr.mxu0 0.0
    %6876 = vmatpush1.msra.mxu0 %v6770
    %6877 = vmatprep.subr.mxu0 0.0
    %6878 = vmatpush1.msra.mxu0 %v6771
    %6879 = vmatprep.subr.mxu0 0.0
    %6880 = vmatpush1.msra.mxu0 %v6772
    %6881 = vmatprep.subr.mxu0 0.0
    %6882 = vmatpush1.msra.mxu0 %v6773
    %6883 = vmatprep.subr.mxu0 0.0
    %6884 = vmatpush1.msra.mxu0 %v6774
    %6885 = vmatprep.subr.mxu0 0.0
    %6886 = vmatpush1.msra.mxu0 0.0
    %6887 = vmatprep.subr.mxu0 0.0
    %6888 = vmatpush1.msra.mxu0 0.0
    %6889 = vmatprep.subr.mxu0 0.0
    %6890 = vmatpush1.msra.mxu0 0.0
    %6891 = vmatprep.subr.mxu0 0.0
    %6892 = vmatpush1.msra.mxu0 0.0
    %6893 = vmatprep.subr.mxu0 0.0
    %6894 = vmatpush1.msra.mxu0 0.0
    %6895 = vmatprep.subr.mxu0 0.0
    %6896 = vmatpush1.msra.mxu0 0.0
    %6897 = vmatprep.subr.mxu0 0.0
    %6898 = vmatpush1.msra.mxu0 0.0
    %6899 = vmatprep.subr.mxu0 0.0
    %6900 = vmatpush1.msra.mxu0 0.0
    %6901 = vmatprep.subr.mxu0 0.0
    %6902 = vmatpush1.msra.mxu0 0.0
    %6903 = vmatprep.subr.mxu0 0.0
    %6904 = vmatpush1.msra.mxu0 0.0
    %6905 = vmatprep.subr.mxu0 0.0
    %6906 = vmatpush1.msra.mxu0 0.0
    %6907 = vmatprep.subr.mxu0 0.0
    %6908 = vmatpush1.msra.mxu0 0.0
    %6909 = vmatprep.subr.mxu0 0.0
    %6910 = vmatpush1.msra.mxu0 0.0
    %6911 = vmatprep.subr.mxu0 0.0
    %6912 = vmatpush1.msra.mxu0 0.0
    %6913 = vmatprep.subr.mxu0 0.0
    %6914 = vmatpush1.msra.mxu0 0.0
    %6915 = vmatprep.subr.mxu0 0.0
    %6916 = vmatpush1.msra.mxu0 0.0
    %6917 = vmatprep.mubr.f32.mxu0 0.0
    %6918 = vmatmul.mubr.f32.gmra.mrb[0].mxu0 %v6723
    %v6919 = vpop.f32.mrb[0].mxu0
    %v6920 = vadd.f32 %v6850, %v6919
    %v6921 = vpop.f32.mrb[0].mxu0
    %6922 = vdwg.mxu0
    %v6923 = vadd.f32 %v5714, %v6920
    %s6924 = scalar_lea.vmem [#allocation18], 3
    %v6925 = vld [vmem:[%s6924] sm:$0x1]
    %s6926 = scalar_lea.vmem [#allocation19], 3
    %v6927 = vld [vmem:[%s6926] sm:$0x1]
    %6928 = vadd.xlane.f32.xlu0 %v6923
    %v6929 = vpop.xlane.xlu0 %6928
    %v6930 = vmul.f32 %v6923, %v6923
    %6931 = vadd.xlane.f32.xlu0 %v6930
    %v6932 = vpop.xlane.xlu0 %6931
    %v6933 = vmul.f32 %v6929, 0.033333335
    %v6934 = vmul.f32 %v6932, 0.033333335
    %v6935 = vmul.f32 %v6933, %v6933
    %v6936 = vsub.f32 %v6934, %v6935
    %v6937 = vmax.f32 %v6936, 0.0
    %v6938 = vsub.f32 %v6923, %v6933
    %v6939 = vadd.f32 %v6937, 1e-05
    %v6940 = vrsqrt.pop %v6939
    %v6941 = vmul.f32 %v6938, %v6940
    %v6943 = vlaneseq
    %v6944 = vshrl.u32 %v6943, 7
    %v6945 = vsub.s32 0, %v6944
    %v6946 = vrot.slane %v6925, %v6945
    %v6948 = vmul.f32 %v6941, %v6946
    %v6950 = vlaneseq
    %v6951 = vshrl.u32 %v6950, 7
    %v6952 = vsub.s32 0, %v6951
    %v6953 = vrot.slane %v6927, %v6952
    %v6955 = vadd.f32 %v6948, %v6953
    %s6956 = scalar_lea.vmem [#allocation21], 1536
    %v6957 = vld [vmem:[%s6956] sm:$0xff]
    %v6958 = vld [vmem:[%s6956 + $0x8] sm:$0xff]
    %v6959 = vld [vmem:[%s6956 + $0x10] sm:$0xff]
    %v6960 = vld [vmem:[%s6956 + $0x18] sm:$0xff]
    %v6961 = vld [vmem:[%s6956 + $0x20] sm:$0xff]
    %v6962 = vld [vmem:[%s6956 + $0x28] sm:$0xff]
    %v6963 = vld [vmem:[%s6956 + $0x30] sm:$0xff]
    %v6964 = vld [vmem:[%s6956 + $0x38] sm:$0xff]
    %v6965 = vld [vmem:[%s6956 + $0x40] sm:$0xff]
    %v6966 = vld [vmem:[%s6956 + $0x48] sm:$0xff]
    %v6967 = vld [vmem:[%s6956 + $0x50] sm:$0xff]
    %v6968 = vld [vmem:[%s6956 + $0x58] sm:$0xff]
    %v6969 = vld [vmem:[%s6956 + $0x60] sm:$0xff]
    %v6970 = vld [vmem:[%s6956 + $0x68] sm:$0xff]
    %v6971 = vld [vmem:[%s6956 + $0x70] sm:$0xff]
    %v6972 = vld [vmem:[%s6956 + $0x78] sm:$0xff]
    %v6973 = vld [vmem:[%s6956 + $0x80] sm:$0xff]
    %v6974 = vld [vmem:[%s6956 + $0x88] sm:$0xff]
    %v6975 = vld [vmem:[%s6956 + $0x90] sm:$0xff]
    %v6976 = vld [vmem:[%s6956 + $0x98] sm:$0xff]
    %v6977 = vld [vmem:[%s6956 + $0xa0] sm:$0xff]
    %v6978 = vld [vmem:[%s6956 + $0xa8] sm:$0xff]
    %v6979 = vld [vmem:[%s6956 + $0xb0] sm:$0xff]
    %v6980 = vld [vmem:[%s6956 + $0xb8] sm:$0xff]
    %v6981 = vld [vmem:[%s6956 + $0xc0] sm:$0xff]
    %v6982 = vld [vmem:[%s6956 + $0xc8] sm:$0xff]
    %v6983 = vld [vmem:[%s6956 + $0xd0] sm:$0xff]
    %v6984 = vld [vmem:[%s6956 + $0xd8] sm:$0xff]
    %v6985 = vld [vmem:[%s6956 + $0xe0] sm:$0xff]
    %v6986 = vld [vmem:[%s6956 + $0xe8] sm:$0xff]
    %v6987 = vld [vmem:[%s6956 + $0xf0] sm:$0xff]
    %v6988 = vld [vmem:[%s6956 + $0xf8] sm:$0xff]
    %v6989 = vld [vmem:[%s6956 + $0x100] sm:$0xff]
    %v6990 = vld [vmem:[%s6956 + $0x108] sm:$0xff]
    %v6991 = vld [vmem:[%s6956 + $0x110] sm:$0xff]
    %v6992 = vld [vmem:[%s6956 + $0x118] sm:$0xff]
    %v6993 = vld [vmem:[%s6956 + $0x120] sm:$0xff]
    %v6994 = vld [vmem:[%s6956 + $0x128] sm:$0xff]
    %v6995 = vld [vmem:[%s6956 + $0x130] sm:$0xff]
    %v6996 = vld [vmem:[%s6956 + $0x138] sm:$0xff]
    %v6997 = vld [vmem:[%s6956 + $0x140] sm:$0xff]
    %v6998 = vld [vmem:[%s6956 + $0x148] sm:$0xff]
    %v6999 = vld [vmem:[%s6956 + $0x150] sm:$0xff]
    %v7000 = vld [vmem:[%s6956 + $0x158] sm:$0xff]
    %v7001 = vld [vmem:[%s6956 + $0x160] sm:$0xff]
    %v7002 = vld [vmem:[%s6956 + $0x168] sm:$0xff]
    %v7003 = vld [vmem:[%s6956 + $0x170] sm:$0xff]
    %v7004 = vld [vmem:[%s6956 + $0x178] sm:$0xff]
    %v7005 = vld [vmem:[%s6956 + $0x180] sm:$0xff]
    %v7006 = vld [vmem:[%s6956 + $0x188] sm:$0xff]
    %v7007 = vld [vmem:[%s6956 + $0x190] sm:$0xff]
    %v7008 = vld [vmem:[%s6956 + $0x198] sm:$0xff]
    %v7009 = vld [vmem:[%s6956 + $0x1a0] sm:$0xff]
    %v7010 = vld [vmem:[%s6956 + $0x1a8] sm:$0xff]
    %v7011 = vld [vmem:[%s6956 + $0x1b0] sm:$0xff]
    %v7012 = vld [vmem:[%s6956 + $0x1b8] sm:$0xff]
    %v7013 = vld [vmem:[%s6956 + $0x1c0] sm:$0xff]
    %v7014 = vld [vmem:[%s6956 + $0x1c8] sm:$0xff]
    %v7015 = vld [vmem:[%s6956 + $0x1d0] sm:$0xff]
    %v7016 = vld [vmem:[%s6956 + $0x1d8] sm:$0xff]
    %v7017 = vld [vmem:[%s6956 + $0x1e0] sm:$0xff]
    %v7018 = vld [vmem:[%s6956 + $0x1e8] sm:$0xff]
    %v7019 = vld [vmem:[%s6956 + $0x1f0] sm:$0xff]
    %v7020 = vld [vmem:[%s6956 + $0x1f8] sm:$0xff]
    %s7021 = scalar_lea.vmem [#allocation22], 12
    %v7022 = vld [vmem:[%s7021] sm:$0xf]
    %v7024 = vlaneseq
    %v7025 = vshrl.u32 %v7024, 7
    %v7026 = vsub.s32 0, %v7025
    %v7027 = vrot.slane %v7022, %v7026
    %v7028 = vlaneseq
    %v7029 = vshrl.u32 %v7028, 7
    %v7030 = vsub.s32 1, %v7029
    %v7031 = vrot.slane %v7022, %v7030
    %v7032 = vlaneseq
    %v7033 = vshrl.u32 %v7032, 7
    %v7034 = vsub.s32 2, %v7033
    %v7035 = vrot.slane %v7022, %v7034
    %v7036 = vlaneseq
    %v7037 = vshrl.u32 %v7036, 7
    %v7038 = vsub.s32 3, %v7037
    %v7039 = vrot.slane %v7022, %v7038
    %7044 = vmatprep.subr.mxu0 %v6958
    %7045 = vmatpush1.msra.mxu0 %v6957
    %7046 = vmatprep.subr.mxu0 %v6962
    %7047 = vmatpush1.msra.mxu0 %v6961
    %7048 = vmatprep.subr.mxu0 %v6966
    %7049 = vmatpush1.msra.mxu0 %v6965
    %7050 = vmatprep.subr.mxu0 %v6970
    %7051 = vmatpush1.msra.mxu0 %v6969
    %7052 = vmatprep.subr.mxu0 %v6974
    %7053 = vmatpush1.msra.mxu0 %v6973
    %7054 = vmatprep.subr.mxu0 %v6978
    %7055 = vmatpush1.msra.mxu0 %v6977
    %7056 = vmatprep.subr.mxu0 %v6982
    %7057 = vmatpush1.msra.mxu0 %v6981
    %7058 = vmatprep.subr.mxu0 %v6986
    %7059 = vmatpush1.msra.mxu0 %v6985
    %7060 = vmatprep.subr.mxu0 %v6990
    %7061 = vmatpush1.msra.mxu0 %v6989
    %7062 = vmatprep.subr.mxu0 %v6994
    %7063 = vmatpush1.msra.mxu0 %v6993
    %7064 = vmatprep.subr.mxu0 %v6998
    %7065 = vmatpush1.msra.mxu0 %v6997
    %7066 = vmatprep.subr.mxu0 %v7002
    %7067 = vmatpush1.msra.mxu0 %v7001
    %7068 = vmatprep.subr.mxu0 %v7006
    %7069 = vmatpush1.msra.mxu0 %v7005
    %7070 = vmatprep.subr.mxu0 %v7010
    %7071 = vmatpush1.msra.mxu0 %v7009
    %7072 = vmatprep.subr.mxu0 %v7014
    %7073 = vmatpush1.msra.mxu0 %v7013
    %7074 = vmatprep.subr.mxu0 %v7018
    %7075 = vmatpush1.msra.mxu0 %v7017
    %7076 = vmatprep.subr.mxu0 0.0
    %7077 = vmatpush1.msra.mxu0 0.0
    %7078 = vmatprep.subr.mxu0 0.0
    %7079 = vmatpush1.msra.mxu0 0.0
    %7080 = vmatprep.subr.mxu0 0.0
    %7081 = vmatpush1.msra.mxu0 0.0
    %7082 = vmatprep.subr.mxu0 0.0
    %7083 = vmatpush1.msra.mxu0 0.0
    %7084 = vmatprep.subr.mxu0 0.0
    %7085 = vmatpush1.msra.mxu0 0.0
    %7086 = vmatprep.subr.mxu0 0.0
    %7087 = vmatpush1.msra.mxu0 0.0
    %7088 = vmatprep.subr.mxu0 0.0
    %7089 = vmatpush1.msra.mxu0 0.0
    %7090 = vmatprep.subr.mxu0 0.0
    %7091 = vmatpush1.msra.mxu0 0.0
    %7092 = vmatprep.subr.mxu0 0.0
    %7093 = vmatpush1.msra.mxu0 0.0
    %7094 = vmatprep.subr.mxu0 0.0
    %7095 = vmatpush1.msra.mxu0 0.0
    %7096 = vmatprep.subr.mxu0 0.0
    %7097 = vmatpush1.msra.mxu0 0.0
    %7098 = vmatprep.subr.mxu0 0.0
    %7099 = vmatpush1.msra.mxu0 0.0
    %7100 = vmatprep.subr.mxu0 0.0
    %7101 = vmatpush1.msra.mxu0 0.0
    %7102 = vmatprep.subr.mxu0 0.0
    %7103 = vmatpush1.msra.mxu0 0.0
    %7104 = vmatprep.subr.mxu0 0.0
    %7105 = vmatpush1.msra.mxu0 0.0
    %7106 = vmatprep.subr.mxu0 0.0
    %7107 = vmatpush1.msra.mxu0 0.0
    %7108 = vmatprep.mubr.f32.mxu0 0.0
    %7109 = vmatmul.mubr.f32.gmra.mrb[0].mxu0 %v6955
    %v7110 = vpop.f32.mrb[0].mxu0
    %v7111 = vadd.f32 %v7027, %v7110
    %v7112 = vpop.f32.mrb[0].mxu0
    %v7113 = vadd.f32 %v7031, %v7112
    %7114 = vdwg.mxu0
    %7115 = vmatprep.subr.mxu0 %v6960
    %7116 = vmatpush1.msra.mxu0 %v6959
    %7117 = vmatprep.subr.mxu0 %v6964
    %7118 = vmatpush1.msra.mxu0 %v6963
    %7119 = vmatprep.subr.mxu0 %v6968
    %7120 = vmatpush1.msra.mxu0 %v6967
    %7121 = vmatprep.subr.mxu0 %v6972
    %7122 = vmatpush1.msra.mxu0 %v6971
    %7123 = vmatprep.subr.mxu0 %v6976
    %7124 = vmatpush1.msra.mxu0 %v6975
    %7125 = vmatprep.subr.mxu0 %v6980
    %7126 = vmatpush1.msra.mxu0 %v6979
    %7127 = vmatprep.subr.mxu0 %v6984
    %7128 = vmatpush1.msra.mxu0 %v6983
    %7129 = vmatprep.subr.mxu0 %v6988
    %7130 = vmatpush1.msra.mxu0 %v6987
    %7131 = vmatprep.subr.mxu0 %v6992
    %7132 = vmatpush1.msra.mxu0 %v6991
    %7133 = vmatprep.subr.mxu0 %v6996
    %7134 = vmatpush1.msra.mxu0 %v6995
    %7135 = vmatprep.subr.mxu0 %v7000
    %7136 = vmatpush1.msra.mxu0 %v6999
    %7137 = vmatprep.subr.mxu0 %v7004
    %7138 = vmatpush1.msra.mxu0 %v7003
    %7139 = vmatprep.subr.mxu0 %v7008
    %7140 = vmatpush1.msra.mxu0 %v7007
    %7141 = vmatprep.subr.mxu0 %v7012
    %7142 = vmatpush1.msra.mxu0 %v7011
    %7143 = vmatprep.subr.mxu0 %v7016
    %7144 = vmatpush1.msra.mxu0 %v7015
    %7145 = vmatprep.subr.mxu0 %v7020
    %7146 = vmatpush1.msra.mxu0 %v7019
    %7147 = vmatprep.subr.mxu0 0.0
    %7148 = vmatpush1.msra.mxu0 0.0
    %7149 = vmatprep.subr.mxu0 0.0
    %7150 = vmatpush1.msra.mxu0 0.0
    %7151 = vmatprep.subr.mxu0 0.0
    %7152 = vmatpush1.msra.mxu0 0.0
    %7153 = vmatprep.subr.mxu0 0.0
    %7154 = vmatpush1.msra.mxu0 0.0
    %7155 = vmatprep.subr.mxu0 0.0
    %7156 = vmatpush1.msra.mxu0 0.0
    %7157 = vmatprep.subr.mxu0 0.0
    %7158 = vmatpush1.msra.mxu0 0.0
    %7159 = vmatprep.subr.mxu0 0.0
    %7160 = vmatpush1.msra.mxu0 0.0
    %7161 = vmatprep.subr.mxu0 0.0
    %7162 = vmatpush1.msra.mxu0 0.0
    %7163 = vmatprep.subr.mxu0 0.0
    %7164 = vmatpush1.msra.mxu0 0.0
    %7165 = vmatprep.subr.mxu0 0.0
    %7166 = vmatpush1.msra.mxu0 0.0
    %7167 = vmatprep.subr.mxu0 0.0
    %7168 = vmatpush1.msra.mxu0 0.0
    %7169 = vmatprep.subr.mxu0 0.0
    %7170 = vmatpush1.msra.mxu0 0.0
    %7171 = vmatprep.subr.mxu0 0.0
    %7172 = vmatpush1.msra.mxu0 0.0
    %7173 = vmatprep.subr.mxu0 0.0
    %7174 = vmatpush1.msra.mxu0 0.0
    %7175 = vmatprep.subr.mxu0 0.0
    %7176 = vmatpush1.msra.mxu0 0.0
    %7177 = vmatprep.subr.mxu0 0.0
    %7178 = vmatpush1.msra.mxu0 0.0
    %7179 = vmatprep.mubr.f32.mxu0 0.0
    %7180 = vmatmul.mubr.f32.gmra.mrb[0].mxu0 %v6955
    %v7181 = vpop.f32.mrb[0].mxu0
    %v7182 = vadd.f32 %v7035, %v7181
    %v7183 = vpop.f32.mrb[0].mxu0
    %v7184 = vadd.f32 %v7039, %v7183
    %7185 = vdwg.mxu0
    %v7186 = vmax.f32 %v7111, 0.0
    %v7187 = vmax.f32 %v7113, 0.0
    %v7188 = vmax.f32 %v7182, 0.0
    %v7189 = vmax.f32 %v7184, 0.0
    %s7190 = scalar_lea.vmem [#allocation24], 1536
    %v7191 = vld [vmem:[%s7190] sm:$0xff]
    %v7192 = vld [vmem:[%s7190 + $0x8] sm:$0xff]
    %v7193 = vld [vmem:[%s7190 + $0x10] sm:$0xff]
    %v7194 = vld [vmem:[%s7190 + $0x18] sm:$0xff]
    %v7195 = vld [vmem:[%s7190 + $0x20] sm:$0xff]
    %v7196 = vld [vmem:[%s7190 + $0x28] sm:$0xff]
    %v7197 = vld [vmem:[%s7190 + $0x30] sm:$0xff]
    %v7198 = vld [vmem:[%s7190 + $0x38] sm:$0xff]
    %v7199 = vld [vmem:[%s7190 + $0x40] sm:$0xff]
    %v7200 = vld [vmem:[%s7190 + $0x48] sm:$0xff]
    %v7201 = vld [vmem:[%s7190 + $0x50] sm:$0xff]
    %v7202 = vld [vmem:[%s7190 + $0x58] sm:$0xff]
    %v7203 = vld [vmem:[%s7190 + $0x60] sm:$0xff]
    %v7204 = vld [vmem:[%s7190 + $0x68] sm:$0xff]
    %v7205 = vld [vmem:[%s7190 + $0x70] sm:$0xff]
    %v7206 = vld [vmem:[%s7190 + $0x78] sm:$0xff]
    %v7207 = vld [vmem:[%s7190 + $0x80] sm:$0xff]
    %v7208 = vld [vmem:[%s7190 + $0x88] sm:$0xff]
    %v7209 = vld [vmem:[%s7190 + $0x90] sm:$0xff]
    %v7210 = vld [vmem:[%s7190 + $0x98] sm:$0xff]
    %v7211 = vld [vmem:[%s7190 + $0xa0] sm:$0xff]
    %v7212 = vld [vmem:[%s7190 + $0xa8] sm:$0xff]
    %v7213 = vld [vmem:[%s7190 + $0xb0] sm:$0xff]
    %v7214 = vld [vmem:[%s7190 + $0xb8] sm:$0xff]
    %v7215 = vld [vmem:[%s7190 + $0xc0] sm:$0xff]
    %v7216 = vld [vmem:[%s7190 + $0xc8] sm:$0xff]
    %v7217 = vld [vmem:[%s7190 + $0xd0] sm:$0xff]
    %v7218 = vld [vmem:[%s7190 + $0xd8] sm:$0xff]
    %v7219 = vld [vmem:[%s7190 + $0xe0] sm:$0xff]
    %v7220 = vld [vmem:[%s7190 + $0xe8] sm:$0xff]
    %v7221 = vld [vmem:[%s7190 + $0xf0] sm:$0xff]
    %v7222 = vld [vmem:[%s7190 + $0xf8] sm:$0xff]
    %v7223 = vld [vmem:[%s7190 + $0x100] sm:$0xff]
    %v7224 = vld [vmem:[%s7190 + $0x108] sm:$0xff]
    %v7225 = vld [vmem:[%s7190 + $0x110] sm:$0xff]
    %v7226 = vld [vmem:[%s7190 + $0x118] sm:$0xff]
    %v7227 = vld [vmem:[%s7190 + $0x120] sm:$0xff]
    %v7228 = vld [vmem:[%s7190 + $0x128] sm:$0xff]
    %v7229 = vld [vmem:[%s7190 + $0x130] sm:$0xff]
    %v7230 = vld [vmem:[%s7190 + $0x138] sm:$0xff]
    %v7231 = vld [vmem:[%s7190 + $0x140] sm:$0xff]
    %v7232 = vld [vmem:[%s7190 + $0x148] sm:$0xff]
    %v7233 = vld [vmem:[%s7190 + $0x150] sm:$0xff]
    %v7234 = vld [vmem:[%s7190 + $0x158] sm:$0xff]
    %v7235 = vld [vmem:[%s7190 + $0x160] sm:$0xff]
    %v7236 = vld [vmem:[%s7190 + $0x168] sm:$0xff]
    %v7237 = vld [vmem:[%s7190 + $0x170] sm:$0xff]
    %v7238 = vld [vmem:[%s7190 + $0x178] sm:$0xff]
    %v7239 = vld [vmem:[%s7190 + $0x180] sm:$0xff]
    %v7240 = vld [vmem:[%s7190 + $0x188] sm:$0xff]
    %v7241 = vld [vmem:[%s7190 + $0x190] sm:$0xff]
    %v7242 = vld [vmem:[%s7190 + $0x198] sm:$0xff]
    %v7243 = vld [vmem:[%s7190 + $0x1a0] sm:$0xff]
    %v7244 = vld [vmem:[%s7190 + $0x1a8] sm:$0xff]
    %v7245 = vld [vmem:[%s7190 + $0x1b0] sm:$0xff]
    %v7246 = vld [vmem:[%s7190 + $0x1b8] sm:$0xff]
    %v7247 = vld [vmem:[%s7190 + $0x1c0] sm:$0xff]
    %v7248 = vld [vmem:[%s7190 + $0x1c8] sm:$0xff]
    %v7249 = vld [vmem:[%s7190 + $0x1d0] sm:$0xff]
    %v7250 = vld [vmem:[%s7190 + $0x1d8] sm:$0xff]
    %v7251 = vld [vmem:[%s7190 + $0x1e0] sm:$0xff]
    %v7252 = vld [vmem:[%s7190 + $0x1e8] sm:$0xff]
    %v7253 = vld [vmem:[%s7190 + $0x1f0] sm:$0xff]
    %v7254 = vld [vmem:[%s7190 + $0x1f8] sm:$0xff]
    %s7255 = scalar_lea.vmem [#allocation25], 3
    %v7256 = vld [vmem:[%s7255] sm:$0x1]
    %v7258 = vlaneseq
    %v7259 = vshrl.u32 %v7258, 7
    %v7260 = vsub.s32 0, %v7259
    %v7261 = vrot.slane %v7256, %v7260
    %7263 = vmatprep.subr.mxu0 0.0
    %7264 = vmatpush1.msra.mxu0 %v7191
    %7265 = vmatprep.subr.mxu0 0.0
    %7266 = vmatpush1.msra.mxu0 %v7192
    %7267 = vmatprep.subr.mxu0 0.0
    %7268 = vmatpush1.msra.mxu0 %v7193
    %7269 = vmatprep.subr.mxu0 0.0
    %7270 = vmatpush1.msra.mxu0 %v7194
    %7271 = vmatprep.subr.mxu0 0.0
    %7272 = vmatpush1.msra.mxu0 %v7195
    %7273 = vmatprep.subr.mxu0 0.0
    %7274 = vmatpush1.msra.mxu0 %v7196
    %7275 = vmatprep.subr.mxu0 0.0
    %7276 = vmatpush1.msra.mxu0 %v7197
    %7277 = vmatprep.subr.mxu0 0.0
    %7278 = vmatpush1.msra.mxu0 %v7198
    %7279 = vmatprep.subr.mxu0 0.0
    %7280 = vmatpush1.msra.mxu0 %v7199
    %7281 = vmatprep.subr.mxu0 0.0
    %7282 = vmatpush1.msra.mxu0 %v7200
    %7283 = vmatprep.subr.mxu0 0.0
    %7284 = vmatpush1.msra.mxu0 %v7201
    %7285 = vmatprep.subr.mxu0 0.0
    %7286 = vmatpush1.msra.mxu0 %v7202
    %7287 = vmatprep.subr.mxu0 0.0
    %7288 = vmatpush1.msra.mxu0 %v7203
    %7289 = vmatprep.subr.mxu0 0.0
    %7290 = vmatpush1.msra.mxu0 %v7204
    %7291 = vmatprep.subr.mxu0 0.0
    %7292 = vmatpush1.msra.mxu0 %v7205
    %7293 = vmatprep.subr.mxu0 0.0
    %7294 = vmatpush1.msra.mxu0 %v7206
    %7295 = vmatprep.subr.mxu0 0.0
    %7296 = vmatpush1.msra.mxu0 %v7207
    %7297 = vmatprep.subr.mxu0 0.0
    %7298 = vmatpush1.msra.mxu0 %v7208
    %7299 = vmatprep.subr.mxu0 0.0
    %7300 = vmatpush1.msra.mxu0 %v7209
    %7301 = vmatprep.subr.mxu0 0.0
    %7302 = vmatpush1.msra.mxu0 %v7210
    %7303 = vmatprep.subr.mxu0 0.0
    %7304 = vmatpush1.msra.mxu0 %v7211
    %7305 = vmatprep.subr.mxu0 0.0
    %7306 = vmatpush1.msra.mxu0 %v7212
    %7307 = vmatprep.subr.mxu0 0.0
    %7308 = vmatpush1.msra.mxu0 %v7213
    %7309 = vmatprep.subr.mxu0 0.0
    %7310 = vmatpush1.msra.mxu0 %v7214
    %7311 = vmatprep.subr.mxu0 0.0
    %7312 = vmatpush1.msra.mxu0 %v7215
    %7313 = vmatprep.subr.mxu0 0.0
    %7314 = vmatpush1.msra.mxu0 %v7216
    %7315 = vmatprep.subr.mxu0 0.0
    %7316 = vmatpush1.msra.mxu0 %v7217
    %7317 = vmatprep.subr.mxu0 0.0
    %7318 = vmatpush1.msra.mxu0 %v7218
    %7319 = vmatprep.subr.mxu0 0.0
    %7320 = vmatpush1.msra.mxu0 %v7219
    %7321 = vmatprep.subr.mxu0 0.0
    %7322 = vmatpush1.msra.mxu0 %v7220
    %7323 = vmatprep.subr.mxu0 0.0
    %7324 = vmatpush1.msra.mxu0 %v7221
    %7325 = vmatprep.subr.mxu0 0.0
    %7326 = vmatpush1.msra.mxu0 %v7222
    %7327 = vmatprep.mubr.f32.mxu0 %v7187
    %7328 = vmatmul.mubr.f32.gmra.mrb[0].mxu0 %v7186
    %v7329 = vpop.f32.mrb[0].mxu0
    %v7330 = vadd.f32 %v7261, %v7329
    %v7331 = vpop.f32.mrb[0].mxu0
    %7332 = vdwg.mxu0
    %7333 = vmatprep.subr.mxu0 0.0
    %7334 = vmatpush1.msra.mxu0 %v7223
    %7335 = vmatprep.subr.mxu0 0.0
    %7336 = vmatpush1.msra.mxu0 %v7224
    %7337 = vmatprep.subr.mxu0 0.0
    %7338 = vmatpush1.msra.mxu0 %v7225
    %7339 = vmatprep.subr.mxu0 0.0
    %7340 = vmatpush1.msra.mxu0 %v7226
    %7341 = vmatprep.subr.mxu0 0.0
    %7342 = vmatpush1.msra.mxu0 %v7227
    %7343 = vmatprep.subr.mxu0 0.0
    %7344 = vmatpush1.msra.mxu0 %v7228
    %7345 = vmatprep.subr.mxu0 0.0
    %7346 = vmatpush1.msra.mxu0 %v7229
    %7347 = vmatprep.subr.mxu0 0.0
    %7348 = vmatpush1.msra.mxu0 %v7230
    %7349 = vmatprep.subr.mxu0 0.0
    %7350 = vmatpush1.msra.mxu0 %v7231
    %7351 = vmatprep.subr.mxu0 0.0
    %7352 = vmatpush1.msra.mxu0 %v7232
    %7353 = vmatprep.subr.mxu0 0.0
    %7354 = vmatpush1.msra.mxu0 %v7233
    %7355 = vmatprep.subr.mxu0 0.0
    %7356 = vmatpush1.msra.mxu0 %v7234
    %7357 = vmatprep.subr.mxu0 0.0
    %7358 = vmatpush1.msra.mxu0 %v7235
    %7359 = vmatprep.subr.mxu0 0.0
    %7360 = vmatpush1.msra.mxu0 %v7236
    %7361 = vmatprep.subr.mxu0 0.0
    %7362 = vmatpush1.msra.mxu0 %v7237
    %7363 = vmatprep.subr.mxu0 0.0
    %7364 = vmatpush1.msra.mxu0 %v7238
    %7365 = vmatprep.subr.mxu0 0.0
    %7366 = vmatpush1.msra.mxu0 %v7239
    %7367 = vmatprep.subr.mxu0 0.0
    %7368 = vmatpush1.msra.mxu0 %v7240
    %7369 = vmatprep.subr.mxu0 0.0
    %7370 = vmatpush1.msra.mxu0 %v7241
    %7371 = vmatprep.subr.mxu0 0.0
    %7372 = vmatpush1.msra.mxu0 %v7242
    %7373 = vmatprep.subr.mxu0 0.0
    %7374 = vmatpush1.msra.mxu0 %v7243
    %7375 = vmatprep.subr.mxu0 0.0
    %7376 = vmatpush1.msra.mxu0 %v7244
    %7377 = vmatprep.subr.mxu0 0.0
    %7378 = vmatpush1.msra.mxu0 %v7245
    %7379 = vmatprep.subr.mxu0 0.0
    %7380 = vmatpush1.msra.mxu0 %v7246
    %7381 = vmatprep.subr.mxu0 0.0
    %7382 = vmatpush1.msra.mxu0 %v7247
    %7383 = vmatprep.subr.mxu0 0.0
    %7384 = vmatpush1.msra.mxu0 %v7248
    %7385 = vmatprep.subr.mxu0 0.0
    %7386 = vmatpush1.msra.mxu0 %v7249
    %7387 = vmatprep.subr.mxu0 0.0
    %7388 = vmatpush1.msra.mxu0 %v7250
    %7389 = vmatprep.subr.mxu0 0.0
    %7390 = vmatpush1.msra.mxu0 %v7251
    %7391 = vmatprep.subr.mxu0 0.0
    %7392 = vmatpush1.msra.mxu0 %v7252
    %7393 = vmatprep.subr.mxu0 0.0
    %7394 = vmatpush1.msra.mxu0 %v7253
    %7395 = vmatprep.subr.mxu0 0.0
    %7396 = vmatpush1.msra.mxu0 %v7254
    %7397 = vmatprep.mubr.f32.mxu0 %v7189
    %7398 = vmatmul.mubr.f32.gmra.mrb[0].mxu0 %v7188
    %v7399 = vpop.f32.mrb[0].mxu0
    %v7400 = vadd.f32 %v7330, %v7399
    %v7401 = vpop.f32.mrb[0].mxu0
    %7402 = vdwg.mxu0
    %v7403 = vadd.f32 %v6955, %v7400
    %s7404 = scalar_lea.vmem [#allocation27], 3
    %v7405 = vld [vmem:[%s7404] sm:$0x1]
    %s7406 = scalar_lea.vmem [#allocation28], 3
    %v7407 = vld [vmem:[%s7406] sm:$0x1]
    %7408 = vadd.xlane.f32.xlu0 %v7403
    %v7409 = vpop.xlane.xlu0 %7408
    %v7410 = vmul.f32 %v7403, %v7403
    %7411 = vadd.xlane.f32.xlu0 %v7410
    %v7412 = vpop.xlane.xlu0 %7411
    %v7413 = vmul.f32 %v7409, 0.033333335
    %v7414 = vmul.f32 %v7412, 0.033333335
    %v7415 = vmul.f32 %v7413, %v7413
    %v7416 = vsub.f32 %v7414, %v7415
    %v7417 = vmax.f32 %v7416, 0.0
    %v7418 = vsub.f32 %v7403, %v7413
    %v7419 = vadd.f32 %v7417, 1e-05
    %v7420 = vrsqrt.pop %v7419
    %v7421 = vmul.f32 %v7418, %v7420
    %v7423 = vlaneseq
    %v7424 = vshrl.u32 %v7423, 7
    %v7425 = vsub.s32 0, %v7424
    %v7426 = vrot.slane %v7405, %v7425
    %v7428 = vmul.f32 %v7421, %v7426
    %v7430 = vlaneseq
    %v7431 = vshrl.u32 %v7430, 7
    %v7432 = vsub.s32 0, %v7431
    %v7433 = vrot.slane %v7407, %v7432
    %v7435 = vadd.f32 %v7428, %v7433
    %v7436 = vld [vmem:[#allocation30] sm:$0xff]
    %v7437 = vld [vmem:[#allocation30 + $0x8] sm:$0xff]
    %v7438 = vld [vmem:[#allocation30 + $0x10] sm:$0xff]
    %v7439 = vld [vmem:[#allocation30 + $0x18] sm:$0xff]
    %v7440 = vld [vmem:[#allocation30 + $0x20] sm:$0xff]
    %v7441 = vld [vmem:[#allocation30 + $0x28] sm:$0xff]
    %v7442 = vld [vmem:[#allocation30 + $0x30] sm:$0xff]
    %v7443 = vld [vmem:[#allocation30 + $0x38] sm:$0xff]
    %v7444 = vld [vmem:[#allocation30 + $0x40] sm:$0xff]
    %v7445 = vld [vmem:[#allocation30 + $0x48] sm:$0xff]
    %v7446 = vld [vmem:[#allocation30 + $0x50] sm:$0xff]
    %v7447 = vld [vmem:[#allocation30 + $0x58] sm:$0xff]
    %v7448 = vld [vmem:[#allocation30 + $0x60] sm:$0xff]
    %v7449 = vld [vmem:[#allocation30 + $0x68] sm:$0xff]
    %v7450 = vld [vmem:[#allocation30 + $0x70] sm:$0xff]
    %v7451 = vld [vmem:[#allocation30 + $0x78] sm:$0xff]
    %v7452 = vld [vmem:[#allocation31] sm:$0x1]
    %v7454 = vlaneseq
    %v7455 = vshrl.u32 %v7454, 7
    %v7456 = vsub.s32 0, %v7455
    %v7457 = vrot.slane %v7452, %v7456
    %7459 = vmatprep.subr.mxu0 0.0
    %7460 = vmatpush1.msra.mxu0 %v7436
    %7461 = vmatprep.subr.mxu0 0.0
    %7462 = vmatpush1.msra.mxu0 %v7437
    %7463 = vmatprep.subr.mxu0 0.0
    %7464 = vmatpush1.msra.mxu0 %v7438
    %7465 = vmatprep.subr.mxu0 0.0
    %7466 = vmatpush1.msra.mxu0 %v7439
    %7467 = vmatprep.subr.mxu0 0.0
    %7468 = vmatpush1.msra.mxu0 %v7440
    %7469 = vmatprep.subr.mxu0 0.0
    %7470 = vmatpush1.msra.mxu0 %v7441
    %7471 = vmatprep.subr.mxu0 0.0
    %7472 = vmatpush1.msra.mxu0 %v7442
    %7473 = vmatprep.subr.mxu0 0.0
    %7474 = vmatpush1.msra.mxu0 %v7443
    %7475 = vmatprep.subr.mxu0 0.0
    %7476 = vmatpush1.msra.mxu0 %v7444
    %7477 = vmatprep.subr.mxu0 0.0
    %7478 = vmatpush1.msra.mxu0 %v7445
    %7479 = vmatprep.subr.mxu0 0.0
    %7480 = vmatpush1.msra.mxu0 %v7446
    %7481 = vmatprep.subr.mxu0 0.0
    %7482 = vmatpush1.msra.mxu0 %v7447
    %7483 = vmatprep.subr.mxu0 0.0
    %7484 = vmatpush1.msra.mxu0 %v7448
    %7485 = vmatprep.subr.mxu0 0.0
    %7486 = vmatpush1.msra.mxu0 %v7449
    %7487 = vmatprep.subr.mxu0 0.0
    %7488 = vmatpush1.msra.mxu0 %v7450
    %7489 = vmatprep.subr.mxu0 0.0
    %7490 = vmatpush1.msra.mxu0 %v7451
    %7491 = vmatprep.subr.mxu0 0.0
    %7492 = vmatpush1.msra.mxu0 0.0
    %7493 = vmatprep.subr.mxu0 0.0
    %7494 = vmatpush1.msra.mxu0 0.0
    %7495 = vmatprep.subr.mxu0 0.0
    %7496 = vmatpush1.msra.mxu0 0.0
    %7497 = vmatprep.subr.mxu0 0.0
    %7498 = vmatpush1.msra.mxu0 0.0
    %7499 = vmatprep.subr.mxu0 0.0
    %7500 = vmatpush1.msra.mxu0 0.0
    %7501 = vmatprep.subr.mxu0 0.0
    %7502 = vmatpush1.msra.mxu0 0.0
    %7503 = vmatprep.subr.mxu0 0.0
    %7504 = vmatpush1.msra.mxu0 0.0
    %7505 = vmatprep.subr.mxu0 0.0
    %7506 = vmatpush1.msra.mxu0 0.0
    %7507 = vmatprep.subr.mxu0 0.0
    %7508 = vmatpush1.msra.mxu0 0.0
    %7509 = vmatprep.subr.mxu0 0.0
    %7510 = vmatpush1.msra.mxu0 0.0
    %7511 = vmatprep.subr.mxu0 0.0
    %7512 = vmatpush1.msra.mxu0 0.0
    %7513 = vmatprep.subr.mxu0 0.0
    %7514 = vmatpush1.msra.mxu0 0.0
    %7515 = vmatprep.subr.mxu0 0.0
    %7516 = vmatpush1.msra.mxu0 0.0
    %7517 = vmatprep.subr.mxu0 0.0
    %7518 = vmatpush1.msra.mxu0 0.0
    %7519 = vmatprep.subr.mxu0 0.0
    %7520 = vmatpush1.msra.mxu0 0.0
    %7521 = vmatprep.subr.mxu0 0.0
    %7522 = vmatpush1.msra.mxu0 0.0
    %7523 = vmatprep.mubr.f32.mxu0 0.0
    %7524 = vmatmul.mubr.f32.gmra.mrb[0].mxu0 %v7435
    %v7525 = vpop.f32.mrb[0].mxu0
    %v7526 = vadd.f32 %v7457, %v7525
    %v7527 = vpop.f32.mrb[0].mxu0
    %7528 = vdwg.mxu0
    %7529 = vst [vmem:[%s22] sm:$0xff] %v7526
    // Predicated region
    $region174: #{model_forward.1} parent=1 // pred_check
      _
    $region175: #{model_forward.1} parent=1 // pred_check_branch
      %7531 = sbr.rel (0) target = $region177
    $region176: #{model_forward.1} parent=1 // pred_region
      _
    $region177: #{model_forward.1} parent=1 // pred_fallthru
      _
    // Predicated region
    $region178: #{model_forward.1} parent=1 // pred_check
      _
    $region179: #{model_forward.1} parent=1 // pred_check_branch
      %7533 = sbr.rel (0) target = $region181
    $region180: #{model_forward.1} parent=1 // pred_region
      _
    $region181: #{model_forward.1} parent=1 // pred_fallthru
      _
    %7534 = vsyncpa [#allocation3], 1
    %7535 = vsyncpa [#allocation5], 1
    %7536 = vsyncpa [#allocation8], 1
    %7537 = vsyncpa [#allocation11], 1
    %7538 = vsyncpa [#allocation14], 1
    %7539 = vsyncpa [#allocation17], 1
    %7540 = vsyncpa [#allocation20], 1
    %7541 = vsyncpa [#allocation23], 1
    %7542 = vsyncpa [#allocation26], 1
    %7543 = vsyncpa [#allocation29], 1
    %7544 = vsyncpa [#allocation32], 1

</llo_original>
